<compile_context>
chip_gen: v7x
topology: tpu7x:2x2x1
jax: 0.10.0
libtpu: 0.0.40
codegen_flags: <defaults>
</compile_context>

<pallas_src>
import functools
import math

import numpy as np
import jax
import jax.numpy as jnp
from jax.experimental import pallas as pl
from jax.experimental.pallas import tpu as pltpu


# ----------------------------------------------------------------------------
# Flat-layout geometry helpers
#   format A (encoder conv input):  grid (H+3) x (W+2), valid pixel (h,w) at (h+1)*(W+2)+(w+1)
#   format D (decoder convT input): grid (H+2) x (W+1), valid pixel (p,q) at p*(W+1)+q
# The extra bottom rows guarantee tap slices never run past the end of the buffer.
# ----------------------------------------------------------------------------
def _fmtA_rows(h, w):
    return (h + 3) * (w + 2)


def _fmtA_idx(h, w):
    wp = w + 2
    return lambda r, c: (r + 1) * wp + (c + 1)


def _fmtD_rows(h, w):
    return (h + 2) * (w + 1)


def _fmtD_idx(h, w):
    wd = w + 1
    return lambda r, c: r * wd + c


def _pool_mats(src_h, src_w, src_rs, src_rows, dst_idx, dst_rows):
    """4 selection matrices: 2x2 max-pool taps, scattered into the next layer's padded layout."""
    g = np.zeros((4, dst_rows, src_rows), np.float32)
    for p in range(src_h // 2):
        for q in range(src_w // 2):
            d = dst_idx(p, q)
            for i in range(2):
                for j in range(2):
                    g[i * 2 + j, d, (2 * p + i) * src_rs + (2 * q + j)] = 1.0
    return g


def _interleave_mats(hi, wi, dst_idx, dst_rows):
    """4 selection matrices: depth-to-space of the 4 convT phase outputs into the next layout."""
    src_rows = hi * (wi + 1)
    s = np.zeros((4, dst_rows, src_rows), np.float32)
    for a in range(2):
        for b in range(2):
            for p in range(hi):
                for q in range(wi):
                    s[a * 2 + b, dst_idx(2 * p + a, 2 * q + b), p * (wi + 1) + q] = 1.0
    return s


def build_selection_matrices(h=16, w=16, dtype=jnp.bfloat16):
    h1, w1 = h // 2, w // 2
    h2, w2 = h // 4, w // 4
    h3, w3 = h // 8, w // 8
    g1 = _pool_mats(h, w, w, h * w, _fmtA_idx(h1, w1), _fmtA_rows(h1, w1))
    g2 = _pool_mats(h1, w1, w1 + 2, h1 * (w1 + 2), _fmtA_idx(h2, w2), _fmtA_rows(h2, w2))
    g3 = _pool_mats(h2, w2, w2 + 2, h2 * (w2 + 2), _fmtD_idx(h3, w3), _fmtD_rows(h3, w3))
    s1 = _interleave_mats(h3, w3, _fmtD_idx(h2, w2), _fmtD_rows(h2, w2))
    s2 = _interleave_mats(h2, w2, _fmtD_idx(h1, w1), _fmtD_rows(h1, w1))
    s3 = _interleave_mats(h1, w1, lambda r, c: r * w + c, h * w)
    return tuple(jnp.asarray(m, dtype) for m in (g1, g2, g3, s1, s2, s3))


# ----------------------------------------------------------------------------
# In-kernel building blocks (all pure value ops: static slices + MXU matmuls + VPU epilogue)
# ----------------------------------------------------------------------------
def _conv3x3(a_pad, w_ref, b_ref, h, w):
    """3x3 conv (pad=1) on a format-A flat value; fused bias + ReLU.

    a_pad: ((h+3)*(w+2), Cin) f32     w_ref: (9, Cin, Cout) bf16    b_ref: (1, Cout) f32
    returns (h*(w+2), Cout) f32, junk in the last 2 columns of each conceptual row.
    """
    wp = w + 2
    m = h * wp
    acc = None
    for ky in range(3):
        for kx in range(3):
            off = ky * wp + kx
            tap = a_pad[off:off + m, :].astype(jnp.bfloat16)
            t = jnp.dot(tap, w_ref[ky * 3 + kx], preferred_element_type=jnp.float32)
            acc = t if acc is None else acc + t
    return jnp.maximum(acc + b_ref[...], 0.0)


def _pool_max(v, g_ref):
    """2x2 max-pool + scatter into the next layer's padded layout via 0/1 selection matmuls."""
    vb = v.astype(jnp.bfloat16)
    out = jnp.dot(g_ref[0], vb, preferred_element_type=jnp.float32)
    for k in range(1, 4):
        out = jnp.maximum(out, jnp.dot(g_ref[k], vb, preferred_element_type=jnp.float32))
    return out


# phase (a, b) -> list of ((dy, dx) input tap, ConvTranspose kernel index ky*3+kx)
_PHASE_TAPS = {
    (0, 0): [((0, 0), 4)],
    (0, 1): [((0, 0), 5), ((0, 1), 3)],
    (1, 0): [((0, 0), 7), ((1, 0), 1)],
    (1, 1): [((0, 0), 8), ((0, 1), 6), ((1, 0), 2), ((1, 1), 0)],
}


def _conv_transpose_s2(d_pad, w_ref, b_ref, hi, wi, relu):
    """4-phase ConvTranspose2d(k=3, s=2, p=1, op=1); fused bias (+ReLU).

    d_pad: ((hi+2)*(wi+1), Cin) f32 format-D value.
    Returns 4 phase outputs [(0,0),(0,1),(1,0),(1,1)], each (hi*(wi+1), Cout) f32.
    """
    wd = wi + 1
    m = hi * wd
    taps = {}
    for dy in range(2):
        for dx in range(2):
            off = dy * wd + dx
            taps[(dy, dx)] = d_pad[off:off + m, :].astype(jnp.bfloat16)
    ys = []
    for ab in ((0, 0), (0, 1), (1, 0), (1, 1)):
        acc = None
        for dydx, kidx in _PHASE_TAPS[ab]:
            t = jnp.dot(taps[dydx], w_ref[kidx], preferred_element_type=jnp.float32)
            acc = t if acc is None else acc + t
        acc = acc + b_ref[...]
        if relu:
            acc = jnp.maximum(acc, 0.0)
        ys.append(acc)
    return ys


def _assemble(ys, s_ref):
    """Depth-to-space: interleave the 4 phase outputs into the next layer's flat layout."""
    out = jnp.dot(s_ref[0], ys[0].astype(jnp.bfloat16), preferred_element_type=jnp.float32)
    for k in range(1, 4):
        out += jnp.dot(s_ref[k], ys[k].astype(jnp.bfloat16),
                       preferred_element_type=jnp.float32)
    return out


# ----------------------------------------------------------------------------
# The fused kernel: whole EncoderDecoder for one batch element per grid step
# ----------------------------------------------------------------------------
def _fused_encdec_kernel(x_ref,
                         w1_ref, b1_ref, w2_ref, b2_ref, w3_ref, b3_ref,
                         wd1_ref, bd1_ref, wd2_ref, bd2_ref, wd3_ref, bd3_ref,
                         g1_ref, g2_ref, g3_ref, s1_ref, s2_ref, s3_ref,
                         out_ref, *, h, w):
    # ---------------- encoder ----------------
    x = x_ref[0]                                                     # (h*w, 9*Cin) bf16 im2col
    a1 = jnp.dot(x, w1_ref[...], preferred_element_type=jnp.float32) + b1_ref[...]
    a1 = jnp.maximum(a1, 0.0)                                        # (256, 64)
    a2_in = _pool_max(a1, g1_ref)                                    # (110, 64)  format A (8x8)
    a2 = _conv3x3(a2_in, w2_ref, b2_ref, h // 2, w // 2)             # (80, 128)
    a3_in = _pool_max(a2, g2_ref)                                    # (42, 128)  format A (4x4)
    a3 = _conv3x3(a3_in, w3_ref, b3_ref, h // 4, w // 4)             # (24, 256)
    d1_in = _pool_max(a3, g3_ref)                                    # (12, 256)  format D (2x2)
    # ---------------- decoder ----------------
    y1 = _conv_transpose_s2(d1_in, wd1_ref, bd1_ref, h // 8, w // 8, relu=True)
    d2_in = _assemble(y1, s1_ref)                                    # (30, 128)  format D (4x4)
    y2 = _conv_transpose_s2(d2_in, wd2_ref, bd2_ref, h // 4, w // 4, relu=True)
    d3_in = _assemble(y2, s2_ref)                                    # (90, 64)   format D (8x8)
    y3 = _conv_transpose_s2(d3_in, wd3_ref, bd3_ref, h // 2, w // 2, relu=False)
    out = _assemble(y3, s3_ref)                                      # (256, Cout) clean flat
    out = 1.0 / (1.0 + jnp.exp(-out))                                # sigmoid (exact, f32)
    out_ref[0] = out.astype(out_ref.dtype)


# ----------------------------------------------------------------------------
# Parameter construction (PyTorch layouts -> kernel layouts, BN folded, bf16 weights)
# ----------------------------------------------------------------------------
def _conv_params(key, cin, cout, transpose):
    k1, k2, k3, k4 = jax.random.split(key, 4)
    std = 1.0 / math.sqrt(cin * 9)
    if transpose:
        # PyTorch ConvTranspose2d weight: (Cin, Cout, kH, kW) -> (kH, kW, Cin, Cout), NO flip
        w_pt = jax.random.uniform(k1, (cin, cout, 3, 3), jnp.float32, -std, std)
        wk = jnp.transpose(w_pt, (2, 3, 0, 1))
    else:
        # PyTorch Conv2d weight: (Cout, Cin, kH, kW) -> (kH, kW, Cin, Cout)
        w_pt = jax.random.uniform(k1, (cout, cin, 3, 3), jnp.float32, -std, std)
        wk = jnp.transpose(w_pt, (2, 3, 1, 0))
    b = jax.random.uniform(k2, (cout,), jnp.float32, -std, std)
    gamma = 1.0 + 0.1 * jax.random.normal(k3, (cout,), jnp.float32)
    beta = 0.1 * jax.random.normal(k4, (cout,), jnp.float32)
    return wk, b, gamma, beta


def init_params(key, in_channels, out_channels, eps=1e-5):
    enc_dims = [(in_channels, 64), (64, 128), (128, 256)]
    dec_dims = [(256, 128), (128, 64), (64, out_channels)]
    keys = jax.random.split(key, 6)
    weights, biases = [], []
    for i, (k, (ci, co)) in enumerate(zip(keys[:3], enc_dims)):
        wk, b, gamma, beta = _conv_params(k, ci, co, transpose=False)
        scale = gamma / jnp.sqrt(1.0 + eps)          # inference BN: mean=0, var=1
        w_eff = wk * scale[None, None, None, :]
        bias_eff = beta + scale * b
        if i == 0:
            weights.append(w_eff.reshape(9 * ci, co).astype(jnp.bfloat16))  # im2col weight
        else:
            weights.append(w_eff.reshape(9, ci, co).astype(jnp.bfloat16))
        biases.append(bias_eff.reshape(1, co).astype(jnp.float32))
    for i, (k, (ci, co)) in enumerate(zip(keys[3:], dec_dims)):
        wk, b, gamma, beta = _conv_params(k, ci, co, transpose=True)
        if i < len(dec_dims) - 1:
            scale = gamma / jnp.sqrt(1.0 + eps)
            bias_eff = beta + scale * b
        else:
            scale = jnp.ones((co,), jnp.float32)     # last layer: no BN
            bias_eff = b
        weights.append((wk * scale[None, None, None, :]).reshape(9, ci, co)
                       .astype(jnp.bfloat16))
        biases.append(bias_eff.reshape(1, co).astype(jnp.float32))
    return weights, biases


# ----------------------------------------------------------------------------
# Public forward: NCHW in -> NCHW out, single pallas_call
# ----------------------------------------------------------------------------
def encoder_decoder_forward(x_nchw, weights, biases, sel_mats):
    n, cin, h, w = x_nchw.shape
    cout = biases[-1].shape[-1]

    # Wrapper glue: NCHW -> NHWC, and im2col for layer 1 (K = 9*Cin fills the MXU).
    x = jnp.transpose(x_nchw, (0, 2, 3, 1))
    xp = jnp.pad(x, ((0, 0), (1, 1), (1, 1), (0, 0)))
    patches = [xp[:, ky:ky + h, kx:kx + w, :] for ky in range(3) for kx in range(3)]
    xcol = jnp.concatenate(patches, axis=-1).reshape(n, h * w, 9 * cin).astype(jnp.bfloat16)

    g1, g2, g3, s1, s2, s3 = sel_mats
    w1, w2, w3, wd1, wd2, wd3 = weights
    b1, b2, b3, bd1, bd2, bd3 = biases
    operands = (xcol, w1, b1, w2, b2, w3, b3, wd1, bd1, wd2, bd2, wd3, bd3,
                g1, g2, g3, s1, s2, s3)

    def _const_spec(arr):
        zeros = (0,) * arr.ndim
        return pl.BlockSpec(arr.shape, lambda nidx: zeros)

    in_specs = [pl.BlockSpec((1, h * w, 9 * cin), lambda nidx: (nidx, 0, 0))]
    in_specs += [_const_spec(op) for op in operands[1:]]

    kernel = functools.partial(_fused_encdec_kernel, h=h, w=w)
    out_flat = pl.pallas_call(
        kernel,
        out_shape=jax.ShapeDtypeStruct((n, h * w, cout), jnp.float32),
        grid=(n,),
        in_specs=in_specs,
        out_specs=pl.BlockSpec((1, h * w, cout), lambda nidx: (nidx, 0, 0)),
        compiler_params=pltpu.CompilerParams(dimension_semantics=("parallel",)),
    )(*operands)

    out = out_flat.reshape(n, h, w, cout)
    return jnp.transpose(out, (0, 3, 1, 2))          # NHWC -> NCHW


# ----------------------------------------------------------------------------
if __name__ == "__main__":
    IN_CHANNELS, OUT_CHANNELS = 4, 3
    N, H, W = 2, 16, 16

    root = jax.random.PRNGKey(0)
    k_x, k_p = jax.random.split(root)
    x = jax.random.normal(k_x, (N, IN_CHANNELS, H, W), jnp.float32)
    weights, biases = init_params(k_p, IN_CHANNELS, OUT_CHANNELS)
    sel_mats = build_selection_matrices(H, W)

    fwd = jax.jit(encoder_decoder_forward)
    out = jax.block_until_ready(fwd(x, weights, biases, sel_mats))

    assert out.shape == (N, OUT_CHANNELS, H, W), out.shape
    assert out.dtype == jnp.float32
    assert bool(jnp.all(jnp.isfinite(out)))
    assert bool(jnp.all((out >= 0.0) & (out <= 1.0)))   # sigmoid output range
    print("KERNEL_OK")
</pallas_src>

<mosaic_0001>
module attributes {stable_mosaic.version = 11 : i64} {
  func.func @_fused_encdec_kernel(%arg0: i32, %arg1: memref<1x256x36xbf16, #tpu.memory_space<vmem>>, %arg2: memref<36x64xbf16, #tpu.memory_space<vmem>>, %arg3: memref<1x64xf32, #tpu.memory_space<vmem>>, %arg4: memref<9x64x128xbf16, #tpu.memory_space<vmem>>, %arg5: memref<1x128xf32, #tpu.memory_space<vmem>>, %arg6: memref<9x128x256xbf16, #tpu.memory_space<vmem>>, %arg7: memref<1x256xf32, #tpu.memory_space<vmem>>, %arg8: memref<9x256x128xbf16, #tpu.memory_space<vmem>>, %arg9: memref<1x128xf32, #tpu.memory_space<vmem>>, %arg10: memref<9x128x64xbf16, #tpu.memory_space<vmem>>, %arg11: memref<1x64xf32, #tpu.memory_space<vmem>>, %arg12: memref<9x64x3xbf16, #tpu.memory_space<vmem>>, %arg13: memref<1x3xf32, #tpu.memory_space<vmem>>, %arg14: memref<4x110x256xbf16, #tpu.memory_space<vmem>>, %arg15: memref<4x42x80xbf16, #tpu.memory_space<vmem>>, %arg16: memref<4x12x24xbf16, #tpu.memory_space<vmem>>, %arg17: memref<4x30x6xbf16, #tpu.memory_space<vmem>>, %arg18: memref<4x90x20xbf16, #tpu.memory_space<vmem>>, %arg19: memref<4x256x72xbf16, #tpu.memory_space<vmem>>, %arg20: memref<1x256x3xf32, #tpu.memory_space<vmem>>) attributes {dimension_semantics = [#tpu.dimension_semantics<parallel>], iteration_bounds = array<i64: 2>, scalar_prefetch = 0 : i64, scratch_operands = 0 : i64, tpu.core_type = #tpu.core_type<tc>, window_params = [{transform_indices = @transform_0, window_bounds = array<i64: 1, 256, 36>}, {pipeline_mode = #tpu.pipeline_mode<synchronous>, transform_indices = @transform_1, window_bounds = array<i64: 36, 64>}, {pipeline_mode = #tpu.pipeline_mode<synchronous>, transform_indices = @transform_2, window_bounds = array<i64: 1, 64>}, {pipeline_mode = #tpu.pipeline_mode<synchronous>, transform_indices = @transform_3, window_bounds = array<i64: 9, 64, 128>}, {pipeline_mode = #tpu.pipeline_mode<synchronous>, transform_indices = @transform_4, window_bounds = array<i64: 1, 128>}, {pipeline_mode = #tpu.pipeline_mode<synchronous>, transform_indices = @transform_5, window_bounds = array<i64: 9, 128, 256>}, {pipeline_mode = #tpu.pipeline_mode<synchronous>, transform_indices = @transform_6, window_bounds = array<i64: 1, 256>}, {pipeline_mode = #tpu.pipeline_mode<synchronous>, transform_indices = @transform_7, window_bounds = array<i64: 9, 256, 128>}, {pipeline_mode = #tpu.pipeline_mode<synchronous>, transform_indices = @transform_8, window_bounds = array<i64: 1, 128>}, {pipeline_mode = #tpu.pipeline_mode<synchronous>, transform_indices = @transform_9, window_bounds = array<i64: 9, 128, 64>}, {pipeline_mode = #tpu.pipeline_mode<synchronous>, transform_indices = @transform_10, window_bounds = array<i64: 1, 64>}, {pipeline_mode = #tpu.pipeline_mode<synchronous>, transform_indices = @transform_11, window_bounds = array<i64: 9, 64, 3>}, {pipeline_mode = #tpu.pipeline_mode<synchronous>, transform_indices = @transform_12, window_bounds = array<i64: 1, 3>}, {pipeline_mode = #tpu.pipeline_mode<synchronous>, transform_indices = @transform_13, window_bounds = array<i64: 4, 110, 256>}, {pipeline_mode = #tpu.pipeline_mode<synchronous>, transform_indices = @transform_14, window_bounds = array<i64: 4, 42, 80>}, {pipeline_mode = #tpu.pipeline_mode<synchronous>, transform_indices = @transform_15, window_bounds = array<i64: 4, 12, 24>}, {pipeline_mode = #tpu.pipeline_mode<synchronous>, transform_indices = @transform_16, window_bounds = array<i64: 4, 30, 6>}, {pipeline_mode = #tpu.pipeline_mode<synchronous>, transform_indices = @transform_17, window_bounds = array<i64: 4, 90, 20>}, {pipeline_mode = #tpu.pipeline_mode<synchronous>, transform_indices = @transform_18, window_bounds = array<i64: 4, 256, 72>}, {transform_indices = @transform_19, window_bounds = array<i64: 1, 256, 3>}]} {
    %c0 = arith.constant 0 : index
    %c0_0 = arith.constant 0 : index
    %c0_1 = arith.constant 0 : index
    %0 = vector.load %arg1[%c0, %c0_0, %c0_1] : memref<1x256x36xbf16, #tpu.memory_space<vmem>>, vector<1x256x36xbf16>
    %1 = vector.shape_cast %0 : vector<1x256x36xbf16> to vector<256x36xbf16>
    %c0_2 = arith.constant 0 : index
    %c0_3 = arith.constant 0 : index
    %2 = vector.load %arg2[%c0_2, %c0_3] : memref<36x64xbf16, #tpu.memory_space<vmem>>, vector<36x64xbf16>
    %cst = arith.constant dense<0.000000e+00> : vector<256x64xf32>
    %3 = tpu.matmul %1, %2, %cst {dimension_numbers = #tpu.dot_dimension_numbers<[1], [0], [0], [1], [0, 0, 1, 1], [], []>} : vector<256x36xbf16>, vector<36x64xbf16>, vector<256x64xf32> -> vector<256x64xf32>
    %c0_4 = arith.constant 0 : index
    %c0_5 = arith.constant 0 : index
    %4 = vector.load %arg3[%c0_4, %c0_5] : memref<1x64xf32, #tpu.memory_space<vmem>>, vector<1x64xf32>
    %5 = vector.broadcast %4 : vector<1x64xf32> to vector<256x64xf32>
    %6 = arith.addf %3, %5 : vector<256x64xf32>
    %cst_6 = arith.constant 0.000000e+00 : f32
    %7 = vector.broadcast %cst_6 : f32 to vector<256x64xf32>
    %8 = arith.maximumf %6, %7 : vector<256x64xf32>
    %9 = arith.truncf %8 : vector<256x64xf32> to vector<256x64xbf16>
    %c0_7 = arith.constant 0 : index
    %c0_8 = arith.constant 0 : index
    %c0_9 = arith.constant 0 : index
    %10 = vector.load %arg14[%c0_7, %c0_8, %c0_9] : memref<4x110x256xbf16, #tpu.memory_space<vmem>>, vector<1x110x256xbf16>
    %11 = vector.shape_cast %10 : vector<1x110x256xbf16> to vector<110x256xbf16>
    %cst_10 = arith.constant dense<0.000000e+00> : vector<110x64xf32>
    %12 = tpu.matmul %11, %9, %cst_10 {dimension_numbers = #tpu.dot_dimension_numbers<[1], [0], [0], [1], [0, 0, 1, 1], [], []>} : vector<110x256xbf16>, vector<256x64xbf16>, vector<110x64xf32> -> vector<110x64xf32>
    %c1 = arith.constant 1 : index
    %c0_11 = arith.constant 0 : index
    %c0_12 = arith.constant 0 : index
    %13 = vector.load %arg14[%c1, %c0_11, %c0_12] : memref<4x110x256xbf16, #tpu.memory_space<vmem>>, vector<1x110x256xbf16>
    %14 = vector.shape_cast %13 : vector<1x110x256xbf16> to vector<110x256xbf16>
    %cst_13 = arith.constant dense<0.000000e+00> : vector<110x64xf32>
    %15 = tpu.matmul %14, %9, %cst_13 {dimension_numbers = #tpu.dot_dimension_numbers<[1], [0], [0], [1], [0, 0, 1, 1], [], []>} : vector<110x256xbf16>, vector<256x64xbf16>, vector<110x64xf32> -> vector<110x64xf32>
    %16 = arith.maximumf %12, %15 : vector<110x64xf32>
    %c2 = arith.constant 2 : index
    %c0_14 = arith.constant 0 : index
    %c0_15 = arith.constant 0 : index
    %17 = vector.load %arg14[%c2, %c0_14, %c0_15] : memref<4x110x256xbf16, #tpu.memory_space<vmem>>, vector<1x110x256xbf16>
    %18 = vector.shape_cast %17 : vector<1x110x256xbf16> to vector<110x256xbf16>
    %cst_16 = arith.constant dense<0.000000e+00> : vector<110x64xf32>
    %19 = tpu.matmul %18, %9, %cst_16 {dimension_numbers = #tpu.dot_dimension_numbers<[1], [0], [0], [1], [0, 0, 1, 1], [], []>} : vector<110x256xbf16>, vector<256x64xbf16>, vector<110x64xf32> -> vector<110x64xf32>
    %20 = arith.maximumf %16, %19 : vector<110x64xf32>
    %c3 = arith.constant 3 : index
    %c0_17 = arith.constant 0 : index
    %c0_18 = arith.constant 0 : index
    %21 = vector.load %arg14[%c3, %c0_17, %c0_18] : memref<4x110x256xbf16, #tpu.memory_space<vmem>>, vector<1x110x256xbf16>
    %22 = vector.shape_cast %21 : vector<1x110x256xbf16> to vector<110x256xbf16>
    %cst_19 = arith.constant dense<0.000000e+00> : vector<110x64xf32>
    %23 = tpu.matmul %22, %9, %cst_19 {dimension_numbers = #tpu.dot_dimension_numbers<[1], [0], [0], [1], [0, 0, 1, 1], [], []>} : vector<110x256xbf16>, vector<256x64xbf16>, vector<110x64xf32> -> vector<110x64xf32>
    %24 = arith.maximumf %20, %23 : vector<110x64xf32>
    %25 = vector.extract_strided_slice %24 {offsets = [0, 0], sizes = [80, 64], strides = [1, 1]} : vector<110x64xf32> to vector<80x64xf32>
    %26 = arith.truncf %25 : vector<80x64xf32> to vector<80x64xbf16>
    %c0_20 = arith.constant 0 : index
    %c0_21 = arith.constant 0 : index
    %c0_22 = arith.constant 0 : index
    %27 = vector.load %arg4[%c0_20, %c0_21, %c0_22] : memref<9x64x128xbf16, #tpu.memory_space<vmem>>, vector<1x64x128xbf16>
    %28 = vector.shape_cast %27 : vector<1x64x128xbf16> to vector<64x128xbf16>
    %cst_23 = arith.constant dense<0.000000e+00> : vector<80x128xf32>
    %29 = tpu.matmul %26, %28, %cst_23 {dimension_numbers = #tpu.dot_dimension_numbers<[1], [0], [0], [1], [0, 0, 1, 1], [], []>} : vector<80x64xbf16>, vector<64x128xbf16>, vector<80x128xf32> -> vector<80x128xf32>
    %30 = vector.extract_strided_slice %24 {offsets = [1, 0], sizes = [80, 64], strides = [1, 1]} : vector<110x64xf32> to vector<80x64xf32>
    %31 = arith.truncf %30 : vector<80x64xf32> to vector<80x64xbf16>
    %c1_24 = arith.constant 1 : index
    %c0_25 = arith.constant 0 : index
    %c0_26 = arith.constant 0 : index
    %32 = vector.load %arg4[%c1_24, %c0_25, %c0_26] : memref<9x64x128xbf16, #tpu.memory_space<vmem>>, vector<1x64x128xbf16>
    %33 = vector.shape_cast %32 : vector<1x64x128xbf16> to vector<64x128xbf16>
    %cst_27 = arith.constant dense<0.000000e+00> : vector<80x128xf32>
    %34 = tpu.matmul %31, %33, %cst_27 {dimension_numbers = #tpu.dot_dimension_numbers<[1], [0], [0], [1], [0, 0, 1, 1], [], []>} : vector<80x64xbf16>, vector<64x128xbf16>, vector<80x128xf32> -> vector<80x128xf32>
    %35 = arith.addf %29, %34 : vector<80x128xf32>
    %36 = vector.extract_strided_slice %24 {offsets = [2, 0], sizes = [80, 64], strides = [1, 1]} : vector<110x64xf32> to vector<80x64xf32>
    %37 = arith.truncf %36 : vector<80x64xf32> to vector<80x64xbf16>
    %c2_28 = arith.constant 2 : index
    %c0_29 = arith.constant 0 : index
    %c0_30 = arith.constant 0 : index
    %38 = vector.load %arg4[%c2_28, %c0_29, %c0_30] : memref<9x64x128xbf16, #tpu.memory_space<vmem>>, vector<1x64x128xbf16>
    %39 = vector.shape_cast %38 : vector<1x64x128xbf16> to vector<64x128xbf16>
    %cst_31 = arith.constant dense<0.000000e+00> : vector<80x128xf32>
    %40 = tpu.matmul %37, %39, %cst_31 {dimension_numbers = #tpu.dot_dimension_numbers<[1], [0], [0], [1], [0, 0, 1, 1], [], []>} : vector<80x64xbf16>, vector<64x128xbf16>, vector<80x128xf32> -> vector<80x128xf32>
    %41 = arith.addf %35, %40 : vector<80x128xf32>
    %42 = vector.extract_strided_slice %24 {offsets = [10, 0], sizes = [80, 64], strides = [1, 1]} : vector<110x64xf32> to vector<80x64xf32>
    %43 = arith.truncf %42 : vector<80x64xf32> to vector<80x64xbf16>
    %c3_32 = arith.constant 3 : index
    %c0_33 = arith.constant 0 : index
    %c0_34 = arith.constant 0 : index
    %44 = vector.load %arg4[%c3_32, %c0_33, %c0_34] : memref<9x64x128xbf16, #tpu.memory_space<vmem>>, vector<1x64x128xbf16>
    %45 = vector.shape_cast %44 : vector<1x64x128xbf16> to vector<64x128xbf16>
    %cst_35 = arith.constant dense<0.000000e+00> : vector<80x128xf32>
    %46 = tpu.matmul %43, %45, %cst_35 {dimension_numbers = #tpu.dot_dimension_numbers<[1], [0], [0], [1], [0, 0, 1, 1], [], []>} : vector<80x64xbf16>, vector<64x128xbf16>, vector<80x128xf32> -> vector<80x128xf32>
    %47 = arith.addf %41, %46 : vector<80x128xf32>
    %48 = vector.extract_strided_slice %24 {offsets = [11, 0], sizes = [80, 64], strides = [1, 1]} : vector<110x64xf32> to vector<80x64xf32>
    %49 = arith.truncf %48 : vector<80x64xf32> to vector<80x64xbf16>
    %c4 = arith.constant 4 : index
    %c0_36 = arith.constant 0 : index
    %c0_37 = arith.constant 0 : index
    %50 = vector.load %arg4[%c4, %c0_36, %c0_37] : memref<9x64x128xbf16, #tpu.memory_space<vmem>>, vector<1x64x128xbf16>
    %51 = vector.shape_cast %50 : vector<1x64x128xbf16> to vector<64x128xbf16>
    %cst_38 = arith.constant dense<0.000000e+00> : vector<80x128xf32>
    %52 = tpu.matmul %49, %51, %cst_38 {dimension_numbers = #tpu.dot_dimension_numbers<[1], [0], [0], [1], [0, 0, 1, 1], [], []>} : vector<80x64xbf16>, vector<64x128xbf16>, vector<80x128xf32> -> vector<80x128xf32>
    %53 = arith.addf %47, %52 : vector<80x128xf32>
    %54 = vector.extract_strided_slice %24 {offsets = [12, 0], sizes = [80, 64], strides = [1, 1]} : vector<110x64xf32> to vector<80x64xf32>
    %55 = arith.truncf %54 : vector<80x64xf32> to vector<80x64xbf16>
    %c5 = arith.constant 5 : index
    %c0_39 = arith.constant 0 : index
    %c0_40 = arith.constant 0 : index
    %56 = vector.load %arg4[%c5, %c0_39, %c0_40] : memref<9x64x128xbf16, #tpu.memory_space<vmem>>, vector<1x64x128xbf16>
    %57 = vector.shape_cast %56 : vector<1x64x128xbf16> to vector<64x128xbf16>
    %cst_41 = arith.constant dense<0.000000e+00> : vector<80x128xf32>
    %58 = tpu.matmul %55, %57, %cst_41 {dimension_numbers = #tpu.dot_dimension_numbers<[1], [0], [0], [1], [0, 0, 1, 1], [], []>} : vector<80x64xbf16>, vector<64x128xbf16>, vector<80x128xf32> -> vector<80x128xf32>
    %59 = arith.addf %53, %58 : vector<80x128xf32>
    %60 = vector.extract_strided_slice %24 {offsets = [20, 0], sizes = [80, 64], strides = [1, 1]} : vector<110x64xf32> to vector<80x64xf32>
    %61 = arith.truncf %60 : vector<80x64xf32> to vector<80x64xbf16>
    %c6 = arith.constant 6 : index
    %c0_42 = arith.constant 0 : index
    %c0_43 = arith.constant 0 : index
    %62 = vector.load %arg4[%c6, %c0_42, %c0_43] : memref<9x64x128xbf16, #tpu.memory_space<vmem>>, vector<1x64x128xbf16>
    %63 = vector.shape_cast %62 : vector<1x64x128xbf16> to vector<64x128xbf16>
    %cst_44 = arith.constant dense<0.000000e+00> : vector<80x128xf32>
    %64 = tpu.matmul %61, %63, %cst_44 {dimension_numbers = #tpu.dot_dimension_numbers<[1], [0], [0], [1], [0, 0, 1, 1], [], []>} : vector<80x64xbf16>, vector<64x128xbf16>, vector<80x128xf32> -> vector<80x128xf32>
    %65 = arith.addf %59, %64 : vector<80x128xf32>
    %66 = vector.extract_strided_slice %24 {offsets = [21, 0], sizes = [80, 64], strides = [1, 1]} : vector<110x64xf32> to vector<80x64xf32>
    %67 = arith.truncf %66 : vector<80x64xf32> to vector<80x64xbf16>
    %c7 = arith.constant 7 : index
    %c0_45 = arith.constant 0 : index
    %c0_46 = arith.constant 0 : index
    %68 = vector.load %arg4[%c7, %c0_45, %c0_46] : memref<9x64x128xbf16, #tpu.memory_space<vmem>>, vector<1x64x128xbf16>
    %69 = vector.shape_cast %68 : vector<1x64x128xbf16> to vector<64x128xbf16>
    %cst_47 = arith.constant dense<0.000000e+00> : vector<80x128xf32>
    %70 = tpu.matmul %67, %69, %cst_47 {dimension_numbers = #tpu.dot_dimension_numbers<[1], [0], [0], [1], [0, 0, 1, 1], [], []>} : vector<80x64xbf16>, vector<64x128xbf16>, vector<80x128xf32> -> vector<80x128xf32>
    %71 = arith.addf %65, %70 : vector<80x128xf32>
    %72 = vector.extract_strided_slice %24 {offsets = [22, 0], sizes = [80, 64], strides = [1, 1]} : vector<110x64xf32> to vector<80x64xf32>
    %73 = arith.truncf %72 : vector<80x64xf32> to vector<80x64xbf16>
    %c8 = arith.constant 8 : index
    %c0_48 = arith.constant 0 : index
    %c0_49 = arith.constant 0 : index
    %74 = vector.load %arg4[%c8, %c0_48, %c0_49] : memref<9x64x128xbf16, #tpu.memory_space<vmem>>, vector<1x64x128xbf16>
    %75 = vector.shape_cast %74 : vector<1x64x128xbf16> to vector<64x128xbf16>
    %cst_50 = arith.constant dense<0.000000e+00> : vector<80x128xf32>
    %76 = tpu.matmul %73, %75, %cst_50 {dimension_numbers = #tpu.dot_dimension_numbers<[1], [0], [0], [1], [0, 0, 1, 1], [], []>} : vector<80x64xbf16>, vector<64x128xbf16>, vector<80x128xf32> -> vector<80x128xf32>
    %77 = arith.addf %71, %76 : vector<80x128xf32>
    %c0_51 = arith.constant 0 : index
    %c0_52 = arith.constant 0 : index
    %78 = vector.load %arg5[%c0_51, %c0_52] : memref<1x128xf32, #tpu.memory_space<vmem>>, vector<1x128xf32>
    %79 = vector.broadcast %78 : vector<1x128xf32> to vector<80x128xf32>
    %80 = arith.addf %77, %79 : vector<80x128xf32>
    %cst_53 = arith.constant 0.000000e+00 : f32
    %81 = vector.broadcast %cst_53 : f32 to vector<80x128xf32>
    %82 = arith.maximumf %80, %81 : vector<80x128xf32>
    %83 = arith.truncf %82 : vector<80x128xf32> to vector<80x128xbf16>
    %c0_54 = arith.constant 0 : index
    %c0_55 = arith.constant 0 : index
    %c0_56 = arith.constant 0 : index
    %84 = vector.load %arg15[%c0_54, %c0_55, %c0_56] : memref<4x42x80xbf16, #tpu.memory_space<vmem>>, vector<1x42x80xbf16>
    %85 = vector.shape_cast %84 : vector<1x42x80xbf16> to vector<42x80xbf16>
    %cst_57 = arith.constant dense<0.000000e+00> : vector<42x128xf32>
    %86 = tpu.matmul %85, %83, %cst_57 {dimension_numbers = #tpu.dot_dimension_numbers<[1], [0], [0], [1], [0, 0, 1, 1], [], []>} : vector<42x80xbf16>, vector<80x128xbf16>, vector<42x128xf32> -> vector<42x128xf32>
    %c1_58 = arith.constant 1 : index
    %c0_59 = arith.constant 0 : index
    %c0_60 = arith.constant 0 : index
    %87 = vector.load %arg15[%c1_58, %c0_59, %c0_60] : memref<4x42x80xbf16, #tpu.memory_space<vmem>>, vector<1x42x80xbf16>
    %88 = vector.shape_cast %87 : vector<1x42x80xbf16> to vector<42x80xbf16>
    %cst_61 = arith.constant dense<0.000000e+00> : vector<42x128xf32>
    %89 = tpu.matmul %88, %83, %cst_61 {dimension_numbers = #tpu.dot_dimension_numbers<[1], [0], [0], [1], [0, 0, 1, 1], [], []>} : vector<42x80xbf16>, vector<80x128xbf16>, vector<42x128xf32> -> vector<42x128xf32>
    %90 = arith.maximumf %86, %89 : vector<42x128xf32>
    %c2_62 = arith.constant 2 : index
    %c0_63 = arith.constant 0 : index
    %c0_64 = arith.constant 0 : index
    %91 = vector.load %arg15[%c2_62, %c0_63, %c0_64] : memref<4x42x80xbf16, #tpu.memory_space<vmem>>, vector<1x42x80xbf16>
    %92 = vector.shape_cast %91 : vector<1x42x80xbf16> to vector<42x80xbf16>
    %cst_65 = arith.constant dense<0.000000e+00> : vector<42x128xf32>
    %93 = tpu.matmul %92, %83, %cst_65 {dimension_numbers = #tpu.dot_dimension_numbers<[1], [0], [0], [1], [0, 0, 1, 1], [], []>} : vector<42x80xbf16>, vector<80x128xbf16>, vector<42x128xf32> -> vector<42x128xf32>
    %94 = arith.maximumf %90, %93 : vector<42x128xf32>
    %c3_66 = arith.constant 3 : index
    %c0_67 = arith.constant 0 : index
    %c0_68 = arith.constant 0 : index
    %95 = vector.load %arg15[%c3_66, %c0_67, %c0_68] : memref<4x42x80xbf16, #tpu.memory_space<vmem>>, vector<1x42x80xbf16>
    %96 = vector.shape_cast %95 : vector<1x42x80xbf16> to vector<42x80xbf16>
    %cst_69 = arith.constant dense<0.000000e+00> : vector<42x128xf32>
    %97 = tpu.matmul %96, %83, %cst_69 {dimension_numbers = #tpu.dot_dimension_numbers<[1], [0], [0], [1], [0, 0, 1, 1], [], []>} : vector<42x80xbf16>, vector<80x128xbf16>, vector<42x128xf32> -> vector<42x128xf32>
    %98 = arith.maximumf %94, %97 : vector<42x128xf32>
    %99 = vector.extract_strided_slice %98 {offsets = [0, 0], sizes = [24, 128], strides = [1, 1]} : vector<42x128xf32> to vector<24x128xf32>
    %100 = arith.truncf %99 : vector<24x128xf32> to vector<24x128xbf16>
    %c0_70 = arith.constant 0 : index
    %c0_71 = arith.constant 0 : index
    %c0_72 = arith.constant 0 : index
    %101 = vector.load %arg6[%c0_70, %c0_71, %c0_72] : memref<9x128x256xbf16, #tpu.memory_space<vmem>>, vector<1x128x256xbf16>
    %102 = vector.shape_cast %101 : vector<1x128x256xbf16> to vector<128x256xbf16>
    %cst_73 = arith.constant dense<0.000000e+00> : vector<24x256xf32>
    %103 = tpu.matmul %100, %102, %cst_73 {dimension_numbers = #tpu.dot_dimension_numbers<[1], [0], [0], [1], [0, 0, 1, 1], [], []>} : vector<24x128xbf16>, vector<128x256xbf16>, vector<24x256xf32> -> vector<24x256xf32>
    %104 = vector.extract_strided_slice %98 {offsets = [1, 0], sizes = [24, 128], strides = [1, 1]} : vector<42x128xf32> to vector<24x128xf32>
    %105 = arith.truncf %104 : vector<24x128xf32> to vector<24x128xbf16>
    %c1_74 = arith.constant 1 : index
    %c0_75 = arith.constant 0 : index
    %c0_76 = arith.constant 0 : index
    %106 = vector.load %arg6[%c1_74, %c0_75, %c0_76] : memref<9x128x256xbf16, #tpu.memory_space<vmem>>, vector<1x128x256xbf16>
    %107 = vector.shape_cast %106 : vector<1x128x256xbf16> to vector<128x256xbf16>
    %cst_77 = arith.constant dense<0.000000e+00> : vector<24x256xf32>
    %108 = tpu.matmul %105, %107, %cst_77 {dimension_numbers = #tpu.dot_dimension_numbers<[1], [0], [0], [1], [0, 0, 1, 1], [], []>} : vector<24x128xbf16>, vector<128x256xbf16>, vector<24x256xf32> -> vector<24x256xf32>
    %109 = arith.addf %103, %108 : vector<24x256xf32>
    %110 = vector.extract_strided_slice %98 {offsets = [2, 0], sizes = [24, 128], strides = [1, 1]} : vector<42x128xf32> to vector<24x128xf32>
    %111 = arith.truncf %110 : vector<24x128xf32> to vector<24x128xbf16>
    %c2_78 = arith.constant 2 : index
    %c0_79 = arith.constant 0 : index
    %c0_80 = arith.constant 0 : index
    %112 = vector.load %arg6[%c2_78, %c0_79, %c0_80] : memref<9x128x256xbf16, #tpu.memory_space<vmem>>, vector<1x128x256xbf16>
    %113 = vector.shape_cast %112 : vector<1x128x256xbf16> to vector<128x256xbf16>
    %cst_81 = arith.constant dense<0.000000e+00> : vector<24x256xf32>
    %114 = tpu.matmul %111, %113, %cst_81 {dimension_numbers = #tpu.dot_dimension_numbers<[1], [0], [0], [1], [0, 0, 1, 1], [], []>} : vector<24x128xbf16>, vector<128x256xbf16>, vector<24x256xf32> -> vector<24x256xf32>
    %115 = arith.addf %109, %114 : vector<24x256xf32>
    %116 = vector.extract_strided_slice %98 {offsets = [6, 0], sizes = [24, 128], strides = [1, 1]} : vector<42x128xf32> to vector<24x128xf32>
    %117 = arith.truncf %116 : vector<24x128xf32> to vector<24x128xbf16>
    %c3_82 = arith.constant 3 : index
    %c0_83 = arith.constant 0 : index
    %c0_84 = arith.constant 0 : index
    %118 = vector.load %arg6[%c3_82, %c0_83, %c0_84] : memref<9x128x256xbf16, #tpu.memory_space<vmem>>, vector<1x128x256xbf16>
    %119 = vector.shape_cast %118 : vector<1x128x256xbf16> to vector<128x256xbf16>
    %cst_85 = arith.constant dense<0.000000e+00> : vector<24x256xf32>
    %120 = tpu.matmul %117, %119, %cst_85 {dimension_numbers = #tpu.dot_dimension_numbers<[1], [0], [0], [1], [0, 0, 1, 1], [], []>} : vector<24x128xbf16>, vector<128x256xbf16>, vector<24x256xf32> -> vector<24x256xf32>
    %121 = arith.addf %115, %120 : vector<24x256xf32>
    %122 = vector.extract_strided_slice %98 {offsets = [7, 0], sizes = [24, 128], strides = [1, 1]} : vector<42x128xf32> to vector<24x128xf32>
    %123 = arith.truncf %122 : vector<24x128xf32> to vector<24x128xbf16>
    %c4_86 = arith.constant 4 : index
    %c0_87 = arith.constant 0 : index
    %c0_88 = arith.constant 0 : index
    %124 = vector.load %arg6[%c4_86, %c0_87, %c0_88] : memref<9x128x256xbf16, #tpu.memory_space<vmem>>, vector<1x128x256xbf16>
    %125 = vector.shape_cast %124 : vector<1x128x256xbf16> to vector<128x256xbf16>
    %cst_89 = arith.constant dense<0.000000e+00> : vector<24x256xf32>
    %126 = tpu.matmul %123, %125, %cst_89 {dimension_numbers = #tpu.dot_dimension_numbers<[1], [0], [0], [1], [0, 0, 1, 1], [], []>} : vector<24x128xbf16>, vector<128x256xbf16>, vector<24x256xf32> -> vector<24x256xf32>
    %127 = arith.addf %121, %126 : vector<24x256xf32>
    %128 = vector.extract_strided_slice %98 {offsets = [8, 0], sizes = [24, 128], strides = [1, 1]} : vector<42x128xf32> to vector<24x128xf32>
    %129 = arith.truncf %128 : vector<24x128xf32> to vector<24x128xbf16>
    %c5_90 = arith.constant 5 : index
    %c0_91 = arith.constant 0 : index
    %c0_92 = arith.constant 0 : index
    %130 = vector.load %arg6[%c5_90, %c0_91, %c0_92] : memref<9x128x256xbf16, #tpu.memory_space<vmem>>, vector<1x128x256xbf16>
    %131 = vector.shape_cast %130 : vector<1x128x256xbf16> to vector<128x256xbf16>
    %cst_93 = arith.constant dense<0.000000e+00> : vector<24x256xf32>
    %132 = tpu.matmul %129, %131, %cst_93 {dimension_numbers = #tpu.dot_dimension_numbers<[1], [0], [0], [1], [0, 0, 1, 1], [], []>} : vector<24x128xbf16>, vector<128x256xbf16>, vector<24x256xf32> -> vector<24x256xf32>
    %133 = arith.addf %127, %132 : vector<24x256xf32>
    %134 = vector.extract_strided_slice %98 {offsets = [12, 0], sizes = [24, 128], strides = [1, 1]} : vector<42x128xf32> to vector<24x128xf32>
    %135 = arith.truncf %134 : vector<24x128xf32> to vector<24x128xbf16>
    %c6_94 = arith.constant 6 : index
    %c0_95 = arith.constant 0 : index
    %c0_96 = arith.constant 0 : index
    %136 = vector.load %arg6[%c6_94, %c0_95, %c0_96] : memref<9x128x256xbf16, #tpu.memory_space<vmem>>, vector<1x128x256xbf16>
    %137 = vector.shape_cast %136 : vector<1x128x256xbf16> to vector<128x256xbf16>
    %cst_97 = arith.constant dense<0.000000e+00> : vector<24x256xf32>
    %138 = tpu.matmul %135, %137, %cst_97 {dimension_numbers = #tpu.dot_dimension_numbers<[1], [0], [0], [1], [0, 0, 1, 1], [], []>} : vector<24x128xbf16>, vector<128x256xbf16>, vector<24x256xf32> -> vector<24x256xf32>
    %139 = arith.addf %133, %138 : vector<24x256xf32>
    %140 = vector.extract_strided_slice %98 {offsets = [13, 0], sizes = [24, 128], strides = [1, 1]} : vector<42x128xf32> to vector<24x128xf32>
    %141 = arith.truncf %140 : vector<24x128xf32> to vector<24x128xbf16>
    %c7_98 = arith.constant 7 : index
    %c0_99 = arith.constant 0 : index
    %c0_100 = arith.constant 0 : index
    %142 = vector.load %arg6[%c7_98, %c0_99, %c0_100] : memref<9x128x256xbf16, #tpu.memory_space<vmem>>, vector<1x128x256xbf16>
    %143 = vector.shape_cast %142 : vector<1x128x256xbf16> to vector<128x256xbf16>
    %cst_101 = arith.constant dense<0.000000e+00> : vector<24x256xf32>
    %144 = tpu.matmul %141, %143, %cst_101 {dimension_numbers = #tpu.dot_dimension_numbers<[1], [0], [0], [1], [0, 0, 1, 1], [], []>} : vector<24x128xbf16>, vector<128x256xbf16>, vector<24x256xf32> -> vector<24x256xf32>
    %145 = arith.addf %139, %144 : vector<24x256xf32>
    %146 = vector.extract_strided_slice %98 {offsets = [14, 0], sizes = [24, 128], strides = [1, 1]} : vector<42x128xf32> to vector<24x128xf32>
    %147 = arith.truncf %146 : vector<24x128xf32> to vector<24x128xbf16>
    %c8_102 = arith.constant 8 : index
    %c0_103 = arith.constant 0 : index
    %c0_104 = arith.constant 0 : index
    %148 = vector.load %arg6[%c8_102, %c0_103, %c0_104] : memref<9x128x256xbf16, #tpu.memory_space<vmem>>, vector<1x128x256xbf16>
    %149 = vector.shape_cast %148 : vector<1x128x256xbf16> to vector<128x256xbf16>
    %cst_105 = arith.constant dense<0.000000e+00> : vector<24x256xf32>
    %150 = tpu.matmul %147, %149, %cst_105 {dimension_numbers = #tpu.dot_dimension_numbers<[1], [0], [0], [1], [0, 0, 1, 1], [], []>} : vector<24x128xbf16>, vector<128x256xbf16>, vector<24x256xf32> -> vector<24x256xf32>
    %151 = arith.addf %145, %150 : vector<24x256xf32>
    %c0_106 = arith.constant 0 : index
    %c0_107 = arith.constant 0 : index
    %152 = vector.load %arg7[%c0_106, %c0_107] : memref<1x256xf32, #tpu.memory_space<vmem>>, vector<1x256xf32>
    %153 = vector.broadcast %152 : vector<1x256xf32> to vector<24x256xf32>
    %154 = arith.addf %151, %153 : vector<24x256xf32>
    %cst_108 = arith.constant 0.000000e+00 : f32
    %155 = vector.broadcast %cst_108 : f32 to vector<24x256xf32>
    %156 = arith.maximumf %154, %155 : vector<24x256xf32>
    %157 = arith.truncf %156 : vector<24x256xf32> to vector<24x256xbf16>
    %c0_109 = arith.constant 0 : index
    %c0_110 = arith.constant 0 : index
    %c0_111 = arith.constant 0 : index
    %158 = vector.load %arg16[%c0_109, %c0_110, %c0_111] : memref<4x12x24xbf16, #tpu.memory_space<vmem>>, vector<1x12x24xbf16>
    %159 = vector.shape_cast %158 : vector<1x12x24xbf16> to vector<12x24xbf16>
    %cst_112 = arith.constant dense<0.000000e+00> : vector<12x256xf32>
    %160 = tpu.matmul %159, %157, %cst_112 {dimension_numbers = #tpu.dot_dimension_numbers<[1], [0], [0], [1], [0, 0, 1, 1], [], []>} : vector<12x24xbf16>, vector<24x256xbf16>, vector<12x256xf32> -> vector<12x256xf32>
    %c1_113 = arith.constant 1 : index
    %c0_114 = arith.constant 0 : index
    %c0_115 = arith.constant 0 : index
    %161 = vector.load %arg16[%c1_113, %c0_114, %c0_115] : memref<4x12x24xbf16, #tpu.memory_space<vmem>>, vector<1x12x24xbf16>
    %162 = vector.shape_cast %161 : vector<1x12x24xbf16> to vector<12x24xbf16>
    %cst_116 = arith.constant dense<0.000000e+00> : vector<12x256xf32>
    %163 = tpu.matmul %162, %157, %cst_116 {dimension_numbers = #tpu.dot_dimension_numbers<[1], [0], [0], [1], [0, 0, 1, 1], [], []>} : vector<12x24xbf16>, vector<24x256xbf16>, vector<12x256xf32> -> vector<12x256xf32>
    %164 = arith.maximumf %160, %163 : vector<12x256xf32>
    %c2_117 = arith.constant 2 : index
    %c0_118 = arith.constant 0 : index
    %c0_119 = arith.constant 0 : index
    %165 = vector.load %arg16[%c2_117, %c0_118, %c0_119] : memref<4x12x24xbf16, #tpu.memory_space<vmem>>, vector<1x12x24xbf16>
    %166 = vector.shape_cast %165 : vector<1x12x24xbf16> to vector<12x24xbf16>
    %cst_120 = arith.constant dense<0.000000e+00> : vector<12x256xf32>
    %167 = tpu.matmul %166, %157, %cst_120 {dimension_numbers = #tpu.dot_dimension_numbers<[1], [0], [0], [1], [0, 0, 1, 1], [], []>} : vector<12x24xbf16>, vector<24x256xbf16>, vector<12x256xf32> -> vector<12x256xf32>
    %168 = arith.maximumf %164, %167 : vector<12x256xf32>
    %c3_121 = arith.constant 3 : index
    %c0_122 = arith.constant 0 : index
    %c0_123 = arith.constant 0 : index
    %169 = vector.load %arg16[%c3_121, %c0_122, %c0_123] : memref<4x12x24xbf16, #tpu.memory_space<vmem>>, vector<1x12x24xbf16>
    %170 = vector.shape_cast %169 : vector<1x12x24xbf16> to vector<12x24xbf16>
    %cst_124 = arith.constant dense<0.000000e+00> : vector<12x256xf32>
    %171 = tpu.matmul %170, %157, %cst_124 {dimension_numbers = #tpu.dot_dimension_numbers<[1], [0], [0], [1], [0, 0, 1, 1], [], []>} : vector<12x24xbf16>, vector<24x256xbf16>, vector<12x256xf32> -> vector<12x256xf32>
    %172 = arith.maximumf %168, %171 : vector<12x256xf32>
    %173 = vector.extract_strided_slice %172 {offsets = [0, 0], sizes = [6, 256], strides = [1, 1]} : vector<12x256xf32> to vector<6x256xf32>
    %174 = arith.truncf %173 : vector<6x256xf32> to vector<6x256xbf16>
    %175 = vector.extract_strided_slice %172 {offsets = [1, 0], sizes = [6, 256], strides = [1, 1]} : vector<12x256xf32> to vector<6x256xf32>
    %176 = arith.truncf %175 : vector<6x256xf32> to vector<6x256xbf16>
    %177 = vector.extract_strided_slice %172 {offsets = [3, 0], sizes = [6, 256], strides = [1, 1]} : vector<12x256xf32> to vector<6x256xf32>
    %178 = arith.truncf %177 : vector<6x256xf32> to vector<6x256xbf16>
    %179 = vector.extract_strided_slice %172 {offsets = [4, 0], sizes = [6, 256], strides = [1, 1]} : vector<12x256xf32> to vector<6x256xf32>
    %180 = arith.truncf %179 : vector<6x256xf32> to vector<6x256xbf16>
    %c4_125 = arith.constant 4 : index
    %c0_126 = arith.constant 0 : index
    %c0_127 = arith.constant 0 : index
    %181 = vector.load %arg8[%c4_125, %c0_126, %c0_127] : memref<9x256x128xbf16, #tpu.memory_space<vmem>>, vector<1x256x128xbf16>
    %182 = vector.shape_cast %181 : vector<1x256x128xbf16> to vector<256x128xbf16>
    %cst_128 = arith.constant dense<0.000000e+00> : vector<6x128xf32>
    %183 = tpu.matmul %174, %182, %cst_128 {dimension_numbers = #tpu.dot_dimension_numbers<[1], [0], [0], [1], [0, 0, 1, 1], [], []>} : vector<6x256xbf16>, vector<256x128xbf16>, vector<6x128xf32> -> vector<6x128xf32>
    %c0_129 = arith.constant 0 : index
    %c0_130 = arith.constant 0 : index
    %184 = vector.load %arg9[%c0_129, %c0_130] : memref<1x128xf32, #tpu.memory_space<vmem>>, vector<1x128xf32>
    %185 = vector.broadcast %184 : vector<1x128xf32> to vector<6x128xf32>
    %186 = arith.addf %183, %185 : vector<6x128xf32>
    %cst_131 = arith.constant 0.000000e+00 : f32
    %187 = vector.broadcast %cst_131 : f32 to vector<6x128xf32>
    %188 = arith.maximumf %186, %187 : vector<6x128xf32>
    %c5_132 = arith.constant 5 : index
    %c0_133 = arith.constant 0 : index
    %c0_134 = arith.constant 0 : index
    %189 = vector.load %arg8[%c5_132, %c0_133, %c0_134] : memref<9x256x128xbf16, #tpu.memory_space<vmem>>, vector<1x256x128xbf16>
    %190 = vector.shape_cast %189 : vector<1x256x128xbf16> to vector<256x128xbf16>
    %cst_135 = arith.constant dense<0.000000e+00> : vector<6x128xf32>
    %191 = tpu.matmul %174, %190, %cst_135 {dimension_numbers = #tpu.dot_dimension_numbers<[1], [0], [0], [1], [0, 0, 1, 1], [], []>} : vector<6x256xbf16>, vector<256x128xbf16>, vector<6x128xf32> -> vector<6x128xf32>
    %c3_136 = arith.constant 3 : index
    %c0_137 = arith.constant 0 : index
    %c0_138 = arith.constant 0 : index
    %192 = vector.load %arg8[%c3_136, %c0_137, %c0_138] : memref<9x256x128xbf16, #tpu.memory_space<vmem>>, vector<1x256x128xbf16>
    %193 = vector.shape_cast %192 : vector<1x256x128xbf16> to vector<256x128xbf16>
    %cst_139 = arith.constant dense<0.000000e+00> : vector<6x128xf32>
    %194 = tpu.matmul %176, %193, %cst_139 {dimension_numbers = #tpu.dot_dimension_numbers<[1], [0], [0], [1], [0, 0, 1, 1], [], []>} : vector<6x256xbf16>, vector<256x128xbf16>, vector<6x128xf32> -> vector<6x128xf32>
    %195 = arith.addf %191, %194 : vector<6x128xf32>
    %c0_140 = arith.constant 0 : index
    %c0_141 = arith.constant 0 : index
    %196 = vector.load %arg9[%c0_140, %c0_141] : memref<1x128xf32, #tpu.memory_space<vmem>>, vector<1x128xf32>
    %197 = vector.broadcast %196 : vector<1x128xf32> to vector<6x128xf32>
    %198 = arith.addf %195, %197 : vector<6x128xf32>
    %cst_142 = arith.constant 0.000000e+00 : f32
    %199 = vector.broadcast %cst_142 : f32 to vector<6x128xf32>
    %200 = arith.maximumf %198, %199 : vector<6x128xf32>
    %c7_143 = arith.constant 7 : index
    %c0_144 = arith.constant 0 : index
    %c0_145 = arith.constant 0 : index
    %201 = vector.load %arg8[%c7_143, %c0_144, %c0_145] : memref<9x256x128xbf16, #tpu.memory_space<vmem>>, vector<1x256x128xbf16>
    %202 = vector.shape_cast %201 : vector<1x256x128xbf16> to vector<256x128xbf16>
    %cst_146 = arith.constant dense<0.000000e+00> : vector<6x128xf32>
    %203 = tpu.matmul %174, %202, %cst_146 {dimension_numbers = #tpu.dot_dimension_numbers<[1], [0], [0], [1], [0, 0, 1, 1], [], []>} : vector<6x256xbf16>, vector<256x128xbf16>, vector<6x128xf32> -> vector<6x128xf32>
    %c1_147 = arith.constant 1 : index
    %c0_148 = arith.constant 0 : index
    %c0_149 = arith.constant 0 : index
    %204 = vector.load %arg8[%c1_147, %c0_148, %c0_149] : memref<9x256x128xbf16, #tpu.memory_space<vmem>>, vector<1x256x128xbf16>
    %205 = vector.shape_cast %204 : vector<1x256x128xbf16> to vector<256x128xbf16>
    %cst_150 = arith.constant dense<0.000000e+00> : vector<6x128xf32>
    %206 = tpu.matmul %178, %205, %cst_150 {dimension_numbers = #tpu.dot_dimension_numbers<[1], [0], [0], [1], [0, 0, 1, 1], [], []>} : vector<6x256xbf16>, vector<256x128xbf16>, vector<6x128xf32> -> vector<6x128xf32>
    %207 = arith.addf %203, %206 : vector<6x128xf32>
    %c0_151 = arith.constant 0 : index
    %c0_152 = arith.constant 0 : index
    %208 = vector.load %arg9[%c0_151, %c0_152] : memref<1x128xf32, #tpu.memory_space<vmem>>, vector<1x128xf32>
    %209 = vector.broadcast %208 : vector<1x128xf32> to vector<6x128xf32>
    %210 = arith.addf %207, %209 : vector<6x128xf32>
    %cst_153 = arith.constant 0.000000e+00 : f32
    %211 = vector.broadcast %cst_153 : f32 to vector<6x128xf32>
    %212 = arith.maximumf %210, %211 : vector<6x128xf32>
    %c8_154 = arith.constant 8 : index
    %c0_155 = arith.constant 0 : index
    %c0_156 = arith.constant 0 : index
    %213 = vector.load %arg8[%c8_154, %c0_155, %c0_156] : memref<9x256x128xbf16, #tpu.memory_space<vmem>>, vector<1x256x128xbf16>
    %214 = vector.shape_cast %213 : vector<1x256x128xbf16> to vector<256x128xbf16>
    %cst_157 = arith.constant dense<0.000000e+00> : vector<6x128xf32>
    %215 = tpu.matmul %174, %214, %cst_157 {dimension_numbers = #tpu.dot_dimension_numbers<[1], [0], [0], [1], [0, 0, 1, 1], [], []>} : vector<6x256xbf16>, vector<256x128xbf16>, vector<6x128xf32> -> vector<6x128xf32>
    %c6_158 = arith.constant 6 : index
    %c0_159 = arith.constant 0 : index
    %c0_160 = arith.constant 0 : index
    %216 = vector.load %arg8[%c6_158, %c0_159, %c0_160] : memref<9x256x128xbf16, #tpu.memory_space<vmem>>, vector<1x256x128xbf16>
    %217 = vector.shape_cast %216 : vector<1x256x128xbf16> to vector<256x128xbf16>
    %cst_161 = arith.constant dense<0.000000e+00> : vector<6x128xf32>
    %218 = tpu.matmul %176, %217, %cst_161 {dimension_numbers = #tpu.dot_dimension_numbers<[1], [0], [0], [1], [0, 0, 1, 1], [], []>} : vector<6x256xbf16>, vector<256x128xbf16>, vector<6x128xf32> -> vector<6x128xf32>
    %219 = arith.addf %215, %218 : vector<6x128xf32>
    %c2_162 = arith.constant 2 : index
    %c0_163 = arith.constant 0 : index
    %c0_164 = arith.constant 0 : index
    %220 = vector.load %arg8[%c2_162, %c0_163, %c0_164] : memref<9x256x128xbf16, #tpu.memory_space<vmem>>, vector<1x256x128xbf16>
    %221 = vector.shape_cast %220 : vector<1x256x128xbf16> to vector<256x128xbf16>
    %cst_165 = arith.constant dense<0.000000e+00> : vector<6x128xf32>
    %222 = tpu.matmul %178, %221, %cst_165 {dimension_numbers = #tpu.dot_dimension_numbers<[1], [0], [0], [1], [0, 0, 1, 1], [], []>} : vector<6x256xbf16>, vector<256x128xbf16>, vector<6x128xf32> -> vector<6x128xf32>
    %223 = arith.addf %219, %222 : vector<6x128xf32>
    %c0_166 = arith.constant 0 : index
    %c0_167 = arith.constant 0 : index
    %c0_168 = arith.constant 0 : index
    %224 = vector.load %arg8[%c0_166, %c0_167, %c0_168] : memref<9x256x128xbf16, #tpu.memory_space<vmem>>, vector<1x256x128xbf16>
    %225 = vector.shape_cast %224 : vector<1x256x128xbf16> to vector<256x128xbf16>
    %cst_169 = arith.constant dense<0.000000e+00> : vector<6x128xf32>
    %226 = tpu.matmul %180, %225, %cst_169 {dimension_numbers = #tpu.dot_dimension_numbers<[1], [0], [0], [1], [0, 0, 1, 1], [], []>} : vector<6x256xbf16>, vector<256x128xbf16>, vector<6x128xf32> -> vector<6x128xf32>
    %227 = arith.addf %223, %226 : vector<6x128xf32>
    %c0_170 = arith.constant 0 : index
    %c0_171 = arith.constant 0 : index
    %228 = vector.load %arg9[%c0_170, %c0_171] : memref<1x128xf32, #tpu.memory_space<vmem>>, vector<1x128xf32>
    %229 = vector.broadcast %228 : vector<1x128xf32> to vector<6x128xf32>
    %230 = arith.addf %227, %229 : vector<6x128xf32>
    %cst_172 = arith.constant 0.000000e+00 : f32
    %231 = vector.broadcast %cst_172 : f32 to vector<6x128xf32>
    %232 = arith.maximumf %230, %231 : vector<6x128xf32>
    %c0_173 = arith.constant 0 : index
    %c0_174 = arith.constant 0 : index
    %c0_175 = arith.constant 0 : index
    %233 = vector.load %arg17[%c0_173, %c0_174, %c0_175] : memref<4x30x6xbf16, #tpu.memory_space<vmem>>, vector<1x30x6xbf16>
    %234 = vector.shape_cast %233 : vector<1x30x6xbf16> to vector<30x6xbf16>
    %235 = arith.truncf %188 : vector<6x128xf32> to vector<6x128xbf16>
    %cst_176 = arith.constant dense<0.000000e+00> : vector<30x128xf32>
    %236 = tpu.matmul %234, %235, %cst_176 {dimension_numbers = #tpu.dot_dimension_numbers<[1], [0], [0], [1], [0, 0, 1, 1], [], []>} : vector<30x6xbf16>, vector<6x128xbf16>, vector<30x128xf32> -> vector<30x128xf32>
    %c1_177 = arith.constant 1 : index
    %c0_178 = arith.constant 0 : index
    %c0_179 = arith.constant 0 : index
    %237 = vector.load %arg17[%c1_177, %c0_178, %c0_179] : memref<4x30x6xbf16, #tpu.memory_space<vmem>>, vector<1x30x6xbf16>
    %238 = vector.shape_cast %237 : vector<1x30x6xbf16> to vector<30x6xbf16>
    %239 = arith.truncf %200 : vector<6x128xf32> to vector<6x128xbf16>
    %cst_180 = arith.constant dense<0.000000e+00> : vector<30x128xf32>
    %240 = tpu.matmul %238, %239, %cst_180 {dimension_numbers = #tpu.dot_dimension_numbers<[1], [0], [0], [1], [0, 0, 1, 1], [], []>} : vector<30x6xbf16>, vector<6x128xbf16>, vector<30x128xf32> -> vector<30x128xf32>
    %241 = arith.addf %236, %240 : vector<30x128xf32>
    %c2_181 = arith.constant 2 : index
    %c0_182 = arith.constant 0 : index
    %c0_183 = arith.constant 0 : index
    %242 = vector.load %arg17[%c2_181, %c0_182, %c0_183] : memref<4x30x6xbf16, #tpu.memory_space<vmem>>, vector<1x30x6xbf16>
    %243 = vector.shape_cast %242 : vector<1x30x6xbf16> to vector<30x6xbf16>
    %244 = arith.truncf %212 : vector<6x128xf32> to vector<6x128xbf16>
    %cst_184 = arith.constant dense<0.000000e+00> : vector<30x128xf32>
    %245 = tpu.matmul %243, %244, %cst_184 {dimension_numbers = #tpu.dot_dimension_numbers<[1], [0], [0], [1], [0, 0, 1, 1], [], []>} : vector<30x6xbf16>, vector<6x128xbf16>, vector<30x128xf32> -> vector<30x128xf32>
    %246 = arith.addf %241, %245 : vector<30x128xf32>
    %c3_185 = arith.constant 3 : index
    %c0_186 = arith.constant 0 : index
    %c0_187 = arith.constant 0 : index
    %247 = vector.load %arg17[%c3_185, %c0_186, %c0_187] : memref<4x30x6xbf16, #tpu.memory_space<vmem>>, vector<1x30x6xbf16>
    %248 = vector.shape_cast %247 : vector<1x30x6xbf16> to vector<30x6xbf16>
    %249 = arith.truncf %232 : vector<6x128xf32> to vector<6x128xbf16>
    %cst_188 = arith.constant dense<0.000000e+00> : vector<30x128xf32>
    %250 = tpu.matmul %248, %249, %cst_188 {dimension_numbers = #tpu.dot_dimension_numbers<[1], [0], [0], [1], [0, 0, 1, 1], [], []>} : vector<30x6xbf16>, vector<6x128xbf16>, vector<30x128xf32> -> vector<30x128xf32>
    %251 = arith.addf %246, %250 : vector<30x128xf32>
    %252 = vector.extract_strided_slice %251 {offsets = [0, 0], sizes = [20, 128], strides = [1, 1]} : vector<30x128xf32> to vector<20x128xf32>
    %253 = arith.truncf %252 : vector<20x128xf32> to vector<20x128xbf16>
    %254 = vector.extract_strided_slice %251 {offsets = [1, 0], sizes = [20, 128], strides = [1, 1]} : vector<30x128xf32> to vector<20x128xf32>
    %255 = arith.truncf %254 : vector<20x128xf32> to vector<20x128xbf16>
    %256 = vector.extract_strided_slice %251 {offsets = [5, 0], sizes = [20, 128], strides = [1, 1]} : vector<30x128xf32> to vector<20x128xf32>
    %257 = arith.truncf %256 : vector<20x128xf32> to vector<20x128xbf16>
    %258 = vector.extract_strided_slice %251 {offsets = [6, 0], sizes = [20, 128], strides = [1, 1]} : vector<30x128xf32> to vector<20x128xf32>
    %259 = arith.truncf %258 : vector<20x128xf32> to vector<20x128xbf16>
    %c4_189 = arith.constant 4 : index
    %c0_190 = arith.constant 0 : index
    %c0_191 = arith.constant 0 : index
    %260 = vector.load %arg10[%c4_189, %c0_190, %c0_191] : memref<9x128x64xbf16, #tpu.memory_space<vmem>>, vector<1x128x64xbf16>
    %261 = vector.shape_cast %260 : vector<1x128x64xbf16> to vector<128x64xbf16>
    %cst_192 = arith.constant dense<0.000000e+00> : vector<20x64xf32>
    %262 = tpu.matmul %253, %261, %cst_192 {dimension_numbers = #tpu.dot_dimension_numbers<[1], [0], [0], [1], [0, 0, 1, 1], [], []>} : vector<20x128xbf16>, vector<128x64xbf16>, vector<20x64xf32> -> vector<20x64xf32>
    %c0_193 = arith.constant 0 : index
    %c0_194 = arith.constant 0 : index
    %263 = vector.load %arg11[%c0_193, %c0_194] : memref<1x64xf32, #tpu.memory_space<vmem>>, vector<1x64xf32>
    %264 = vector.broadcast %263 : vector<1x64xf32> to vector<20x64xf32>
    %265 = arith.addf %262, %264 : vector<20x64xf32>
    %cst_195 = arith.constant 0.000000e+00 : f32
    %266 = vector.broadcast %cst_195 : f32 to vector<20x64xf32>
    %267 = arith.maximumf %265, %266 : vector<20x64xf32>
    %c5_196 = arith.constant 5 : index
    %c0_197 = arith.constant 0 : index
    %c0_198 = arith.constant 0 : index
    %268 = vector.load %arg10[%c5_196, %c0_197, %c0_198] : memref<9x128x64xbf16, #tpu.memory_space<vmem>>, vector<1x128x64xbf16>
    %269 = vector.shape_cast %268 : vector<1x128x64xbf16> to vector<128x64xbf16>
    %cst_199 = arith.constant dense<0.000000e+00> : vector<20x64xf32>
    %270 = tpu.matmul %253, %269, %cst_199 {dimension_numbers = #tpu.dot_dimension_numbers<[1], [0], [0], [1], [0, 0, 1, 1], [], []>} : vector<20x128xbf16>, vector<128x64xbf16>, vector<20x64xf32> -> vector<20x64xf32>
    %c3_200 = arith.constant 3 : index
    %c0_201 = arith.constant 0 : index
    %c0_202 = arith.constant 0 : index
    %271 = vector.load %arg10[%c3_200, %c0_201, %c0_202] : memref<9x128x64xbf16, #tpu.memory_space<vmem>>, vector<1x128x64xbf16>
    %272 = vector.shape_cast %271 : vector<1x128x64xbf16> to vector<128x64xbf16>
    %cst_203 = arith.constant dense<0.000000e+00> : vector<20x64xf32>
    %273 = tpu.matmul %255, %272, %cst_203 {dimension_numbers = #tpu.dot_dimension_numbers<[1], [0], [0], [1], [0, 0, 1, 1], [], []>} : vector<20x128xbf16>, vector<128x64xbf16>, vector<20x64xf32> -> vector<20x64xf32>
    %274 = arith.addf %270, %273 : vector<20x64xf32>
    %c0_204 = arith.constant 0 : index
    %c0_205 = arith.constant 0 : index
    %275 = vector.load %arg11[%c0_204, %c0_205] : memref<1x64xf32, #tpu.memory_space<vmem>>, vector<1x64xf32>
    %276 = vector.broadcast %275 : vector<1x64xf32> to vector<20x64xf32>
    %277 = arith.addf %274, %276 : vector<20x64xf32>
    %cst_206 = arith.constant 0.000000e+00 : f32
    %278 = vector.broadcast %cst_206 : f32 to vector<20x64xf32>
    %279 = arith.maximumf %277, %278 : vector<20x64xf32>
    %c7_207 = arith.constant 7 : index
    %c0_208 = arith.constant 0 : index
    %c0_209 = arith.constant 0 : index
    %280 = vector.load %arg10[%c7_207, %c0_208, %c0_209] : memref<9x128x64xbf16, #tpu.memory_space<vmem>>, vector<1x128x64xbf16>
    %281 = vector.shape_cast %280 : vector<1x128x64xbf16> to vector<128x64xbf16>
    %cst_210 = arith.constant dense<0.000000e+00> : vector<20x64xf32>
    %282 = tpu.matmul %253, %281, %cst_210 {dimension_numbers = #tpu.dot_dimension_numbers<[1], [0], [0], [1], [0, 0, 1, 1], [], []>} : vector<20x128xbf16>, vector<128x64xbf16>, vector<20x64xf32> -> vector<20x64xf32>
    %c1_211 = arith.constant 1 : index
    %c0_212 = arith.constant 0 : index
    %c0_213 = arith.constant 0 : index
    %283 = vector.load %arg10[%c1_211, %c0_212, %c0_213] : memref<9x128x64xbf16, #tpu.memory_space<vmem>>, vector<1x128x64xbf16>
    %284 = vector.shape_cast %283 : vector<1x128x64xbf16> to vector<128x64xbf16>
    %cst_214 = arith.constant dense<0.000000e+00> : vector<20x64xf32>
    %285 = tpu.matmul %257, %284, %cst_214 {dimension_numbers = #tpu.dot_dimension_numbers<[1], [0], [0], [1], [0, 0, 1, 1], [], []>} : vector<20x128xbf16>, vector<128x64xbf16>, vector<20x64xf32> -> vector<20x64xf32>
    %286 = arith.addf %282, %285 : vector<20x64xf32>
    %c0_215 = arith.constant 0 : index
    %c0_216 = arith.constant 0 : index
    %287 = vector.load %arg11[%c0_215, %c0_216] : memref<1x64xf32, #tpu.memory_space<vmem>>, vector<1x64xf32>
    %288 = vector.broadcast %287 : vector<1x64xf32> to vector<20x64xf32>
    %289 = arith.addf %286, %288 : vector<20x64xf32>
    %cst_217 = arith.constant 0.000000e+00 : f32
    %290 = vector.broadcast %cst_217 : f32 to vector<20x64xf32>
    %291 = arith.maximumf %289, %290 : vector<20x64xf32>
    %c8_218 = arith.constant 8 : index
    %c0_219 = arith.constant 0 : index
    %c0_220 = arith.constant 0 : index
    %292 = vector.load %arg10[%c8_218, %c0_219, %c0_220] : memref<9x128x64xbf16, #tpu.memory_space<vmem>>, vector<1x128x64xbf16>
    %293 = vector.shape_cast %292 : vector<1x128x64xbf16> to vector<128x64xbf16>
    %cst_221 = arith.constant dense<0.000000e+00> : vector<20x64xf32>
    %294 = tpu.matmul %253, %293, %cst_221 {dimension_numbers = #tpu.dot_dimension_numbers<[1], [0], [0], [1], [0, 0, 1, 1], [], []>} : vector<20x128xbf16>, vector<128x64xbf16>, vector<20x64xf32> -> vector<20x64xf32>
    %c6_222 = arith.constant 6 : index
    %c0_223 = arith.constant 0 : index
    %c0_224 = arith.constant 0 : index
    %295 = vector.load %arg10[%c6_222, %c0_223, %c0_224] : memref<9x128x64xbf16, #tpu.memory_space<vmem>>, vector<1x128x64xbf16>
    %296 = vector.shape_cast %295 : vector<1x128x64xbf16> to vector<128x64xbf16>
    %cst_225 = arith.constant dense<0.000000e+00> : vector<20x64xf32>
    %297 = tpu.matmul %255, %296, %cst_225 {dimension_numbers = #tpu.dot_dimension_numbers<[1], [0], [0], [1], [0, 0, 1, 1], [], []>} : vector<20x128xbf16>, vector<128x64xbf16>, vector<20x64xf32> -> vector<20x64xf32>
    %298 = arith.addf %294, %297 : vector<20x64xf32>
    %c2_226 = arith.constant 2 : index
    %c0_227 = arith.constant 0 : index
    %c0_228 = arith.constant 0 : index
    %299 = vector.load %arg10[%c2_226, %c0_227, %c0_228] : memref<9x128x64xbf16, #tpu.memory_space<vmem>>, vector<1x128x64xbf16>
    %300 = vector.shape_cast %299 : vector<1x128x64xbf16> to vector<128x64xbf16>
    %cst_229 = arith.constant dense<0.000000e+00> : vector<20x64xf32>
    %301 = tpu.matmul %257, %300, %cst_229 {dimension_numbers = #tpu.dot_dimension_numbers<[1], [0], [0], [1], [0, 0, 1, 1], [], []>} : vector<20x128xbf16>, vector<128x64xbf16>, vector<20x64xf32> -> vector<20x64xf32>
    %302 = arith.addf %298, %301 : vector<20x64xf32>
    %c0_230 = arith.constant 0 : index
    %c0_231 = arith.constant 0 : index
    %c0_232 = arith.constant 0 : index
    %303 = vector.load %arg10[%c0_230, %c0_231, %c0_232] : memref<9x128x64xbf16, #tpu.memory_space<vmem>>, vector<1x128x64xbf16>
    %304 = vector.shape_cast %303 : vector<1x128x64xbf16> to vector<128x64xbf16>
    %cst_233 = arith.constant dense<0.000000e+00> : vector<20x64xf32>
    %305 = tpu.matmul %259, %304, %cst_233 {dimension_numbers = #tpu.dot_dimension_numbers<[1], [0], [0], [1], [0, 0, 1, 1], [], []>} : vector<20x128xbf16>, vector<128x64xbf16>, vector<20x64xf32> -> vector<20x64xf32>
    %306 = arith.addf %302, %305 : vector<20x64xf32>
    %c0_234 = arith.constant 0 : index
    %c0_235 = arith.constant 0 : index
    %307 = vector.load %arg11[%c0_234, %c0_235] : memref<1x64xf32, #tpu.memory_space<vmem>>, vector<1x64xf32>
    %308 = vector.broadcast %307 : vector<1x64xf32> to vector<20x64xf32>
    %309 = arith.addf %306, %308 : vector<20x64xf32>
    %cst_236 = arith.constant 0.000000e+00 : f32
    %310 = vector.broadcast %cst_236 : f32 to vector<20x64xf32>
    %311 = arith.maximumf %309, %310 : vector<20x64xf32>
    %c0_237 = arith.constant 0 : index
    %c0_238 = arith.constant 0 : index
    %c0_239 = arith.constant 0 : index
    %312 = vector.load %arg18[%c0_237, %c0_238, %c0_239] : memref<4x90x20xbf16, #tpu.memory_space<vmem>>, vector<1x90x20xbf16>
    %313 = vector.shape_cast %312 : vector<1x90x20xbf16> to vector<90x20xbf16>
    %314 = arith.truncf %267 : vector<20x64xf32> to vector<20x64xbf16>
    %cst_240 = arith.constant dense<0.000000e+00> : vector<90x64xf32>
    %315 = tpu.matmul %313, %314, %cst_240 {dimension_numbers = #tpu.dot_dimension_numbers<[1], [0], [0], [1], [0, 0, 1, 1], [], []>} : vector<90x20xbf16>, vector<20x64xbf16>, vector<90x64xf32> -> vector<90x64xf32>
    %c1_241 = arith.constant 1 : index
    %c0_242 = arith.constant 0 : index
    %c0_243 = arith.constant 0 : index
    %316 = vector.load %arg18[%c1_241, %c0_242, %c0_243] : memref<4x90x20xbf16, #tpu.memory_space<vmem>>, vector<1x90x20xbf16>
    %317 = vector.shape_cast %316 : vector<1x90x20xbf16> to vector<90x20xbf16>
    %318 = arith.truncf %279 : vector<20x64xf32> to vector<20x64xbf16>
    %cst_244 = arith.constant dense<0.000000e+00> : vector<90x64xf32>
    %319 = tpu.matmul %317, %318, %cst_244 {dimension_numbers = #tpu.dot_dimension_numbers<[1], [0], [0], [1], [0, 0, 1, 1], [], []>} : vector<90x20xbf16>, vector<20x64xbf16>, vector<90x64xf32> -> vector<90x64xf32>
    %320 = arith.addf %315, %319 : vector<90x64xf32>
    %c2_245 = arith.constant 2 : index
    %c0_246 = arith.constant 0 : index
    %c0_247 = arith.constant 0 : index
    %321 = vector.load %arg18[%c2_245, %c0_246, %c0_247] : memref<4x90x20xbf16, #tpu.memory_space<vmem>>, vector<1x90x20xbf16>
    %322 = vector.shape_cast %321 : vector<1x90x20xbf16> to vector<90x20xbf16>
    %323 = arith.truncf %291 : vector<20x64xf32> to vector<20x64xbf16>
    %cst_248 = arith.constant dense<0.000000e+00> : vector<90x64xf32>
    %324 = tpu.matmul %322, %323, %cst_248 {dimension_numbers = #tpu.dot_dimension_numbers<[1], [0], [0], [1], [0, 0, 1, 1], [], []>} : vector<90x20xbf16>, vector<20x64xbf16>, vector<90x64xf32> -> vector<90x64xf32>
    %325 = arith.addf %320, %324 : vector<90x64xf32>
    %c3_249 = arith.constant 3 : index
    %c0_250 = arith.constant 0 : index
    %c0_251 = arith.constant 0 : index
    %326 = vector.load %arg18[%c3_249, %c0_250, %c0_251] : memref<4x90x20xbf16, #tpu.memory_space<vmem>>, vector<1x90x20xbf16>
    %327 = vector.shape_cast %326 : vector<1x90x20xbf16> to vector<90x20xbf16>
    %328 = arith.truncf %311 : vector<20x64xf32> to vector<20x64xbf16>
    %cst_252 = arith.constant dense<0.000000e+00> : vector<90x64xf32>
    %329 = tpu.matmul %327, %328, %cst_252 {dimension_numbers = #tpu.dot_dimension_numbers<[1], [0], [0], [1], [0, 0, 1, 1], [], []>} : vector<90x20xbf16>, vector<20x64xbf16>, vector<90x64xf32> -> vector<90x64xf32>
    %330 = arith.addf %325, %329 : vector<90x64xf32>
    %331 = vector.extract_strided_slice %330 {offsets = [0, 0], sizes = [72, 64], strides = [1, 1]} : vector<90x64xf32> to vector<72x64xf32>
    %332 = arith.truncf %331 : vector<72x64xf32> to vector<72x64xbf16>
    %333 = vector.extract_strided_slice %330 {offsets = [1, 0], sizes = [72, 64], strides = [1, 1]} : vector<90x64xf32> to vector<72x64xf32>
    %334 = arith.truncf %333 : vector<72x64xf32> to vector<72x64xbf16>
    %335 = vector.extract_strided_slice %330 {offsets = [9, 0], sizes = [72, 64], strides = [1, 1]} : vector<90x64xf32> to vector<72x64xf32>
    %336 = arith.truncf %335 : vector<72x64xf32> to vector<72x64xbf16>
    %337 = vector.extract_strided_slice %330 {offsets = [10, 0], sizes = [72, 64], strides = [1, 1]} : vector<90x64xf32> to vector<72x64xf32>
    %338 = arith.truncf %337 : vector<72x64xf32> to vector<72x64xbf16>
    %c4_253 = arith.constant 4 : index
    %c0_254 = arith.constant 0 : index
    %c0_255 = arith.constant 0 : index
    %339 = vector.load %arg12[%c4_253, %c0_254, %c0_255] : memref<9x64x3xbf16, #tpu.memory_space<vmem>>, vector<1x64x3xbf16>
    %340 = vector.shape_cast %339 : vector<1x64x3xbf16> to vector<64x3xbf16>
    %cst_256 = arith.constant dense<0.000000e+00> : vector<72x3xf32>
    %341 = tpu.matmul %332, %340, %cst_256 {dimension_numbers = #tpu.dot_dimension_numbers<[1], [0], [0], [1], [0, 0, 1, 1], [], []>} : vector<72x64xbf16>, vector<64x3xbf16>, vector<72x3xf32> -> vector<72x3xf32>
    %c0_257 = arith.constant 0 : index
    %c0_258 = arith.constant 0 : index
    %342 = vector.load %arg13[%c0_257, %c0_258] : memref<1x3xf32, #tpu.memory_space<vmem>>, vector<1x3xf32>
    %343 = vector.broadcast %342 : vector<1x3xf32> to vector<72x3xf32>
    %344 = arith.addf %341, %343 : vector<72x3xf32>
    %c5_259 = arith.constant 5 : index
    %c0_260 = arith.constant 0 : index
    %c0_261 = arith.constant 0 : index
    %345 = vector.load %arg12[%c5_259, %c0_260, %c0_261] : memref<9x64x3xbf16, #tpu.memory_space<vmem>>, vector<1x64x3xbf16>
    %346 = vector.shape_cast %345 : vector<1x64x3xbf16> to vector<64x3xbf16>
    %cst_262 = arith.constant dense<0.000000e+00> : vector<72x3xf32>
    %347 = tpu.matmul %332, %346, %cst_262 {dimension_numbers = #tpu.dot_dimension_numbers<[1], [0], [0], [1], [0, 0, 1, 1], [], []>} : vector<72x64xbf16>, vector<64x3xbf16>, vector<72x3xf32> -> vector<72x3xf32>
    %c3_263 = arith.constant 3 : index
    %c0_264 = arith.constant 0 : index
    %c0_265 = arith.constant 0 : index
    %348 = vector.load %arg12[%c3_263, %c0_264, %c0_265] : memref<9x64x3xbf16, #tpu.memory_space<vmem>>, vector<1x64x3xbf16>
    %349 = vector.shape_cast %348 : vector<1x64x3xbf16> to vector<64x3xbf16>
    %cst_266 = arith.constant dense<0.000000e+00> : vector<72x3xf32>
    %350 = tpu.matmul %334, %349, %cst_266 {dimension_numbers = #tpu.dot_dimension_numbers<[1], [0], [0], [1], [0, 0, 1, 1], [], []>} : vector<72x64xbf16>, vector<64x3xbf16>, vector<72x3xf32> -> vector<72x3xf32>
    %351 = arith.addf %347, %350 : vector<72x3xf32>
    %c0_267 = arith.constant 0 : index
    %c0_268 = arith.constant 0 : index
    %352 = vector.load %arg13[%c0_267, %c0_268] : memref<1x3xf32, #tpu.memory_space<vmem>>, vector<1x3xf32>
    %353 = vector.broadcast %352 : vector<1x3xf32> to vector<72x3xf32>
    %354 = arith.addf %351, %353 : vector<72x3xf32>
    %c7_269 = arith.constant 7 : index
    %c0_270 = arith.constant 0 : index
    %c0_271 = arith.constant 0 : index
    %355 = vector.load %arg12[%c7_269, %c0_270, %c0_271] : memref<9x64x3xbf16, #tpu.memory_space<vmem>>, vector<1x64x3xbf16>
    %356 = vector.shape_cast %355 : vector<1x64x3xbf16> to vector<64x3xbf16>
    %cst_272 = arith.constant dense<0.000000e+00> : vector<72x3xf32>
    %357 = tpu.matmul %332, %356, %cst_272 {dimension_numbers = #tpu.dot_dimension_numbers<[1], [0], [0], [1], [0, 0, 1, 1], [], []>} : vector<72x64xbf16>, vector<64x3xbf16>, vector<72x3xf32> -> vector<72x3xf32>
    %c1_273 = arith.constant 1 : index
    %c0_274 = arith.constant 0 : index
    %c0_275 = arith.constant 0 : index
    %358 = vector.load %arg12[%c1_273, %c0_274, %c0_275] : memref<9x64x3xbf16, #tpu.memory_space<vmem>>, vector<1x64x3xbf16>
    %359 = vector.shape_cast %358 : vector<1x64x3xbf16> to vector<64x3xbf16>
    %cst_276 = arith.constant dense<0.000000e+00> : vector<72x3xf32>
    %360 = tpu.matmul %336, %359, %cst_276 {dimension_numbers = #tpu.dot_dimension_numbers<[1], [0], [0], [1], [0, 0, 1, 1], [], []>} : vector<72x64xbf16>, vector<64x3xbf16>, vector<72x3xf32> -> vector<72x3xf32>
    %361 = arith.addf %357, %360 : vector<72x3xf32>
    %c0_277 = arith.constant 0 : index
    %c0_278 = arith.constant 0 : index
    %362 = vector.load %arg13[%c0_277, %c0_278] : memref<1x3xf32, #tpu.memory_space<vmem>>, vector<1x3xf32>
    %363 = vector.broadcast %362 : vector<1x3xf32> to vector<72x3xf32>
    %364 = arith.addf %361, %363 : vector<72x3xf32>
    %c8_279 = arith.constant 8 : index
    %c0_280 = arith.constant 0 : index
    %c0_281 = arith.constant 0 : index
    %365 = vector.load %arg12[%c8_279, %c0_280, %c0_281] : memref<9x64x3xbf16, #tpu.memory_space<vmem>>, vector<1x64x3xbf16>
    %366 = vector.shape_cast %365 : vector<1x64x3xbf16> to vector<64x3xbf16>
    %cst_282 = arith.constant dense<0.000000e+00> : vector<72x3xf32>
    %367 = tpu.matmul %332, %366, %cst_282 {dimension_numbers = #tpu.dot_dimension_numbers<[1], [0], [0], [1], [0, 0, 1, 1], [], []>} : vector<72x64xbf16>, vector<64x3xbf16>, vector<72x3xf32> -> vector<72x3xf32>
    %c6_283 = arith.constant 6 : index
    %c0_284 = arith.constant 0 : index
    %c0_285 = arith.constant 0 : index
    %368 = vector.load %arg12[%c6_283, %c0_284, %c0_285] : memref<9x64x3xbf16, #tpu.memory_space<vmem>>, vector<1x64x3xbf16>
    %369 = vector.shape_cast %368 : vector<1x64x3xbf16> to vector<64x3xbf16>
    %cst_286 = arith.constant dense<0.000000e+00> : vector<72x3xf32>
    %370 = tpu.matmul %334, %369, %cst_286 {dimension_numbers = #tpu.dot_dimension_numbers<[1], [0], [0], [1], [0, 0, 1, 1], [], []>} : vector<72x64xbf16>, vector<64x3xbf16>, vector<72x3xf32> -> vector<72x3xf32>
    %371 = arith.addf %367, %370 : vector<72x3xf32>
    %c2_287 = arith.constant 2 : index
    %c0_288 = arith.constant 0 : index
    %c0_289 = arith.constant 0 : index
    %372 = vector.load %arg12[%c2_287, %c0_288, %c0_289] : memref<9x64x3xbf16, #tpu.memory_space<vmem>>, vector<1x64x3xbf16>
    %373 = vector.shape_cast %372 : vector<1x64x3xbf16> to vector<64x3xbf16>
    %cst_290 = arith.constant dense<0.000000e+00> : vector<72x3xf32>
    %374 = tpu.matmul %336, %373, %cst_290 {dimension_numbers = #tpu.dot_dimension_numbers<[1], [0], [0], [1], [0, 0, 1, 1], [], []>} : vector<72x64xbf16>, vector<64x3xbf16>, vector<72x3xf32> -> vector<72x3xf32>
    %375 = arith.addf %371, %374 : vector<72x3xf32>
    %c0_291 = arith.constant 0 : index
    %c0_292 = arith.constant 0 : index
    %c0_293 = arith.constant 0 : index
    %376 = vector.load %arg12[%c0_291, %c0_292, %c0_293] : memref<9x64x3xbf16, #tpu.memory_space<vmem>>, vector<1x64x3xbf16>
    %377 = vector.shape_cast %376 : vector<1x64x3xbf16> to vector<64x3xbf16>
    %cst_294 = arith.constant dense<0.000000e+00> : vector<72x3xf32>
    %378 = tpu.matmul %338, %377, %cst_294 {dimension_numbers = #tpu.dot_dimension_numbers<[1], [0], [0], [1], [0, 0, 1, 1], [], []>} : vector<72x64xbf16>, vector<64x3xbf16>, vector<72x3xf32> -> vector<72x3xf32>
    %379 = arith.addf %375, %378 : vector<72x3xf32>
    %c0_295 = arith.constant 0 : index
    %c0_296 = arith.constant 0 : index
    %380 = vector.load %arg13[%c0_295, %c0_296] : memref<1x3xf32, #tpu.memory_space<vmem>>, vector<1x3xf32>
    %381 = vector.broadcast %380 : vector<1x3xf32> to vector<72x3xf32>
    %382 = arith.addf %379, %381 : vector<72x3xf32>
    %c0_297 = arith.constant 0 : index
    %c0_298 = arith.constant 0 : index
    %c0_299 = arith.constant 0 : index
    %383 = vector.load %arg19[%c0_297, %c0_298, %c0_299] : memref<4x256x72xbf16, #tpu.memory_space<vmem>>, vector<1x256x72xbf16>
    %384 = vector.shape_cast %383 : vector<1x256x72xbf16> to vector<256x72xbf16>
    %385 = arith.truncf %344 : vector<72x3xf32> to vector<72x3xbf16>
    %cst_300 = arith.constant dense<0.000000e+00> : vector<256x3xf32>
    %386 = tpu.matmul %384, %385, %cst_300 {dimension_numbers = #tpu.dot_dimension_numbers<[1], [0], [0], [1], [0, 0, 1, 1], [], []>} : vector<256x72xbf16>, vector<72x3xbf16>, vector<256x3xf32> -> vector<256x3xf32>
    %c1_301 = arith.constant 1 : index
    %c0_302 = arith.constant 0 : index
    %c0_303 = arith.constant 0 : index
    %387 = vector.load %arg19[%c1_301, %c0_302, %c0_303] : memref<4x256x72xbf16, #tpu.memory_space<vmem>>, vector<1x256x72xbf16>
    %388 = vector.shape_cast %387 : vector<1x256x72xbf16> to vector<256x72xbf16>
    %389 = arith.truncf %354 : vector<72x3xf32> to vector<72x3xbf16>
    %cst_304 = arith.constant dense<0.000000e+00> : vector<256x3xf32>
    %390 = tpu.matmul %388, %389, %cst_304 {dimension_numbers = #tpu.dot_dimension_numbers<[1], [0], [0], [1], [0, 0, 1, 1], [], []>} : vector<256x72xbf16>, vector<72x3xbf16>, vector<256x3xf32> -> vector<256x3xf32>
    %391 = arith.addf %386, %390 : vector<256x3xf32>
    %c2_305 = arith.constant 2 : index
    %c0_306 = arith.constant 0 : index
    %c0_307 = arith.constant 0 : index
    %392 = vector.load %arg19[%c2_305, %c0_306, %c0_307] : memref<4x256x72xbf16, #tpu.memory_space<vmem>>, vector<1x256x72xbf16>
    %393 = vector.shape_cast %392 : vector<1x256x72xbf16> to vector<256x72xbf16>
    %394 = arith.truncf %364 : vector<72x3xf32> to vector<72x3xbf16>
    %cst_308 = arith.constant dense<0.000000e+00> : vector<256x3xf32>
    %395 = tpu.matmul %393, %394, %cst_308 {dimension_numbers = #tpu.dot_dimension_numbers<[1], [0], [0], [1], [0, 0, 1, 1], [], []>} : vector<256x72xbf16>, vector<72x3xbf16>, vector<256x3xf32> -> vector<256x3xf32>
    %396 = arith.addf %391, %395 : vector<256x3xf32>
    %c3_309 = arith.constant 3 : index
    %c0_310 = arith.constant 0 : index
    %c0_311 = arith.constant 0 : index
    %397 = vector.load %arg19[%c3_309, %c0_310, %c0_311] : memref<4x256x72xbf16, #tpu.memory_space<vmem>>, vector<1x256x72xbf16>
    %398 = vector.shape_cast %397 : vector<1x256x72xbf16> to vector<256x72xbf16>
    %399 = arith.truncf %382 : vector<72x3xf32> to vector<72x3xbf16>
    %cst_312 = arith.constant dense<0.000000e+00> : vector<256x3xf32>
    %400 = tpu.matmul %398, %399, %cst_312 {dimension_numbers = #tpu.dot_dimension_numbers<[1], [0], [0], [1], [0, 0, 1, 1], [], []>} : vector<256x72xbf16>, vector<72x3xbf16>, vector<256x3xf32> -> vector<256x3xf32>
    %401 = arith.addf %396, %400 : vector<256x3xf32>
    %cst_313 = arith.constant 0.000000e+00 : f32
    %402 = vector.broadcast %cst_313 : f32 to vector<256x3xf32>
    %403 = arith.subf %402, %401 : vector<256x3xf32>
    %404 = math.exp %403 : vector<256x3xf32>
    %cst_314 = arith.constant 1.000000e+00 : f32
    %405 = vector.broadcast %cst_314 : f32 to vector<256x3xf32>
    %406 = arith.addf %405, %404 : vector<256x3xf32>
    %cst_315 = arith.constant 1.000000e+00 : f32
    %407 = vector.broadcast %cst_315 : f32 to vector<256x3xf32>
    %408 = arith.divf %407, %406 : vector<256x3xf32>
    %c0_316 = arith.constant 0 : index
    %c0_317 = arith.constant 0 : index
    %c0_318 = arith.constant 0 : index
    %409 = vector.load %arg20[%c0_316, %c0_317, %c0_318] : memref<1x256x3xf32, #tpu.memory_space<vmem>>, vector<1x256x3xf32>
    %410 = vector.shape_cast %409 : vector<1x256x3xf32> to vector<256x3xf32>
    %411 = vector.shape_cast %408 : vector<256x3xf32> to vector<1x256x3xf32>
    tpu.vector_store %arg20[%c0_316, %c0_317, %c0_318], %411 {strides = array<i32>} : memref<1x256x3xf32, #tpu.memory_space<vmem>>, vector<1x256x3xf32>,
    return
  }
  func.func @transform_0(%arg0: i32) -> (i32, i32, i32) {
    %c0_i32 = arith.constant 0 : i32
    %c0_i32_0 = arith.constant 0 : i32
    %c0_i32_1 = arith.constant 0 : i32
    return %arg0, %c0_i32, %c0_i32_0 : i32, i32, i32
  }
  func.func @transform_1(%arg0: i32) -> (i32, i32) {
    %c0_i32 = arith.constant 0 : i32
    %c0_i32_0 = arith.constant 0 : i32
    %c0_i32_1 = arith.constant 0 : i32
    return %c0_i32, %c0_i32_0 : i32, i32
  }
  func.func @transform_2(%arg0: i32) -> (i32, i32) {
    %c0_i32 = arith.constant 0 : i32
    %c0_i32_0 = arith.constant 0 : i32
    %c0_i32_1 = arith.constant 0 : i32
    return %c0_i32, %c0_i32_0 : i32, i32
  }
  func.func @transform_3(%arg0: i32) -> (i32, i32, i32) {
    %c0_i32 = arith.constant 0 : i32
    %c0_i32_0 = arith.constant 0 : i32
    %c0_i32_1 = arith.constant 0 : i32
    %c0_i32_2 = arith.constant 0 : i32
    return %c0_i32, %c0_i32_0, %c0_i32_1 : i32, i32, i32
  }
  func.func @transform_4(%arg0: i32) -> (i32, i32) {
    %c0_i32 = arith.constant 0 : i32
    %c0_i32_0 = arith.constant 0 : i32
    %c0_i32_1 = arith.constant 0 : i32
    return %c0_i32, %c0_i32_0 : i32, i32
  }
  func.func @transform_5(%arg0: i32) -> (i32, i32, i32) {
    %c0_i32 = arith.constant 0 : i32
    %c0_i32_0 = arith.constant 0 : i32
    %c0_i32_1 = arith.constant 0 : i32
    %c0_i32_2 = arith.constant 0 : i32
    return %c0_i32, %c0_i32_0, %c0_i32_1 : i32, i32, i32
  }
  func.func @transform_6(%arg0: i32) -> (i32, i32) {
    %c0_i32 = arith.constant 0 : i32
    %c0_i32_0 = arith.constant 0 : i32
    %c0_i32_1 = arith.constant 0 : i32
    return %c0_i32, %c0_i32_0 : i32, i32
  }
  func.func @transform_7(%arg0: i32) -> (i32, i32, i32) {
    %c0_i32 = arith.constant 0 : i32
    %c0_i32_0 = arith.constant 0 : i32
    %c0_i32_1 = arith.constant 0 : i32
    %c0_i32_2 = arith.constant 0 : i32
    return %c0_i32, %c0_i32_0, %c0_i32_1 : i32, i32, i32
  }
  func.func @transform_8(%arg0: i32) -> (i32, i32) {
    %c0_i32 = arith.constant 0 : i32
    %c0_i32_0 = arith.constant 0 : i32
    %c0_i32_1 = arith.constant 0 : i32
    return %c0_i32, %c0_i32_0 : i32, i32
  }
  func.func @transform_9(%arg0: i32) -> (i32, i32, i32) {
    %c0_i32 = arith.constant 0 : i32
    %c0_i32_0 = arith.constant 0 : i32
    %c0_i32_1 = arith.constant 0 : i32
    %c0_i32_2 = arith.constant 0 : i32
    return %c0_i32, %c0_i32_0, %c0_i32_1 : i32, i32, i32
  }
  func.func @transform_10(%arg0: i32) -> (i32, i32) {
    %c0_i32 = arith.constant 0 : i32
    %c0_i32_0 = arith.constant 0 : i32
    %c0_i32_1 = arith.constant 0 : i32
    return %c0_i32, %c0_i32_0 : i32, i32
  }
  func.func @transform_11(%arg0: i32) -> (i32, i32, i32) {
    %c0_i32 = arith.constant 0 : i32
    %c0_i32_0 = arith.constant 0 : i32
    %c0_i32_1 = arith.constant 0 : i32
    %c0_i32_2 = arith.constant 0 : i32
    return %c0_i32, %c0_i32_0, %c0_i32_1 : i32, i32, i32
  }
  func.func @transform_12(%arg0: i32) -> (i32, i32) {
    %c0_i32 = arith.constant 0 : i32
    %c0_i32_0 = arith.constant 0 : i32
    %c0_i32_1 = arith.constant 0 : i32
    return %c0_i32, %c0_i32_0 : i32, i32
  }
  func.func @transform_13(%arg0: i32) -> (i32, i32, i32) {
    %c0_i32 = arith.constant 0 : i32
    %c0_i32_0 = arith.constant 0 : i32
    %c0_i32_1 = arith.constant 0 : i32
    %c0_i32_2 = arith.constant 0 : i32
    return %c0_i32, %c0_i32_0, %c0_i32_1 : i32, i32, i32
  }
  func.func @transform_14(%arg0: i32) -> (i32, i32, i32) {
    %c0_i32 = arith.constant 0 : i32
    %c0_i32_0 = arith.constant 0 : i32
    %c0_i32_1 = arith.constant 0 : i32
    %c0_i32_2 = arith.constant 0 : i32
    return %c0_i32, %c0_i32_0, %c0_i32_1 : i32, i32, i32
  }
  func.func @transform_15(%arg0: i32) -> (i32, i32, i32) {
    %c0_i32 = arith.constant 0 : i32
    %c0_i32_0 = arith.constant 0 : i32
    %c0_i32_1 = arith.constant 0 : i32
    %c0_i32_2 = arith.constant 0 : i32
    return %c0_i32, %c0_i32_0, %c0_i32_1 : i32, i32, i32
  }
  func.func @transform_16(%arg0: i32) -> (i32, i32, i32) {
    %c0_i32 = arith.constant 0 : i32
    %c0_i32_0 = arith.constant 0 : i32
    %c0_i32_1 = arith.constant 0 : i32
    %c0_i32_2 = arith.constant 0 : i32
    return %c0_i32, %c0_i32_0, %c0_i32_1 : i32, i32, i32
  }
  func.func @transform_17(%arg0: i32) -> (i32, i32, i32) {
    %c0_i32 = arith.constant 0 : i32
    %c0_i32_0 = arith.constant 0 : i32
    %c0_i32_1 = arith.constant 0 : i32
    %c0_i32_2 = arith.constant 0 : i32
    return %c0_i32, %c0_i32_0, %c0_i32_1 : i32, i32, i32
  }
  func.func @transform_18(%arg0: i32) -> (i32, i32, i32) {
    %c0_i32 = arith.constant 0 : i32
    %c0_i32_0 = arith.constant 0 : i32
    %c0_i32_1 = arith.constant 0 : i32
    %c0_i32_2 = arith.constant 0 : i32
    return %c0_i32, %c0_i32_0, %c0_i32_1 : i32, i32, i32
  }
  func.func @transform_19(%arg0: i32) -> (i32, i32, i32) {
    %c0_i32 = arith.constant 0 : i32
    %c0_i32_0 = arith.constant 0 : i32
    %c0_i32_1 = arith.constant 0 : i32
    return %arg0, %c0_i32, %c0_i32_0 : i32, i32, i32
  }
}

</mosaic_0001>

<llo_original>
// kernel: encoder_decoder_forward.1
$region0: #{encoder_decoder_forward.1}
  #allocation0 [shape = 'u32[]', space=smem, size = 0x4, offset = 0x4, fixed_abs, tag = 'smem constant byte address 0x4 - core index']
  #allocation1 [shape = 'u32[144,128]{1,0:T(1,128)}', space=vmem, size = 0x12000, scoped, tag = 'internal scratch']
  %s0 = inlined_call_operand.vmem [shape: bf16[2,256,36], index: 0, kind: input, shape index: {}]
  %s1 = inlined_call_operand.vmem [shape: bf16[36,64], index: 1, kind: input, shape index: {}]
  %s2 = inlined_call_operand.vmem [shape: f32[1,64], index: 2, kind: input, shape index: {}]
  %s3 = inlined_call_operand.vmem [shape: bf16[9,64,128], index: 3, kind: input, shape index: {}]
  %s4 = inlined_call_operand.vmem [shape: f32[1,128], index: 4, kind: input, shape index: {}]
  %s5 = inlined_call_operand.vmem [shape: bf16[9,128,256], index: 5, kind: input, shape index: {}]
  %s6 = inlined_call_operand.vmem [shape: f32[1,256], index: 6, kind: input, shape index: {}]
  %s7 = inlined_call_operand.vmem [shape: bf16[9,256,128], index: 7, kind: input, shape index: {}]
  %s8 = inlined_call_operand.vmem [shape: f32[1,128], index: 8, kind: input, shape index: {}]
  %s9 = inlined_call_operand.vmem [shape: bf16[9,128,64], index: 9, kind: input, shape index: {}]
  %s10 = inlined_call_operand.vmem [shape: f32[1,64], index: 10, kind: input, shape index: {}]
  %s11 = inlined_call_operand.vmem [shape: bf16[9,64,3], index: 11, kind: input, shape index: {}]
  %s12 = inlined_call_operand.vmem [shape: f32[1,3], index: 12, kind: input, shape index: {}]
  %s13 = inlined_call_operand.vmem [shape: bf16[4,110,256], index: 13, kind: input, shape index: {}]
  %s14 = inlined_call_operand.vmem [shape: bf16[4,42,80], index: 14, kind: input, shape index: {}]
  %s15 = inlined_call_operand.vmem [shape: bf16[4,12,24], index: 15, kind: input, shape index: {}]
  %s16 = inlined_call_operand.vmem [shape: bf16[4,30,6], index: 16, kind: input, shape index: {}]
  %s17 = inlined_call_operand.vmem [shape: bf16[4,90,20], index: 17, kind: input, shape index: {}]
  %s18 = inlined_call_operand.vmem [shape: bf16[4,256,72], index: 18, kind: input, shape index: {}]
  %s19 = inlined_call_operand.vmem [shape: f32[2,256,3], index: 19, kind: output, shape index: {}]
  %s20 = sld [smem:[#allocation0]]
  $region109: #{encoder_decoder_forward.1} parent=0
    _
  %s22 = ssub.s32 1, %s20
  %s23 = scalar_select 0, %s22, %s20
  loop: start=0, step=1, limit=4
  $region2: #{encoder_decoder_forward.1} parent=0 // loop_pre_header
    _
  $region3: #{encoder_decoder_forward.1} parent=0 // loop_header
    %s25 = sphi 0, %s29
    %p26 = scmp.ge.s32.totalorder %s25, 4
    %s35 = sphi 0, %s37
    %s38 = sphi 0, %s35
    %s39 = sphi 0, %s38
    %s55 = sphi 0, %s39
    %s59 = sphi 0, %s59
    %s61 = sphi 0, %s59
    %s62 = sphi 0, %s61
    %s76 = sphi 0, %s62
    %s80 = sphi 0, %s80
    %s82 = sphi 0, %s80
    %s83 = sphi 0, %s82
    %s97 = sphi 0, %s83
    %s101 = sphi 0, %s101
    %s103 = sphi 0, %s101
    %s104 = sphi 0, %s103
    %s118 = sphi 0, %s104
    %s122 = sphi 0, %s122
    %s124 = sphi 0, %s122
    %s125 = sphi 0, %s124
    %s139 = sphi 0, %s125
    %s143 = sphi 0, %s143
    %s145 = sphi 0, %s143
    %s146 = sphi 0, %s145
    %s160 = sphi 0, %s146
    %s164 = sphi 0, %s164
    %s166 = sphi 0, %s164
    %s167 = sphi 0, %s166
    %s181 = sphi 0, %s167
    %s185 = sphi 0, %s185
    %s187 = sphi 0, %s185
    %s188 = sphi 0, %s187
    %s202 = sphi 0, %s188
    %s206 = sphi 0, %s206
    %s208 = sphi 0, %s206
    %s209 = sphi 0, %s208
    %s223 = sphi 0, %s209
    %s227 = sphi 0, %s227
    %s229 = sphi 0, %s227
    %s230 = sphi 0, %s229
    %s244 = sphi 0, %s230
    %s248 = sphi 0, %s248
    %s250 = sphi 0, %s248
    %s251 = sphi 0, %s250
    %s265 = sphi 0, %s251
    %s269 = sphi 0, %s269
    %s271 = sphi 0, %s269
    %s272 = sphi 0, %s271
    %s286 = sphi 0, %s272
    %s290 = sphi 0, %s290
    %s292 = sphi 0, %s290
    %s293 = sphi 0, %s292
    %s307 = sphi 0, %s293
    %s311 = sphi 0, %s311
    %s313 = sphi 0, %s311
    %s314 = sphi 0, %s313
    %s328 = sphi 0, %s314
    %s332 = sphi 0, %s332
    %s334 = sphi 0, %s332
    %s335 = sphi 0, %s334
    %s349 = sphi 0, %s335
    %s353 = sphi 0, %s353
    %s355 = sphi 0, %s353
    %s356 = sphi 0, %s355
    %s370 = sphi 0, %s356
    %s374 = sphi 0, %s374
    %s376 = sphi 0, %s374
    %s377 = sphi 0, %s376
    %s391 = sphi 0, %s377
    %s395 = sphi 0, %s395
    %s397 = sphi 0, %s395
    %s398 = sphi 0, %s397
    %s412 = sphi 0, %s398
    %s416 = sphi 0, %s416
    %s418 = sphi 0, %s416
    %s419 = sphi 0, %s418
    %s433 = sphi 0, %s419
    %s439 = sphi 0, %s441
    %s442 = sphi 0, %s439
    %s443 = sphi 0, %s442
    %s459 = sphi 0, %s443
  $region4: #{encoder_decoder_forward.1} parent=0 // loop_header_branch
    %28 = sbr.rel (%p26) target = $region8
  $region5: #{encoder_decoder_forward.1} parent=0 // loop_body
    %s30 = ssub.s32 %s25, 1
    %s31 = ssub.s32 %s25, 2
    %s32 = sadd.s32 %s25, 1
    %s33 = ssub.s32 %s25, %s32
    %p34 = scmp.eq.s32.totalorder %s33, 0
    %s36 = sadd.s32 %s35, 1
    %s37 = scalar_select %p34, %s35, %s36
    %p40 = pneg %p34
    %p41 = scmp.eq.s32.totalorder %s25, 1
    %p42 = por %p40, %p41
    %p43 = scmp.ne.s32.totalorder %s35, %s38
    %p44 = scmp.eq.s32.totalorder %s25, 0
    %p45 = por %p43, %p44
    %p46 = scmp.ne.s32.totalorder %s35, %s38
    %p47 = scmp.eq.s32.totalorder %s30, 1
    %p48 = por %p46, %p47
    %p49 = scmp.ne.s32.totalorder %s38, %s39
    %p50 = scmp.eq.s32.totalorder %s30, 0
    %p51 = por %p49, %p50
    %p52 = scmp.ne.s32.totalorder %s38, %s39
    %p53 = scmp.eq.s32.totalorder %s31, 1
    %p54 = por %p52, %p53
    %p56 = scmp.ne.s32.totalorder %s39, %s55
    %p57 = scmp.eq.s32.totalorder %s31, 0
    %p58 = por %p56, %p57
    %s60 = sadd.s32 %s59, 1
    %p63 = scmp.eq.s32.totalorder %s25, 1
    %p64 = scmp.ne.s32.totalorder %s59, %s61
    %p65 = scmp.eq.s32.totalorder %s25, 0
    %p66 = por %p64, %p65
    %p67 = scmp.ne.s32.totalorder %s59, %s61
    %p68 = scmp.eq.s32.totalorder %s30, 1
    %p69 = por %p67, %p68
    %p70 = scmp.ne.s32.totalorder %s61, %s62
    %p71 = scmp.eq.s32.totalorder %s30, 0
    %p72 = por %p70, %p71
    %p73 = scmp.ne.s32.totalorder %s61, %s62
    %p74 = scmp.eq.s32.totalorder %s31, 1
    %p75 = por %p73, %p74
    %p77 = scmp.ne.s32.totalorder %s62, %s76
    %p78 = scmp.eq.s32.totalorder %s31, 0
    %p79 = por %p77, %p78
    %s81 = sadd.s32 %s80, 1
    %p84 = scmp.eq.s32.totalorder %s25, 1
    %p85 = scmp.ne.s32.totalorder %s80, %s82
    %p86 = scmp.eq.s32.totalorder %s25, 0
    %p87 = por %p85, %p86
    %p88 = scmp.ne.s32.totalorder %s80, %s82
    %p89 = scmp.eq.s32.totalorder %s30, 1
    %p90 = por %p88, %p89
    %p91 = scmp.ne.s32.totalorder %s82, %s83
    %p92 = scmp.eq.s32.totalorder %s30, 0
    %p93 = por %p91, %p92
    %p94 = scmp.ne.s32.totalorder %s82, %s83
    %p95 = scmp.eq.s32.totalorder %s31, 1
    %p96 = por %p94, %p95
    %p98 = scmp.ne.s32.totalorder %s83, %s97
    %p99 = scmp.eq.s32.totalorder %s31, 0
    %p100 = por %p98, %p99
    %s102 = sadd.s32 %s101, 1
    %p105 = scmp.eq.s32.totalorder %s25, 1
    %p106 = scmp.ne.s32.totalorder %s101, %s103
    %p107 = scmp.eq.s32.totalorder %s25, 0
    %p108 = por %p106, %p107
    %p109 = scmp.ne.s32.totalorder %s101, %s103
    %p110 = scmp.eq.s32.totalorder %s30, 1
    %p111 = por %p109, %p110
    %p112 = scmp.ne.s32.totalorder %s103, %s104
    %p113 = scmp.eq.s32.totalorder %s30, 0
    %p114 = por %p112, %p113
    %p115 = scmp.ne.s32.totalorder %s103, %s104
    %p116 = scmp.eq.s32.totalorder %s31, 1
    %p117 = por %p115, %p116
    %p119 = scmp.ne.s32.totalorder %s104, %s118
    %p120 = scmp.eq.s32.totalorder %s31, 0
    %p121 = por %p119, %p120
    %s123 = sadd.s32 %s122, 1
    %p126 = scmp.eq.s32.totalorder %s25, 1
    %p127 = scmp.ne.s32.totalorder %s122, %s124
    %p128 = scmp.eq.s32.totalorder %s25, 0
    %p129 = por %p127, %p128
    %p130 = scmp.ne.s32.totalorder %s122, %s124
    %p131 = scmp.eq.s32.totalorder %s30, 1
    %p132 = por %p130, %p131
    %p133 = scmp.ne.s32.totalorder %s124, %s125
    %p134 = scmp.eq.s32.totalorder %s30, 0
    %p135 = por %p133, %p134
    %p136 = scmp.ne.s32.totalorder %s124, %s125
    %p137 = scmp.eq.s32.totalorder %s31, 1
    %p138 = por %p136, %p137
    %p140 = scmp.ne.s32.totalorder %s125, %s139
    %p141 = scmp.eq.s32.totalorder %s31, 0
    %p142 = por %p140, %p141
    %s144 = sadd.s32 %s143, 1
    %p147 = scmp.eq.s32.totalorder %s25, 1
    %p148 = scmp.ne.s32.totalorder %s143, %s145
    %p149 = scmp.eq.s32.totalorder %s25, 0
    %p150 = por %p148, %p149
    %p151 = scmp.ne.s32.totalorder %s143, %s145
    %p152 = scmp.eq.s32.totalorder %s30, 1
    %p153 = por %p151, %p152
    %p154 = scmp.ne.s32.totalorder %s145, %s146
    %p155 = scmp.eq.s32.totalorder %s30, 0
    %p156 = por %p154, %p155
    %p157 = scmp.ne.s32.totalorder %s145, %s146
    %p158 = scmp.eq.s32.totalorder %s31, 1
    %p159 = por %p157, %p158
    %p161 = scmp.ne.s32.totalorder %s146, %s160
    %p162 = scmp.eq.s32.totalorder %s31, 0
    %p163 = por %p161, %p162
    %s165 = sadd.s32 %s164, 1
    %p168 = scmp.eq.s32.totalorder %s25, 1
    %p169 = scmp.ne.s32.totalorder %s164, %s166
    %p170 = scmp.eq.s32.totalorder %s25, 0
    %p171 = por %p169, %p170
    %p172 = scmp.ne.s32.totalorder %s164, %s166
    %p173 = scmp.eq.s32.totalorder %s30, 1
    %p174 = por %p172, %p173
    %p175 = scmp.ne.s32.totalorder %s166, %s167
    %p176 = scmp.eq.s32.totalorder %s30, 0
    %p177 = por %p175, %p176
    %p178 = scmp.ne.s32.totalorder %s166, %s167
    %p179 = scmp.eq.s32.totalorder %s31, 1
    %p180 = por %p178, %p179
    %p182 = scmp.ne.s32.totalorder %s167, %s181
    %p183 = scmp.eq.s32.totalorder %s31, 0
    %p184 = por %p182, %p183
    %s186 = sadd.s32 %s185, 1
    %p189 = scmp.eq.s32.totalorder %s25, 1
    %p190 = scmp.ne.s32.totalorder %s185, %s187
    %p191 = scmp.eq.s32.totalorder %s25, 0
    %p192 = por %p190, %p191
    %p193 = scmp.ne.s32.totalorder %s185, %s187
    %p194 = scmp.eq.s32.totalorder %s30, 1
    %p195 = por %p193, %p194
    %p196 = scmp.ne.s32.totalorder %s187, %s188
    %p197 = scmp.eq.s32.totalorder %s30, 0
    %p198 = por %p196, %p197
    %p199 = scmp.ne.s32.totalorder %s187, %s188
    %p200 = scmp.eq.s32.totalorder %s31, 1
    %p201 = por %p199, %p200
    %p203 = scmp.ne.s32.totalorder %s188, %s202
    %p204 = scmp.eq.s32.totalorder %s31, 0
    %p205 = por %p203, %p204
    %s207 = sadd.s32 %s206, 1
    %p210 = scmp.eq.s32.totalorder %s25, 1
    %p211 = scmp.ne.s32.totalorder %s206, %s208
    %p212 = scmp.eq.s32.totalorder %s25, 0
    %p213 = por %p211, %p212
    %p214 = scmp.ne.s32.totalorder %s206, %s208
    %p215 = scmp.eq.s32.totalorder %s30, 1
    %p216 = por %p214, %p215
    %p217 = scmp.ne.s32.totalorder %s208, %s209
    %p218 = scmp.eq.s32.totalorder %s30, 0
    %p219 = por %p217, %p218
    %p220 = scmp.ne.s32.totalorder %s208, %s209
    %p221 = scmp.eq.s32.totalorder %s31, 1
    %p222 = por %p220, %p221
    %p224 = scmp.ne.s32.totalorder %s209, %s223
    %p225 = scmp.eq.s32.totalorder %s31, 0
    %p226 = por %p224, %p225
    %s228 = sadd.s32 %s227, 1
    %p231 = scmp.eq.s32.totalorder %s25, 1
    %p232 = scmp.ne.s32.totalorder %s227, %s229
    %p233 = scmp.eq.s32.totalorder %s25, 0
    %p234 = por %p232, %p233
    %p235 = scmp.ne.s32.totalorder %s227, %s229
    %p236 = scmp.eq.s32.totalorder %s30, 1
    %p237 = por %p235, %p236
    %p238 = scmp.ne.s32.totalorder %s229, %s230
    %p239 = scmp.eq.s32.totalorder %s30, 0
    %p240 = por %p238, %p239
    %p241 = scmp.ne.s32.totalorder %s229, %s230
    %p242 = scmp.eq.s32.totalorder %s31, 1
    %p243 = por %p241, %p242
    %p245 = scmp.ne.s32.totalorder %s230, %s244
    %p246 = scmp.eq.s32.totalorder %s31, 0
    %p247 = por %p245, %p246
    %s249 = sadd.s32 %s248, 1
    %p252 = scmp.eq.s32.totalorder %s25, 1
    %p253 = scmp.ne.s32.totalorder %s248, %s250
    %p254 = scmp.eq.s32.totalorder %s25, 0
    %p255 = por %p253, %p254
    %p256 = scmp.ne.s32.totalorder %s248, %s250
    %p257 = scmp.eq.s32.totalorder %s30, 1
    %p258 = por %p256, %p257
    %p259 = scmp.ne.s32.totalorder %s250, %s251
    %p260 = scmp.eq.s32.totalorder %s30, 0
    %p261 = por %p259, %p260
    %p262 = scmp.ne.s32.totalorder %s250, %s251
    %p263 = scmp.eq.s32.totalorder %s31, 1
    %p264 = por %p262, %p263
    %p266 = scmp.ne.s32.totalorder %s251, %s265
    %p267 = scmp.eq.s32.totalorder %s31, 0
    %p268 = por %p266, %p267
    %s270 = sadd.s32 %s269, 1
    %p273 = scmp.eq.s32.totalorder %s25, 1
    %p274 = scmp.ne.s32.totalorder %s269, %s271
    %p275 = scmp.eq.s32.totalorder %s25, 0
    %p276 = por %p274, %p275
    %p277 = scmp.ne.s32.totalorder %s269, %s271
    %p278 = scmp.eq.s32.totalorder %s30, 1
    %p279 = por %p277, %p278
    %p280 = scmp.ne.s32.totalorder %s271, %s272
    %p281 = scmp.eq.s32.totalorder %s30, 0
    %p282 = por %p280, %p281
    %p283 = scmp.ne.s32.totalorder %s271, %s272
    %p284 = scmp.eq.s32.totalorder %s31, 1
    %p285 = por %p283, %p284
    %p287 = scmp.ne.s32.totalorder %s272, %s286
    %p288 = scmp.eq.s32.totalorder %s31, 0
    %p289 = por %p287, %p288
    %s291 = sadd.s32 %s290, 1
    %p294 = scmp.eq.s32.totalorder %s25, 1
    %p295 = scmp.ne.s32.totalorder %s290, %s292
    %p296 = scmp.eq.s32.totalorder %s25, 0
    %p297 = por %p295, %p296
    %p298 = scmp.ne.s32.totalorder %s290, %s292
    %p299 = scmp.eq.s32.totalorder %s30, 1
    %p300 = por %p298, %p299
    %p301 = scmp.ne.s32.totalorder %s292, %s293
    %p302 = scmp.eq.s32.totalorder %s30, 0
    %p303 = por %p301, %p302
    %p304 = scmp.ne.s32.totalorder %s292, %s293
    %p305 = scmp.eq.s32.totalorder %s31, 1
    %p306 = por %p304, %p305
    %p308 = scmp.ne.s32.totalorder %s293, %s307
    %p309 = scmp.eq.s32.totalorder %s31, 0
    %p310 = por %p308, %p309
    %s312 = sadd.s32 %s311, 1
    %p315 = scmp.eq.s32.totalorder %s25, 1
    %p316 = scmp.ne.s32.totalorder %s311, %s313
    %p317 = scmp.eq.s32.totalorder %s25, 0
    %p318 = por %p316, %p317
    %p319 = scmp.ne.s32.totalorder %s311, %s313
    %p320 = scmp.eq.s32.totalorder %s30, 1
    %p321 = por %p319, %p320
    %p322 = scmp.ne.s32.totalorder %s313, %s314
    %p323 = scmp.eq.s32.totalorder %s30, 0
    %p324 = por %p322, %p323
    %p325 = scmp.ne.s32.totalorder %s313, %s314
    %p326 = scmp.eq.s32.totalorder %s31, 1
    %p327 = por %p325, %p326
    %p329 = scmp.ne.s32.totalorder %s314, %s328
    %p330 = scmp.eq.s32.totalorder %s31, 0
    %p331 = por %p329, %p330
    %s333 = sadd.s32 %s332, 1
    %p336 = scmp.eq.s32.totalorder %s25, 1
    %p337 = scmp.ne.s32.totalorder %s332, %s334
    %p338 = scmp.eq.s32.totalorder %s25, 0
    %p339 = por %p337, %p338
    %p340 = scmp.ne.s32.totalorder %s332, %s334
    %p341 = scmp.eq.s32.totalorder %s30, 1
    %p342 = por %p340, %p341
    %p343 = scmp.ne.s32.totalorder %s334, %s335
    %p344 = scmp.eq.s32.totalorder %s30, 0
    %p345 = por %p343, %p344
    %p346 = scmp.ne.s32.totalorder %s334, %s335
    %p347 = scmp.eq.s32.totalorder %s31, 1
    %p348 = por %p346, %p347
    %p350 = scmp.ne.s32.totalorder %s335, %s349
    %p351 = scmp.eq.s32.totalorder %s31, 0
    %p352 = por %p350, %p351
    %s354 = sadd.s32 %s353, 1
    %p357 = scmp.eq.s32.totalorder %s25, 1
    %p358 = scmp.ne.s32.totalorder %s353, %s355
    %p359 = scmp.eq.s32.totalorder %s25, 0
    %p360 = por %p358, %p359
    %p361 = scmp.ne.s32.totalorder %s353, %s355
    %p362 = scmp.eq.s32.totalorder %s30, 1
    %p363 = por %p361, %p362
    %p364 = scmp.ne.s32.totalorder %s355, %s356
    %p365 = scmp.eq.s32.totalorder %s30, 0
    %p366 = por %p364, %p365
    %p367 = scmp.ne.s32.totalorder %s355, %s356
    %p368 = scmp.eq.s32.totalorder %s31, 1
    %p369 = por %p367, %p368
    %p371 = scmp.ne.s32.totalorder %s356, %s370
    %p372 = scmp.eq.s32.totalorder %s31, 0
    %p373 = por %p371, %p372
    %s375 = sadd.s32 %s374, 1
    %p378 = scmp.eq.s32.totalorder %s25, 1
    %p379 = scmp.ne.s32.totalorder %s374, %s376
    %p380 = scmp.eq.s32.totalorder %s25, 0
    %p381 = por %p379, %p380
    %p382 = scmp.ne.s32.totalorder %s374, %s376
    %p383 = scmp.eq.s32.totalorder %s30, 1
    %p384 = por %p382, %p383
    %p385 = scmp.ne.s32.totalorder %s376, %s377
    %p386 = scmp.eq.s32.totalorder %s30, 0
    %p387 = por %p385, %p386
    %p388 = scmp.ne.s32.totalorder %s376, %s377
    %p389 = scmp.eq.s32.totalorder %s31, 1
    %p390 = por %p388, %p389
    %p392 = scmp.ne.s32.totalorder %s377, %s391
    %p393 = scmp.eq.s32.totalorder %s31, 0
    %p394 = por %p392, %p393
    %s396 = sadd.s32 %s395, 1
    %p399 = scmp.eq.s32.totalorder %s25, 1
    %p400 = scmp.ne.s32.totalorder %s395, %s397
    %p401 = scmp.eq.s32.totalorder %s25, 0
    %p402 = por %p400, %p401
    %p403 = scmp.ne.s32.totalorder %s395, %s397
    %p404 = scmp.eq.s32.totalorder %s30, 1
    %p405 = por %p403, %p404
    %p406 = scmp.ne.s32.totalorder %s397, %s398
    %p407 = scmp.eq.s32.totalorder %s30, 0
    %p408 = por %p406, %p407
    %p409 = scmp.ne.s32.totalorder %s397, %s398
    %p410 = scmp.eq.s32.totalorder %s31, 1
    %p411 = por %p409, %p410
    %p413 = scmp.ne.s32.totalorder %s398, %s412
    %p414 = scmp.eq.s32.totalorder %s31, 0
    %p415 = por %p413, %p414
    %s417 = sadd.s32 %s416, 1
    %p420 = scmp.eq.s32.totalorder %s25, 1
    %p421 = scmp.ne.s32.totalorder %s416, %s418
    %p422 = scmp.eq.s32.totalorder %s25, 0
    %p423 = por %p421, %p422
    %p424 = scmp.ne.s32.totalorder %s416, %s418
    %p425 = scmp.eq.s32.totalorder %s30, 1
    %p426 = por %p424, %p425
    %p427 = scmp.ne.s32.totalorder %s418, %s419
    %p428 = scmp.eq.s32.totalorder %s30, 0
    %p429 = por %p427, %p428
    %p430 = scmp.ne.s32.totalorder %s418, %s419
    %p431 = scmp.eq.s32.totalorder %s31, 1
    %p432 = por %p430, %p431
    %p434 = scmp.ne.s32.totalorder %s419, %s433
    %p435 = scmp.eq.s32.totalorder %s31, 0
    %p436 = por %p434, %p435
    %s437 = ssub.s32 %s25, %s32
    %p438 = scmp.eq.s32.totalorder %s437, 0
    %s440 = sadd.s32 %s439, 1
    %s441 = scalar_select %p438, %s439, %s440
    %p444 = pneg %p438
    %p445 = scmp.eq.s32.totalorder %s25, 1
    %p446 = por %p444, %p445
    %p447 = scmp.ne.s32.totalorder %s439, %s442
    %p448 = scmp.eq.s32.totalorder %s25, 0
    %p449 = por %p447, %p448
    %p450 = scmp.ne.s32.totalorder %s439, %s442
    %p451 = scmp.eq.s32.totalorder %s30, 1
    %p452 = por %p450, %p451
    %p453 = scmp.ne.s32.totalorder %s442, %s443
    %p454 = scmp.eq.s32.totalorder %s30, 0
    %p455 = por %p453, %p454
    %p456 = scmp.ne.s32.totalorder %s442, %s443
    %p457 = scmp.eq.s32.totalorder %s31, 1
    %p458 = por %p456, %p457
    %p460 = scmp.ne.s32.totalorder %s443, %s459
    %p461 = scmp.eq.s32.totalorder %s31, 0
    %p462 = por %p460, %p461
    %p463 = scmp.le.s32.totalorder 1, %s25
    %p464 = scmp.lt.s32.totalorder %s25, 3
    %p465 = pnand %p463, %p464
    %p466 = pneg %p465
    // Predicated region
    $region9: #{encoder_decoder_forward.1} parent=5 // pred_check
      _
    $region10: #{encoder_decoder_forward.1} parent=5 // pred_check_branch
      %468 = sbr.rel (%p465) target = $region12
    $region11: #{encoder_decoder_forward.1} parent=5 // pred_region
      %s469 = ssub.s32 %s25, 1
      // Predicated region
      $region13: #{encoder_decoder_forward.1} parent=11 // pred_check
        %p470 = pneg %p72
      $region14: #{encoder_decoder_forward.1} parent=11 // pred_check_branch
        %472 = sbr.rel (%p470) target = $region16
      $region15: #{encoder_decoder_forward.1} parent=11 // pred_region
        _
      $region16: #{encoder_decoder_forward.1} parent=11 // pred_fallthru
        _
      // Predicated region
      $region17: #{encoder_decoder_forward.1} parent=11 // pred_check
        %p473 = pneg %p93
      $region18: #{encoder_decoder_forward.1} parent=11 // pred_check_branch
        %475 = sbr.rel (%p473) target = $region20
      $region19: #{encoder_decoder_forward.1} parent=11 // pred_region
        _
      $region20: #{encoder_decoder_forward.1} parent=11 // pred_fallthru
        _
      // Predicated region
      $region21: #{encoder_decoder_forward.1} parent=11 // pred_check
        %p476 = pneg %p114
      $region22: #{encoder_decoder_forward.1} parent=11 // pred_check_branch
        %478 = sbr.rel (%p476) target = $region24
      $region23: #{encoder_decoder_forward.1} parent=11 // pred_region
        _
      $region24: #{encoder_decoder_forward.1} parent=11 // pred_fallthru
        _
      // Predicated region
      $region25: #{encoder_decoder_forward.1} parent=11 // pred_check
        %p479 = pneg %p135
      $region26: #{encoder_decoder_forward.1} parent=11 // pred_check_branch
        %481 = sbr.rel (%p479) target = $region28
      $region27: #{encoder_decoder_forward.1} parent=11 // pred_region
        _
      $region28: #{encoder_decoder_forward.1} parent=11 // pred_fallthru
        _
      // Predicated region
      $region29: #{encoder_decoder_forward.1} parent=11 // pred_check
        %p482 = pneg %p156
      $region30: #{encoder_decoder_forward.1} parent=11 // pred_check_branch
        %484 = sbr.rel (%p482) target = $region32
      $region31: #{encoder_decoder_forward.1} parent=11 // pred_region
        _
      $region32: #{encoder_decoder_forward.1} parent=11 // pred_fallthru
        _
      // Predicated region
      $region33: #{encoder_decoder_forward.1} parent=11 // pred_check
        %p485 = pneg %p177
      $region34: #{encoder_decoder_forward.1} parent=11 // pred_check_branch
        %487 = sbr.rel (%p485) target = $region36
      $region35: #{encoder_decoder_forward.1} parent=11 // pred_region
        _
      $region36: #{encoder_decoder_forward.1} parent=11 // pred_fallthru
        _
      // Predicated region
      $region37: #{encoder_decoder_forward.1} parent=11 // pred_check
        %p488 = pneg %p198
      $region38: #{encoder_decoder_forward.1} parent=11 // pred_check_branch
        %490 = sbr.rel (%p488) target = $region40
      $region39: #{encoder_decoder_forward.1} parent=11 // pred_region
        _
      $region40: #{encoder_decoder_forward.1} parent=11 // pred_fallthru
        _
      // Predicated region
      $region41: #{encoder_decoder_forward.1} parent=11 // pred_check
        %p491 = pneg %p219
      $region42: #{encoder_decoder_forward.1} parent=11 // pred_check_branch
        %493 = sbr.rel (%p491) target = $region44
      $region43: #{encoder_decoder_forward.1} parent=11 // pred_region
        _
      $region44: #{encoder_decoder_forward.1} parent=11 // pred_fallthru
        _
      // Predicated region
      $region45: #{encoder_decoder_forward.1} parent=11 // pred_check
        %p494 = pneg %p240
      $region46: #{encoder_decoder_forward.1} parent=11 // pred_check_branch
        %496 = sbr.rel (%p494) target = $region48
      $region47: #{encoder_decoder_forward.1} parent=11 // pred_region
        _
      $region48: #{encoder_decoder_forward.1} parent=11 // pred_fallthru
        _
      // Predicated region
      $region49: #{encoder_decoder_forward.1} parent=11 // pred_check
        %p497 = pneg %p261
      $region50: #{encoder_decoder_forward.1} parent=11 // pred_check_branch
        %499 = sbr.rel (%p497) target = $region52
      $region51: #{encoder_decoder_forward.1} parent=11 // pred_region
        _
      $region52: #{encoder_decoder_forward.1} parent=11 // pred_fallthru
        _
      // Predicated region
      $region53: #{encoder_decoder_forward.1} parent=11 // pred_check
        %p500 = pneg %p282
      $region54: #{encoder_decoder_forward.1} parent=11 // pred_check_branch
        %502 = sbr.rel (%p500) target = $region56
      $region55: #{encoder_decoder_forward.1} parent=11 // pred_region
        _
      $region56: #{encoder_decoder_forward.1} parent=11 // pred_fallthru
        _
      // Predicated region
      $region57: #{encoder_decoder_forward.1} parent=11 // pred_check
        %p503 = pneg %p303
      $region58: #{encoder_decoder_forward.1} parent=11 // pred_check_branch
        %505 = sbr.rel (%p503) target = $region60
      $region59: #{encoder_decoder_forward.1} parent=11 // pred_region
        _
      $region60: #{encoder_decoder_forward.1} parent=11 // pred_fallthru
        _
      // Predicated region
      $region61: #{encoder_decoder_forward.1} parent=11 // pred_check
        %p506 = pneg %p324
      $region62: #{encoder_decoder_forward.1} parent=11 // pred_check_branch
        %508 = sbr.rel (%p506) target = $region64
      $region63: #{encoder_decoder_forward.1} parent=11 // pred_region
        _
      $region64: #{encoder_decoder_forward.1} parent=11 // pred_fallthru
        _
      // Predicated region
      $region65: #{encoder_decoder_forward.1} parent=11 // pred_check
        %p509 = pneg %p345
      $region66: #{encoder_decoder_forward.1} parent=11 // pred_check_branch
        %511 = sbr.rel (%p509) target = $region68
      $region67: #{encoder_decoder_forward.1} parent=11 // pred_region
        _
      $region68: #{encoder_decoder_forward.1} parent=11 // pred_fallthru
        _
      // Predicated region
      $region69: #{encoder_decoder_forward.1} parent=11 // pred_check
        %p512 = pneg %p366
      $region70: #{encoder_decoder_forward.1} parent=11 // pred_check_branch
        %514 = sbr.rel (%p512) target = $region72
      $region71: #{encoder_decoder_forward.1} parent=11 // pred_region
        _
      $region72: #{encoder_decoder_forward.1} parent=11 // pred_fallthru
        _
      // Predicated region
      $region73: #{encoder_decoder_forward.1} parent=11 // pred_check
        %p515 = pneg %p387
      $region74: #{encoder_decoder_forward.1} parent=11 // pred_check_branch
        %517 = sbr.rel (%p515) target = $region76
      $region75: #{encoder_decoder_forward.1} parent=11 // pred_region
        _
      $region76: #{encoder_decoder_forward.1} parent=11 // pred_fallthru
        _
      // Predicated region
      $region77: #{encoder_decoder_forward.1} parent=11 // pred_check
        %p518 = pneg %p408
      $region78: #{encoder_decoder_forward.1} parent=11 // pred_check_branch
        %520 = sbr.rel (%p518) target = $region80
      $region79: #{encoder_decoder_forward.1} parent=11 // pred_region
        _
      $region80: #{encoder_decoder_forward.1} parent=11 // pred_fallthru
        _
      // Predicated region
      $region81: #{encoder_decoder_forward.1} parent=11 // pred_check
        %p521 = pneg %p429
      $region82: #{encoder_decoder_forward.1} parent=11 // pred_check_branch
        %523 = sbr.rel (%p521) target = $region84
      $region83: #{encoder_decoder_forward.1} parent=11 // pred_region
        _
      $region84: #{encoder_decoder_forward.1} parent=11 // pred_fallthru
        _
    $region12: #{encoder_decoder_forward.1} parent=5 // pred_fallthru
      _
    %p524 = scmp.lt.s32.totalorder %s25, 2
    // Predicated region
    $region85: #{encoder_decoder_forward.1} parent=5 // pred_check
      %p525 = pneg %p524
    $region86: #{encoder_decoder_forward.1} parent=5 // pred_check_branch
      %527 = sbr.rel (%p525) target = $region88
    $region87: #{encoder_decoder_forward.1} parent=5 // pred_region
      // Predicated region
      $region89: #{encoder_decoder_forward.1} parent=87 // pred_check
        %p528 = pneg %p45
      $region90: #{encoder_decoder_forward.1} parent=87 // pred_check_branch
        %530 = sbr.rel (%p528) target = $region92
      $region91: #{encoder_decoder_forward.1} parent=87 // pred_region
        %p531 = scmp.lt.s32.totalorder %s25, 1
        %s532 = scalar_select %p531, %s25, 1
        %s533 = smul.addr %s532, 32
        %s534 = smul.addr %s533, 4
        %s535 = scalar_lea.vmem %s0, %s534
      $region92: #{encoder_decoder_forward.1} parent=87 // pred_fallthru
        _
    $region88: #{encoder_decoder_forward.1} parent=5 // pred_fallthru
      _
    %p536 = scmp.le.s32.totalorder 1, %s25
    %p537 = scmp.lt.s32.totalorder %s25, 3
    %p538 = pnand %p536, %p537
    %p539 = pneg %p538
    // Predicated region
    $region93: #{encoder_decoder_forward.1} parent=5 // pred_check
      _
    $region94: #{encoder_decoder_forward.1} parent=5 // pred_check_branch
      %541 = sbr.rel (%p538) target = $region96
    $region95: #{encoder_decoder_forward.1} parent=5 // pred_region
      %s542 = ssub.s32 %s25, 1
      %p543 = scmp.lt.s32.totalorder %s30, 1
      %s544 = scalar_select %p543, %s30, 1
      %s545 = smul.addr %s544, 32
      %s546 = smul.addr %s545, 4
      %s547 = scalar_lea.vmem %s0, %s546
      %p548 = pneg %p51
      %p549 = pneg %p48
      %p550 = pneg %p72
      %p551 = pneg %p69
      %p552 = pneg %p93
      %p553 = pneg %p90
      %p554 = pneg %p114
      %p555 = pneg %p111
      %p556 = pneg %p135
      %p557 = pneg %p132
      %p558 = pneg %p156
      %p559 = pneg %p153
      %p560 = pneg %p177
      %p561 = pneg %p174
      %p562 = pneg %p198
      %p563 = pneg %p195
      %p564 = pneg %p219
      %p565 = pneg %p216
      %p566 = pneg %p240
      %p567 = pneg %p237
      %p568 = pneg %p261
      %p569 = pneg %p258
      %p570 = pneg %p282
      %p571 = pneg %p279
      %p572 = pneg %p303
      %p573 = pneg %p300
      %p574 = pneg %p324
      %p575 = pneg %p321
      %p576 = pneg %p345
      %p577 = pneg %p342
      %p578 = pneg %p366
      %p579 = pneg %p363
      %p580 = pneg %p387
      %p581 = pneg %p384
      %p582 = pneg %p408
      %p583 = pneg %p405
      %p584 = pneg %p429
      %p585 = pneg %p426
      %p586 = pneg %p455
      %p587 = pneg %p452
      %p588 = scmp.lt.s32.totalorder %s30, 1
      %s589 = scalar_select %p588, %s30, 1
      %s590 = smul.addr %s589, 32
      %s591 = smul.addr %s590, 8
      %s592 = scalar_lea.vmem %s19, %s591
      %p593 = scmp.lt.s32.totalorder %s30, 1
      %s594 = scalar_select %p593, %s30, 1
      %s595 = smul.addr %s594, 32
      %s596 = smul.addr %s595, 4
      %s597 = scalar_lea.vmem %s0, %s596
      %p598 = scmp.lt.s32.totalorder %s30, 1
      %s599 = scalar_select %p598, %s30, 1
      %s600 = smul.addr %s599, 32
      %s601 = smul.addr %s600, 8
      %s602 = scalar_lea.vmem %s19, %s601
      %v604 = vld [vmem:[%s597] sm:$0xf]
      %v605 = vld [vmem:[%s597 + $0x4] sm:$0xf]
      %v606 = vld [vmem:[%s597 + $0x8] sm:$0xf]
      %v607 = vld [vmem:[%s597 + $0xc] sm:$0xf]
      %v608 = vld [vmem:[%s597 + $0x10] sm:$0xf]
      %v609 = vld [vmem:[%s597 + $0x14] sm:$0xf]
      %v610 = vld [vmem:[%s597 + $0x18] sm:$0xf]
      %v611 = vld [vmem:[%s597 + $0x1c] sm:$0xf]
      %v612 = vld [vmem:[%s597 + $0x20] sm:$0xf]
      %v613 = vld [vmem:[%s597 + $0x24] sm:$0xf]
      %v614 = vld [vmem:[%s597 + $0x28] sm:$0xf]
      %v615 = vld [vmem:[%s597 + $0x2c] sm:$0xf]
      %v616 = vld [vmem:[%s597 + $0x30] sm:$0xf]
      %v617 = vld [vmem:[%s597 + $0x34] sm:$0xf]
      %v618 = vld [vmem:[%s597 + $0x38] sm:$0xf]
      %v619 = vld [vmem:[%s597 + $0x3c] sm:$0xf]
      %v620 = vld [vmem:[%s597 + $0x40] sm:$0xf]
      %v621 = vld [vmem:[%s597 + $0x44] sm:$0xf]
      %v622 = vld [vmem:[%s597 + $0x48] sm:$0xf]
      %v623 = vld [vmem:[%s597 + $0x4c] sm:$0xf]
      %v624 = vld [vmem:[%s597 + $0x50] sm:$0xf]
      %v625 = vld [vmem:[%s597 + $0x54] sm:$0xf]
      %v626 = vld [vmem:[%s597 + $0x58] sm:$0xf]
      %v627 = vld [vmem:[%s597 + $0x5c] sm:$0xf]
      %v628 = vld [vmem:[%s597 + $0x60] sm:$0xf]
      %v629 = vld [vmem:[%s597 + $0x64] sm:$0xf]
      %v630 = vld [vmem:[%s597 + $0x68] sm:$0xf]
      %v631 = vld [vmem:[%s597 + $0x6c] sm:$0xf]
      %v632 = vld [vmem:[%s597 + $0x70] sm:$0xf]
      %v633 = vld [vmem:[%s597 + $0x74] sm:$0xf]
      %v634 = vld [vmem:[%s597 + $0x78] sm:$0xf]
      %v635 = vld [vmem:[%s597 + $0x7c] sm:$0xf]
      %v636 = vld [vmem:[%s1] sm:$0xf]
      %v637 = vld [vmem:[%s1 + $0x4] sm:$0xf]
      %v638 = vld [vmem:[%s1 + $0x8] sm:$0xf]
      %v639 = vld [vmem:[%s1 + $0xc] sm:$0xf]
      %v640 = vld [vmem:[%s1 + $0x10] sm:$0x3]
      %v641 = vld [vmem:[%s2] sm:$0x1]
      %v643 = vlaneseq
      %v644 = vshrl.u32 %v643, 7
      %v645 = vsub.s32 0, %v644
      %v646 = vrot.slane %v641, %v645
      %v680 = vunpack.c.l.b16 %v604
      %v681 = vunpack.c.l.b16 %v605
      %v682 = vunpack.c.l.b16 %v606
      %v683 = vunpack.c.l.b16 %v607
      %v684 = vunpack.c.l.b16 %v608
      %v685 = vunpack.c.l.b16 %v609
      %v686 = vunpack.c.l.b16 %v610
      %v687 = vunpack.c.l.b16 %v611
      %v688 = vunpack.c.l.b16 %v612
      %v689 = vunpack.c.l.b16 %v613
      %v690 = vunpack.c.l.b16 %v614
      %v691 = vunpack.c.l.b16 %v615
      %v692 = vunpack.c.l.b16 %v616
      %v693 = vunpack.c.l.b16 %v617
      %v694 = vunpack.c.l.b16 %v618
      %v695 = vunpack.c.l.b16 %v619
      %v696 = vunpack.c.l.b16 %v620
      %v697 = vunpack.c.l.b16 %v621
      %v698 = vunpack.c.l.b16 %v622
      %v699 = vunpack.c.l.b16 %v623
      %v700 = vunpack.c.l.b16 %v624
      %v701 = vunpack.c.l.b16 %v625
      %v702 = vunpack.c.l.b16 %v626
      %v703 = vunpack.c.l.b16 %v627
      %v704 = vunpack.c.l.b16 %v628
      %v705 = vunpack.c.l.b16 %v629
      %v706 = vunpack.c.l.b16 %v630
      %v707 = vunpack.c.l.b16 %v631
      %v708 = vunpack.c.l.b16 %v632
      %v709 = vunpack.c.l.b16 %v633
      %v710 = vunpack.c.l.b16 %v634
      %v711 = vunpack.c.l.b16 %v635
      %v712 = vpack.c.b16 %v681, %v680
      %v713 = vpack.c.b16 %v683, %v682
      %v714 = vpack.c.b16 %v685, %v684
      %v715 = vpack.c.b16 %v687, %v686
      %v716 = vpack.c.b16 %v689, %v688
      %v717 = vpack.c.b16 %v691, %v690
      %v718 = vpack.c.b16 %v693, %v692
      %v719 = vpack.c.b16 %v695, %v694
      %v720 = vpack.c.b16 %v697, %v696
      %v721 = vpack.c.b16 %v699, %v698
      %v722 = vpack.c.b16 %v701, %v700
      %v723 = vpack.c.b16 %v703, %v702
      %v724 = vpack.c.b16 %v705, %v704
      %v725 = vpack.c.b16 %v707, %v706
      %v726 = vpack.c.b16 %v709, %v708
      %v727 = vpack.c.b16 %v711, %v710
      %v733 = vunpack.c.l.b16 %v636
      %v734 = vunpack.c.l.b16 %v637
      %v735 = vunpack.c.l.b16 %v638
      %v736 = vunpack.c.l.b16 %v639
      %v737 = vunpack.c.l.b16 %v640
      %v738 = vpack.c.b16 %v734, %v733
      %v739 = vpack.c.b16 %v736, %v735
      %v740 = vpack.c.b16 %v737, %v737
      %vm743 = vcmask 293888
      %v745 = vsel %vm743, %v712, 0
      %v748 = vsel %vm743, %v713, 0
      %v751 = vsel %vm743, %v714, 0
      %v754 = vsel %vm743, %v715, 0
      %v757 = vsel %vm743, %v716, 0
      %v760 = vsel %vm743, %v717, 0
      %v763 = vsel %vm743, %v718, 0
      %v766 = vsel %vm743, %v719, 0
      %v769 = vsel %vm743, %v720, 0
      %v772 = vsel %vm743, %v721, 0
      %v775 = vsel %vm743, %v722, 0
      %v778 = vsel %vm743, %v723, 0
      %v781 = vsel %vm743, %v724, 0
      %v784 = vsel %vm743, %v725, 0
      %v787 = vsel %vm743, %v726, 0
      %v790 = vsel %vm743, %v727, 0
      %vm792 = vcmask 1041408
      %v794 = vsel %vm792, %v740, 0
      %796 = vmatprep.subr.bf16.mxu0 0
      %797 = vmatpush1.bf16.msra.mxu0 %v738
      %798 = vmatprep.subr.bf16.mxu0 0
      %799 = vmatpush1.bf16.msra.mxu0 %v739
      %800 = vmatprep.subr.bf16.mxu0 0
      %801 = vmatpush1.bf16.msra.mxu0 %v794
      %802 = vmatprep.subr.bf16.mxu0 0
      %803 = vmatpush1.bf16.msra.mxu0 0
      %804 = vmatprep.subr.bf16.mxu0 0
      %805 = vmatpush1.bf16.msra.mxu0 0
      %806 = vmatprep.subr.bf16.mxu0 0
      %807 = vmatpush1.bf16.msra.mxu0 0
      %808 = vmatprep.subr.bf16.mxu0 0
      %809 = vmatpush1.bf16.msra.mxu0 0
      %810 = vmatprep.subr.bf16.mxu0 0
      %811 = vmatpush1.bf16.msra.mxu0 0
      %812 = vmatprep.subr.bf16.mxu0 0
      %813 = vmatpush1.bf16.msra.mxu0 0
      %814 = vmatprep.subr.bf16.mxu0 0
      %815 = vmatpush1.bf16.msra.mxu0 0
      %816 = vmatprep.subr.bf16.mxu0 0
      %817 = vmatpush1.bf16.msra.mxu0 0
      %818 = vmatprep.subr.bf16.mxu0 0
      %819 = vmatpush1.bf16.msra.mxu0 0
      %820 = vmatprep.subr.bf16.mxu0 0
      %821 = vmatpush1.bf16.msra.mxu0 0
      %822 = vmatprep.subr.bf16.mxu0 0
      %823 = vmatpush1.bf16.msra.mxu0 0
      %824 = vmatprep.subr.bf16.mxu0 0
      %825 = vmatpush1.bf16.msra.mxu0 0
      %826 = vmatprep.subr.bf16.mxu0 0
      %827 = vmatpush1.bf16.msra.mxu0 0
      %828 = vmatprep.mubr.bf16.mxu0 0
      %829 = vmatmul.mubr.bf16.gmra.mrb[0].mxu0 %v745
      %v830 = vpop.f32.mrb[0].mxu0
      %v831 = vadd.f32 %v646, %v830
      %v832 = vpop.f32.mrb[0].mxu0
      %v833 = vpop.f32.mrb[0].mxu0
      %v834 = vadd.f32 %v646, %v833
      %v835 = vpop.f32.mrb[0].mxu0
      %836 = vmatprep.mubr.bf16.mxu0 0
      %837 = vmatmul.mubr.bf16.gmra.mrb[0].mxu0 %v748
      %v838 = vpop.f32.mrb[0].mxu0
      %v839 = vadd.f32 %v646, %v838
      %v840 = vpop.f32.mrb[0].mxu0
      %v841 = vpop.f32.mrb[0].mxu0
      %v842 = vadd.f32 %v646, %v841
      %v843 = vpop.f32.mrb[0].mxu0
      %844 = vmatprep.mubr.bf16.mxu0 0
      %845 = vmatmul.mubr.bf16.gmra.mrb[0].mxu0 %v751
      %v846 = vpop.f32.mrb[0].mxu0
      %v847 = vadd.f32 %v646, %v846
      %v848 = vpop.f32.mrb[0].mxu0
      %v849 = vpop.f32.mrb[0].mxu0
      %v850 = vadd.f32 %v646, %v849
      %v851 = vpop.f32.mrb[0].mxu0
      %852 = vmatprep.mubr.bf16.mxu0 0
      %853 = vmatmul.mubr.bf16.gmra.mrb[0].mxu0 %v754
      %v854 = vpop.f32.mrb[0].mxu0
      %v855 = vadd.f32 %v646, %v854
      %v856 = vpop.f32.mrb[0].mxu0
      %v857 = vpop.f32.mrb[0].mxu0
      %v858 = vadd.f32 %v646, %v857
      %v859 = vpop.f32.mrb[0].mxu0
      %860 = vmatprep.mubr.bf16.mxu0 0
      %861 = vmatmul.mubr.bf16.gmra.mrb[0].mxu0 %v757
      %v862 = vpop.f32.mrb[0].mxu0
      %v863 = vadd.f32 %v646, %v862
      %v864 = vpop.f32.mrb[0].mxu0
      %v865 = vpop.f32.mrb[0].mxu0
      %v866 = vadd.f32 %v646, %v865
      %v867 = vpop.f32.mrb[0].mxu0
      %868 = vmatprep.mubr.bf16.mxu0 0
      %869 = vmatmul.mubr.bf16.gmra.mrb[0].mxu0 %v760
      %v870 = vpop.f32.mrb[0].mxu0
      %v871 = vadd.f32 %v646, %v870
      %v872 = vpop.f32.mrb[0].mxu0
      %v873 = vpop.f32.mrb[0].mxu0
      %v874 = vadd.f32 %v646, %v873
      %v875 = vpop.f32.mrb[0].mxu0
      %876 = vmatprep.mubr.bf16.mxu0 0
      %877 = vmatmul.mubr.bf16.gmra.mrb[0].mxu0 %v763
      %v878 = vpop.f32.mrb[0].mxu0
      %v879 = vadd.f32 %v646, %v878
      %v880 = vpop.f32.mrb[0].mxu0
      %v881 = vpop.f32.mrb[0].mxu0
      %v882 = vadd.f32 %v646, %v881
      %v883 = vpop.f32.mrb[0].mxu0
      %884 = vmatprep.mubr.bf16.mxu0 0
      %885 = vmatmul.mubr.bf16.gmra.mrb[0].mxu0 %v766
      %v886 = vpop.f32.mrb[0].mxu0
      %v887 = vadd.f32 %v646, %v886
      %v888 = vpop.f32.mrb[0].mxu0
      %v889 = vpop.f32.mrb[0].mxu0
      %v890 = vadd.f32 %v646, %v889
      %v891 = vpop.f32.mrb[0].mxu0
      %892 = vmatprep.mubr.bf16.mxu0 0
      %893 = vmatmul.mubr.bf16.gmra.mrb[0].mxu0 %v769
      %v894 = vpop.f32.mrb[0].mxu0
      %v895 = vadd.f32 %v646, %v894
      %v896 = vpop.f32.mrb[0].mxu0
      %v897 = vpop.f32.mrb[0].mxu0
      %v898 = vadd.f32 %v646, %v897
      %v899 = vpop.f32.mrb[0].mxu0
      %900 = vmatprep.mubr.bf16.mxu0 0
      %901 = vmatmul.mubr.bf16.gmra.mrb[0].mxu0 %v772
      %v902 = vpop.f32.mrb[0].mxu0
      %v903 = vadd.f32 %v646, %v902
      %v904 = vpop.f32.mrb[0].mxu0
      %v905 = vpop.f32.mrb[0].mxu0
      %v906 = vadd.f32 %v646, %v905
      %v907 = vpop.f32.mrb[0].mxu0
      %908 = vmatprep.mubr.bf16.mxu0 0
      %909 = vmatmul.mubr.bf16.gmra.mrb[0].mxu0 %v775
      %v910 = vpop.f32.mrb[0].mxu0
      %v911 = vadd.f32 %v646, %v910
      %v912 = vpop.f32.mrb[0].mxu0
      %v913 = vpop.f32.mrb[0].mxu0
      %v914 = vadd.f32 %v646, %v913
      %v915 = vpop.f32.mrb[0].mxu0
      %916 = vmatprep.mubr.bf16.mxu0 0
      %917 = vmatmul.mubr.bf16.gmra.mrb[0].mxu0 %v778
      %v918 = vpop.f32.mrb[0].mxu0
      %v919 = vadd.f32 %v646, %v918
      %v920 = vpop.f32.mrb[0].mxu0
      %v921 = vpop.f32.mrb[0].mxu0
      %v922 = vadd.f32 %v646, %v921
      %v923 = vpop.f32.mrb[0].mxu0
      %924 = vmatprep.mubr.bf16.mxu0 0
      %925 = vmatmul.mubr.bf16.gmra.mrb[0].mxu0 %v781
      %v926 = vpop.f32.mrb[0].mxu0
      %v927 = vadd.f32 %v646, %v926
      %v928 = vpop.f32.mrb[0].mxu0
      %v929 = vpop.f32.mrb[0].mxu0
      %v930 = vadd.f32 %v646, %v929
      %v931 = vpop.f32.mrb[0].mxu0
      %932 = vmatprep.mubr.bf16.mxu0 0
      %933 = vmatmul.mubr.bf16.gmra.mrb[0].mxu0 %v784
      %v934 = vpop.f32.mrb[0].mxu0
      %v935 = vadd.f32 %v646, %v934
      %v936 = vpop.f32.mrb[0].mxu0
      %v937 = vpop.f32.mrb[0].mxu0
      %v938 = vadd.f32 %v646, %v937
      %v939 = vpop.f32.mrb[0].mxu0
      %940 = vmatprep.mubr.bf16.mxu0 0
      %941 = vmatmul.mubr.bf16.gmra.mrb[0].mxu0 %v787
      %v942 = vpop.f32.mrb[0].mxu0
      %v943 = vadd.f32 %v646, %v942
      %v944 = vpop.f32.mrb[0].mxu0
      %v945 = vpop.f32.mrb[0].mxu0
      %v946 = vadd.f32 %v646, %v945
      %v947 = vpop.f32.mrb[0].mxu0
      %948 = vmatprep.mubr.bf16.mxu0 0
      %949 = vmatmul.mubr.bf16.gmra.mrb[0].mxu0 %v790
      %v950 = vpop.f32.mrb[0].mxu0
      %v951 = vadd.f32 %v646, %v950
      %v952 = vpop.f32.mrb[0].mxu0
      %v953 = vpop.f32.mrb[0].mxu0
      %v954 = vadd.f32 %v646, %v953
      %v955 = vpop.f32.mrb[0].mxu0
      %956 = vdwg.mxu0
      %v957 = vmax.f32 %v831, 0.0
      %v958 = vmax.f32 %v834, 0.0
      %v959 = vmax.f32 %v839, 0.0
      %v960 = vmax.f32 %v842, 0.0
      %v961 = vmax.f32 %v847, 0.0
      %v962 = vmax.f32 %v850, 0.0
      %v963 = vmax.f32 %v855, 0.0
      %v964 = vmax.f32 %v858, 0.0
      %v965 = vmax.f32 %v863, 0.0
      %v966 = vmax.f32 %v866, 0.0
      %v967 = vmax.f32 %v871, 0.0
      %v968 = vmax.f32 %v874, 0.0
      %v969 = vmax.f32 %v879, 0.0
      %v970 = vmax.f32 %v882, 0.0
      %v971 = vmax.f32 %v887, 0.0
      %v972 = vmax.f32 %v890, 0.0
      %v973 = vmax.f32 %v895, 0.0
      %v974 = vmax.f32 %v898, 0.0
      %v975 = vmax.f32 %v903, 0.0
      %v976 = vmax.f32 %v906, 0.0
      %v977 = vmax.f32 %v911, 0.0
      %v978 = vmax.f32 %v914, 0.0
      %v979 = vmax.f32 %v919, 0.0
      %v980 = vmax.f32 %v922, 0.0
      %v981 = vmax.f32 %v927, 0.0
      %v982 = vmax.f32 %v930, 0.0
      %v983 = vmax.f32 %v935, 0.0
      %v984 = vmax.f32 %v938, 0.0
      %v985 = vmax.f32 %v943, 0.0
      %v986 = vmax.f32 %v946, 0.0
      %v987 = vmax.f32 %v951, 0.0
      %v988 = vmax.f32 %v954, 0.0
      %v989 = vpack.c.bf16 %v958, %v957
      %v990 = vpack.c.bf16 %v960, %v959
      %v991 = vpack.c.bf16 %v962, %v961
      %v992 = vpack.c.bf16 %v964, %v963
      %v993 = vpack.c.bf16 %v966, %v965
      %v994 = vpack.c.bf16 %v968, %v967
      %v995 = vpack.c.bf16 %v970, %v969
      %v996 = vpack.c.bf16 %v972, %v971
      %v997 = vpack.c.bf16 %v974, %v973
      %v998 = vpack.c.bf16 %v976, %v975
      %v999 = vpack.c.bf16 %v978, %v977
      %v1000 = vpack.c.bf16 %v980, %v979
      %v1001 = vpack.c.bf16 %v982, %v981
      %v1002 = vpack.c.bf16 %v984, %v983
      %v1003 = vpack.c.bf16 %v986, %v985
      %v1004 = vpack.c.bf16 %v988, %v987
      %v1005 = vld [vmem:[%s13] sm:$0xff]
      %v1006 = vld [vmem:[%s13 + $0x8] sm:$0xff]
      %v1007 = vld [vmem:[%s13 + $0x10] sm:$0xff]
      %v1008 = vld [vmem:[%s13 + $0x18] sm:$0xff]
      %v1009 = vld [vmem:[%s13 + $0x20] sm:$0xff]
      %v1010 = vld [vmem:[%s13 + $0x28] sm:$0xff]
      %v1011 = vld [vmem:[%s13 + $0x30] sm:$0xff]
      %v1012 = vld [vmem:[%s13 + $0x38] sm:$0xff]
      %v1013 = vld [vmem:[%s13 + $0x40] sm:$0xff]
      %v1014 = vld [vmem:[%s13 + $0x48] sm:$0xff]
      %v1015 = vld [vmem:[%s13 + $0x50] sm:$0xff]
      %v1016 = vld [vmem:[%s13 + $0x58] sm:$0xff]
      %v1017 = vld [vmem:[%s13 + $0x60] sm:$0xff]
      %v1018 = vld [vmem:[%s13 + $0x68] sm:$0x77]
      %v1033 = vunpack.c.l.b16 %v1005
      %v1034 = vunpack.c.h.b16 %v1005
      %v1035 = vunpack.c.l.b16 %v1006
      %v1036 = vunpack.c.h.b16 %v1006
      %v1037 = vunpack.c.l.b16 %v1007
      %v1038 = vunpack.c.h.b16 %v1007
      %v1039 = vunpack.c.l.b16 %v1008
      %v1040 = vunpack.c.h.b16 %v1008
      %v1041 = vunpack.c.l.b16 %v1009
      %v1042 = vunpack.c.h.b16 %v1009
      %v1043 = vunpack.c.l.b16 %v1010
      %v1044 = vunpack.c.h.b16 %v1010
      %v1045 = vunpack.c.l.b16 %v1011
      %v1046 = vunpack.c.h.b16 %v1011
      %v1047 = vunpack.c.l.b16 %v1012
      %v1048 = vunpack.c.h.b16 %v1012
      %v1049 = vunpack.c.l.b16 %v1013
      %v1050 = vunpack.c.h.b16 %v1013
      %v1051 = vunpack.c.l.b16 %v1014
      %v1052 = vunpack.c.h.b16 %v1014
      %v1053 = vunpack.c.l.b16 %v1015
      %v1054 = vunpack.c.h.b16 %v1015
      %v1055 = vunpack.c.l.b16 %v1016
      %v1056 = vunpack.c.h.b16 %v1016
      %v1057 = vunpack.c.l.b16 %v1017
      %v1058 = vunpack.c.h.b16 %v1017
      %v1059 = vunpack.c.l.b16 %v1018
      %v1060 = vunpack.c.h.b16 %v1018
      %v1061 = vpack.c.b16 %v1035, %v1033
      %v1062 = vpack.c.b16 %v1036, %v1034
      %v1063 = vpack.c.b16 %v1039, %v1037
      %v1064 = vpack.c.b16 %v1040, %v1038
      %v1065 = vpack.c.b16 %v1043, %v1041
      %v1066 = vpack.c.b16 %v1044, %v1042
      %v1067 = vpack.c.b16 %v1047, %v1045
      %v1068 = vpack.c.b16 %v1048, %v1046
      %v1069 = vpack.c.b16 %v1051, %v1049
      %v1070 = vpack.c.b16 %v1052, %v1050
      %v1071 = vpack.c.b16 %v1055, %v1053
      %v1072 = vpack.c.b16 %v1056, %v1054
      %v1073 = vpack.c.b16 %v1059, %v1057
      %v1074 = vpack.c.b16 %v1060, %v1058
      %1089 = vmatprep.subr.bf16.mxu0 0
      %1090 = vmatpush1.bf16.msra.mxu0 %v989
      %1091 = vmatprep.subr.bf16.mxu0 0
      %1092 = vmatpush1.bf16.msra.mxu0 %v990
      %1093 = vmatprep.subr.bf16.mxu0 0
      %1094 = vmatpush1.bf16.msra.mxu0 %v991
      %1095 = vmatprep.subr.bf16.mxu0 0
      %1096 = vmatpush1.bf16.msra.mxu0 %v992
      %1097 = vmatprep.subr.bf16.mxu0 0
      %1098 = vmatpush1.bf16.msra.mxu0 %v993
      %1099 = vmatprep.subr.bf16.mxu0 0
      %1100 = vmatpush1.bf16.msra.mxu0 %v994
      %1101 = vmatprep.subr.bf16.mxu0 0
      %1102 = vmatpush1.bf16.msra.mxu0 %v995
      %1103 = vmatprep.subr.bf16.mxu0 0
      %1104 = vmatpush1.bf16.msra.mxu0 %v996
      %1105 = vmatprep.subr.bf16.mxu0 0
      %1106 = vmatpush1.bf16.msra.mxu0 %v997
      %1107 = vmatprep.subr.bf16.mxu0 0
      %1108 = vmatpush1.bf16.msra.mxu0 %v998
      %1109 = vmatprep.subr.bf16.mxu0 0
      %1110 = vmatpush1.bf16.msra.mxu0 %v999
      %1111 = vmatprep.subr.bf16.mxu0 0
      %1112 = vmatpush1.bf16.msra.mxu0 %v1000
      %1113 = vmatprep.subr.bf16.mxu0 0
      %1114 = vmatpush1.bf16.msra.mxu0 %v1001
      %1115 = vmatprep.subr.bf16.mxu0 0
      %1116 = vmatpush1.bf16.msra.mxu0 %v1002
      %1117 = vmatprep.subr.bf16.mxu0 0
      %1118 = vmatpush1.bf16.msra.mxu0 %v1003
      %1119 = vmatprep.subr.bf16.mxu0 0
      %1120 = vmatpush1.bf16.msra.mxu0 %v1004
      %1121 = vmatprep.mubr.bf16.mxu0 %v1062
      %1122 = vmatmul.mubr.bf16.gmra.mrb[0].mxu0 %v1061
      %v1123 = vpop.f32.mrb[0].mxu0
      %v1124 = vadd.f32 0.0, %v1123
      %v1125 = vpop.f32.mrb[0].mxu0
      %v1126 = vpop.f32.mrb[0].mxu0
      %v1127 = vadd.f32 0.0, %v1126
      %v1128 = vpop.f32.mrb[0].mxu0
      %1129 = vmatprep.mubr.bf16.mxu0 %v1064
      %1130 = vmatmul.mubr.bf16.gmra.mrb[0].mxu0 %v1063
      %v1131 = vpop.f32.mrb[0].mxu0
      %v1132 = vadd.f32 0.0, %v1131
      %v1133 = vpop.f32.mrb[0].mxu0
      %v1134 = vpop.f32.mrb[0].mxu0
      %v1135 = vadd.f32 0.0, %v1134
      %v1136 = vpop.f32.mrb[0].mxu0
      %1137 = vmatprep.mubr.bf16.mxu0 %v1066
      %1138 = vmatmul.mubr.bf16.gmra.mrb[0].mxu0 %v1065
      %v1139 = vpop.f32.mrb[0].mxu0
      %v1140 = vadd.f32 0.0, %v1139
      %v1141 = vpop.f32.mrb[0].mxu0
      %v1142 = vpop.f32.mrb[0].mxu0
      %v1143 = vadd.f32 0.0, %v1142
      %v1144 = vpop.f32.mrb[0].mxu0
      %1145 = vmatprep.mubr.bf16.mxu0 %v1068
      %1146 = vmatmul.mubr.bf16.gmra.mrb[0].mxu0 %v1067
      %v1147 = vpop.f32.mrb[0].mxu0
      %v1148 = vadd.f32 0.0, %v1147
      %v1149 = vpop.f32.mrb[0].mxu0
      %v1150 = vpop.f32.mrb[0].mxu0
      %v1151 = vadd.f32 0.0, %v1150
      %v1152 = vpop.f32.mrb[0].mxu0
      %1153 = vmatprep.mubr.bf16.mxu0 %v1070
      %1154 = vmatmul.mubr.bf16.gmra.mrb[0].mxu0 %v1069
      %v1155 = vpop.f32.mrb[0].mxu0
      %v1156 = vadd.f32 0.0, %v1155
      %v1157 = vpop.f32.mrb[0].mxu0
      %v1158 = vpop.f32.mrb[0].mxu0
      %v1159 = vadd.f32 0.0, %v1158
      %v1160 = vpop.f32.mrb[0].mxu0
      %1161 = vmatprep.mubr.bf16.mxu0 %v1072
      %1162 = vmatmul.mubr.bf16.gmra.mrb[0].mxu0 %v1071
      %v1163 = vpop.f32.mrb[0].mxu0
      %v1164 = vadd.f32 0.0, %v1163
      %v1165 = vpop.f32.mrb[0].mxu0
      %v1166 = vpop.f32.mrb[0].mxu0
      %v1167 = vadd.f32 0.0, %v1166
      %v1168 = vpop.f32.mrb[0].mxu0
      %1169 = vmatprep.mubr.bf16.mxu0 %v1074
      %1170 = vmatmul.mubr.bf16.gmra.mrb[0].mxu0 %v1073
      %v1171 = vpop.f32.mrb[0].mxu0
      %v1172 = vadd.f32 0.0, %v1171
      %v1173 = vpop.f32.mrb[0].mxu0
      %v1174 = vpop.f32.mrb[0].mxu0
      %v1175 = vpop.f32.mrb[0].mxu0
      %1176 = vdwg.mxu0
      %s1177 = scalar_lea.vmem %s13, 112
      %v1178 = vld [vmem:[%s1177] sm:$0xff]
      %v1179 = vld [vmem:[%s1177 + $0x8] sm:$0xff]
      %v1180 = vld [vmem:[%s1177 + $0x10] sm:$0xff]
      %v1181 = vld [vmem:[%s1177 + $0x18] sm:$0xff]
      %v1182 = vld [vmem:[%s1177 + $0x20] sm:$0xff]
      %v1183 = vld [vmem:[%s1177 + $0x28] sm:$0xff]
      %v1184 = vld [vmem:[%s1177 + $0x30] sm:$0xff]
      %v1185 = vld [vmem:[%s1177 + $0x38] sm:$0xff]
      %v1186 = vld [vmem:[%s1177 + $0x40] sm:$0xff]
      %v1187 = vld [vmem:[%s1177 + $0x48] sm:$0xff]
      %v1188 = vld [vmem:[%s1177 + $0x50] sm:$0xff]
      %v1189 = vld [vmem:[%s1177 + $0x58] sm:$0xff]
      %v1190 = vld [vmem:[%s1177 + $0x60] sm:$0xff]
      %v1191 = vld [vmem:[%s1177 + $0x68] sm:$0x77]
      %v1206 = vunpack.c.l.b16 %v1178
      %v1207 = vunpack.c.h.b16 %v1178
      %v1208 = vunpack.c.l.b16 %v1179
      %v1209 = vunpack.c.h.b16 %v1179
      %v1210 = vunpack.c.l.b16 %v1180
      %v1211 = vunpack.c.h.b16 %v1180
      %v1212 = vunpack.c.l.b16 %v1181
      %v1213 = vunpack.c.h.b16 %v1181
      %v1214 = vunpack.c.l.b16 %v1182
      %v1215 = vunpack.c.h.b16 %v1182
      %v1216 = vunpack.c.l.b16 %v1183
      %v1217 = vunpack.c.h.b16 %v1183
      %v1218 = vunpack.c.l.b16 %v1184
      %v1219 = vunpack.c.h.b16 %v1184
      %v1220 = vunpack.c.l.b16 %v1185
      %v1221 = vunpack.c.h.b16 %v1185
      %v1222 = vunpack.c.l.b16 %v1186
      %v1223 = vunpack.c.h.b16 %v1186
      %v1224 = vunpack.c.l.b16 %v1187
      %v1225 = vunpack.c.h.b16 %v1187
      %v1226 = vunpack.c.l.b16 %v1188
      %v1227 = vunpack.c.h.b16 %v1188
      %v1228 = vunpack.c.l.b16 %v1189
      %v1229 = vunpack.c.h.b16 %v1189
      %v1230 = vunpack.c.l.b16 %v1190
      %v1231 = vunpack.c.h.b16 %v1190
      %v1232 = vunpack.c.l.b16 %v1191
      %v1233 = vunpack.c.h.b16 %v1191
      %v1234 = vpack.c.b16 %v1208, %v1206
      %v1235 = vpack.c.b16 %v1209, %v1207
      %v1236 = vpack.c.b16 %v1212, %v1210
      %v1237 = vpack.c.b16 %v1213, %v1211
      %v1238 = vpack.c.b16 %v1216, %v1214
      %v1239 = vpack.c.b16 %v1217, %v1215
      %v1240 = vpack.c.b16 %v1220, %v1218
      %v1241 = vpack.c.b16 %v1221, %v1219
      %v1242 = vpack.c.b16 %v1224, %v1222
      %v1243 = vpack.c.b16 %v1225, %v1223
      %v1244 = vpack.c.b16 %v1228, %v1226
      %v1245 = vpack.c.b16 %v1229, %v1227
      %v1246 = vpack.c.b16 %v1232, %v1230
      %v1247 = vpack.c.b16 %v1233, %v1231
      %1262 = vmatprep.subr.bf16.mxu0 0
      %1263 = vmatpush1.bf16.msra.mxu0 %v989
      %1264 = vmatprep.subr.bf16.mxu0 0
      %1265 = vmatpush1.bf16.msra.mxu0 %v990
      %1266 = vmatprep.subr.bf16.mxu0 0
      %1267 = vmatpush1.bf16.msra.mxu0 %v991
      %1268 = vmatprep.subr.bf16.mxu0 0
      %1269 = vmatpush1.bf16.msra.mxu0 %v992
      %1270 = vmatprep.subr.bf16.mxu0 0
      %1271 = vmatpush1.bf16.msra.mxu0 %v993
      %1272 = vmatprep.subr.bf16.mxu0 0
      %1273 = vmatpush1.bf16.msra.mxu0 %v994
      %1274 = vmatprep.subr.bf16.mxu0 0
      %1275 = vmatpush1.bf16.msra.mxu0 %v995
      %1276 = vmatprep.subr.bf16.mxu0 0
      %1277 = vmatpush1.bf16.msra.mxu0 %v996
      %1278 = vmatprep.subr.bf16.mxu0 0
      %1279 = vmatpush1.bf16.msra.mxu0 %v997
      %1280 = vmatprep.subr.bf16.mxu0 0
      %1281 = vmatpush1.bf16.msra.mxu0 %v998
      %1282 = vmatprep.subr.bf16.mxu0 0
      %1283 = vmatpush1.bf16.msra.mxu0 %v999
      %1284 = vmatprep.subr.bf16.mxu0 0
      %1285 = vmatpush1.bf16.msra.mxu0 %v1000
      %1286 = vmatprep.subr.bf16.mxu0 0
      %1287 = vmatpush1.bf16.msra.mxu0 %v1001
      %1288 = vmatprep.subr.bf16.mxu0 0
      %1289 = vmatpush1.bf16.msra.mxu0 %v1002
      %1290 = vmatprep.subr.bf16.mxu0 0
      %1291 = vmatpush1.bf16.msra.mxu0 %v1003
      %1292 = vmatprep.subr.bf16.mxu0 0
      %1293 = vmatpush1.bf16.msra.mxu0 %v1004
      %1294 = vmatprep.mubr.bf16.mxu0 %v1235
      %1295 = vmatmul.mubr.bf16.gmra.mrb[0].mxu0 %v1234
      %v1296 = vpop.f32.mrb[0].mxu0
      %v1297 = vadd.f32 0.0, %v1296
      %v1298 = vpop.f32.mrb[0].mxu0
      %v1299 = vpop.f32.mrb[0].mxu0
      %v1300 = vadd.f32 0.0, %v1299
      %v1301 = vpop.f32.mrb[0].mxu0
      %1302 = vmatprep.mubr.bf16.mxu0 %v1237
      %1303 = vmatmul.mubr.bf16.gmra.mrb[0].mxu0 %v1236
      %v1304 = vpop.f32.mrb[0].mxu0
      %v1305 = vadd.f32 0.0, %v1304
      %v1306 = vpop.f32.mrb[0].mxu0
      %v1307 = vpop.f32.mrb[0].mxu0
      %v1308 = vadd.f32 0.0, %v1307
      %v1309 = vpop.f32.mrb[0].mxu0
      %1310 = vmatprep.mubr.bf16.mxu0 %v1239
      %1311 = vmatmul.mubr.bf16.gmra.mrb[0].mxu0 %v1238
      %v1312 = vpop.f32.mrb[0].mxu0
      %v1313 = vadd.f32 0.0, %v1312
      %v1314 = vpop.f32.mrb[0].mxu0
      %v1315 = vpop.f32.mrb[0].mxu0
      %v1316 = vadd.f32 0.0, %v1315
      %v1317 = vpop.f32.mrb[0].mxu0
      %1318 = vmatprep.mubr.bf16.mxu0 %v1241
      %1319 = vmatmul.mubr.bf16.gmra.mrb[0].mxu0 %v1240
      %v1320 = vpop.f32.mrb[0].mxu0
      %v1321 = vadd.f32 0.0, %v1320
      %v1322 = vpop.f32.mrb[0].mxu0
      %v1323 = vpop.f32.mrb[0].mxu0
      %v1324 = vadd.f32 0.0, %v1323
      %v1325 = vpop.f32.mrb[0].mxu0
      %1326 = vmatprep.mubr.bf16.mxu0 %v1243
      %1327 = vmatmul.mubr.bf16.gmra.mrb[0].mxu0 %v1242
      %v1328 = vpop.f32.mrb[0].mxu0
      %v1329 = vadd.f32 0.0, %v1328
      %v1330 = vpop.f32.mrb[0].mxu0
      %v1331 = vpop.f32.mrb[0].mxu0
      %v1332 = vadd.f32 0.0, %v1331
      %v1333 = vpop.f32.mrb[0].mxu0
      %1334 = vmatprep.mubr.bf16.mxu0 %v1245
      %1335 = vmatmul.mubr.bf16.gmra.mrb[0].mxu0 %v1244
      %v1336 = vpop.f32.mrb[0].mxu0
      %v1337 = vadd.f32 0.0, %v1336
      %v1338 = vpop.f32.mrb[0].mxu0
      %v1339 = vpop.f32.mrb[0].mxu0
      %v1340 = vadd.f32 0.0, %v1339
      %v1341 = vpop.f32.mrb[0].mxu0
      %1342 = vmatprep.mubr.bf16.mxu0 %v1247
      %1343 = vmatmul.mubr.bf16.gmra.mrb[0].mxu0 %v1246
      %v1344 = vpop.f32.mrb[0].mxu0
      %v1345 = vadd.f32 0.0, %v1344
      %v1346 = vpop.f32.mrb[0].mxu0
      %v1347 = vpop.f32.mrb[0].mxu0
      %v1348 = vpop.f32.mrb[0].mxu0
      %1349 = vdwg.mxu0
      %v1350 = vmax.f32 %v1124, %v1297
      %v1351 = vmax.f32 %v1127, %v1300
      %v1352 = vmax.f32 %v1132, %v1305
      %v1353 = vmax.f32 %v1135, %v1308
      %v1354 = vmax.f32 %v1140, %v1313
      %v1355 = vmax.f32 %v1143, %v1316
      %v1356 = vmax.f32 %v1148, %v1321
      %v1357 = vmax.f32 %v1151, %v1324
      %v1358 = vmax.f32 %v1156, %v1329
      %v1359 = vmax.f32 %v1159, %v1332
      %v1360 = vmax.f32 %v1164, %v1337
      %v1361 = vmax.f32 %v1167, %v1340
      %v1362 = vmax.f32 %v1172, %v1345
      %s1363 = scalar_lea.vmem %s13, 224
      %v1364 = vld [vmem:[%s1363] sm:$0xff]
      %v1365 = vld [vmem:[%s1363 + $0x8] sm:$0xff]
      %v1366 = vld [vmem:[%s1363 + $0x10] sm:$0xff]
      %v1367 = vld [vmem:[%s1363 + $0x18] sm:$0xff]
      %v1368 = vld [vmem:[%s1363 + $0x20] sm:$0xff]
      %v1369 = vld [vmem:[%s1363 + $0x28] sm:$0xff]
      %v1370 = vld [vmem:[%s1363 + $0x30] sm:$0xff]
      %v1371 = vld [vmem:[%s1363 + $0x38] sm:$0xff]
      %v1372 = vld [vmem:[%s1363 + $0x40] sm:$0xff]
      %v1373 = vld [vmem:[%s1363 + $0x48] sm:$0xff]
      %v1374 = vld [vmem:[%s1363 + $0x50] sm:$0xff]
      %v1375 = vld [vmem:[%s1363 + $0x58] sm:$0xff]
      %v1376 = vld [vmem:[%s1363 + $0x60] sm:$0xff]
      %v1377 = vld [vmem:[%s1363 + $0x68] sm:$0x77]
      %v1392 = vunpack.c.l.b16 %v1364
      %v1393 = vunpack.c.h.b16 %v1364
      %v1394 = vunpack.c.l.b16 %v1365
      %v1395 = vunpack.c.h.b16 %v1365
      %v1396 = vunpack.c.l.b16 %v1366
      %v1397 = vunpack.c.h.b16 %v1366
      %v1398 = vunpack.c.l.b16 %v1367
      %v1399 = vunpack.c.h.b16 %v1367
      %v1400 = vunpack.c.l.b16 %v1368
      %v1401 = vunpack.c.h.b16 %v1368
      %v1402 = vunpack.c.l.b16 %v1369
      %v1403 = vunpack.c.h.b16 %v1369
      %v1404 = vunpack.c.l.b16 %v1370
      %v1405 = vunpack.c.h.b16 %v1370
      %v1406 = vunpack.c.l.b16 %v1371
      %v1407 = vunpack.c.h.b16 %v1371
      %v1408 = vunpack.c.l.b16 %v1372
      %v1409 = vunpack.c.h.b16 %v1372
      %v1410 = vunpack.c.l.b16 %v1373
      %v1411 = vunpack.c.h.b16 %v1373
      %v1412 = vunpack.c.l.b16 %v1374
      %v1413 = vunpack.c.h.b16 %v1374
      %v1414 = vunpack.c.l.b16 %v1375
      %v1415 = vunpack.c.h.b16 %v1375
      %v1416 = vunpack.c.l.b16 %v1376
      %v1417 = vunpack.c.h.b16 %v1376
      %v1418 = vunpack.c.l.b16 %v1377
      %v1419 = vunpack.c.h.b16 %v1377
      %v1420 = vpack.c.b16 %v1394, %v1392
      %v1421 = vpack.c.b16 %v1395, %v1393
      %v1422 = vpack.c.b16 %v1398, %v1396
      %v1423 = vpack.c.b16 %v1399, %v1397
      %v1424 = vpack.c.b16 %v1402, %v1400
      %v1425 = vpack.c.b16 %v1403, %v1401
      %v1426 = vpack.c.b16 %v1406, %v1404
      %v1427 = vpack.c.b16 %v1407, %v1405
      %v1428 = vpack.c.b16 %v1410, %v1408
      %v1429 = vpack.c.b16 %v1411, %v1409
      %v1430 = vpack.c.b16 %v1414, %v1412
      %v1431 = vpack.c.b16 %v1415, %v1413
      %v1432 = vpack.c.b16 %v1418, %v1416
      %v1433 = vpack.c.b16 %v1419, %v1417
      %1448 = vmatprep.subr.bf16.mxu0 0
      %1449 = vmatpush1.bf16.msra.mxu0 %v989
      %1450 = vmatprep.subr.bf16.mxu0 0
      %1451 = vmatpush1.bf16.msra.mxu0 %v990
      %1452 = vmatprep.subr.bf16.mxu0 0
      %1453 = vmatpush1.bf16.msra.mxu0 %v991
      %1454 = vmatprep.subr.bf16.mxu0 0
      %1455 = vmatpush1.bf16.msra.mxu0 %v992
      %1456 = vmatprep.subr.bf16.mxu0 0
      %1457 = vmatpush1.bf16.msra.mxu0 %v993
      %1458 = vmatprep.subr.bf16.mxu0 0
      %1459 = vmatpush1.bf16.msra.mxu0 %v994
      %1460 = vmatprep.subr.bf16.mxu0 0
      %1461 = vmatpush1.bf16.msra.mxu0 %v995
      %1462 = vmatprep.subr.bf16.mxu0 0
      %1463 = vmatpush1.bf16.msra.mxu0 %v996
      %1464 = vmatprep.subr.bf16.mxu0 0
      %1465 = vmatpush1.bf16.msra.mxu0 %v997
      %1466 = vmatprep.subr.bf16.mxu0 0
      %1467 = vmatpush1.bf16.msra.mxu0 %v998
      %1468 = vmatprep.subr.bf16.mxu0 0
      %1469 = vmatpush1.bf16.msra.mxu0 %v999
      %1470 = vmatprep.subr.bf16.mxu0 0
      %1471 = vmatpush1.bf16.msra.mxu0 %v1000
      %1472 = vmatprep.subr.bf16.mxu0 0
      %1473 = vmatpush1.bf16.msra.mxu0 %v1001
      %1474 = vmatprep.subr.bf16.mxu0 0
      %1475 = vmatpush1.bf16.msra.mxu0 %v1002
      %1476 = vmatprep.subr.bf16.mxu0 0
      %1477 = vmatpush1.bf16.msra.mxu0 %v1003
      %1478 = vmatprep.subr.bf16.mxu0 0
      %1479 = vmatpush1.bf16.msra.mxu0 %v1004
      %1480 = vmatprep.mubr.bf16.mxu0 %v1421
      %1481 = vmatmul.mubr.bf16.gmra.mrb[0].mxu0 %v1420
      %v1482 = vpop.f32.mrb[0].mxu0
      %v1483 = vadd.f32 0.0, %v1482
      %v1484 = vpop.f32.mrb[0].mxu0
      %v1485 = vpop.f32.mrb[0].mxu0
      %v1486 = vadd.f32 0.0, %v1485
      %v1487 = vpop.f32.mrb[0].mxu0
      %1488 = vmatprep.mubr.bf16.mxu0 %v1423
      %1489 = vmatmul.mubr.bf16.gmra.mrb[0].mxu0 %v1422
      %v1490 = vpop.f32.mrb[0].mxu0
      %v1491 = vadd.f32 0.0, %v1490
      %v1492 = vpop.f32.mrb[0].mxu0
      %v1493 = vpop.f32.mrb[0].mxu0
      %v1494 = vadd.f32 0.0, %v1493
      %v1495 = vpop.f32.mrb[0].mxu0
      %1496 = vmatprep.mubr.bf16.mxu0 %v1425
      %1497 = vmatmul.mubr.bf16.gmra.mrb[0].mxu0 %v1424
      %v1498 = vpop.f32.mrb[0].mxu0
      %v1499 = vadd.f32 0.0, %v1498
      %v1500 = vpop.f32.mrb[0].mxu0
      %v1501 = vpop.f32.mrb[0].mxu0
      %v1502 = vadd.f32 0.0, %v1501
      %v1503 = vpop.f32.mrb[0].mxu0
      %1504 = vmatprep.mubr.bf16.mxu0 %v1427
      %1505 = vmatmul.mubr.bf16.gmra.mrb[0].mxu0 %v1426
      %v1506 = vpop.f32.mrb[0].mxu0
      %v1507 = vadd.f32 0.0, %v1506
      %v1508 = vpop.f32.mrb[0].mxu0
      %v1509 = vpop.f32.mrb[0].mxu0
      %v1510 = vadd.f32 0.0, %v1509
      %v1511 = vpop.f32.mrb[0].mxu0
      %1512 = vmatprep.mubr.bf16.mxu0 %v1429
      %1513 = vmatmul.mubr.bf16.gmra.mrb[0].mxu0 %v1428
      %v1514 = vpop.f32.mrb[0].mxu0
      %v1515 = vadd.f32 0.0, %v1514
      %v1516 = vpop.f32.mrb[0].mxu0
      %v1517 = vpop.f32.mrb[0].mxu0
      %v1518 = vadd.f32 0.0, %v1517
      %v1519 = vpop.f32.mrb[0].mxu0
      %1520 = vmatprep.mubr.bf16.mxu0 %v1431
      %1521 = vmatmul.mubr.bf16.gmra.mrb[0].mxu0 %v1430
      %v1522 = vpop.f32.mrb[0].mxu0
      %v1523 = vadd.f32 0.0, %v1522
      %v1524 = vpop.f32.mrb[0].mxu0
      %v1525 = vpop.f32.mrb[0].mxu0
      %v1526 = vadd.f32 0.0, %v1525
      %v1527 = vpop.f32.mrb[0].mxu0
      %1528 = vmatprep.mubr.bf16.mxu0 %v1433
      %1529 = vmatmul.mubr.bf16.gmra.mrb[0].mxu0 %v1432
      %v1530 = vpop.f32.mrb[0].mxu0
      %v1531 = vadd.f32 0.0, %v1530
      %v1532 = vpop.f32.mrb[0].mxu0
      %v1533 = vpop.f32.mrb[0].mxu0
      %v1534 = vpop.f32.mrb[0].mxu0
      %1535 = vdwg.mxu0
      %v1536 = vmax.f32 %v1350, %v1483
      %v1537 = vmax.f32 %v1351, %v1486
      %v1538 = vmax.f32 %v1352, %v1491
      %v1539 = vmax.f32 %v1353, %v1494
      %v1540 = vmax.f32 %v1354, %v1499
      %v1541 = vmax.f32 %v1355, %v1502
      %v1542 = vmax.f32 %v1356, %v1507
      %v1543 = vmax.f32 %v1357, %v1510
      %v1544 = vmax.f32 %v1358, %v1515
      %v1545 = vmax.f32 %v1359, %v1518
      %v1546 = vmax.f32 %v1360, %v1523
      %v1547 = vmax.f32 %v1361, %v1526
      %v1548 = vmax.f32 %v1362, %v1531
      %s1549 = scalar_lea.vmem %s13, 336
      %v1550 = vld [vmem:[%s1549] sm:$0xff]
      %v1551 = vld [vmem:[%s1549 + $0x8] sm:$0xff]
      %v1552 = vld [vmem:[%s1549 + $0x10] sm:$0xff]
      %v1553 = vld [vmem:[%s1549 + $0x18] sm:$0xff]
      %v1554 = vld [vmem:[%s1549 + $0x20] sm:$0xff]
      %v1555 = vld [vmem:[%s1549 + $0x28] sm:$0xff]
      %v1556 = vld [vmem:[%s1549 + $0x30] sm:$0xff]
      %v1557 = vld [vmem:[%s1549 + $0x38] sm:$0xff]
      %v1558 = vld [vmem:[%s1549 + $0x40] sm:$0xff]
      %v1559 = vld [vmem:[%s1549 + $0x48] sm:$0xff]
      %v1560 = vld [vmem:[%s1549 + $0x50] sm:$0xff]
      %v1561 = vld [vmem:[%s1549 + $0x58] sm:$0xff]
      %v1562 = vld [vmem:[%s1549 + $0x60] sm:$0xff]
      %v1563 = vld [vmem:[%s1549 + $0x68] sm:$0x77]
      %v1578 = vunpack.c.l.b16 %v1550
      %v1579 = vunpack.c.h.b16 %v1550
      %v1580 = vunpack.c.l.b16 %v1551
      %v1581 = vunpack.c.h.b16 %v1551
      %v1582 = vunpack.c.l.b16 %v1552
      %v1583 = vunpack.c.h.b16 %v1552
      %v1584 = vunpack.c.l.b16 %v1553
      %v1585 = vunpack.c.h.b16 %v1553
      %v1586 = vunpack.c.l.b16 %v1554
      %v1587 = vunpack.c.h.b16 %v1554
      %v1588 = vunpack.c.l.b16 %v1555
      %v1589 = vunpack.c.h.b16 %v1555
      %v1590 = vunpack.c.l.b16 %v1556
      %v1591 = vunpack.c.h.b16 %v1556
      %v1592 = vunpack.c.l.b16 %v1557
      %v1593 = vunpack.c.h.b16 %v1557
      %v1594 = vunpack.c.l.b16 %v1558
      %v1595 = vunpack.c.h.b16 %v1558
      %v1596 = vunpack.c.l.b16 %v1559
      %v1597 = vunpack.c.h.b16 %v1559
      %v1598 = vunpack.c.l.b16 %v1560
      %v1599 = vunpack.c.h.b16 %v1560
      %v1600 = vunpack.c.l.b16 %v1561
      %v1601 = vunpack.c.h.b16 %v1561
      %v1602 = vunpack.c.l.b16 %v1562
      %v1603 = vunpack.c.h.b16 %v1562
      %v1604 = vunpack.c.l.b16 %v1563
      %v1605 = vunpack.c.h.b16 %v1563
      %v1606 = vpack.c.b16 %v1580, %v1578
      %v1607 = vpack.c.b16 %v1581, %v1579
      %v1608 = vpack.c.b16 %v1584, %v1582
      %v1609 = vpack.c.b16 %v1585, %v1583
      %v1610 = vpack.c.b16 %v1588, %v1586
      %v1611 = vpack.c.b16 %v1589, %v1587
      %v1612 = vpack.c.b16 %v1592, %v1590
      %v1613 = vpack.c.b16 %v1593, %v1591
      %v1614 = vpack.c.b16 %v1596, %v1594
      %v1615 = vpack.c.b16 %v1597, %v1595
      %v1616 = vpack.c.b16 %v1600, %v1598
      %v1617 = vpack.c.b16 %v1601, %v1599
      %v1618 = vpack.c.b16 %v1604, %v1602
      %v1619 = vpack.c.b16 %v1605, %v1603
      %1634 = vmatprep.subr.bf16.mxu0 0
      %1635 = vmatpush1.bf16.msra.mxu0 %v989
      %1636 = vmatprep.subr.bf16.mxu0 0
      %1637 = vmatpush1.bf16.msra.mxu0 %v990
      %1638 = vmatprep.subr.bf16.mxu0 0
      %1639 = vmatpush1.bf16.msra.mxu0 %v991
      %1640 = vmatprep.subr.bf16.mxu0 0
      %1641 = vmatpush1.bf16.msra.mxu0 %v992
      %1642 = vmatprep.subr.bf16.mxu0 0
      %1643 = vmatpush1.bf16.msra.mxu0 %v993
      %1644 = vmatprep.subr.bf16.mxu0 0
      %1645 = vmatpush1.bf16.msra.mxu0 %v994
      %1646 = vmatprep.subr.bf16.mxu0 0
      %1647 = vmatpush1.bf16.msra.mxu0 %v995
      %1648 = vmatprep.subr.bf16.mxu0 0
      %1649 = vmatpush1.bf16.msra.mxu0 %v996
      %1650 = vmatprep.subr.bf16.mxu0 0
      %1651 = vmatpush1.bf16.msra.mxu0 %v997
      %1652 = vmatprep.subr.bf16.mxu0 0
      %1653 = vmatpush1.bf16.msra.mxu0 %v998
      %1654 = vmatprep.subr.bf16.mxu0 0
      %1655 = vmatpush1.bf16.msra.mxu0 %v999
      %1656 = vmatprep.subr.bf16.mxu0 0
      %1657 = vmatpush1.bf16.msra.mxu0 %v1000
      %1658 = vmatprep.subr.bf16.mxu0 0
      %1659 = vmatpush1.bf16.msra.mxu0 %v1001
      %1660 = vmatprep.subr.bf16.mxu0 0
      %1661 = vmatpush1.bf16.msra.mxu0 %v1002
      %1662 = vmatprep.subr.bf16.mxu0 0
      %1663 = vmatpush1.bf16.msra.mxu0 %v1003
      %1664 = vmatprep.subr.bf16.mxu0 0
      %1665 = vmatpush1.bf16.msra.mxu0 %v1004
      %1666 = vmatprep.mubr.bf16.mxu0 %v1607
      %1667 = vmatmul.mubr.bf16.gmra.mrb[0].mxu0 %v1606
      %v1668 = vpop.f32.mrb[0].mxu0
      %v1669 = vadd.f32 0.0, %v1668
      %v1670 = vpop.f32.mrb[0].mxu0
      %v1671 = vpop.f32.mrb[0].mxu0
      %v1672 = vadd.f32 0.0, %v1671
      %v1673 = vpop.f32.mrb[0].mxu0
      %1674 = vmatprep.mubr.bf16.mxu0 %v1609
      %1675 = vmatmul.mubr.bf16.gmra.mrb[0].mxu0 %v1608
      %v1676 = vpop.f32.mrb[0].mxu0
      %v1677 = vadd.f32 0.0, %v1676
      %v1678 = vpop.f32.mrb[0].mxu0
      %v1679 = vpop.f32.mrb[0].mxu0
      %v1680 = vadd.f32 0.0, %v1679
      %v1681 = vpop.f32.mrb[0].mxu0
      %1682 = vmatprep.mubr.bf16.mxu0 %v1611
      %1683 = vmatmul.mubr.bf16.gmra.mrb[0].mxu0 %v1610
      %v1684 = vpop.f32.mrb[0].mxu0
      %v1685 = vadd.f32 0.0, %v1684
      %v1686 = vpop.f32.mrb[0].mxu0
      %v1687 = vpop.f32.mrb[0].mxu0
      %v1688 = vadd.f32 0.0, %v1687
      %v1689 = vpop.f32.mrb[0].mxu0
      %1690 = vmatprep.mubr.bf16.mxu0 %v1613
      %1691 = vmatmul.mubr.bf16.gmra.mrb[0].mxu0 %v1612
      %v1692 = vpop.f32.mrb[0].mxu0
      %v1693 = vadd.f32 0.0, %v1692
      %v1694 = vpop.f32.mrb[0].mxu0
      %v1695 = vpop.f32.mrb[0].mxu0
      %v1696 = vadd.f32 0.0, %v1695
      %v1697 = vpop.f32.mrb[0].mxu0
      %1698 = vmatprep.mubr.bf16.mxu0 %v1615
      %1699 = vmatmul.mubr.bf16.gmra.mrb[0].mxu0 %v1614
      %v1700 = vpop.f32.mrb[0].mxu0
      %v1701 = vadd.f32 0.0, %v1700
      %v1702 = vpop.f32.mrb[0].mxu0
      %v1703 = vpop.f32.mrb[0].mxu0
      %v1704 = vadd.f32 0.0, %v1703
      %v1705 = vpop.f32.mrb[0].mxu0
      %1706 = vmatprep.mubr.bf16.mxu0 %v1617
      %1707 = vmatmul.mubr.bf16.gmra.mrb[0].mxu0 %v1616
      %v1708 = vpop.f32.mrb[0].mxu0
      %v1709 = vadd.f32 0.0, %v1708
      %v1710 = vpop.f32.mrb[0].mxu0
      %v1711 = vpop.f32.mrb[0].mxu0
      %v1712 = vadd.f32 0.0, %v1711
      %v1713 = vpop.f32.mrb[0].mxu0
      %1714 = vmatprep.mubr.bf16.mxu0 %v1619
      %1715 = vmatmul.mubr.bf16.gmra.mrb[0].mxu0 %v1618
      %v1716 = vpop.f32.mrb[0].mxu0
      %v1717 = vadd.f32 0.0, %v1716
      %v1718 = vpop.f32.mrb[0].mxu0
      %v1719 = vpop.f32.mrb[0].mxu0
      %v1720 = vpop.f32.mrb[0].mxu0
      %1721 = vdwg.mxu0
      %v1722 = vmax.f32 %v1536, %v1669
      %v1723 = vmax.f32 %v1537, %v1672
      %v1724 = vmax.f32 %v1538, %v1677
      %v1725 = vmax.f32 %v1539, %v1680
      %v1726 = vmax.f32 %v1540, %v1685
      %v1727 = vmax.f32 %v1541, %v1688
      %v1728 = vmax.f32 %v1542, %v1693
      %v1729 = vmax.f32 %v1543, %v1696
      %v1730 = vmax.f32 %v1544, %v1701
      %v1731 = vmax.f32 %v1545, %v1704
      %v1732 = vmax.f32 %v1546, %v1709
      %v1733 = vmax.f32 %v1547, %v1712
      %v1734 = vmax.f32 %v1548, %v1717
      %v1735 = vpack.c.bf16 %v1723, %v1722
      %v1736 = vpack.c.bf16 %v1725, %v1724
      %v1737 = vpack.c.bf16 %v1727, %v1726
      %v1738 = vpack.c.bf16 %v1729, %v1728
      %v1739 = vpack.c.bf16 %v1731, %v1730
      %v1740 = vld [vmem:[%s3] sm:$0xf]
      %v1741 = vld [vmem:[%s3 + $0x4] sm:$0xf]
      %v1742 = vld [vmem:[%s3 + $0x8] sm:$0xf]
      %v1743 = vld [vmem:[%s3 + $0xc] sm:$0xf]
      %v1744 = vld [vmem:[%s3 + $0x10] sm:$0xf]
      %v1745 = vld [vmem:[%s3 + $0x14] sm:$0xf]
      %v1746 = vld [vmem:[%s3 + $0x18] sm:$0xf]
      %v1747 = vld [vmem:[%s3 + $0x1c] sm:$0xf]
      %v1748 = vpack.c.bf16 %v1732, %v1732
      %s1749 = scalar_lea.vmem %s3, 32
      %v1750 = vld [vmem:[%s1749] sm:$0xf]
      %v1751 = vld [vmem:[%s1749 + $0x4] sm:$0xf]
      %v1752 = vld [vmem:[%s1749 + $0x8] sm:$0xf]
      %v1753 = vld [vmem:[%s1749 + $0xc] sm:$0xf]
      %v1754 = vld [vmem:[%s1749 + $0x10] sm:$0xf]
      %v1755 = vld [vmem:[%s1749 + $0x14] sm:$0xf]
      %v1756 = vld [vmem:[%s1749 + $0x18] sm:$0xf]
      %v1757 = vld [vmem:[%s1749 + $0x1c] sm:$0xf]
      %vm1758 = vsmask.f32 7424
      %v1760 = vshrl.u32 %v1735, 16
      %v1762 = vshll.u32 %v1735, 16
      %v1764 = vrot.slane %v1762, 1
      %v1765 = vor.u32 %v1760, %v1764
      %v1767 = vshll.u32 %v1736, 16
      %v1769 = vrot.slane %v1767, 1
      %v1770 = vsel %vm1758, %v1765, %v1769
      %v1771 = vshrl.u32 %v1736, 16
      %v1773 = vor.u32 %v1771, %v1769
      %v1775 = vshll.u32 %v1737, 16
      %v1777 = vrot.slane %v1775, 1
      %v1778 = vsel %vm1758, %v1773, %v1777
      %v1779 = vshrl.u32 %v1737, 16
      %v1781 = vor.u32 %v1779, %v1777
      %v1783 = vshll.u32 %v1738, 16
      %v1785 = vrot.slane %v1783, 1
      %v1786 = vsel %vm1758, %v1781, %v1785
      %v1787 = vshrl.u32 %v1738, 16
      %v1789 = vor.u32 %v1787, %v1785
      %v1791 = vshll.u32 %v1739, 16
      %v1793 = vrot.slane %v1791, 1
      %v1794 = vsel %vm1758, %v1789, %v1793
      %v1795 = vshrl.u32 %v1739, 16
      %v1797 = vor.u32 %v1795, %v1793
      %v1799 = vshll.u32 %v1748, 16
      %v1801 = vrot.slane %v1799, 1
      %v1802 = vsel %vm1758, %v1797, %v1801
      %v1811 = vunpack.c.l.b16 %v1750
      %v1812 = vunpack.c.l.b16 %v1751
      %v1813 = vunpack.c.l.b16 %v1752
      %v1814 = vunpack.c.l.b16 %v1753
      %v1815 = vunpack.c.l.b16 %v1754
      %v1816 = vunpack.c.l.b16 %v1755
      %v1817 = vunpack.c.l.b16 %v1756
      %v1818 = vunpack.c.l.b16 %v1757
      %v1819 = vpack.c.b16 %v1812, %v1811
      %v1820 = vpack.c.b16 %v1814, %v1813
      %v1821 = vpack.c.b16 %v1816, %v1815
      %v1822 = vpack.c.b16 %v1818, %v1817
      %vm1827 = vcmask 523264
      %v1829 = vsel %vm1827, %v1770, 0
      %v1832 = vsel %vm1827, %v1778, 0
      %v1835 = vsel %vm1827, %v1786, 0
      %v1838 = vsel %vm1827, %v1794, 0
      %v1841 = vsel %vm1827, %v1802, 0
      %1843 = vmatprep.subr.bf16.mxu0 0
      %1844 = vmatpush1.bf16.msra.mxu0 %v1819
      %1845 = vmatprep.subr.bf16.mxu0 0
      %1846 = vmatpush1.bf16.msra.mxu0 %v1820
      %1847 = vmatprep.subr.bf16.mxu0 0
      %1848 = vmatpush1.bf16.msra.mxu0 %v1821
      %1849 = vmatprep.subr.bf16.mxu0 0
      %1850 = vmatpush1.bf16.msra.mxu0 %v1822
      %1851 = vmatprep.subr.bf16.mxu0 0
      %1852 = vmatpush1.bf16.msra.mxu0 0
      %1853 = vmatprep.subr.bf16.mxu0 0
      %1854 = vmatpush1.bf16.msra.mxu0 0
      %1855 = vmatprep.subr.bf16.mxu0 0
      %1856 = vmatpush1.bf16.msra.mxu0 0
      %1857 = vmatprep.subr.bf16.mxu0 0
      %1858 = vmatpush1.bf16.msra.mxu0 0
      %1859 = vmatprep.subr.bf16.mxu0 0
      %1860 = vmatpush1.bf16.msra.mxu0 0
      %1861 = vmatprep.subr.bf16.mxu0 0
      %1862 = vmatpush1.bf16.msra.mxu0 0
      %1863 = vmatprep.subr.bf16.mxu0 0
      %1864 = vmatpush1.bf16.msra.mxu0 0
      %1865 = vmatprep.subr.bf16.mxu0 0
      %1866 = vmatpush1.bf16.msra.mxu0 0
      %1867 = vmatprep.subr.bf16.mxu0 0
      %1868 = vmatpush1.bf16.msra.mxu0 0
      %1869 = vmatprep.subr.bf16.mxu0 0
      %1870 = vmatpush1.bf16.msra.mxu0 0
      %1871 = vmatprep.subr.bf16.mxu0 0
      %1872 = vmatpush1.bf16.msra.mxu0 0
      %1873 = vmatprep.subr.bf16.mxu0 0
      %1874 = vmatpush1.bf16.msra.mxu0 0
      %1875 = vmatprep.mubr.bf16.mxu0 0
      %1876 = vmatmul.mubr.bf16.gmra.mrb[0].mxu0 %v1829
      %v1877 = vpop.f32.mrb[0].mxu0
      %v1878 = vadd.f32 0.0, %v1877
      %v1879 = vpop.f32.mrb[0].mxu0
      %v1880 = vpop.f32.mrb[0].mxu0
      %v1881 = vadd.f32 0.0, %v1880
      %v1882 = vpop.f32.mrb[0].mxu0
      %1883 = vmatprep.mubr.bf16.mxu0 0
      %1884 = vmatmul.mubr.bf16.gmra.mrb[0].mxu0 %v1832
      %v1885 = vpop.f32.mrb[0].mxu0
      %v1886 = vadd.f32 0.0, %v1885
      %v1887 = vpop.f32.mrb[0].mxu0
      %v1888 = vpop.f32.mrb[0].mxu0
      %v1889 = vadd.f32 0.0, %v1888
      %v1890 = vpop.f32.mrb[0].mxu0
      %1891 = vmatprep.mubr.bf16.mxu0 0
      %1892 = vmatmul.mubr.bf16.gmra.mrb[0].mxu0 %v1835
      %v1893 = vpop.f32.mrb[0].mxu0
      %v1894 = vadd.f32 0.0, %v1893
      %v1895 = vpop.f32.mrb[0].mxu0
      %v1896 = vpop.f32.mrb[0].mxu0
      %v1897 = vadd.f32 0.0, %v1896
      %v1898 = vpop.f32.mrb[0].mxu0
      %1899 = vmatprep.mubr.bf16.mxu0 0
      %1900 = vmatmul.mubr.bf16.gmra.mrb[0].mxu0 %v1838
      %v1901 = vpop.f32.mrb[0].mxu0
      %v1902 = vadd.f32 0.0, %v1901
      %v1903 = vpop.f32.mrb[0].mxu0
      %v1904 = vpop.f32.mrb[0].mxu0
      %v1905 = vadd.f32 0.0, %v1904
      %v1906 = vpop.f32.mrb[0].mxu0
      %1907 = vmatprep.mubr.bf16.mxu0 0
      %1908 = vmatmul.mubr.bf16.gmra.mrb[0].mxu0 %v1841
      %v1909 = vpop.f32.mrb[0].mxu0
      %v1910 = vadd.f32 0.0, %v1909
      %v1911 = vpop.f32.mrb[0].mxu0
      %v1912 = vpop.f32.mrb[0].mxu0
      %v1913 = vadd.f32 0.0, %v1912
      %v1914 = vpop.f32.mrb[0].mxu0
      %1915 = vdwg.mxu0
      %v1924 = vunpack.c.l.b16 %v1740
      %v1925 = vunpack.c.l.b16 %v1741
      %v1926 = vunpack.c.l.b16 %v1742
      %v1927 = vunpack.c.l.b16 %v1743
      %v1928 = vunpack.c.l.b16 %v1744
      %v1929 = vunpack.c.l.b16 %v1745
      %v1930 = vunpack.c.l.b16 %v1746
      %v1931 = vunpack.c.l.b16 %v1747
      %v1932 = vpack.c.b16 %v1925, %v1924
      %v1933 = vpack.c.b16 %v1927, %v1926
      %v1934 = vpack.c.b16 %v1929, %v1928
      %v1935 = vpack.c.b16 %v1931, %v1930
      %v1940 = vsel %vm1827, %v1735, 0
      %v1942 = vsel %vm1827, %v1736, 0
      %v1944 = vsel %vm1827, %v1737, 0
      %v1946 = vsel %vm1827, %v1738, 0
      %v1948 = vsel %vm1827, %v1739, 0
      %1950 = vmatprep.subr.bf16.mxu0 0
      %1951 = vmatpush1.bf16.msra.mxu0 %v1932
      %1952 = vmatprep.subr.bf16.mxu0 0
      %1953 = vmatpush1.bf16.msra.mxu0 %v1933
      %1954 = vmatprep.subr.bf16.mxu0 0
      %1955 = vmatpush1.bf16.msra.mxu0 %v1934
      %1956 = vmatprep.subr.bf16.mxu0 0
      %1957 = vmatpush1.bf16.msra.mxu0 %v1935
      %1958 = vmatprep.subr.bf16.mxu0 0
      %1959 = vmatpush1.bf16.msra.mxu0 0
      %1960 = vmatprep.subr.bf16.mxu0 0
      %1961 = vmatpush1.bf16.msra.mxu0 0
      %1962 = vmatprep.subr.bf16.mxu0 0
      %1963 = vmatpush1.bf16.msra.mxu0 0
      %1964 = vmatprep.subr.bf16.mxu0 0
      %1965 = vmatpush1.bf16.msra.mxu0 0
      %1966 = vmatprep.subr.bf16.mxu0 0
      %1967 = vmatpush1.bf16.msra.mxu0 0
      %1968 = vmatprep.subr.bf16.mxu0 0
      %1969 = vmatpush1.bf16.msra.mxu0 0
      %1970 = vmatprep.subr.bf16.mxu0 0
      %1971 = vmatpush1.bf16.msra.mxu0 0
      %1972 = vmatprep.subr.bf16.mxu0 0
      %1973 = vmatpush1.bf16.msra.mxu0 0
      %1974 = vmatprep.subr.bf16.mxu0 0
      %1975 = vmatpush1.bf16.msra.mxu0 0
      %1976 = vmatprep.subr.bf16.mxu0 0
      %1977 = vmatpush1.bf16.msra.mxu0 0
      %1978 = vmatprep.subr.bf16.mxu0 0
      %1979 = vmatpush1.bf16.msra.mxu0 0
      %1980 = vmatprep.subr.bf16.mxu0 0
      %1981 = vmatpush1.bf16.msra.mxu0 0
      %1982 = vmatprep.mubr.bf16.mxu0 0
      %1983 = vmatmul.mubr.bf16.gmra.mrb[0].mxu0 %v1940
      %v1984 = vpop.f32.mrb[0].mxu0
      %v1985 = vadd.f32 %v1878, %v1984
      %v1986 = vpop.f32.mrb[0].mxu0
      %v1987 = vpop.f32.mrb[0].mxu0
      %v1988 = vadd.f32 %v1881, %v1987
      %v1989 = vpop.f32.mrb[0].mxu0
      %1990 = vmatprep.mubr.bf16.mxu0 0
      %1991 = vmatmul.mubr.bf16.gmra.mrb[0].mxu0 %v1942
      %v1992 = vpop.f32.mrb[0].mxu0
      %v1993 = vadd.f32 %v1886, %v1992
      %v1994 = vpop.f32.mrb[0].mxu0
      %v1995 = vpop.f32.mrb[0].mxu0
      %v1996 = vadd.f32 %v1889, %v1995
      %v1997 = vpop.f32.mrb[0].mxu0
      %1998 = vmatprep.mubr.bf16.mxu0 0
      %1999 = vmatmul.mubr.bf16.gmra.mrb[0].mxu0 %v1944
      %v2000 = vpop.f32.mrb[0].mxu0
      %v2001 = vadd.f32 %v1894, %v2000
      %v2002 = vpop.f32.mrb[0].mxu0
      %v2003 = vpop.f32.mrb[0].mxu0
      %v2004 = vadd.f32 %v1897, %v2003
      %v2005 = vpop.f32.mrb[0].mxu0
      %2006 = vmatprep.mubr.bf16.mxu0 0
      %2007 = vmatmul.mubr.bf16.gmra.mrb[0].mxu0 %v1946
      %v2008 = vpop.f32.mrb[0].mxu0
      %v2009 = vadd.f32 %v1902, %v2008
      %v2010 = vpop.f32.mrb[0].mxu0
      %v2011 = vpop.f32.mrb[0].mxu0
      %v2012 = vadd.f32 %v1905, %v2011
      %v2013 = vpop.f32.mrb[0].mxu0
      %2014 = vmatprep.mubr.bf16.mxu0 0
      %2015 = vmatmul.mubr.bf16.gmra.mrb[0].mxu0 %v1948
      %v2016 = vpop.f32.mrb[0].mxu0
      %v2017 = vadd.f32 %v1910, %v2016
      %v2018 = vpop.f32.mrb[0].mxu0
      %v2019 = vpop.f32.mrb[0].mxu0
      %v2020 = vadd.f32 %v1913, %v2019
      %v2021 = vpop.f32.mrb[0].mxu0
      %2022 = vdwg.mxu0
      %s2023 = scalar_lea.vmem %s3, 64
      %v2024 = vld [vmem:[%s2023] sm:$0xf]
      %v2025 = vld [vmem:[%s2023 + $0x4] sm:$0xf]
      %v2026 = vld [vmem:[%s2023 + $0x8] sm:$0xf]
      %v2027 = vld [vmem:[%s2023 + $0xc] sm:$0xf]
      %v2028 = vld [vmem:[%s2023 + $0x10] sm:$0xf]
      %v2029 = vld [vmem:[%s2023 + $0x14] sm:$0xf]
      %v2030 = vld [vmem:[%s2023 + $0x18] sm:$0xf]
      %v2031 = vld [vmem:[%s2023 + $0x1c] sm:$0xf]
      %vm2038 = vcmask 1046528
      %v2039 = vrot.slane %v1735, 1
      %v2040 = vrot.slane %v1736, 1
      %v2041 = vsel %vm2038, %v2039, %v2040
      %v2042 = vrot.slane %v1737, 1
      %v2043 = vsel %vm2038, %v2040, %v2042
      %v2044 = vrot.slane %v1738, 1
      %v2045 = vsel %vm2038, %v2042, %v2044
      %v2046 = vrot.slane %v1739, 1
      %v2047 = vsel %vm2038, %v2044, %v2046
      %v2048 = vrot.slane %v1748, 1
      %v2049 = vsel %vm2038, %v2046, %v2048
      %v2058 = vunpack.c.l.b16 %v2024
      %v2059 = vunpack.c.l.b16 %v2025
      %v2060 = vunpack.c.l.b16 %v2026
      %v2061 = vunpack.c.l.b16 %v2027
      %v2062 = vunpack.c.l.b16 %v2028
      %v2063 = vunpack.c.l.b16 %v2029
      %v2064 = vunpack.c.l.b16 %v2030
      %v2065 = vunpack.c.l.b16 %v2031
      %v2066 = vpack.c.b16 %v2059, %v2058
      %v2067 = vpack.c.b16 %v2061, %v2060
      %v2068 = vpack.c.b16 %v2063, %v2062
      %v2069 = vpack.c.b16 %v2065, %v2064
      %v2075 = vsel %vm1827, %v2041, 0
      %v2078 = vsel %vm1827, %v2043, 0
      %v2081 = vsel %vm1827, %v2045, 0
      %v2084 = vsel %vm1827, %v2047, 0
      %v2087 = vsel %vm1827, %v2049, 0
      %2089 = vmatprep.subr.bf16.mxu0 0
      %2090 = vmatpush1.bf16.msra.mxu0 %v2066
      %2091 = vmatprep.subr.bf16.mxu0 0
      %2092 = vmatpush1.bf16.msra.mxu0 %v2067
      %2093 = vmatprep.subr.bf16.mxu0 0
      %2094 = vmatpush1.bf16.msra.mxu0 %v2068
      %2095 = vmatprep.subr.bf16.mxu0 0
      %2096 = vmatpush1.bf16.msra.mxu0 %v2069
      %2097 = vmatprep.subr.bf16.mxu0 0
      %2098 = vmatpush1.bf16.msra.mxu0 0
      %2099 = vmatprep.subr.bf16.mxu0 0
      %2100 = vmatpush1.bf16.msra.mxu0 0
      %2101 = vmatprep.subr.bf16.mxu0 0
      %2102 = vmatpush1.bf16.msra.mxu0 0
      %2103 = vmatprep.subr.bf16.mxu0 0
      %2104 = vmatpush1.bf16.msra.mxu0 0
      %2105 = vmatprep.subr.bf16.mxu0 0
      %2106 = vmatpush1.bf16.msra.mxu0 0
      %2107 = vmatprep.subr.bf16.mxu0 0
      %2108 = vmatpush1.bf16.msra.mxu0 0
      %2109 = vmatprep.subr.bf16.mxu0 0
      %2110 = vmatpush1.bf16.msra.mxu0 0
      %2111 = vmatprep.subr.bf16.mxu0 0
      %2112 = vmatpush1.bf16.msra.mxu0 0
      %2113 = vmatprep.subr.bf16.mxu0 0
      %2114 = vmatpush1.bf16.msra.mxu0 0
      %2115 = vmatprep.subr.bf16.mxu0 0
      %2116 = vmatpush1.bf16.msra.mxu0 0
      %2117 = vmatprep.subr.bf16.mxu0 0
      %2118 = vmatpush1.bf16.msra.mxu0 0
      %2119 = vmatprep.subr.bf16.mxu0 0
      %2120 = vmatpush1.bf16.msra.mxu0 0
      %2121 = vmatprep.mubr.bf16.mxu0 0
      %2122 = vmatmul.mubr.bf16.gmra.mrb[0].mxu0 %v2075
      %v2123 = vpop.f32.mrb[0].mxu0
      %v2124 = vadd.f32 0.0, %v2123
      %v2125 = vpop.f32.mrb[0].mxu0
      %v2126 = vpop.f32.mrb[0].mxu0
      %v2127 = vadd.f32 0.0, %v2126
      %v2128 = vpop.f32.mrb[0].mxu0
      %2129 = vmatprep.mubr.bf16.mxu0 0
      %2130 = vmatmul.mubr.bf16.gmra.mrb[0].mxu0 %v2078
      %v2131 = vpop.f32.mrb[0].mxu0
      %v2132 = vadd.f32 0.0, %v2131
      %v2133 = vpop.f32.mrb[0].mxu0
      %v2134 = vpop.f32.mrb[0].mxu0
      %v2135 = vadd.f32 0.0, %v2134
      %v2136 = vpop.f32.mrb[0].mxu0
      %2137 = vmatprep.mubr.bf16.mxu0 0
      %2138 = vmatmul.mubr.bf16.gmra.mrb[0].mxu0 %v2081
      %v2139 = vpop.f32.mrb[0].mxu0
      %v2140 = vadd.f32 0.0, %v2139
      %v2141 = vpop.f32.mrb[0].mxu0
      %v2142 = vpop.f32.mrb[0].mxu0
      %v2143 = vadd.f32 0.0, %v2142
      %v2144 = vpop.f32.mrb[0].mxu0
      %2145 = vmatprep.mubr.bf16.mxu0 0
      %2146 = vmatmul.mubr.bf16.gmra.mrb[0].mxu0 %v2084
      %v2147 = vpop.f32.mrb[0].mxu0
      %v2148 = vadd.f32 0.0, %v2147
      %v2149 = vpop.f32.mrb[0].mxu0
      %v2150 = vpop.f32.mrb[0].mxu0
      %v2151 = vadd.f32 0.0, %v2150
      %v2152 = vpop.f32.mrb[0].mxu0
      %2153 = vmatprep.mubr.bf16.mxu0 0
      %2154 = vmatmul.mubr.bf16.gmra.mrb[0].mxu0 %v2087
      %v2155 = vpop.f32.mrb[0].mxu0
      %v2156 = vadd.f32 0.0, %v2155
      %v2157 = vpop.f32.mrb[0].mxu0
      %v2158 = vpop.f32.mrb[0].mxu0
      %v2159 = vadd.f32 0.0, %v2158
      %v2160 = vpop.f32.mrb[0].mxu0
      %2161 = vdwg.mxu0
      %v2162 = vadd.f32 %v1985, %v2124
      %v2163 = vadd.f32 %v1988, %v2127
      %v2164 = vadd.f32 %v1993, %v2132
      %v2165 = vadd.f32 %v1996, %v2135
      %v2166 = vadd.f32 %v2001, %v2140
      %v2167 = vadd.f32 %v2004, %v2143
      %v2168 = vadd.f32 %v2009, %v2148
      %v2169 = vadd.f32 %v2012, %v2151
      %v2170 = vadd.f32 %v2017, %v2156
      %v2171 = vadd.f32 %v2020, %v2159
      %v2172 = vpack.c.bf16 %v1724, %v1723
      %v2173 = vpack.c.bf16 %v1726, %v1725
      %v2174 = vpack.c.bf16 %v1728, %v1727
      %v2175 = vpack.c.bf16 %v1730, %v1729
      %v2176 = vpack.c.bf16 %v1732, %v1731
      %v2177 = vpack.c.bf16 %v1733, %v1733
      %s2178 = scalar_lea.vmem %s3, 96
      %v2179 = vld [vmem:[%s2178] sm:$0xf]
      %v2180 = vld [vmem:[%s2178 + $0x4] sm:$0xf]
      %v2181 = vld [vmem:[%s2178 + $0x8] sm:$0xf]
      %v2182 = vld [vmem:[%s2178 + $0xc] sm:$0xf]
      %v2183 = vld [vmem:[%s2178 + $0x10] sm:$0xf]
      %v2184 = vld [vmem:[%s2178 + $0x14] sm:$0xf]
      %v2185 = vld [vmem:[%s2178 + $0x18] sm:$0xf]
      %v2186 = vld [vmem:[%s2178 + $0x1c] sm:$0xf]
      %v2193 = vrot.slane %v2172, 1
      %v2194 = vrot.slane %v2173, 1
      %v2195 = vsel %vm2038, %v2193, %v2194
      %v2196 = vrot.slane %v2174, 1
      %v2197 = vsel %vm2038, %v2194, %v2196
      %v2198 = vrot.slane %v2175, 1
      %v2199 = vsel %vm2038, %v2196, %v2198
      %v2200 = vrot.slane %v2176, 1
      %v2201 = vsel %vm2038, %v2198, %v2200
      %v2202 = vrot.slane %v2177, 1
      %v2203 = vsel %vm2038, %v2200, %v2202
      %v2212 = vunpack.c.l.b16 %v2179
      %v2213 = vunpack.c.l.b16 %v2180
      %v2214 = vunpack.c.l.b16 %v2181
      %v2215 = vunpack.c.l.b16 %v2182
      %v2216 = vunpack.c.l.b16 %v2183
      %v2217 = vunpack.c.l.b16 %v2184
      %v2218 = vunpack.c.l.b16 %v2185
      %v2219 = vunpack.c.l.b16 %v2186
      %v2220 = vpack.c.b16 %v2213, %v2212
      %v2221 = vpack.c.b16 %v2215, %v2214
      %v2222 = vpack.c.b16 %v2217, %v2216
      %v2223 = vpack.c.b16 %v2219, %v2218
      %v2229 = vsel %vm1827, %v2195, 0
      %v2232 = vsel %vm1827, %v2197, 0
      %v2235 = vsel %vm1827, %v2199, 0
      %v2238 = vsel %vm1827, %v2201, 0
      %v2241 = vsel %vm1827, %v2203, 0
      %2243 = vmatprep.subr.bf16.mxu0 0
      %2244 = vmatpush1.bf16.msra.mxu0 %v2220
      %2245 = vmatprep.subr.bf16.mxu0 0
      %2246 = vmatpush1.bf16.msra.mxu0 %v2221
      %2247 = vmatprep.subr.bf16.mxu0 0
      %2248 = vmatpush1.bf16.msra.mxu0 %v2222
      %2249 = vmatprep.subr.bf16.mxu0 0
      %2250 = vmatpush1.bf16.msra.mxu0 %v2223
      %2251 = vmatprep.subr.bf16.mxu0 0
      %2252 = vmatpush1.bf16.msra.mxu0 0
      %2253 = vmatprep.subr.bf16.mxu0 0
      %2254 = vmatpush1.bf16.msra.mxu0 0
      %2255 = vmatprep.subr.bf16.mxu0 0
      %2256 = vmatpush1.bf16.msra.mxu0 0
      %2257 = vmatprep.subr.bf16.mxu0 0
      %2258 = vmatpush1.bf16.msra.mxu0 0
      %2259 = vmatprep.subr.bf16.mxu0 0
      %2260 = vmatpush1.bf16.msra.mxu0 0
      %2261 = vmatprep.subr.bf16.mxu0 0
      %2262 = vmatpush1.bf16.msra.mxu0 0
      %2263 = vmatprep.subr.bf16.mxu0 0
      %2264 = vmatpush1.bf16.msra.mxu0 0
      %2265 = vmatprep.subr.bf16.mxu0 0
      %2266 = vmatpush1.bf16.msra.mxu0 0
      %2267 = vmatprep.subr.bf16.mxu0 0
      %2268 = vmatpush1.bf16.msra.mxu0 0
      %2269 = vmatprep.subr.bf16.mxu0 0
      %2270 = vmatpush1.bf16.msra.mxu0 0
      %2271 = vmatprep.subr.bf16.mxu0 0
      %2272 = vmatpush1.bf16.msra.mxu0 0
      %2273 = vmatprep.subr.bf16.mxu0 0
      %2274 = vmatpush1.bf16.msra.mxu0 0
      %2275 = vmatprep.mubr.bf16.mxu0 0
      %2276 = vmatmul.mubr.bf16.gmra.mrb[0].mxu0 %v2229
      %v2277 = vpop.f32.mrb[0].mxu0
      %v2278 = vadd.f32 0.0, %v2277
      %v2279 = vpop.f32.mrb[0].mxu0
      %v2280 = vpop.f32.mrb[0].mxu0
      %v2281 = vadd.f32 0.0, %v2280
      %v2282 = vpop.f32.mrb[0].mxu0
      %2283 = vmatprep.mubr.bf16.mxu0 0
      %2284 = vmatmul.mubr.bf16.gmra.mrb[0].mxu0 %v2232
      %v2285 = vpop.f32.mrb[0].mxu0
      %v2286 = vadd.f32 0.0, %v2285
      %v2287 = vpop.f32.mrb[0].mxu0
      %v2288 = vpop.f32.mrb[0].mxu0
      %v2289 = vadd.f32 0.0, %v2288
      %v2290 = vpop.f32.mrb[0].mxu0
      %2291 = vmatprep.mubr.bf16.mxu0 0
      %2292 = vmatmul.mubr.bf16.gmra.mrb[0].mxu0 %v2235
      %v2293 = vpop.f32.mrb[0].mxu0
      %v2294 = vadd.f32 0.0, %v2293
      %v2295 = vpop.f32.mrb[0].mxu0
      %v2296 = vpop.f32.mrb[0].mxu0
      %v2297 = vadd.f32 0.0, %v2296
      %v2298 = vpop.f32.mrb[0].mxu0
      %2299 = vmatprep.mubr.bf16.mxu0 0
      %2300 = vmatmul.mubr.bf16.gmra.mrb[0].mxu0 %v2238
      %v2301 = vpop.f32.mrb[0].mxu0
      %v2302 = vadd.f32 0.0, %v2301
      %v2303 = vpop.f32.mrb[0].mxu0
      %v2304 = vpop.f32.mrb[0].mxu0
      %v2305 = vadd.f32 0.0, %v2304
      %v2306 = vpop.f32.mrb[0].mxu0
      %2307 = vmatprep.mubr.bf16.mxu0 0
      %2308 = vmatmul.mubr.bf16.gmra.mrb[0].mxu0 %v2241
      %v2309 = vpop.f32.mrb[0].mxu0
      %v2310 = vadd.f32 0.0, %v2309
      %v2311 = vpop.f32.mrb[0].mxu0
      %v2312 = vpop.f32.mrb[0].mxu0
      %v2313 = vadd.f32 0.0, %v2312
      %v2314 = vpop.f32.mrb[0].mxu0
      %2315 = vdwg.mxu0
      %v2316 = vadd.f32 %v2162, %v2278
      %v2317 = vadd.f32 %v2163, %v2281
      %v2318 = vadd.f32 %v2164, %v2286
      %v2319 = vadd.f32 %v2165, %v2289
      %v2320 = vadd.f32 %v2166, %v2294
      %v2321 = vadd.f32 %v2167, %v2297
      %v2322 = vadd.f32 %v2168, %v2302
      %v2323 = vadd.f32 %v2169, %v2305
      %v2324 = vadd.f32 %v2170, %v2310
      %v2325 = vadd.f32 %v2171, %v2313
      %s2326 = scalar_lea.vmem %s3, 128
      %v2327 = vld [vmem:[%s2326] sm:$0xf]
      %v2328 = vld [vmem:[%s2326 + $0x4] sm:$0xf]
      %v2329 = vld [vmem:[%s2326 + $0x8] sm:$0xf]
      %v2330 = vld [vmem:[%s2326 + $0xc] sm:$0xf]
      %v2331 = vld [vmem:[%s2326 + $0x10] sm:$0xf]
      %v2332 = vld [vmem:[%s2326 + $0x14] sm:$0xf]
      %v2333 = vld [vmem:[%s2326 + $0x18] sm:$0xf]
      %v2334 = vld [vmem:[%s2326 + $0x1c] sm:$0xf]
      %vm2335 = vsmask.f32 6400
      %v2337 = vshrl.u32 %v2172, 16
      %v2339 = vrot.slane %v2337, 1
      %v2340 = vshll.u32 %v2172, 16
      %v2342 = vrot.slane %v2340, 2
      %v2343 = vor.u32 %v2339, %v2342
      %v2345 = vshrl.u32 %v2173, 16
      %v2347 = vrot.slane %v2345, 1
      %v2348 = vshll.u32 %v2173, 16
      %v2350 = vrot.slane %v2348, 2
      %v2351 = vor.u32 %v2347, %v2350
      %v2352 = vsel %vm2335, %v2343, %v2351
      %v2354 = vshrl.u32 %v2174, 16
      %v2356 = vrot.slane %v2354, 1
      %v2357 = vshll.u32 %v2174, 16
      %v2359 = vrot.slane %v2357, 2
      %v2360 = vor.u32 %v2356, %v2359
      %v2361 = vsel %vm2335, %v2351, %v2360
      %v2363 = vshrl.u32 %v2175, 16
      %v2365 = vrot.slane %v2363, 1
      %v2366 = vshll.u32 %v2175, 16
      %v2368 = vrot.slane %v2366, 2
      %v2369 = vor.u32 %v2365, %v2368
      %v2370 = vsel %vm2335, %v2360, %v2369
      %v2372 = vshrl.u32 %v2176, 16
      %v2374 = vrot.slane %v2372, 1
      %v2375 = vshll.u32 %v2176, 16
      %v2377 = vrot.slane %v2375, 2
      %v2378 = vor.u32 %v2374, %v2377
      %v2379 = vsel %vm2335, %v2369, %v2378
      %v2381 = vshrl.u32 %v2177, 16
      %v2383 = vrot.slane %v2381, 1
      %v2384 = vshll.u32 %v2177, 16
      %v2386 = vrot.slane %v2384, 2
      %v2387 = vor.u32 %v2383, %v2386
      %v2388 = vsel %vm2335, %v2378, %v2387
      %v2397 = vunpack.c.l.b16 %v2327
      %v2398 = vunpack.c.l.b16 %v2328
      %v2399 = vunpack.c.l.b16 %v2329
      %v2400 = vunpack.c.l.b16 %v2330
      %v2401 = vunpack.c.l.b16 %v2331
      %v2402 = vunpack.c.l.b16 %v2332
      %v2403 = vunpack.c.l.b16 %v2333
      %v2404 = vunpack.c.l.b16 %v2334
      %v2405 = vpack.c.b16 %v2398, %v2397
      %v2406 = vpack.c.b16 %v2400, %v2399
      %v2407 = vpack.c.b16 %v2402, %v2401
      %v2408 = vpack.c.b16 %v2404, %v2403
      %v2414 = vsel %vm1827, %v2352, 0
      %v2417 = vsel %vm1827, %v2361, 0
      %v2420 = vsel %vm1827, %v2370, 0
      %v2423 = vsel %vm1827, %v2379, 0
      %v2426 = vsel %vm1827, %v2388, 0
      %2428 = vmatprep.subr.bf16.mxu0 0
      %2429 = vmatpush1.bf16.msra.mxu0 %v2405
      %2430 = vmatprep.subr.bf16.mxu0 0
      %2431 = vmatpush1.bf16.msra.mxu0 %v2406
      %2432 = vmatprep.subr.bf16.mxu0 0
      %2433 = vmatpush1.bf16.msra.mxu0 %v2407
      %2434 = vmatprep.subr.bf16.mxu0 0
      %2435 = vmatpush1.bf16.msra.mxu0 %v2408
      %2436 = vmatprep.subr.bf16.mxu0 0
      %2437 = vmatpush1.bf16.msra.mxu0 0
      %2438 = vmatprep.subr.bf16.mxu0 0
      %2439 = vmatpush1.bf16.msra.mxu0 0
      %2440 = vmatprep.subr.bf16.mxu0 0
      %2441 = vmatpush1.bf16.msra.mxu0 0
      %2442 = vmatprep.subr.bf16.mxu0 0
      %2443 = vmatpush1.bf16.msra.mxu0 0
      %2444 = vmatprep.subr.bf16.mxu0 0
      %2445 = vmatpush1.bf16.msra.mxu0 0
      %2446 = vmatprep.subr.bf16.mxu0 0
      %2447 = vmatpush1.bf16.msra.mxu0 0
      %2448 = vmatprep.subr.bf16.mxu0 0
      %2449 = vmatpush1.bf16.msra.mxu0 0
      %2450 = vmatprep.subr.bf16.mxu0 0
      %2451 = vmatpush1.bf16.msra.mxu0 0
      %2452 = vmatprep.subr.bf16.mxu0 0
      %2453 = vmatpush1.bf16.msra.mxu0 0
      %2454 = vmatprep.subr.bf16.mxu0 0
      %2455 = vmatpush1.bf16.msra.mxu0 0
      %2456 = vmatprep.subr.bf16.mxu0 0
      %2457 = vmatpush1.bf16.msra.mxu0 0
      %2458 = vmatprep.subr.bf16.mxu0 0
      %2459 = vmatpush1.bf16.msra.mxu0 0
      %2460 = vmatprep.mubr.bf16.mxu0 0
      %2461 = vmatmul.mubr.bf16.gmra.mrb[0].mxu0 %v2414
      %v2462 = vpop.f32.mrb[0].mxu0
      %v2463 = vadd.f32 0.0, %v2462
      %v2464 = vpop.f32.mrb[0].mxu0
      %v2465 = vpop.f32.mrb[0].mxu0
      %v2466 = vadd.f32 0.0, %v2465
      %v2467 = vpop.f32.mrb[0].mxu0
      %2468 = vmatprep.mubr.bf16.mxu0 0
      %2469 = vmatmul.mubr.bf16.gmra.mrb[0].mxu0 %v2417
      %v2470 = vpop.f32.mrb[0].mxu0
      %v2471 = vadd.f32 0.0, %v2470
      %v2472 = vpop.f32.mrb[0].mxu0
      %v2473 = vpop.f32.mrb[0].mxu0
      %v2474 = vadd.f32 0.0, %v2473
      %v2475 = vpop.f32.mrb[0].mxu0
      %2476 = vmatprep.mubr.bf16.mxu0 0
      %2477 = vmatmul.mubr.bf16.gmra.mrb[0].mxu0 %v2420
      %v2478 = vpop.f32.mrb[0].mxu0
      %v2479 = vadd.f32 0.0, %v2478
      %v2480 = vpop.f32.mrb[0].mxu0
      %v2481 = vpop.f32.mrb[0].mxu0
      %v2482 = vadd.f32 0.0, %v2481
      %v2483 = vpop.f32.mrb[0].mxu0
      %2484 = vmatprep.mubr.bf16.mxu0 0
      %2485 = vmatmul.mubr.bf16.gmra.mrb[0].mxu0 %v2423
      %v2486 = vpop.f32.mrb[0].mxu0
      %v2487 = vadd.f32 0.0, %v2486
      %v2488 = vpop.f32.mrb[0].mxu0
      %v2489 = vpop.f32.mrb[0].mxu0
      %v2490 = vadd.f32 0.0, %v2489
      %v2491 = vpop.f32.mrb[0].mxu0
      %2492 = vmatprep.mubr.bf16.mxu0 0
      %2493 = vmatmul.mubr.bf16.gmra.mrb[0].mxu0 %v2426
      %v2494 = vpop.f32.mrb[0].mxu0
      %v2495 = vadd.f32 0.0, %v2494
      %v2496 = vpop.f32.mrb[0].mxu0
      %v2497 = vpop.f32.mrb[0].mxu0
      %v2498 = vadd.f32 0.0, %v2497
      %v2499 = vpop.f32.mrb[0].mxu0
      %2500 = vdwg.mxu0
      %v2501 = vadd.f32 %v2316, %v2463
      %v2502 = vadd.f32 %v2317, %v2466
      %v2503 = vadd.f32 %v2318, %v2471
      %v2504 = vadd.f32 %v2319, %v2474
      %v2505 = vadd.f32 %v2320, %v2479
      %v2506 = vadd.f32 %v2321, %v2482
      %v2507 = vadd.f32 %v2322, %v2487
      %v2508 = vadd.f32 %v2323, %v2490
      %v2509 = vadd.f32 %v2324, %v2495
      %v2510 = vadd.f32 %v2325, %v2498
      %s2511 = scalar_lea.vmem %s3, 160
      %v2512 = vld [vmem:[%s2511] sm:$0xf]
      %v2513 = vld [vmem:[%s2511 + $0x4] sm:$0xf]
      %v2514 = vld [vmem:[%s2511 + $0x8] sm:$0xf]
      %v2515 = vld [vmem:[%s2511 + $0xc] sm:$0xf]
      %v2516 = vld [vmem:[%s2511 + $0x10] sm:$0xf]
      %v2517 = vld [vmem:[%s2511 + $0x14] sm:$0xf]
      %v2518 = vld [vmem:[%s2511 + $0x18] sm:$0xf]
      %v2519 = vld [vmem:[%s2511 + $0x1c] sm:$0xf]
      %vm2520 = vcmask 1045504
      %v2521 = vrot.slane %v2172, 2
      %v2522 = vrot.slane %v2173, 2
      %v2523 = vsel %vm2520, %v2521, %v2522
      %v2524 = vrot.slane %v2174, 2
      %v2525 = vsel %vm2520, %v2522, %v2524
      %v2526 = vrot.slane %v2175, 2
      %v2527 = vsel %vm2520, %v2524, %v2526
      %v2528 = vrot.slane %v2176, 2
      %v2529 = vsel %vm2520, %v2526, %v2528
      %v2530 = vrot.slane %v2177, 2
      %v2531 = vsel %vm2520, %v2528, %v2530
      %v2540 = vunpack.c.l.b16 %v2512
      %v2541 = vunpack.c.l.b16 %v2513
      %v2542 = vunpack.c.l.b16 %v2514
      %v2543 = vunpack.c.l.b16 %v2515
      %v2544 = vunpack.c.l.b16 %v2516
      %v2545 = vunpack.c.l.b16 %v2517
      %v2546 = vunpack.c.l.b16 %v2518
      %v2547 = vunpack.c.l.b16 %v2519
      %v2548 = vpack.c.b16 %v2541, %v2540
      %v2549 = vpack.c.b16 %v2543, %v2542
      %v2550 = vpack.c.b16 %v2545, %v2544
      %v2551 = vpack.c.b16 %v2547, %v2546
      %v2557 = vsel %vm1827, %v2523, 0
      %v2560 = vsel %vm1827, %v2525, 0
      %v2563 = vsel %vm1827, %v2527, 0
      %v2566 = vsel %vm1827, %v2529, 0
      %v2569 = vsel %vm1827, %v2531, 0
      %2571 = vmatprep.subr.bf16.mxu0 0
      %2572 = vmatpush1.bf16.msra.mxu0 %v2548
      %2573 = vmatprep.subr.bf16.mxu0 0
      %2574 = vmatpush1.bf16.msra.mxu0 %v2549
      %2575 = vmatprep.subr.bf16.mxu0 0
      %2576 = vmatpush1.bf16.msra.mxu0 %v2550
      %2577 = vmatprep.subr.bf16.mxu0 0
      %2578 = vmatpush1.bf16.msra.mxu0 %v2551
      %2579 = vmatprep.subr.bf16.mxu0 0
      %2580 = vmatpush1.bf16.msra.mxu0 0
      %2581 = vmatprep.subr.bf16.mxu0 0
      %2582 = vmatpush1.bf16.msra.mxu0 0
      %2583 = vmatprep.subr.bf16.mxu0 0
      %2584 = vmatpush1.bf16.msra.mxu0 0
      %2585 = vmatprep.subr.bf16.mxu0 0
      %2586 = vmatpush1.bf16.msra.mxu0 0
      %2587 = vmatprep.subr.bf16.mxu0 0
      %2588 = vmatpush1.bf16.msra.mxu0 0
      %2589 = vmatprep.subr.bf16.mxu0 0
      %2590 = vmatpush1.bf16.msra.mxu0 0
      %2591 = vmatprep.subr.bf16.mxu0 0
      %2592 = vmatpush1.bf16.msra.mxu0 0
      %2593 = vmatprep.subr.bf16.mxu0 0
      %2594 = vmatpush1.bf16.msra.mxu0 0
      %2595 = vmatprep.subr.bf16.mxu0 0
      %2596 = vmatpush1.bf16.msra.mxu0 0
      %2597 = vmatprep.subr.bf16.mxu0 0
      %2598 = vmatpush1.bf16.msra.mxu0 0
      %2599 = vmatprep.subr.bf16.mxu0 0
      %2600 = vmatpush1.bf16.msra.mxu0 0
      %2601 = vmatprep.subr.bf16.mxu0 0
      %2602 = vmatpush1.bf16.msra.mxu0 0
      %2603 = vmatprep.mubr.bf16.mxu0 0
      %2604 = vmatmul.mubr.bf16.gmra.mrb[0].mxu0 %v2557
      %v2605 = vpop.f32.mrb[0].mxu0
      %v2606 = vadd.f32 0.0, %v2605
      %v2607 = vpop.f32.mrb[0].mxu0
      %v2608 = vpop.f32.mrb[0].mxu0
      %v2609 = vadd.f32 0.0, %v2608
      %v2610 = vpop.f32.mrb[0].mxu0
      %2611 = vmatprep.mubr.bf16.mxu0 0
      %2612 = vmatmul.mubr.bf16.gmra.mrb[0].mxu0 %v2560
      %v2613 = vpop.f32.mrb[0].mxu0
      %v2614 = vadd.f32 0.0, %v2613
      %v2615 = vpop.f32.mrb[0].mxu0
      %v2616 = vpop.f32.mrb[0].mxu0
      %v2617 = vadd.f32 0.0, %v2616
      %v2618 = vpop.f32.mrb[0].mxu0
      %2619 = vmatprep.mubr.bf16.mxu0 0
      %2620 = vmatmul.mubr.bf16.gmra.mrb[0].mxu0 %v2563
      %v2621 = vpop.f32.mrb[0].mxu0
      %v2622 = vadd.f32 0.0, %v2621
      %v2623 = vpop.f32.mrb[0].mxu0
      %v2624 = vpop.f32.mrb[0].mxu0
      %v2625 = vadd.f32 0.0, %v2624
      %v2626 = vpop.f32.mrb[0].mxu0
      %2627 = vmatprep.mubr.bf16.mxu0 0
      %2628 = vmatmul.mubr.bf16.gmra.mrb[0].mxu0 %v2566
      %v2629 = vpop.f32.mrb[0].mxu0
      %v2630 = vadd.f32 0.0, %v2629
      %v2631 = vpop.f32.mrb[0].mxu0
      %v2632 = vpop.f32.mrb[0].mxu0
      %v2633 = vadd.f32 0.0, %v2632
      %v2634 = vpop.f32.mrb[0].mxu0
      %2635 = vmatprep.mubr.bf16.mxu0 0
      %2636 = vmatmul.mubr.bf16.gmra.mrb[0].mxu0 %v2569
      %v2637 = vpop.f32.mrb[0].mxu0
      %v2638 = vadd.f32 0.0, %v2637
      %v2639 = vpop.f32.mrb[0].mxu0
      %v2640 = vpop.f32.mrb[0].mxu0
      %v2641 = vadd.f32 0.0, %v2640
      %v2642 = vpop.f32.mrb[0].mxu0
      %2643 = vdwg.mxu0
      %v2644 = vadd.f32 %v2501, %v2606
      %v2645 = vadd.f32 %v2502, %v2609
      %v2646 = vadd.f32 %v2503, %v2614
      %v2647 = vadd.f32 %v2504, %v2617
      %v2648 = vadd.f32 %v2505, %v2622
      %v2649 = vadd.f32 %v2506, %v2625
      %v2650 = vadd.f32 %v2507, %v2630
      %v2651 = vadd.f32 %v2508, %v2633
      %v2652 = vadd.f32 %v2509, %v2638
      %v2653 = vadd.f32 %v2510, %v2641
      %v2654 = vpack.c.bf16 %v1733, %v1732
      %v2655 = vpack.c.bf16 %v1734, %v1734
      %s2656 = scalar_lea.vmem %s3, 192
      %v2657 = vld [vmem:[%s2656] sm:$0xf]
      %v2658 = vld [vmem:[%s2656 + $0x4] sm:$0xf]
      %v2659 = vld [vmem:[%s2656 + $0x8] sm:$0xf]
      %v2660 = vld [vmem:[%s2656 + $0xc] sm:$0xf]
      %v2661 = vld [vmem:[%s2656 + $0x10] sm:$0xf]
      %v2662 = vld [vmem:[%s2656 + $0x14] sm:$0xf]
      %v2663 = vld [vmem:[%s2656 + $0x18] sm:$0xf]
      %v2664 = vld [vmem:[%s2656 + $0x1c] sm:$0xf]
      %v2667 = vrot.slane %v1736, 2
      %v2668 = vrot.slane %v1737, 2
      %v2669 = vsel %vm2520, %v2667, %v2668
      %v2670 = vrot.slane %v1738, 2
      %v2671 = vsel %vm2520, %v2668, %v2670
      %v2672 = vrot.slane %v1739, 2
      %v2673 = vsel %vm2520, %v2670, %v2672
      %v2674 = vrot.slane %v2654, 2
      %v2675 = vsel %vm2520, %v2672, %v2674
      %v2676 = vrot.slane %v2655, 2
      %v2677 = vsel %vm2520, %v2674, %v2676
      %v2686 = vunpack.c.l.b16 %v2657
      %v2687 = vunpack.c.l.b16 %v2658
      %v2688 = vunpack.c.l.b16 %v2659
      %v2689 = vunpack.c.l.b16 %v2660
      %v2690 = vunpack.c.l.b16 %v2661
      %v2691 = vunpack.c.l.b16 %v2662
      %v2692 = vunpack.c.l.b16 %v2663
      %v2693 = vunpack.c.l.b16 %v2664
      %v2694 = vpack.c.b16 %v2687, %v2686
      %v2695 = vpack.c.b16 %v2689, %v2688
      %v2696 = vpack.c.b16 %v2691, %v2690
      %v2697 = vpack.c.b16 %v2693, %v2692
      %v2703 = vsel %vm1827, %v2669, 0
      %v2706 = vsel %vm1827, %v2671, 0
      %v2709 = vsel %vm1827, %v2673, 0
      %v2712 = vsel %vm1827, %v2675, 0
      %v2715 = vsel %vm1827, %v2677, 0
      %2717 = vmatprep.subr.bf16.mxu0 0
      %2718 = vmatpush1.bf16.msra.mxu0 %v2694
      %2719 = vmatprep.subr.bf16.mxu0 0
      %2720 = vmatpush1.bf16.msra.mxu0 %v2695
      %2721 = vmatprep.subr.bf16.mxu0 0
      %2722 = vmatpush1.bf16.msra.mxu0 %v2696
      %2723 = vmatprep.subr.bf16.mxu0 0
      %2724 = vmatpush1.bf16.msra.mxu0 %v2697
      %2725 = vmatprep.subr.bf16.mxu0 0
      %2726 = vmatpush1.bf16.msra.mxu0 0
      %2727 = vmatprep.subr.bf16.mxu0 0
      %2728 = vmatpush1.bf16.msra.mxu0 0
      %2729 = vmatprep.subr.bf16.mxu0 0
      %2730 = vmatpush1.bf16.msra.mxu0 0
      %2731 = vmatprep.subr.bf16.mxu0 0
      %2732 = vmatpush1.bf16.msra.mxu0 0
      %2733 = vmatprep.subr.bf16.mxu0 0
      %2734 = vmatpush1.bf16.msra.mxu0 0
      %2735 = vmatprep.subr.bf16.mxu0 0
      %2736 = vmatpush1.bf16.msra.mxu0 0
      %2737 = vmatprep.subr.bf16.mxu0 0
      %2738 = vmatpush1.bf16.msra.mxu0 0
      %2739 = vmatprep.subr.bf16.mxu0 0
      %2740 = vmatpush1.bf16.msra.mxu0 0
      %2741 = vmatprep.subr.bf16.mxu0 0
      %2742 = vmatpush1.bf16.msra.mxu0 0
      %2743 = vmatprep.subr.bf16.mxu0 0
      %2744 = vmatpush1.bf16.msra.mxu0 0
      %2745 = vmatprep.subr.bf16.mxu0 0
      %2746 = vmatpush1.bf16.msra.mxu0 0
      %2747 = vmatprep.subr.bf16.mxu0 0
      %2748 = vmatpush1.bf16.msra.mxu0 0
      %2749 = vmatprep.mubr.bf16.mxu0 0
      %2750 = vmatmul.mubr.bf16.gmra.mrb[0].mxu0 %v2703
      %v2751 = vpop.f32.mrb[0].mxu0
      %v2752 = vadd.f32 0.0, %v2751
      %v2753 = vpop.f32.mrb[0].mxu0
      %v2754 = vpop.f32.mrb[0].mxu0
      %v2755 = vadd.f32 0.0, %v2754
      %v2756 = vpop.f32.mrb[0].mxu0
      %2757 = vmatprep.mubr.bf16.mxu0 0
      %2758 = vmatmul.mubr.bf16.gmra.mrb[0].mxu0 %v2706
      %v2759 = vpop.f32.mrb[0].mxu0
      %v2760 = vadd.f32 0.0, %v2759
      %v2761 = vpop.f32.mrb[0].mxu0
      %v2762 = vpop.f32.mrb[0].mxu0
      %v2763 = vadd.f32 0.0, %v2762
      %v2764 = vpop.f32.mrb[0].mxu0
      %2765 = vmatprep.mubr.bf16.mxu0 0
      %2766 = vmatmul.mubr.bf16.gmra.mrb[0].mxu0 %v2709
      %v2767 = vpop.f32.mrb[0].mxu0
      %v2768 = vadd.f32 0.0, %v2767
      %v2769 = vpop.f32.mrb[0].mxu0
      %v2770 = vpop.f32.mrb[0].mxu0
      %v2771 = vadd.f32 0.0, %v2770
      %v2772 = vpop.f32.mrb[0].mxu0
      %2773 = vmatprep.mubr.bf16.mxu0 0
      %2774 = vmatmul.mubr.bf16.gmra.mrb[0].mxu0 %v2712
      %v2775 = vpop.f32.mrb[0].mxu0
      %v2776 = vadd.f32 0.0, %v2775
      %v2777 = vpop.f32.mrb[0].mxu0
      %v2778 = vpop.f32.mrb[0].mxu0
      %v2779 = vadd.f32 0.0, %v2778
      %v2780 = vpop.f32.mrb[0].mxu0
      %2781 = vmatprep.mubr.bf16.mxu0 0
      %2782 = vmatmul.mubr.bf16.gmra.mrb[0].mxu0 %v2715
      %v2783 = vpop.f32.mrb[0].mxu0
      %v2784 = vadd.f32 0.0, %v2783
      %v2785 = vpop.f32.mrb[0].mxu0
      %v2786 = vpop.f32.mrb[0].mxu0
      %v2787 = vadd.f32 0.0, %v2786
      %v2788 = vpop.f32.mrb[0].mxu0
      %2789 = vdwg.mxu0
      %v2790 = vadd.f32 %v2644, %v2752
      %v2791 = vadd.f32 %v2645, %v2755
      %v2792 = vadd.f32 %v2646, %v2760
      %v2793 = vadd.f32 %v2647, %v2763
      %v2794 = vadd.f32 %v2648, %v2768
      %v2795 = vadd.f32 %v2649, %v2771
      %v2796 = vadd.f32 %v2650, %v2776
      %v2797 = vadd.f32 %v2651, %v2779
      %v2798 = vadd.f32 %v2652, %v2784
      %v2799 = vadd.f32 %v2653, %v2787
      %s2800 = scalar_lea.vmem %s3, 224
      %v2801 = vld [vmem:[%s2800] sm:$0xf]
      %v2802 = vld [vmem:[%s2800 + $0x4] sm:$0xf]
      %v2803 = vld [vmem:[%s2800 + $0x8] sm:$0xf]
      %v2804 = vld [vmem:[%s2800 + $0xc] sm:$0xf]
      %v2805 = vld [vmem:[%s2800 + $0x10] sm:$0xf]
      %v2806 = vld [vmem:[%s2800 + $0x14] sm:$0xf]
      %v2807 = vld [vmem:[%s2800 + $0x18] sm:$0xf]
      %v2808 = vld [vmem:[%s2800 + $0x1c] sm:$0xf]
      %vm2809 = vsmask.f32 5376
      %v2810 = vrot.slane %v1771, 2
      %v2811 = vrot.slane %v1767, 3
      %v2812 = vor.u32 %v2810, %v2811
      %v2813 = vrot.slane %v1779, 2
      %v2814 = vrot.slane %v1775, 3
      %v2815 = vor.u32 %v2813, %v2814
      %v2816 = vsel %vm2809, %v2812, %v2815
      %v2817 = vrot.slane %v1787, 2
      %v2818 = vrot.slane %v1783, 3
      %v2819 = vor.u32 %v2817, %v2818
      %v2820 = vsel %vm2809, %v2815, %v2819
      %v2821 = vrot.slane %v1795, 2
      %v2822 = vrot.slane %v1791, 3
      %v2823 = vor.u32 %v2821, %v2822
      %v2824 = vsel %vm2809, %v2819, %v2823
      %v2826 = vshrl.u32 %v2654, 16
      %v2828 = vrot.slane %v2826, 2
      %v2829 = vshll.u32 %v2654, 16
      %v2831 = vrot.slane %v2829, 3
      %v2832 = vor.u32 %v2828, %v2831
      %v2833 = vsel %vm2809, %v2823, %v2832
      %v2835 = vshrl.u32 %v2655, 16
      %v2837 = vrot.slane %v2835, 2
      %v2838 = vshll.u32 %v2655, 16
      %v2840 = vrot.slane %v2838, 3
      %v2841 = vor.u32 %v2837, %v2840
      %v2842 = vsel %vm2809, %v2832, %v2841
      %v2851 = vunpack.c.l.b16 %v2801
      %v2852 = vunpack.c.l.b16 %v2802
      %v2853 = vunpack.c.l.b16 %v2803
      %v2854 = vunpack.c.l.b16 %v2804
      %v2855 = vunpack.c.l.b16 %v2805
      %v2856 = vunpack.c.l.b16 %v2806
      %v2857 = vunpack.c.l.b16 %v2807
      %v2858 = vunpack.c.l.b16 %v2808
      %v2859 = vpack.c.b16 %v2852, %v2851
      %v2860 = vpack.c.b16 %v2854, %v2853
      %v2861 = vpack.c.b16 %v2856, %v2855
      %v2862 = vpack.c.b16 %v2858, %v2857
      %v2868 = vsel %vm1827, %v2816, 0
      %v2871 = vsel %vm1827, %v2820, 0
      %v2874 = vsel %vm1827, %v2824, 0
      %v2877 = vsel %vm1827, %v2833, 0
      %v2880 = vsel %vm1827, %v2842, 0
      %2882 = vmatprep.subr.bf16.mxu0 0
      %2883 = vmatpush1.bf16.msra.mxu0 %v2859
      %2884 = vmatprep.subr.bf16.mxu0 0
      %2885 = vmatpush1.bf16.msra.mxu0 %v2860
      %2886 = vmatprep.subr.bf16.mxu0 0
      %2887 = vmatpush1.bf16.msra.mxu0 %v2861
      %2888 = vmatprep.subr.bf16.mxu0 0
      %2889 = vmatpush1.bf16.msra.mxu0 %v2862
      %2890 = vmatprep.subr.bf16.mxu0 0
      %2891 = vmatpush1.bf16.msra.mxu0 0
      %2892 = vmatprep.subr.bf16.mxu0 0
      %2893 = vmatpush1.bf16.msra.mxu0 0
      %2894 = vmatprep.subr.bf16.mxu0 0
      %2895 = vmatpush1.bf16.msra.mxu0 0
      %2896 = vmatprep.subr.bf16.mxu0 0
      %2897 = vmatpush1.bf16.msra.mxu0 0
      %2898 = vmatprep.subr.bf16.mxu0 0
      %2899 = vmatpush1.bf16.msra.mxu0 0
      %2900 = vmatprep.subr.bf16.mxu0 0
      %2901 = vmatpush1.bf16.msra.mxu0 0
      %2902 = vmatprep.subr.bf16.mxu0 0
      %2903 = vmatpush1.bf16.msra.mxu0 0
      %2904 = vmatprep.subr.bf16.mxu0 0
      %2905 = vmatpush1.bf16.msra.mxu0 0
      %2906 = vmatprep.subr.bf16.mxu0 0
      %2907 = vmatpush1.bf16.msra.mxu0 0
      %2908 = vmatprep.subr.bf16.mxu0 0
      %2909 = vmatpush1.bf16.msra.mxu0 0
      %2910 = vmatprep.subr.bf16.mxu0 0
      %2911 = vmatpush1.bf16.msra.mxu0 0
      %2912 = vmatprep.subr.bf16.mxu0 0
      %2913 = vmatpush1.bf16.msra.mxu0 0
      %2914 = vmatprep.mubr.bf16.mxu0 0
      %2915 = vmatmul.mubr.bf16.gmra.mrb[0].mxu0 %v2868
      %v2916 = vpop.f32.mrb[0].mxu0
      %v2917 = vadd.f32 0.0, %v2916
      %v2918 = vpop.f32.mrb[0].mxu0
      %v2919 = vpop.f32.mrb[0].mxu0
      %v2920 = vadd.f32 0.0, %v2919
      %v2921 = vpop.f32.mrb[0].mxu0
      %2922 = vmatprep.mubr.bf16.mxu0 0
      %2923 = vmatmul.mubr.bf16.gmra.mrb[0].mxu0 %v2871
      %v2924 = vpop.f32.mrb[0].mxu0
      %v2925 = vadd.f32 0.0, %v2924
      %v2926 = vpop.f32.mrb[0].mxu0
      %v2927 = vpop.f32.mrb[0].mxu0
      %v2928 = vadd.f32 0.0, %v2927
      %v2929 = vpop.f32.mrb[0].mxu0
      %2930 = vmatprep.mubr.bf16.mxu0 0
      %2931 = vmatmul.mubr.bf16.gmra.mrb[0].mxu0 %v2874
      %v2932 = vpop.f32.mrb[0].mxu0
      %v2933 = vadd.f32 0.0, %v2932
      %v2934 = vpop.f32.mrb[0].mxu0
      %v2935 = vpop.f32.mrb[0].mxu0
      %v2936 = vadd.f32 0.0, %v2935
      %v2937 = vpop.f32.mrb[0].mxu0
      %2938 = vmatprep.mubr.bf16.mxu0 0
      %2939 = vmatmul.mubr.bf16.gmra.mrb[0].mxu0 %v2877
      %v2940 = vpop.f32.mrb[0].mxu0
      %v2941 = vadd.f32 0.0, %v2940
      %v2942 = vpop.f32.mrb[0].mxu0
      %v2943 = vpop.f32.mrb[0].mxu0
      %v2944 = vadd.f32 0.0, %v2943
      %v2945 = vpop.f32.mrb[0].mxu0
      %2946 = vmatprep.mubr.bf16.mxu0 0
      %2947 = vmatmul.mubr.bf16.gmra.mrb[0].mxu0 %v2880
      %v2948 = vpop.f32.mrb[0].mxu0
      %v2949 = vadd.f32 0.0, %v2948
      %v2950 = vpop.f32.mrb[0].mxu0
      %v2951 = vpop.f32.mrb[0].mxu0
      %v2952 = vadd.f32 0.0, %v2951
      %v2953 = vpop.f32.mrb[0].mxu0
      %2954 = vdwg.mxu0
      %v2955 = vadd.f32 %v2790, %v2917
      %v2956 = vadd.f32 %v2791, %v2920
      %v2957 = vadd.f32 %v2792, %v2925
      %v2958 = vadd.f32 %v2793, %v2928
      %v2959 = vadd.f32 %v2794, %v2933
      %v2960 = vadd.f32 %v2795, %v2936
      %v2961 = vadd.f32 %v2796, %v2941
      %v2962 = vadd.f32 %v2797, %v2944
      %v2963 = vadd.f32 %v2798, %v2949
      %v2964 = vadd.f32 %v2799, %v2952
      %s2965 = scalar_lea.vmem %s3, 256
      %v2966 = vld [vmem:[%s2965] sm:$0xf]
      %v2967 = vld [vmem:[%s2965 + $0x4] sm:$0xf]
      %v2968 = vld [vmem:[%s2965 + $0x8] sm:$0xf]
      %v2969 = vld [vmem:[%s2965 + $0xc] sm:$0xf]
      %v2970 = vld [vmem:[%s2965 + $0x10] sm:$0xf]
      %v2971 = vld [vmem:[%s2965 + $0x14] sm:$0xf]
      %v2972 = vld [vmem:[%s2965 + $0x18] sm:$0xf]
      %v2973 = vld [vmem:[%s2965 + $0x1c] sm:$0xf]
      %vm2974 = vcmask 1044480
      %v2975 = vrot.slane %v1736, 3
      %v2976 = vrot.slane %v1737, 3
      %v2977 = vsel %vm2974, %v2975, %v2976
      %v2978 = vrot.slane %v1738, 3
      %v2979 = vsel %vm2974, %v2976, %v2978
      %v2980 = vrot.slane %v1739, 3
      %v2981 = vsel %vm2974, %v2978, %v2980
      %v2982 = vrot.slane %v2654, 3
      %v2983 = vsel %vm2974, %v2980, %v2982
      %v2984 = vrot.slane %v2655, 3
      %v2985 = vsel %vm2974, %v2982, %v2984
      %v2994 = vunpack.c.l.b16 %v2966
      %v2995 = vunpack.c.l.b16 %v2967
      %v2996 = vunpack.c.l.b16 %v2968
      %v2997 = vunpack.c.l.b16 %v2969
      %v2998 = vunpack.c.l.b16 %v2970
      %v2999 = vunpack.c.l.b16 %v2971
      %v3000 = vunpack.c.l.b16 %v2972
      %v3001 = vunpack.c.l.b16 %v2973
      %v3002 = vpack.c.b16 %v2995, %v2994
      %v3003 = vpack.c.b16 %v2997, %v2996
      %v3004 = vpack.c.b16 %v2999, %v2998
      %v3005 = vpack.c.b16 %v3001, %v3000
      %v3011 = vsel %vm1827, %v2977, 0
      %v3014 = vsel %vm1827, %v2979, 0
      %v3017 = vsel %vm1827, %v2981, 0
      %v3020 = vsel %vm1827, %v2983, 0
      %v3023 = vsel %vm1827, %v2985, 0
      %3025 = vmatprep.subr.bf16.mxu0 0
      %3026 = vmatpush1.bf16.msra.mxu0 %v3002
      %3027 = vmatprep.subr.bf16.mxu0 0
      %3028 = vmatpush1.bf16.msra.mxu0 %v3003
      %3029 = vmatprep.subr.bf16.mxu0 0
      %3030 = vmatpush1.bf16.msra.mxu0 %v3004
      %3031 = vmatprep.subr.bf16.mxu0 0
      %3032 = vmatpush1.bf16.msra.mxu0 %v3005
      %3033 = vmatprep.subr.bf16.mxu0 0
      %3034 = vmatpush1.bf16.msra.mxu0 0
      %3035 = vmatprep.subr.bf16.mxu0 0
      %3036 = vmatpush1.bf16.msra.mxu0 0
      %3037 = vmatprep.subr.bf16.mxu0 0
      %3038 = vmatpush1.bf16.msra.mxu0 0
      %3039 = vmatprep.subr.bf16.mxu0 0
      %3040 = vmatpush1.bf16.msra.mxu0 0
      %3041 = vmatprep.subr.bf16.mxu0 0
      %3042 = vmatpush1.bf16.msra.mxu0 0
      %3043 = vmatprep.subr.bf16.mxu0 0
      %3044 = vmatpush1.bf16.msra.mxu0 0
      %3045 = vmatprep.subr.bf16.mxu0 0
      %3046 = vmatpush1.bf16.msra.mxu0 0
      %3047 = vmatprep.subr.bf16.mxu0 0
      %3048 = vmatpush1.bf16.msra.mxu0 0
      %3049 = vmatprep.subr.bf16.mxu0 0
      %3050 = vmatpush1.bf16.msra.mxu0 0
      %3051 = vmatprep.subr.bf16.mxu0 0
      %3052 = vmatpush1.bf16.msra.mxu0 0
      %3053 = vmatprep.subr.bf16.mxu0 0
      %3054 = vmatpush1.bf16.msra.mxu0 0
      %3055 = vmatprep.subr.bf16.mxu0 0
      %3056 = vmatpush1.bf16.msra.mxu0 0
      %3057 = vmatprep.mubr.bf16.mxu0 0
      %3058 = vmatmul.mubr.bf16.gmra.mrb[0].mxu0 %v3011
      %v3059 = vpop.f32.mrb[0].mxu0
      %v3060 = vadd.f32 0.0, %v3059
      %v3061 = vpop.f32.mrb[0].mxu0
      %v3062 = vpop.f32.mrb[0].mxu0
      %v3063 = vadd.f32 0.0, %v3062
      %v3064 = vpop.f32.mrb[0].mxu0
      %3065 = vmatprep.mubr.bf16.mxu0 0
      %3066 = vmatmul.mubr.bf16.gmra.mrb[0].mxu0 %v3014
      %v3067 = vpop.f32.mrb[0].mxu0
      %v3068 = vadd.f32 0.0, %v3067
      %v3069 = vpop.f32.mrb[0].mxu0
      %v3070 = vpop.f32.mrb[0].mxu0
      %v3071 = vadd.f32 0.0, %v3070
      %v3072 = vpop.f32.mrb[0].mxu0
      %3073 = vmatprep.mubr.bf16.mxu0 0
      %3074 = vmatmul.mubr.bf16.gmra.mrb[0].mxu0 %v3017
      %v3075 = vpop.f32.mrb[0].mxu0
      %v3076 = vadd.f32 0.0, %v3075
      %v3077 = vpop.f32.mrb[0].mxu0
      %v3078 = vpop.f32.mrb[0].mxu0
      %v3079 = vadd.f32 0.0, %v3078
      %v3080 = vpop.f32.mrb[0].mxu0
      %3081 = vmatprep.mubr.bf16.mxu0 0
      %3082 = vmatmul.mubr.bf16.gmra.mrb[0].mxu0 %v3020
      %v3083 = vpop.f32.mrb[0].mxu0
      %v3084 = vadd.f32 0.0, %v3083
      %v3085 = vpop.f32.mrb[0].mxu0
      %v3086 = vpop.f32.mrb[0].mxu0
      %v3087 = vadd.f32 0.0, %v3086
      %v3088 = vpop.f32.mrb[0].mxu0
      %3089 = vmatprep.mubr.bf16.mxu0 0
      %3090 = vmatmul.mubr.bf16.gmra.mrb[0].mxu0 %v3023
      %v3091 = vpop.f32.mrb[0].mxu0
      %v3092 = vadd.f32 0.0, %v3091
      %v3093 = vpop.f32.mrb[0].mxu0
      %v3094 = vpop.f32.mrb[0].mxu0
      %v3095 = vadd.f32 0.0, %v3094
      %v3096 = vpop.f32.mrb[0].mxu0
      %3097 = vdwg.mxu0
      %v3098 = vadd.f32 %v2955, %v3060
      %v3099 = vadd.f32 %v2956, %v3063
      %v3100 = vadd.f32 %v2957, %v3068
      %v3101 = vadd.f32 %v2958, %v3071
      %v3102 = vadd.f32 %v2959, %v3076
      %v3103 = vadd.f32 %v2960, %v3079
      %v3104 = vadd.f32 %v2961, %v3084
      %v3105 = vadd.f32 %v2962, %v3087
      %v3106 = vadd.f32 %v2963, %v3092
      %v3107 = vadd.f32 %v2964, %v3095
      %v3108 = vld [vmem:[%s4] sm:$0x1]
      %v3110 = vlaneseq
      %v3111 = vshrl.u32 %v3110, 7
      %v3112 = vsub.s32 0, %v3111
      %v3113 = vrot.slane %v3108, %v3112
      %v3115 = vadd.f32 %v3098, %v3113
      %v3116 = vadd.f32 %v3099, %v3113
      %v3117 = vadd.f32 %v3100, %v3113
      %v3118 = vadd.f32 %v3101, %v3113
      %v3119 = vadd.f32 %v3102, %v3113
      %v3120 = vadd.f32 %v3103, %v3113
      %v3121 = vadd.f32 %v3104, %v3113
      %v3122 = vadd.f32 %v3105, %v3113
      %v3123 = vadd.f32 %v3106, %v3113
      %v3124 = vadd.f32 %v3107, %v3113
      %v3125 = vmax.f32 %v3115, 0.0
      %v3126 = vmax.f32 %v3116, 0.0
      %v3127 = vmax.f32 %v3117, 0.0
      %v3128 = vmax.f32 %v3118, 0.0
      %v3129 = vmax.f32 %v3119, 0.0
      %v3130 = vmax.f32 %v3120, 0.0
      %v3131 = vmax.f32 %v3121, 0.0
      %v3132 = vmax.f32 %v3122, 0.0
      %v3133 = vmax.f32 %v3123, 0.0
      %v3134 = vmax.f32 %v3124, 0.0
      %v3135 = vpack.c.bf16 %v3126, %v3125
      %v3136 = vpack.c.bf16 %v3128, %v3127
      %v3137 = vpack.c.bf16 %v3130, %v3129
      %v3138 = vpack.c.bf16 %v3132, %v3131
      %v3139 = vpack.c.bf16 %v3134, %v3133
      %v3140 = vld [vmem:[%s14] sm:$0xf]
      %v3141 = vld [vmem:[%s14 + $0x4] sm:$0xf]
      %v3142 = vld [vmem:[%s14 + $0x8] sm:$0xf]
      %v3143 = vld [vmem:[%s14 + $0xc] sm:$0xf]
      %v3144 = vld [vmem:[%s14 + $0x10] sm:$0xf]
      %v3145 = vld [vmem:[%s14 + $0x14] sm:$0x1]
      %v3152 = vunpack.c.l.b16 %v3140
      %v3153 = vunpack.c.l.b16 %v3141
      %v3154 = vunpack.c.l.b16 %v3142
      %v3155 = vunpack.c.l.b16 %v3143
      %v3156 = vunpack.c.l.b16 %v3144
      %v3157 = vunpack.c.l.b16 %v3145
      %v3158 = vpack.c.b16 %v3153, %v3152
      %v3159 = vpack.c.b16 %v3155, %v3154
      %v3160 = vpack.c.b16 %v3157, %v3156
      %vm3161 = vcmask 654336
      %v3163 = vsel %vm3161, %v3158, 0
      %v3166 = vsel %vm3161, %v3159, 0
      %v3169 = vsel %vm3161, %v3160, 0
      %3171 = vmatprep.subr.bf16.mxu0 0
      %3172 = vmatpush1.bf16.msra.mxu0 %v3135
      %3173 = vmatprep.subr.bf16.mxu0 0
      %3174 = vmatpush1.bf16.msra.mxu0 %v3136
      %3175 = vmatprep.subr.bf16.mxu0 0
      %3176 = vmatpush1.bf16.msra.mxu0 %v3137
      %3177 = vmatprep.subr.bf16.mxu0 0
      %3178 = vmatpush1.bf16.msra.mxu0 %v3138
      %3179 = vmatprep.subr.bf16.mxu0 0
      %3180 = vmatpush1.bf16.msra.mxu0 %v3139
      %3181 = vmatprep.subr.bf16.mxu0 0
      %3182 = vmatpush1.bf16.msra.mxu0 0
      %3183 = vmatprep.subr.bf16.mxu0 0
      %3184 = vmatpush1.bf16.msra.mxu0 0
      %3185 = vmatprep.subr.bf16.mxu0 0
      %3186 = vmatpush1.bf16.msra.mxu0 0
      %3187 = vmatprep.subr.bf16.mxu0 0
      %3188 = vmatpush1.bf16.msra.mxu0 0
      %3189 = vmatprep.subr.bf16.mxu0 0
      %3190 = vmatpush1.bf16.msra.mxu0 0
      %3191 = vmatprep.subr.bf16.mxu0 0
      %3192 = vmatpush1.bf16.msra.mxu0 0
      %3193 = vmatprep.subr.bf16.mxu0 0
      %3194 = vmatpush1.bf16.msra.mxu0 0
      %3195 = vmatprep.subr.bf16.mxu0 0
      %3196 = vmatpush1.bf16.msra.mxu0 0
      %3197 = vmatprep.subr.bf16.mxu0 0
      %3198 = vmatpush1.bf16.msra.mxu0 0
      %3199 = vmatprep.subr.bf16.mxu0 0
      %3200 = vmatpush1.bf16.msra.mxu0 0
      %3201 = vmatprep.subr.bf16.mxu0 0
      %3202 = vmatpush1.bf16.msra.mxu0 0
      %3203 = vmatprep.mubr.bf16.mxu0 0
      %3204 = vmatmul.mubr.bf16.gmra.mrb[0].mxu0 %v3163
      %v3205 = vpop.f32.mrb[0].mxu0
      %v3206 = vadd.f32 0.0, %v3205
      %v3207 = vpop.f32.mrb[0].mxu0
      %v3208 = vpop.f32.mrb[0].mxu0
      %v3209 = vadd.f32 0.0, %v3208
      %v3210 = vpop.f32.mrb[0].mxu0
      %3211 = vmatprep.mubr.bf16.mxu0 0
      %3212 = vmatmul.mubr.bf16.gmra.mrb[0].mxu0 %v3166
      %v3213 = vpop.f32.mrb[0].mxu0
      %v3214 = vadd.f32 0.0, %v3213
      %v3215 = vpop.f32.mrb[0].mxu0
      %v3216 = vpop.f32.mrb[0].mxu0
      %v3217 = vadd.f32 0.0, %v3216
      %v3218 = vpop.f32.mrb[0].mxu0
      %3219 = vmatprep.mubr.bf16.mxu0 0
      %3220 = vmatmul.mubr.bf16.gmra.mrb[0].mxu0 %v3169
      %v3221 = vpop.f32.mrb[0].mxu0
      %v3222 = vadd.f32 0.0, %v3221
      %v3223 = vpop.f32.mrb[0].mxu0
      %v3224 = vpop.f32.mrb[0].mxu0
      %v3225 = vpop.f32.mrb[0].mxu0
      %3226 = vdwg.mxu0
      %s3227 = scalar_lea.vmem %s14, 24
      %v3228 = vld [vmem:[%s3227] sm:$0xf]
      %v3229 = vld [vmem:[%s3227 + $0x4] sm:$0xf]
      %v3230 = vld [vmem:[%s3227 + $0x8] sm:$0xf]
      %v3231 = vld [vmem:[%s3227 + $0xc] sm:$0xf]
      %v3232 = vld [vmem:[%s3227 + $0x10] sm:$0xf]
      %v3233 = vld [vmem:[%s3227 + $0x14] sm:$0x1]
      %v3240 = vunpack.c.l.b16 %v3228
      %v3241 = vunpack.c.l.b16 %v3229
      %v3242 = vunpack.c.l.b16 %v3230
      %v3243 = vunpack.c.l.b16 %v3231
      %v3244 = vunpack.c.l.b16 %v3232
      %v3245 = vunpack.c.l.b16 %v3233
      %v3246 = vpack.c.b16 %v3241, %v3240
      %v3247 = vpack.c.b16 %v3243, %v3242
      %v3248 = vpack.c.b16 %v3245, %v3244
      %v3250 = vsel %vm3161, %v3246, 0
      %v3253 = vsel %vm3161, %v3247, 0
      %v3256 = vsel %vm3161, %v3248, 0
      %3258 = vmatprep.subr.bf16.mxu0 0
      %3259 = vmatpush1.bf16.msra.mxu0 %v3135
      %3260 = vmatprep.subr.bf16.mxu0 0
      %3261 = vmatpush1.bf16.msra.mxu0 %v3136
      %3262 = vmatprep.subr.bf16.mxu0 0
      %3263 = vmatpush1.bf16.msra.mxu0 %v3137
      %3264 = vmatprep.subr.bf16.mxu0 0
      %3265 = vmatpush1.bf16.msra.mxu0 %v3138
      %3266 = vmatprep.subr.bf16.mxu0 0
      %3267 = vmatpush1.bf16.msra.mxu0 %v3139
      %3268 = vmatprep.subr.bf16.mxu0 0
      %3269 = vmatpush1.bf16.msra.mxu0 0
      %3270 = vmatprep.subr.bf16.mxu0 0
      %3271 = vmatpush1.bf16.msra.mxu0 0
      %3272 = vmatprep.subr.bf16.mxu0 0
      %3273 = vmatpush1.bf16.msra.mxu0 0
      %3274 = vmatprep.subr.bf16.mxu0 0
      %3275 = vmatpush1.bf16.msra.mxu0 0
      %3276 = vmatprep.subr.bf16.mxu0 0
      %3277 = vmatpush1.bf16.msra.mxu0 0
      %3278 = vmatprep.subr.bf16.mxu0 0
      %3279 = vmatpush1.bf16.msra.mxu0 0
      %3280 = vmatprep.subr.bf16.mxu0 0
      %3281 = vmatpush1.bf16.msra.mxu0 0
      %3282 = vmatprep.subr.bf16.mxu0 0
      %3283 = vmatpush1.bf16.msra.mxu0 0
      %3284 = vmatprep.subr.bf16.mxu0 0
      %3285 = vmatpush1.bf16.msra.mxu0 0
      %3286 = vmatprep.subr.bf16.mxu0 0
      %3287 = vmatpush1.bf16.msra.mxu0 0
      %3288 = vmatprep.subr.bf16.mxu0 0
      %3289 = vmatpush1.bf16.msra.mxu0 0
      %3290 = vmatprep.mubr.bf16.mxu0 0
      %3291 = vmatmul.mubr.bf16.gmra.mrb[0].mxu0 %v3250
      %v3292 = vpop.f32.mrb[0].mxu0
      %v3293 = vadd.f32 0.0, %v3292
      %v3294 = vpop.f32.mrb[0].mxu0
      %v3295 = vpop.f32.mrb[0].mxu0
      %v3296 = vadd.f32 0.0, %v3295
      %v3297 = vpop.f32.mrb[0].mxu0
      %3298 = vmatprep.mubr.bf16.mxu0 0
      %3299 = vmatmul.mubr.bf16.gmra.mrb[0].mxu0 %v3253
      %v3300 = vpop.f32.mrb[0].mxu0
      %v3301 = vadd.f32 0.0, %v3300
      %v3302 = vpop.f32.mrb[0].mxu0
      %v3303 = vpop.f32.mrb[0].mxu0
      %v3304 = vadd.f32 0.0, %v3303
      %v3305 = vpop.f32.mrb[0].mxu0
      %3306 = vmatprep.mubr.bf16.mxu0 0
      %3307 = vmatmul.mubr.bf16.gmra.mrb[0].mxu0 %v3256
      %v3308 = vpop.f32.mrb[0].mxu0
      %v3309 = vadd.f32 0.0, %v3308
      %v3310 = vpop.f32.mrb[0].mxu0
      %v3311 = vpop.f32.mrb[0].mxu0
      %v3312 = vpop.f32.mrb[0].mxu0
      %3313 = vdwg.mxu0
      %v3314 = vmax.f32 %v3206, %v3293
      %v3315 = vmax.f32 %v3209, %v3296
      %v3316 = vmax.f32 %v3214, %v3301
      %v3317 = vmax.f32 %v3217, %v3304
      %v3318 = vmax.f32 %v3222, %v3309
      %s3319 = scalar_lea.vmem %s14, 48
      %v3320 = vld [vmem:[%s3319] sm:$0xf]
      %v3321 = vld [vmem:[%s3319 + $0x4] sm:$0xf]
      %v3322 = vld [vmem:[%s3319 + $0x8] sm:$0xf]
      %v3323 = vld [vmem:[%s3319 + $0xc] sm:$0xf]
      %v3324 = vld [vmem:[%s3319 + $0x10] sm:$0xf]
      %v3325 = vld [vmem:[%s3319 + $0x14] sm:$0x1]
      %v3332 = vunpack.c.l.b16 %v3320
      %v3333 = vunpack.c.l.b16 %v3321
      %v3334 = vunpack.c.l.b16 %v3322
      %v3335 = vunpack.c.l.b16 %v3323
      %v3336 = vunpack.c.l.b16 %v3324
      %v3337 = vunpack.c.l.b16 %v3325
      %v3338 = vpack.c.b16 %v3333, %v3332
      %v3339 = vpack.c.b16 %v3335, %v3334
      %v3340 = vpack.c.b16 %v3337, %v3336
      %v3342 = vsel %vm3161, %v3338, 0
      %v3345 = vsel %vm3161, %v3339, 0
      %v3348 = vsel %vm3161, %v3340, 0
      %3350 = vmatprep.subr.bf16.mxu0 0
      %3351 = vmatpush1.bf16.msra.mxu0 %v3135
      %3352 = vmatprep.subr.bf16.mxu0 0
      %3353 = vmatpush1.bf16.msra.mxu0 %v3136
      %3354 = vmatprep.subr.bf16.mxu0 0
      %3355 = vmatpush1.bf16.msra.mxu0 %v3137
      %3356 = vmatprep.subr.bf16.mxu0 0
      %3357 = vmatpush1.bf16.msra.mxu0 %v3138
      %3358 = vmatprep.subr.bf16.mxu0 0
      %3359 = vmatpush1.bf16.msra.mxu0 %v3139
      %3360 = vmatprep.subr.bf16.mxu0 0
      %3361 = vmatpush1.bf16.msra.mxu0 0
      %3362 = vmatprep.subr.bf16.mxu0 0
      %3363 = vmatpush1.bf16.msra.mxu0 0
      %3364 = vmatprep.subr.bf16.mxu0 0
      %3365 = vmatpush1.bf16.msra.mxu0 0
      %3366 = vmatprep.subr.bf16.mxu0 0
      %3367 = vmatpush1.bf16.msra.mxu0 0
      %3368 = vmatprep.subr.bf16.mxu0 0
      %3369 = vmatpush1.bf16.msra.mxu0 0
      %3370 = vmatprep.subr.bf16.mxu0 0
      %3371 = vmatpush1.bf16.msra.mxu0 0
      %3372 = vmatprep.subr.bf16.mxu0 0
      %3373 = vmatpush1.bf16.msra.mxu0 0
      %3374 = vmatprep.subr.bf16.mxu0 0
      %3375 = vmatpush1.bf16.msra.mxu0 0
      %3376 = vmatprep.subr.bf16.mxu0 0
      %3377 = vmatpush1.bf16.msra.mxu0 0
      %3378 = vmatprep.subr.bf16.mxu0 0
      %3379 = vmatpush1.bf16.msra.mxu0 0
      %3380 = vmatprep.subr.bf16.mxu0 0
      %3381 = vmatpush1.bf16.msra.mxu0 0
      %3382 = vmatprep.mubr.bf16.mxu0 0
      %3383 = vmatmul.mubr.bf16.gmra.mrb[0].mxu0 %v3342
      %v3384 = vpop.f32.mrb[0].mxu0
      %v3385 = vadd.f32 0.0, %v3384
      %v3386 = vpop.f32.mrb[0].mxu0
      %v3387 = vpop.f32.mrb[0].mxu0
      %v3388 = vadd.f32 0.0, %v3387
      %v3389 = vpop.f32.mrb[0].mxu0
      %3390 = vmatprep.mubr.bf16.mxu0 0
      %3391 = vmatmul.mubr.bf16.gmra.mrb[0].mxu0 %v3345
      %v3392 = vpop.f32.mrb[0].mxu0
      %v3393 = vadd.f32 0.0, %v3392
      %v3394 = vpop.f32.mrb[0].mxu0
      %v3395 = vpop.f32.mrb[0].mxu0
      %v3396 = vadd.f32 0.0, %v3395
      %v3397 = vpop.f32.mrb[0].mxu0
      %3398 = vmatprep.mubr.bf16.mxu0 0
      %3399 = vmatmul.mubr.bf16.gmra.mrb[0].mxu0 %v3348
      %v3400 = vpop.f32.mrb[0].mxu0
      %v3401 = vadd.f32 0.0, %v3400
      %v3402 = vpop.f32.mrb[0].mxu0
      %v3403 = vpop.f32.mrb[0].mxu0
      %v3404 = vpop.f32.mrb[0].mxu0
      %3405 = vdwg.mxu0
      %v3406 = vmax.f32 %v3314, %v3385
      %v3407 = vmax.f32 %v3315, %v3388
      %v3408 = vmax.f32 %v3316, %v3393
      %v3409 = vmax.f32 %v3317, %v3396
      %v3410 = vmax.f32 %v3318, %v3401
      %s3411 = scalar_lea.vmem %s14, 72
      %v3412 = vld [vmem:[%s3411] sm:$0xf]
      %v3413 = vld [vmem:[%s3411 + $0x4] sm:$0xf]
      %v3414 = vld [vmem:[%s3411 + $0x8] sm:$0xf]
      %v3415 = vld [vmem:[%s3411 + $0xc] sm:$0xf]
      %v3416 = vld [vmem:[%s3411 + $0x10] sm:$0xf]
      %v3417 = vld [vmem:[%s3411 + $0x14] sm:$0x1]
      %v3424 = vunpack.c.l.b16 %v3412
      %v3425 = vunpack.c.l.b16 %v3413
      %v3426 = vunpack.c.l.b16 %v3414
      %v3427 = vunpack.c.l.b16 %v3415
      %v3428 = vunpack.c.l.b16 %v3416
      %v3429 = vunpack.c.l.b16 %v3417
      %v3430 = vpack.c.b16 %v3425, %v3424
      %v3431 = vpack.c.b16 %v3427, %v3426
      %v3432 = vpack.c.b16 %v3429, %v3428
      %v3434 = vsel %vm3161, %v3430, 0
      %v3437 = vsel %vm3161, %v3431, 0
      %v3440 = vsel %vm3161, %v3432, 0
      %3442 = vmatprep.subr.bf16.mxu0 0
      %3443 = vmatpush1.bf16.msra.mxu0 %v3135
      %3444 = vmatprep.subr.bf16.mxu0 0
      %3445 = vmatpush1.bf16.msra.mxu0 %v3136
      %3446 = vmatprep.subr.bf16.mxu0 0
      %3447 = vmatpush1.bf16.msra.mxu0 %v3137
      %3448 = vmatprep.subr.bf16.mxu0 0
      %3449 = vmatpush1.bf16.msra.mxu0 %v3138
      %3450 = vmatprep.subr.bf16.mxu0 0
      %3451 = vmatpush1.bf16.msra.mxu0 %v3139
      %3452 = vmatprep.subr.bf16.mxu0 0
      %3453 = vmatpush1.bf16.msra.mxu0 0
      %3454 = vmatprep.subr.bf16.mxu0 0
      %3455 = vmatpush1.bf16.msra.mxu0 0
      %3456 = vmatprep.subr.bf16.mxu0 0
      %3457 = vmatpush1.bf16.msra.mxu0 0
      %3458 = vmatprep.subr.bf16.mxu0 0
      %3459 = vmatpush1.bf16.msra.mxu0 0
      %3460 = vmatprep.subr.bf16.mxu0 0
      %3461 = vmatpush1.bf16.msra.mxu0 0
      %3462 = vmatprep.subr.bf16.mxu0 0
      %3463 = vmatpush1.bf16.msra.mxu0 0
      %3464 = vmatprep.subr.bf16.mxu0 0
      %3465 = vmatpush1.bf16.msra.mxu0 0
      %3466 = vmatprep.subr.bf16.mxu0 0
      %3467 = vmatpush1.bf16.msra.mxu0 0
      %3468 = vmatprep.subr.bf16.mxu0 0
      %3469 = vmatpush1.bf16.msra.mxu0 0
      %3470 = vmatprep.subr.bf16.mxu0 0
      %3471 = vmatpush1.bf16.msra.mxu0 0
      %3472 = vmatprep.subr.bf16.mxu0 0
      %3473 = vmatpush1.bf16.msra.mxu0 0
      %3474 = vmatprep.mubr.bf16.mxu0 0
      %3475 = vmatmul.mubr.bf16.gmra.mrb[0].mxu0 %v3434
      %v3476 = vpop.f32.mrb[0].mxu0
      %v3477 = vadd.f32 0.0, %v3476
      %v3478 = vpop.f32.mrb[0].mxu0
      %v3479 = vpop.f32.mrb[0].mxu0
      %v3480 = vadd.f32 0.0, %v3479
      %v3481 = vpop.f32.mrb[0].mxu0
      %3482 = vmatprep.mubr.bf16.mxu0 0
      %3483 = vmatmul.mubr.bf16.gmra.mrb[0].mxu0 %v3437
      %v3484 = vpop.f32.mrb[0].mxu0
      %v3485 = vadd.f32 0.0, %v3484
      %v3486 = vpop.f32.mrb[0].mxu0
      %v3487 = vpop.f32.mrb[0].mxu0
      %v3488 = vadd.f32 0.0, %v3487
      %v3489 = vpop.f32.mrb[0].mxu0
      %3490 = vmatprep.mubr.bf16.mxu0 0
      %3491 = vmatmul.mubr.bf16.gmra.mrb[0].mxu0 %v3440
      %v3492 = vpop.f32.mrb[0].mxu0
      %v3493 = vadd.f32 0.0, %v3492
      %v3494 = vpop.f32.mrb[0].mxu0
      %v3495 = vpop.f32.mrb[0].mxu0
      %v3496 = vpop.f32.mrb[0].mxu0
      %3497 = vdwg.mxu0
      %v3498 = vmax.f32 %v3406, %v3477
      %v3499 = vmax.f32 %v3407, %v3480
      %v3500 = vmax.f32 %v3408, %v3485
      %v3501 = vmax.f32 %v3409, %v3488
      %v3502 = vmax.f32 %v3410, %v3493
      %v3503 = vpack.c.bf16 %v3499, %v3498
      %v3504 = vpack.c.bf16 %v3500, %v3500
      %v3505 = vld [vmem:[%s5] sm:$0xff]
      %v3506 = vld [vmem:[%s5 + $0x8] sm:$0xff]
      %v3507 = vld [vmem:[%s5 + $0x10] sm:$0xff]
      %v3508 = vld [vmem:[%s5 + $0x18] sm:$0xff]
      %v3509 = vld [vmem:[%s5 + $0x20] sm:$0xff]
      %v3510 = vld [vmem:[%s5 + $0x28] sm:$0xff]
      %v3511 = vld [vmem:[%s5 + $0x30] sm:$0xff]
      %v3512 = vld [vmem:[%s5 + $0x38] sm:$0xff]
      %v3513 = vld [vmem:[%s5 + $0x40] sm:$0xff]
      %v3514 = vld [vmem:[%s5 + $0x48] sm:$0xff]
      %v3515 = vld [vmem:[%s5 + $0x50] sm:$0xff]
      %v3516 = vld [vmem:[%s5 + $0x58] sm:$0xff]
      %v3517 = vld [vmem:[%s5 + $0x60] sm:$0xff]
      %v3518 = vld [vmem:[%s5 + $0x68] sm:$0xff]
      %v3519 = vld [vmem:[%s5 + $0x70] sm:$0xff]
      %v3520 = vld [vmem:[%s5 + $0x78] sm:$0xff]
      %v3521 = vpack.c.bf16 %v3501, %v3500
      %s3522 = scalar_lea.vmem %s5, 128
      %v3523 = vld [vmem:[%s3522] sm:$0xff]
      %v3524 = vld [vmem:[%s3522 + $0x8] sm:$0xff]
      %v3525 = vld [vmem:[%s3522 + $0x10] sm:$0xff]
      %v3526 = vld [vmem:[%s3522 + $0x18] sm:$0xff]
      %v3527 = vld [vmem:[%s3522 + $0x20] sm:$0xff]
      %v3528 = vld [vmem:[%s3522 + $0x28] sm:$0xff]
      %v3529 = vld [vmem:[%s3522 + $0x30] sm:$0xff]
      %v3530 = vld [vmem:[%s3522 + $0x38] sm:$0xff]
      %v3531 = vld [vmem:[%s3522 + $0x40] sm:$0xff]
      %v3532 = vld [vmem:[%s3522 + $0x48] sm:$0xff]
      %v3533 = vld [vmem:[%s3522 + $0x50] sm:$0xff]
      %v3534 = vld [vmem:[%s3522 + $0x58] sm:$0xff]
      %v3535 = vld [vmem:[%s3522 + $0x60] sm:$0xff]
      %v3536 = vld [vmem:[%s3522 + $0x68] sm:$0xff]
      %v3537 = vld [vmem:[%s3522 + $0x70] sm:$0xff]
      %v3538 = vld [vmem:[%s3522 + $0x78] sm:$0xff]
      %v3540 = vshrl.u32 %v3503, 16
      %v3542 = vshll.u32 %v3503, 16
      %v3544 = vrot.slane %v3542, 1
      %v3545 = vor.u32 %v3540, %v3544
      %v3547 = vshll.u32 %v3521, 16
      %v3549 = vrot.slane %v3547, 1
      %v3550 = vsel %vm1758, %v3545, %v3549
      %v3551 = vshrl.u32 %v3521, 16
      %v3553 = vor.u32 %v3551, %v3549
      %v3572 = vunpack.c.l.b16 %v3523
      %v3573 = vunpack.c.h.b16 %v3523
      %v3574 = vunpack.c.l.b16 %v3524
      %v3575 = vunpack.c.h.b16 %v3524
      %v3576 = vunpack.c.l.b16 %v3525
      %v3577 = vunpack.c.h.b16 %v3525
      %v3578 = vunpack.c.l.b16 %v3526
      %v3579 = vunpack.c.h.b16 %v3526
      %v3580 = vunpack.c.l.b16 %v3527
      %v3581 = vunpack.c.h.b16 %v3527
      %v3582 = vunpack.c.l.b16 %v3528
      %v3583 = vunpack.c.h.b16 %v3528
      %v3584 = vunpack.c.l.b16 %v3529
      %v3585 = vunpack.c.h.b16 %v3529
      %v3586 = vunpack.c.l.b16 %v3530
      %v3587 = vunpack.c.h.b16 %v3530
      %v3588 = vunpack.c.l.b16 %v3531
      %v3589 = vunpack.c.h.b16 %v3531
      %v3590 = vunpack.c.l.b16 %v3532
      %v3591 = vunpack.c.h.b16 %v3532
      %v3592 = vunpack.c.l.b16 %v3533
      %v3593 = vunpack.c.h.b16 %v3533
      %v3594 = vunpack.c.l.b16 %v3534
      %v3595 = vunpack.c.h.b16 %v3534
      %v3596 = vunpack.c.l.b16 %v3535
      %v3597 = vunpack.c.h.b16 %v3535
      %v3598 = vunpack.c.l.b16 %v3536
      %v3599 = vunpack.c.h.b16 %v3536
      %v3600 = vunpack.c.l.b16 %v3537
      %v3601 = vunpack.c.h.b16 %v3537
      %v3602 = vunpack.c.l.b16 %v3538
      %v3603 = vunpack.c.h.b16 %v3538
      %v3604 = vpack.c.b16 %v3574, %v3572
      %v3605 = vpack.c.b16 %v3575, %v3573
      %v3606 = vpack.c.b16 %v3578, %v3576
      %v3607 = vpack.c.b16 %v3579, %v3577
      %v3608 = vpack.c.b16 %v3582, %v3580
      %v3609 = vpack.c.b16 %v3583, %v3581
      %v3610 = vpack.c.b16 %v3586, %v3584
      %v3611 = vpack.c.b16 %v3587, %v3585
      %v3612 = vpack.c.b16 %v3590, %v3588
      %v3613 = vpack.c.b16 %v3591, %v3589
      %v3614 = vpack.c.b16 %v3594, %v3592
      %v3615 = vpack.c.b16 %v3595, %v3593
      %v3616 = vpack.c.b16 %v3598, %v3596
      %v3617 = vpack.c.b16 %v3599, %v3597
      %v3618 = vpack.c.b16 %v3602, %v3600
      %v3619 = vpack.c.b16 %v3603, %v3601
      %3636 = vmatprep.subr.bf16.mxu0 %v3605
      %3637 = vmatpush1.bf16.msra.mxu0 %v3604
      %3638 = vmatprep.subr.bf16.mxu0 %v3607
      %3639 = vmatpush1.bf16.msra.mxu0 %v3606
      %3640 = vmatprep.subr.bf16.mxu0 %v3609
      %3641 = vmatpush1.bf16.msra.mxu0 %v3608
      %3642 = vmatprep.subr.bf16.mxu0 %v3611
      %3643 = vmatpush1.bf16.msra.mxu0 %v3610
      %3644 = vmatprep.subr.bf16.mxu0 %v3613
      %3645 = vmatpush1.bf16.msra.mxu0 %v3612
      %3646 = vmatprep.subr.bf16.mxu0 %v3615
      %3647 = vmatpush1.bf16.msra.mxu0 %v3614
      %3648 = vmatprep.subr.bf16.mxu0 %v3617
      %3649 = vmatpush1.bf16.msra.mxu0 %v3616
      %3650 = vmatprep.subr.bf16.mxu0 %v3619
      %3651 = vmatpush1.bf16.msra.mxu0 %v3618
      %3652 = vmatprep.subr.bf16.mxu0 0
      %3653 = vmatpush1.bf16.msra.mxu0 0
      %3654 = vmatprep.subr.bf16.mxu0 0
      %3655 = vmatpush1.bf16.msra.mxu0 0
      %3656 = vmatprep.subr.bf16.mxu0 0
      %3657 = vmatpush1.bf16.msra.mxu0 0
      %3658 = vmatprep.subr.bf16.mxu0 0
      %3659 = vmatpush1.bf16.msra.mxu0 0
      %3660 = vmatprep.subr.bf16.mxu0 0
      %3661 = vmatpush1.bf16.msra.mxu0 0
      %3662 = vmatprep.subr.bf16.mxu0 0
      %3663 = vmatpush1.bf16.msra.mxu0 0
      %3664 = vmatprep.subr.bf16.mxu0 0
      %3665 = vmatpush1.bf16.msra.mxu0 0
      %3666 = vmatprep.subr.bf16.mxu0 0
      %3667 = vmatpush1.bf16.msra.mxu0 0
      %3668 = vmatprep.mubr.bf16.mxu0 0
      %3669 = vmatmul.mubr.bf16.gmra.mrb[0].mxu0 %v3550
      %v3670 = vpop.f32.mrb[0].mxu0
      %v3671 = vadd.f32 0.0, %v3670
      %v3672 = vpop.f32.mrb[0].mxu0
      %v3673 = vadd.f32 0.0, %v3672
      %v3674 = vpop.f32.mrb[0].mxu0
      %v3675 = vadd.f32 0.0, %v3674
      %v3676 = vpop.f32.mrb[0].mxu0
      %v3677 = vadd.f32 0.0, %v3676
      %3678 = vmatprep.mubr.bf16.mxu0 0
      %3679 = vmatmul.mubr.bf16.gmra.mrb[0].mxu0 %v3553
      %v3680 = vpop.f32.mrb[0].mxu0
      %v3681 = vadd.f32 0.0, %v3680
      %v3682 = vpop.f32.mrb[0].mxu0
      %v3683 = vadd.f32 0.0, %v3682
      %v3684 = vpop.f32.mrb[0].mxu0
      %v3685 = vpop.f32.mrb[0].mxu0
      %3686 = vdwg.mxu0
      %v3703 = vunpack.c.l.b16 %v3505
      %v3704 = vunpack.c.h.b16 %v3505
      %v3705 = vunpack.c.l.b16 %v3506
      %v3706 = vunpack.c.h.b16 %v3506
      %v3707 = vunpack.c.l.b16 %v3507
      %v3708 = vunpack.c.h.b16 %v3507
      %v3709 = vunpack.c.l.b16 %v3508
      %v3710 = vunpack.c.h.b16 %v3508
      %v3711 = vunpack.c.l.b16 %v3509
      %v3712 = vunpack.c.h.b16 %v3509
      %v3713 = vunpack.c.l.b16 %v3510
      %v3714 = vunpack.c.h.b16 %v3510
      %v3715 = vunpack.c.l.b16 %v3511
      %v3716 = vunpack.c.h.b16 %v3511
      %v3717 = vunpack.c.l.b16 %v3512
      %v3718 = vunpack.c.h.b16 %v3512
      %v3719 = vunpack.c.l.b16 %v3513
      %v3720 = vunpack.c.h.b16 %v3513
      %v3721 = vunpack.c.l.b16 %v3514
      %v3722 = vunpack.c.h.b16 %v3514
      %v3723 = vunpack.c.l.b16 %v3515
      %v3724 = vunpack.c.h.b16 %v3515
      %v3725 = vunpack.c.l.b16 %v3516
      %v3726 = vunpack.c.h.b16 %v3516
      %v3727 = vunpack.c.l.b16 %v3517
      %v3728 = vunpack.c.h.b16 %v3517
      %v3729 = vunpack.c.l.b16 %v3518
      %v3730 = vunpack.c.h.b16 %v3518
      %v3731 = vunpack.c.l.b16 %v3519
      %v3732 = vunpack.c.h.b16 %v3519
      %v3733 = vunpack.c.l.b16 %v3520
      %v3734 = vunpack.c.h.b16 %v3520
      %v3735 = vpack.c.b16 %v3705, %v3703
      %v3736 = vpack.c.b16 %v3706, %v3704
      %v3737 = vpack.c.b16 %v3709, %v3707
      %v3738 = vpack.c.b16 %v3710, %v3708
      %v3739 = vpack.c.b16 %v3713, %v3711
      %v3740 = vpack.c.b16 %v3714, %v3712
      %v3741 = vpack.c.b16 %v3717, %v3715
      %v3742 = vpack.c.b16 %v3718, %v3716
      %v3743 = vpack.c.b16 %v3721, %v3719
      %v3744 = vpack.c.b16 %v3722, %v3720
      %v3745 = vpack.c.b16 %v3725, %v3723
      %v3746 = vpack.c.b16 %v3726, %v3724
      %v3747 = vpack.c.b16 %v3729, %v3727
      %v3748 = vpack.c.b16 %v3730, %v3728
      %v3749 = vpack.c.b16 %v3733, %v3731
      %v3750 = vpack.c.b16 %v3734, %v3732
      %3767 = vmatprep.subr.bf16.mxu0 %v3736
      %3768 = vmatpush1.bf16.msra.mxu0 %v3735
      %3769 = vmatprep.subr.bf16.mxu0 %v3738
      %3770 = vmatpush1.bf16.msra.mxu0 %v3737
      %3771 = vmatprep.subr.bf16.mxu0 %v3740
      %3772 = vmatpush1.bf16.msra.mxu0 %v3739
      %3773 = vmatprep.subr.bf16.mxu0 %v3742
      %3774 = vmatpush1.bf16.msra.mxu0 %v3741
      %3775 = vmatprep.subr.bf16.mxu0 %v3744
      %3776 = vmatpush1.bf16.msra.mxu0 %v3743
      %3777 = vmatprep.subr.bf16.mxu0 %v3746
      %3778 = vmatpush1.bf16.msra.mxu0 %v3745
      %3779 = vmatprep.subr.bf16.mxu0 %v3748
      %3780 = vmatpush1.bf16.msra.mxu0 %v3747
      %3781 = vmatprep.subr.bf16.mxu0 %v3750
      %3782 = vmatpush1.bf16.msra.mxu0 %v3749
      %3783 = vmatprep.subr.bf16.mxu0 0
      %3784 = vmatpush1.bf16.msra.mxu0 0
      %3785 = vmatprep.subr.bf16.mxu0 0
      %3786 = vmatpush1.bf16.msra.mxu0 0
      %3787 = vmatprep.subr.bf16.mxu0 0
      %3788 = vmatpush1.bf16.msra.mxu0 0
      %3789 = vmatprep.subr.bf16.mxu0 0
      %3790 = vmatpush1.bf16.msra.mxu0 0
      %3791 = vmatprep.subr.bf16.mxu0 0
      %3792 = vmatpush1.bf16.msra.mxu0 0
      %3793 = vmatprep.subr.bf16.mxu0 0
      %3794 = vmatpush1.bf16.msra.mxu0 0
      %3795 = vmatprep.subr.bf16.mxu0 0
      %3796 = vmatpush1.bf16.msra.mxu0 0
      %3797 = vmatprep.subr.bf16.mxu0 0
      %3798 = vmatpush1.bf16.msra.mxu0 0
      %3799 = vmatprep.mubr.bf16.mxu0 0
      %3800 = vmatmul.mubr.bf16.gmra.mrb[0].mxu0 %v3503
      %v3801 = vpop.f32.mrb[0].mxu0
      %v3802 = vadd.f32 %v3671, %v3801
      %v3803 = vpop.f32.mrb[0].mxu0
      %v3804 = vadd.f32 %v3673, %v3803
      %v3805 = vpop.f32.mrb[0].mxu0
      %v3806 = vadd.f32 %v3675, %v3805
      %v3807 = vpop.f32.mrb[0].mxu0
      %v3808 = vadd.f32 %v3677, %v3807
      %3809 = vmatprep.mubr.bf16.mxu0 0
      %3810 = vmatmul.mubr.bf16.gmra.mrb[0].mxu0 %v3504
      %v3811 = vpop.f32.mrb[0].mxu0
      %v3812 = vadd.f32 %v3681, %v3811
      %v3813 = vpop.f32.mrb[0].mxu0
      %v3814 = vadd.f32 %v3683, %v3813
      %v3815 = vpop.f32.mrb[0].mxu0
      %v3816 = vpop.f32.mrb[0].mxu0
      %3817 = vdwg.mxu0
      %s3818 = scalar_lea.vmem %s5, 256
      %v3819 = vld [vmem:[%s3818] sm:$0xff]
      %v3820 = vld [vmem:[%s3818 + $0x8] sm:$0xff]
      %v3821 = vld [vmem:[%s3818 + $0x10] sm:$0xff]
      %v3822 = vld [vmem:[%s3818 + $0x18] sm:$0xff]
      %v3823 = vld [vmem:[%s3818 + $0x20] sm:$0xff]
      %v3824 = vld [vmem:[%s3818 + $0x28] sm:$0xff]
      %v3825 = vld [vmem:[%s3818 + $0x30] sm:$0xff]
      %v3826 = vld [vmem:[%s3818 + $0x38] sm:$0xff]
      %v3827 = vld [vmem:[%s3818 + $0x40] sm:$0xff]
      %v3828 = vld [vmem:[%s3818 + $0x48] sm:$0xff]
      %v3829 = vld [vmem:[%s3818 + $0x50] sm:$0xff]
      %v3830 = vld [vmem:[%s3818 + $0x58] sm:$0xff]
      %v3831 = vld [vmem:[%s3818 + $0x60] sm:$0xff]
      %v3832 = vld [vmem:[%s3818 + $0x68] sm:$0xff]
      %v3833 = vld [vmem:[%s3818 + $0x70] sm:$0xff]
      %v3834 = vld [vmem:[%s3818 + $0x78] sm:$0xff]
      %v3837 = vrot.slane %v3503, 1
      %v3838 = vrot.slane %v3521, 1
      %v3839 = vsel %vm2038, %v3837, %v3838
      %v3858 = vunpack.c.l.b16 %v3819
      %v3859 = vunpack.c.h.b16 %v3819
      %v3860 = vunpack.c.l.b16 %v3820
      %v3861 = vunpack.c.h.b16 %v3820
      %v3862 = vunpack.c.l.b16 %v3821
      %v3863 = vunpack.c.h.b16 %v3821
      %v3864 = vunpack.c.l.b16 %v3822
      %v3865 = vunpack.c.h.b16 %v3822
      %v3866 = vunpack.c.l.b16 %v3823
      %v3867 = vunpack.c.h.b16 %v3823
      %v3868 = vunpack.c.l.b16 %v3824
      %v3869 = vunpack.c.h.b16 %v3824
      %v3870 = vunpack.c.l.b16 %v3825
      %v3871 = vunpack.c.h.b16 %v3825
      %v3872 = vunpack.c.l.b16 %v3826
      %v3873 = vunpack.c.h.b16 %v3826
      %v3874 = vunpack.c.l.b16 %v3827
      %v3875 = vunpack.c.h.b16 %v3827
      %v3876 = vunpack.c.l.b16 %v3828
      %v3877 = vunpack.c.h.b16 %v3828
      %v3878 = vunpack.c.l.b16 %v3829
      %v3879 = vunpack.c.h.b16 %v3829
      %v3880 = vunpack.c.l.b16 %v3830
      %v3881 = vunpack.c.h.b16 %v3830
      %v3882 = vunpack.c.l.b16 %v3831
      %v3883 = vunpack.c.h.b16 %v3831
      %v3884 = vunpack.c.l.b16 %v3832
      %v3885 = vunpack.c.h.b16 %v3832
      %v3886 = vunpack.c.l.b16 %v3833
      %v3887 = vunpack.c.h.b16 %v3833
      %v3888 = vunpack.c.l.b16 %v3834
      %v3889 = vunpack.c.h.b16 %v3834
      %v3890 = vpack.c.b16 %v3860, %v3858
      %v3891 = vpack.c.b16 %v3861, %v3859
      %v3892 = vpack.c.b16 %v3864, %v3862
      %v3893 = vpack.c.b16 %v3865, %v3863
      %v3894 = vpack.c.b16 %v3868, %v3866
      %v3895 = vpack.c.b16 %v3869, %v3867
      %v3896 = vpack.c.b16 %v3872, %v3870
      %v3897 = vpack.c.b16 %v3873, %v3871
      %v3898 = vpack.c.b16 %v3876, %v3874
      %v3899 = vpack.c.b16 %v3877, %v3875
      %v3900 = vpack.c.b16 %v3880, %v3878
      %v3901 = vpack.c.b16 %v3881, %v3879
      %v3902 = vpack.c.b16 %v3884, %v3882
      %v3903 = vpack.c.b16 %v3885, %v3883
      %v3904 = vpack.c.b16 %v3888, %v3886
      %v3905 = vpack.c.b16 %v3889, %v3887
      %3922 = vmatprep.subr.bf16.mxu0 %v3891
      %3923 = vmatpush1.bf16.msra.mxu0 %v3890
      %3924 = vmatprep.subr.bf16.mxu0 %v3893
      %3925 = vmatpush1.bf16.msra.mxu0 %v3892
      %3926 = vmatprep.subr.bf16.mxu0 %v3895
      %3927 = vmatpush1.bf16.msra.mxu0 %v3894
      %3928 = vmatprep.subr.bf16.mxu0 %v3897
      %3929 = vmatpush1.bf16.msra.mxu0 %v3896
      %3930 = vmatprep.subr.bf16.mxu0 %v3899
      %3931 = vmatpush1.bf16.msra.mxu0 %v3898
      %3932 = vmatprep.subr.bf16.mxu0 %v3901
      %3933 = vmatpush1.bf16.msra.mxu0 %v3900
      %3934 = vmatprep.subr.bf16.mxu0 %v3903
      %3935 = vmatpush1.bf16.msra.mxu0 %v3902
      %3936 = vmatprep.subr.bf16.mxu0 %v3905
      %3937 = vmatpush1.bf16.msra.mxu0 %v3904
      %3938 = vmatprep.subr.bf16.mxu0 0
      %3939 = vmatpush1.bf16.msra.mxu0 0
      %3940 = vmatprep.subr.bf16.mxu0 0
      %3941 = vmatpush1.bf16.msra.mxu0 0
      %3942 = vmatprep.subr.bf16.mxu0 0
      %3943 = vmatpush1.bf16.msra.mxu0 0
      %3944 = vmatprep.subr.bf16.mxu0 0
      %3945 = vmatpush1.bf16.msra.mxu0 0
      %3946 = vmatprep.subr.bf16.mxu0 0
      %3947 = vmatpush1.bf16.msra.mxu0 0
      %3948 = vmatprep.subr.bf16.mxu0 0
      %3949 = vmatpush1.bf16.msra.mxu0 0
      %3950 = vmatprep.subr.bf16.mxu0 0
      %3951 = vmatpush1.bf16.msra.mxu0 0
      %3952 = vmatprep.subr.bf16.mxu0 0
      %3953 = vmatpush1.bf16.msra.mxu0 0
      %3954 = vmatprep.mubr.bf16.mxu0 0
      %3955 = vmatmul.mubr.bf16.gmra.mrb[0].mxu0 %v3839
      %v3956 = vpop.f32.mrb[0].mxu0
      %v3957 = vadd.f32 0.0, %v3956
      %v3958 = vpop.f32.mrb[0].mxu0
      %v3959 = vadd.f32 0.0, %v3958
      %v3960 = vpop.f32.mrb[0].mxu0
      %v3961 = vadd.f32 0.0, %v3960
      %v3962 = vpop.f32.mrb[0].mxu0
      %v3963 = vadd.f32 0.0, %v3962
      %3964 = vmatprep.mubr.bf16.mxu0 0
      %3965 = vmatmul.mubr.bf16.gmra.mrb[0].mxu0 %v3838
      %v3966 = vpop.f32.mrb[0].mxu0
      %v3967 = vadd.f32 0.0, %v3966
      %v3968 = vpop.f32.mrb[0].mxu0
      %v3969 = vadd.f32 0.0, %v3968
      %v3970 = vpop.f32.mrb[0].mxu0
      %v3971 = vpop.f32.mrb[0].mxu0
      %3972 = vdwg.mxu0
      %v3973 = vadd.f32 %v3802, %v3957
      %v3974 = vadd.f32 %v3804, %v3959
      %v3975 = vadd.f32 %v3806, %v3961
      %v3976 = vadd.f32 %v3808, %v3963
      %v3977 = vadd.f32 %v3812, %v3967
      %v3978 = vadd.f32 %v3814, %v3969
      %s3979 = scalar_lea.vmem %s5, 384
      %v3980 = vld [vmem:[%s3979] sm:$0xff]
      %v3981 = vld [vmem:[%s3979 + $0x8] sm:$0xff]
      %v3982 = vld [vmem:[%s3979 + $0x10] sm:$0xff]
      %v3983 = vld [vmem:[%s3979 + $0x18] sm:$0xff]
      %v3984 = vld [vmem:[%s3979 + $0x20] sm:$0xff]
      %v3985 = vld [vmem:[%s3979 + $0x28] sm:$0xff]
      %v3986 = vld [vmem:[%s3979 + $0x30] sm:$0xff]
      %v3987 = vld [vmem:[%s3979 + $0x38] sm:$0xff]
      %v3988 = vld [vmem:[%s3979 + $0x40] sm:$0xff]
      %v3989 = vld [vmem:[%s3979 + $0x48] sm:$0xff]
      %v3990 = vld [vmem:[%s3979 + $0x50] sm:$0xff]
      %v3991 = vld [vmem:[%s3979 + $0x58] sm:$0xff]
      %v3992 = vld [vmem:[%s3979 + $0x60] sm:$0xff]
      %v3993 = vld [vmem:[%s3979 + $0x68] sm:$0xff]
      %v3994 = vld [vmem:[%s3979 + $0x70] sm:$0xff]
      %v3995 = vld [vmem:[%s3979 + $0x78] sm:$0xff]
      %v3996 = vrot.slane %v3503, 3
      %v3997 = vrot.slane %v3521, 3
      %v3998 = vsel %vm2974, %v3996, %v3997
      %v4017 = vunpack.c.l.b16 %v3980
      %v4018 = vunpack.c.h.b16 %v3980
      %v4019 = vunpack.c.l.b16 %v3981
      %v4020 = vunpack.c.h.b16 %v3981
      %v4021 = vunpack.c.l.b16 %v3982
      %v4022 = vunpack.c.h.b16 %v3982
      %v4023 = vunpack.c.l.b16 %v3983
      %v4024 = vunpack.c.h.b16 %v3983
      %v4025 = vunpack.c.l.b16 %v3984
      %v4026 = vunpack.c.h.b16 %v3984
      %v4027 = vunpack.c.l.b16 %v3985
      %v4028 = vunpack.c.h.b16 %v3985
      %v4029 = vunpack.c.l.b16 %v3986
      %v4030 = vunpack.c.h.b16 %v3986
      %v4031 = vunpack.c.l.b16 %v3987
      %v4032 = vunpack.c.h.b16 %v3987
      %v4033 = vunpack.c.l.b16 %v3988
      %v4034 = vunpack.c.h.b16 %v3988
      %v4035 = vunpack.c.l.b16 %v3989
      %v4036 = vunpack.c.h.b16 %v3989
      %v4037 = vunpack.c.l.b16 %v3990
      %v4038 = vunpack.c.h.b16 %v3990
      %v4039 = vunpack.c.l.b16 %v3991
      %v4040 = vunpack.c.h.b16 %v3991
      %v4041 = vunpack.c.l.b16 %v3992
      %v4042 = vunpack.c.h.b16 %v3992
      %v4043 = vunpack.c.l.b16 %v3993
      %v4044 = vunpack.c.h.b16 %v3993
      %v4045 = vunpack.c.l.b16 %v3994
      %v4046 = vunpack.c.h.b16 %v3994
      %v4047 = vunpack.c.l.b16 %v3995
      %v4048 = vunpack.c.h.b16 %v3995
      %v4049 = vpack.c.b16 %v4019, %v4017
      %v4050 = vpack.c.b16 %v4020, %v4018
      %v4051 = vpack.c.b16 %v4023, %v4021
      %v4052 = vpack.c.b16 %v4024, %v4022
      %v4053 = vpack.c.b16 %v4027, %v4025
      %v4054 = vpack.c.b16 %v4028, %v4026
      %v4055 = vpack.c.b16 %v4031, %v4029
      %v4056 = vpack.c.b16 %v4032, %v4030
      %v4057 = vpack.c.b16 %v4035, %v4033
      %v4058 = vpack.c.b16 %v4036, %v4034
      %v4059 = vpack.c.b16 %v4039, %v4037
      %v4060 = vpack.c.b16 %v4040, %v4038
      %v4061 = vpack.c.b16 %v4043, %v4041
      %v4062 = vpack.c.b16 %v4044, %v4042
      %v4063 = vpack.c.b16 %v4047, %v4045
      %v4064 = vpack.c.b16 %v4048, %v4046
      %4081 = vmatprep.subr.bf16.mxu0 %v4050
      %4082 = vmatpush1.bf16.msra.mxu0 %v4049
      %4083 = vmatprep.subr.bf16.mxu0 %v4052
      %4084 = vmatpush1.bf16.msra.mxu0 %v4051
      %4085 = vmatprep.subr.bf16.mxu0 %v4054
      %4086 = vmatpush1.bf16.msra.mxu0 %v4053
      %4087 = vmatprep.subr.bf16.mxu0 %v4056
      %4088 = vmatpush1.bf16.msra.mxu0 %v4055
      %4089 = vmatprep.subr.bf16.mxu0 %v4058
      %4090 = vmatpush1.bf16.msra.mxu0 %v4057
      %4091 = vmatprep.subr.bf16.mxu0 %v4060
      %4092 = vmatpush1.bf16.msra.mxu0 %v4059
      %4093 = vmatprep.subr.bf16.mxu0 %v4062
      %4094 = vmatpush1.bf16.msra.mxu0 %v4061
      %4095 = vmatprep.subr.bf16.mxu0 %v4064
      %4096 = vmatpush1.bf16.msra.mxu0 %v4063
      %4097 = vmatprep.subr.bf16.mxu0 0
      %4098 = vmatpush1.bf16.msra.mxu0 0
      %4099 = vmatprep.subr.bf16.mxu0 0
      %4100 = vmatpush1.bf16.msra.mxu0 0
      %4101 = vmatprep.subr.bf16.mxu0 0
      %4102 = vmatpush1.bf16.msra.mxu0 0
      %4103 = vmatprep.subr.bf16.mxu0 0
      %4104 = vmatpush1.bf16.msra.mxu0 0
      %4105 = vmatprep.subr.bf16.mxu0 0
      %4106 = vmatpush1.bf16.msra.mxu0 0
      %4107 = vmatprep.subr.bf16.mxu0 0
      %4108 = vmatpush1.bf16.msra.mxu0 0
      %4109 = vmatprep.subr.bf16.mxu0 0
      %4110 = vmatpush1.bf16.msra.mxu0 0
      %4111 = vmatprep.subr.bf16.mxu0 0
      %4112 = vmatpush1.bf16.msra.mxu0 0
      %4113 = vmatprep.mubr.bf16.mxu0 0
      %4114 = vmatmul.mubr.bf16.gmra.mrb[0].mxu0 %v3998
      %v4115 = vpop.f32.mrb[0].mxu0
      %v4116 = vadd.f32 0.0, %v4115
      %v4117 = vpop.f32.mrb[0].mxu0
      %v4118 = vadd.f32 0.0, %v4117
      %v4119 = vpop.f32.mrb[0].mxu0
      %v4120 = vadd.f32 0.0, %v4119
      %v4121 = vpop.f32.mrb[0].mxu0
      %v4122 = vadd.f32 0.0, %v4121
      %4123 = vmatprep.mubr.bf16.mxu0 0
      %4124 = vmatmul.mubr.bf16.gmra.mrb[0].mxu0 %v3997
      %v4125 = vpop.f32.mrb[0].mxu0
      %v4126 = vadd.f32 0.0, %v4125
      %v4127 = vpop.f32.mrb[0].mxu0
      %v4128 = vadd.f32 0.0, %v4127
      %v4129 = vpop.f32.mrb[0].mxu0
      %v4130 = vpop.f32.mrb[0].mxu0
      %4131 = vdwg.mxu0
      %v4132 = vadd.f32 %v3973, %v4116
      %v4133 = vadd.f32 %v3974, %v4118
      %v4134 = vadd.f32 %v3975, %v4120
      %v4135 = vadd.f32 %v3976, %v4122
      %v4136 = vadd.f32 %v3977, %v4126
      %v4137 = vadd.f32 %v3978, %v4128
      %s4138 = scalar_lea.vmem %s5, 512
      %v4139 = vld [vmem:[%s4138] sm:$0xff]
      %v4140 = vld [vmem:[%s4138 + $0x8] sm:$0xff]
      %v4141 = vld [vmem:[%s4138 + $0x10] sm:$0xff]
      %v4142 = vld [vmem:[%s4138 + $0x18] sm:$0xff]
      %v4143 = vld [vmem:[%s4138 + $0x20] sm:$0xff]
      %v4144 = vld [vmem:[%s4138 + $0x28] sm:$0xff]
      %v4145 = vld [vmem:[%s4138 + $0x30] sm:$0xff]
      %v4146 = vld [vmem:[%s4138 + $0x38] sm:$0xff]
      %v4147 = vld [vmem:[%s4138 + $0x40] sm:$0xff]
      %v4148 = vld [vmem:[%s4138 + $0x48] sm:$0xff]
      %v4149 = vld [vmem:[%s4138 + $0x50] sm:$0xff]
      %v4150 = vld [vmem:[%s4138 + $0x58] sm:$0xff]
      %v4151 = vld [vmem:[%s4138 + $0x60] sm:$0xff]
      %v4152 = vld [vmem:[%s4138 + $0x68] sm:$0xff]
      %v4153 = vld [vmem:[%s4138 + $0x70] sm:$0xff]
      %v4154 = vld [vmem:[%s4138 + $0x78] sm:$0xff]
      %vm4155 = vsmask.f32 4352
      %v4156 = vrot.slane %v3540, 3
      %v4157 = vrot.slane %v3542, 4
      %v4158 = vor.u32 %v4156, %v4157
      %v4159 = vrot.slane %v3551, 3
      %v4160 = vrot.slane %v3547, 4
      %v4161 = vor.u32 %v4159, %v4160
      %v4162 = vsel %vm4155, %v4158, %v4161
      %v4181 = vunpack.c.l.b16 %v4139
      %v4182 = vunpack.c.h.b16 %v4139
      %v4183 = vunpack.c.l.b16 %v4140
      %v4184 = vunpack.c.h.b16 %v4140
      %v4185 = vunpack.c.l.b16 %v4141
      %v4186 = vunpack.c.h.b16 %v4141
      %v4187 = vunpack.c.l.b16 %v4142
      %v4188 = vunpack.c.h.b16 %v4142
      %v4189 = vunpack.c.l.b16 %v4143
      %v4190 = vunpack.c.h.b16 %v4143
      %v4191 = vunpack.c.l.b16 %v4144
      %v4192 = vunpack.c.h.b16 %v4144
      %v4193 = vunpack.c.l.b16 %v4145
      %v4194 = vunpack.c.h.b16 %v4145
      %v4195 = vunpack.c.l.b16 %v4146
      %v4196 = vunpack.c.h.b16 %v4146
      %v4197 = vunpack.c.l.b16 %v4147
      %v4198 = vunpack.c.h.b16 %v4147
      %v4199 = vunpack.c.l.b16 %v4148
      %v4200 = vunpack.c.h.b16 %v4148
      %v4201 = vunpack.c.l.b16 %v4149
      %v4202 = vunpack.c.h.b16 %v4149
      %v4203 = vunpack.c.l.b16 %v4150
      %v4204 = vunpack.c.h.b16 %v4150
      %v4205 = vunpack.c.l.b16 %v4151
      %v4206 = vunpack.c.h.b16 %v4151
      %v4207 = vunpack.c.l.b16 %v4152
      %v4208 = vunpack.c.h.b16 %v4152
      %v4209 = vunpack.c.l.b16 %v4153
      %v4210 = vunpack.c.h.b16 %v4153
      %v4211 = vunpack.c.l.b16 %v4154
      %v4212 = vunpack.c.h.b16 %v4154
      %v4213 = vpack.c.b16 %v4183, %v4181
      %v4214 = vpack.c.b16 %v4184, %v4182
      %v4215 = vpack.c.b16 %v4187, %v4185
      %v4216 = vpack.c.b16 %v4188, %v4186
      %v4217 = vpack.c.b16 %v4191, %v4189
      %v4218 = vpack.c.b16 %v4192, %v4190
      %v4219 = vpack.c.b16 %v4195, %v4193
      %v4220 = vpack.c.b16 %v4196, %v4194
      %v4221 = vpack.c.b16 %v4199, %v4197
      %v4222 = vpack.c.b16 %v4200, %v4198
      %v4223 = vpack.c.b16 %v4203, %v4201
      %v4224 = vpack.c.b16 %v4204, %v4202
      %v4225 = vpack.c.b16 %v4207, %v4205
      %v4226 = vpack.c.b16 %v4208, %v4206
      %v4227 = vpack.c.b16 %v4211, %v4209
      %v4228 = vpack.c.b16 %v4212, %v4210
      %4245 = vmatprep.subr.bf16.mxu0 %v4214
      %4246 = vmatpush1.bf16.msra.mxu0 %v4213
      %4247 = vmatprep.subr.bf16.mxu0 %v4216
      %4248 = vmatpush1.bf16.msra.mxu0 %v4215
      %4249 = vmatprep.subr.bf16.mxu0 %v4218
      %4250 = vmatpush1.bf16.msra.mxu0 %v4217
      %4251 = vmatprep.subr.bf16.mxu0 %v4220
      %4252 = vmatpush1.bf16.msra.mxu0 %v4219
      %4253 = vmatprep.subr.bf16.mxu0 %v4222
      %4254 = vmatpush1.bf16.msra.mxu0 %v4221
      %4255 = vmatprep.subr.bf16.mxu0 %v4224
      %4256 = vmatpush1.bf16.msra.mxu0 %v4223
      %4257 = vmatprep.subr.bf16.mxu0 %v4226
      %4258 = vmatpush1.bf16.msra.mxu0 %v4225
      %4259 = vmatprep.subr.bf16.mxu0 %v4228
      %4260 = vmatpush1.bf16.msra.mxu0 %v4227
      %4261 = vmatprep.subr.bf16.mxu0 0
      %4262 = vmatpush1.bf16.msra.mxu0 0
      %4263 = vmatprep.subr.bf16.mxu0 0
      %4264 = vmatpush1.bf16.msra.mxu0 0
      %4265 = vmatprep.subr.bf16.mxu0 0
      %4266 = vmatpush1.bf16.msra.mxu0 0
      %4267 = vmatprep.subr.bf16.mxu0 0
      %4268 = vmatpush1.bf16.msra.mxu0 0
      %4269 = vmatprep.subr.bf16.mxu0 0
      %4270 = vmatpush1.bf16.msra.mxu0 0
      %4271 = vmatprep.subr.bf16.mxu0 0
      %4272 = vmatpush1.bf16.msra.mxu0 0
      %4273 = vmatprep.subr.bf16.mxu0 0
      %4274 = vmatpush1.bf16.msra.mxu0 0
      %4275 = vmatprep.subr.bf16.mxu0 0
      %4276 = vmatpush1.bf16.msra.mxu0 0
      %4277 = vmatprep.mubr.bf16.mxu0 0
      %4278 = vmatmul.mubr.bf16.gmra.mrb[0].mxu0 %v4162
      %v4279 = vpop.f32.mrb[0].mxu0
      %v4280 = vadd.f32 0.0, %v4279
      %v4281 = vpop.f32.mrb[0].mxu0
      %v4282 = vadd.f32 0.0, %v4281
      %v4283 = vpop.f32.mrb[0].mxu0
      %v4284 = vadd.f32 0.0, %v4283
      %v4285 = vpop.f32.mrb[0].mxu0
      %v4286 = vadd.f32 0.0, %v4285
      %4287 = vmatprep.mubr.bf16.mxu0 0
      %4288 = vmatmul.mubr.bf16.gmra.mrb[0].mxu0 %v4161
      %v4289 = vpop.f32.mrb[0].mxu0
      %v4290 = vadd.f32 0.0, %v4289
      %v4291 = vpop.f32.mrb[0].mxu0
      %v4292 = vadd.f32 0.0, %v4291
      %v4293 = vpop.f32.mrb[0].mxu0
      %v4294 = vpop.f32.mrb[0].mxu0
      %4295 = vdwg.mxu0
      %v4296 = vadd.f32 %v4132, %v4280
      %v4297 = vadd.f32 %v4133, %v4282
      %v4298 = vadd.f32 %v4134, %v4284
      %v4299 = vadd.f32 %v4135, %v4286
      %v4300 = vadd.f32 %v4136, %v4290
      %v4301 = vadd.f32 %v4137, %v4292
      %v4302 = vpack.c.bf16 %v3500, %v3499
      %v4303 = vpack.c.bf16 %v3501, %v3501
      %s4304 = scalar_lea.vmem %s5, 640
      %v4305 = vld [vmem:[%s4304] sm:$0xff]
      %v4306 = vld [vmem:[%s4304 + $0x8] sm:$0xff]
      %v4307 = vld [vmem:[%s4304 + $0x10] sm:$0xff]
      %v4308 = vld [vmem:[%s4304 + $0x18] sm:$0xff]
      %v4309 = vld [vmem:[%s4304 + $0x20] sm:$0xff]
      %v4310 = vld [vmem:[%s4304 + $0x28] sm:$0xff]
      %v4311 = vld [vmem:[%s4304 + $0x30] sm:$0xff]
      %v4312 = vld [vmem:[%s4304 + $0x38] sm:$0xff]
      %v4313 = vld [vmem:[%s4304 + $0x40] sm:$0xff]
      %v4314 = vld [vmem:[%s4304 + $0x48] sm:$0xff]
      %v4315 = vld [vmem:[%s4304 + $0x50] sm:$0xff]
      %v4316 = vld [vmem:[%s4304 + $0x58] sm:$0xff]
      %v4317 = vld [vmem:[%s4304 + $0x60] sm:$0xff]
      %v4318 = vld [vmem:[%s4304 + $0x68] sm:$0xff]
      %v4319 = vld [vmem:[%s4304 + $0x70] sm:$0xff]
      %v4320 = vld [vmem:[%s4304 + $0x78] sm:$0xff]
      %v4337 = vunpack.c.l.b16 %v4305
      %v4338 = vunpack.c.h.b16 %v4305
      %v4339 = vunpack.c.l.b16 %v4306
      %v4340 = vunpack.c.h.b16 %v4306
      %v4341 = vunpack.c.l.b16 %v4307
      %v4342 = vunpack.c.h.b16 %v4307
      %v4343 = vunpack.c.l.b16 %v4308
      %v4344 = vunpack.c.h.b16 %v4308
      %v4345 = vunpack.c.l.b16 %v4309
      %v4346 = vunpack.c.h.b16 %v4309
      %v4347 = vunpack.c.l.b16 %v4310
      %v4348 = vunpack.c.h.b16 %v4310
      %v4349 = vunpack.c.l.b16 %v4311
      %v4350 = vunpack.c.h.b16 %v4311
      %v4351 = vunpack.c.l.b16 %v4312
      %v4352 = vunpack.c.h.b16 %v4312
      %v4353 = vunpack.c.l.b16 %v4313
      %v4354 = vunpack.c.h.b16 %v4313
      %v4355 = vunpack.c.l.b16 %v4314
      %v4356 = vunpack.c.h.b16 %v4314
      %v4357 = vunpack.c.l.b16 %v4315
      %v4358 = vunpack.c.h.b16 %v4315
      %v4359 = vunpack.c.l.b16 %v4316
      %v4360 = vunpack.c.h.b16 %v4316
      %v4361 = vunpack.c.l.b16 %v4317
      %v4362 = vunpack.c.h.b16 %v4317
      %v4363 = vunpack.c.l.b16 %v4318
      %v4364 = vunpack.c.h.b16 %v4318
      %v4365 = vunpack.c.l.b16 %v4319
      %v4366 = vunpack.c.h.b16 %v4319
      %v4367 = vunpack.c.l.b16 %v4320
      %v4368 = vunpack.c.h.b16 %v4320
      %v4369 = vpack.c.b16 %v4339, %v4337
      %v4370 = vpack.c.b16 %v4340, %v4338
      %v4371 = vpack.c.b16 %v4343, %v4341
      %v4372 = vpack.c.b16 %v4344, %v4342
      %v4373 = vpack.c.b16 %v4347, %v4345
      %v4374 = vpack.c.b16 %v4348, %v4346
      %v4375 = vpack.c.b16 %v4351, %v4349
      %v4376 = vpack.c.b16 %v4352, %v4350
      %v4377 = vpack.c.b16 %v4355, %v4353
      %v4378 = vpack.c.b16 %v4356, %v4354
      %v4379 = vpack.c.b16 %v4359, %v4357
      %v4380 = vpack.c.b16 %v4360, %v4358
      %v4381 = vpack.c.b16 %v4363, %v4361
      %v4382 = vpack.c.b16 %v4364, %v4362
      %v4383 = vpack.c.b16 %v4367, %v4365
      %v4384 = vpack.c.b16 %v4368, %v4366
      %4401 = vmatprep.subr.bf16.mxu0 %v4370
      %4402 = vmatpush1.bf16.msra.mxu0 %v4369
      %4403 = vmatprep.subr.bf16.mxu0 %v4372
      %4404 = vmatpush1.bf16.msra.mxu0 %v4371
      %4405 = vmatprep.subr.bf16.mxu0 %v4374
      %4406 = vmatpush1.bf16.msra.mxu0 %v4373
      %4407 = vmatprep.subr.bf16.mxu0 %v4376
      %4408 = vmatpush1.bf16.msra.mxu0 %v4375
      %4409 = vmatprep.subr.bf16.mxu0 %v4378
      %4410 = vmatpush1.bf16.msra.mxu0 %v4377
      %4411 = vmatprep.subr.bf16.mxu0 %v4380
      %4412 = vmatpush1.bf16.msra.mxu0 %v4379
      %4413 = vmatprep.subr.bf16.mxu0 %v4382
      %4414 = vmatpush1.bf16.msra.mxu0 %v4381
      %4415 = vmatprep.subr.bf16.mxu0 %v4384
      %4416 = vmatpush1.bf16.msra.mxu0 %v4383
      %4417 = vmatprep.subr.bf16.mxu0 0
      %4418 = vmatpush1.bf16.msra.mxu0 0
      %4419 = vmatprep.subr.bf16.mxu0 0
      %4420 = vmatpush1.bf16.msra.mxu0 0
      %4421 = vmatprep.subr.bf16.mxu0 0
      %4422 = vmatpush1.bf16.msra.mxu0 0
      %4423 = vmatprep.subr.bf16.mxu0 0
      %4424 = vmatpush1.bf16.msra.mxu0 0
      %4425 = vmatprep.subr.bf16.mxu0 0
      %4426 = vmatpush1.bf16.msra.mxu0 0
      %4427 = vmatprep.subr.bf16.mxu0 0
      %4428 = vmatpush1.bf16.msra.mxu0 0
      %4429 = vmatprep.subr.bf16.mxu0 0
      %4430 = vmatpush1.bf16.msra.mxu0 0
      %4431 = vmatprep.subr.bf16.mxu0 0
      %4432 = vmatpush1.bf16.msra.mxu0 0
      %4433 = vmatprep.mubr.bf16.mxu0 0
      %4434 = vmatmul.mubr.bf16.gmra.mrb[0].mxu0 %v4302
      %v4435 = vpop.f32.mrb[0].mxu0
      %v4436 = vadd.f32 0.0, %v4435
      %v4437 = vpop.f32.mrb[0].mxu0
      %v4438 = vadd.f32 0.0, %v4437
      %v4439 = vpop.f32.mrb[0].mxu0
      %v4440 = vadd.f32 0.0, %v4439
      %v4441 = vpop.f32.mrb[0].mxu0
      %v4442 = vadd.f32 0.0, %v4441
      %4443 = vmatprep.mubr.bf16.mxu0 0
      %4444 = vmatmul.mubr.bf16.gmra.mrb[0].mxu0 %v4303
      %v4445 = vpop.f32.mrb[0].mxu0
      %v4446 = vadd.f32 0.0, %v4445
      %v4447 = vpop.f32.mrb[0].mxu0
      %v4448 = vadd.f32 0.0, %v4447
      %v4449 = vpop.f32.mrb[0].mxu0
      %v4450 = vpop.f32.mrb[0].mxu0
      %4451 = vdwg.mxu0
      %v4452 = vadd.f32 %v4296, %v4436
      %v4453 = vadd.f32 %v4297, %v4438
      %v4454 = vadd.f32 %v4298, %v4440
      %v4455 = vadd.f32 %v4299, %v4442
      %v4456 = vadd.f32 %v4300, %v4446
      %v4457 = vadd.f32 %v4301, %v4448
      %v4458 = vpack.c.bf16 %v3502, %v3501
      %s4459 = scalar_lea.vmem %s5, 768
      %v4460 = vld [vmem:[%s4459] sm:$0xff]
      %v4461 = vld [vmem:[%s4459 + $0x8] sm:$0xff]
      %v4462 = vld [vmem:[%s4459 + $0x10] sm:$0xff]
      %v4463 = vld [vmem:[%s4459 + $0x18] sm:$0xff]
      %v4464 = vld [vmem:[%s4459 + $0x20] sm:$0xff]
      %v4465 = vld [vmem:[%s4459 + $0x28] sm:$0xff]
      %v4466 = vld [vmem:[%s4459 + $0x30] sm:$0xff]
      %v4467 = vld [vmem:[%s4459 + $0x38] sm:$0xff]
      %v4468 = vld [vmem:[%s4459 + $0x40] sm:$0xff]
      %v4469 = vld [vmem:[%s4459 + $0x48] sm:$0xff]
      %v4470 = vld [vmem:[%s4459 + $0x50] sm:$0xff]
      %v4471 = vld [vmem:[%s4459 + $0x58] sm:$0xff]
      %v4472 = vld [vmem:[%s4459 + $0x60] sm:$0xff]
      %v4473 = vld [vmem:[%s4459 + $0x68] sm:$0xff]
      %v4474 = vld [vmem:[%s4459 + $0x70] sm:$0xff]
      %v4475 = vld [vmem:[%s4459 + $0x78] sm:$0xff]
      %v4478 = vrot.slane %v4302, 2
      %v4479 = vrot.slane %v4458, 2
      %v4480 = vsel %vm2520, %v4478, %v4479
      %v4499 = vunpack.c.l.b16 %v4460
      %v4500 = vunpack.c.h.b16 %v4460
      %v4501 = vunpack.c.l.b16 %v4461
      %v4502 = vunpack.c.h.b16 %v4461
      %v4503 = vunpack.c.l.b16 %v4462
      %v4504 = vunpack.c.h.b16 %v4462
      %v4505 = vunpack.c.l.b16 %v4463
      %v4506 = vunpack.c.h.b16 %v4463
      %v4507 = vunpack.c.l.b16 %v4464
      %v4508 = vunpack.c.h.b16 %v4464
      %v4509 = vunpack.c.l.b16 %v4465
      %v4510 = vunpack.c.h.b16 %v4465
      %v4511 = vunpack.c.l.b16 %v4466
      %v4512 = vunpack.c.h.b16 %v4466
      %v4513 = vunpack.c.l.b16 %v4467
      %v4514 = vunpack.c.h.b16 %v4467
      %v4515 = vunpack.c.l.b16 %v4468
      %v4516 = vunpack.c.h.b16 %v4468
      %v4517 = vunpack.c.l.b16 %v4469
      %v4518 = vunpack.c.h.b16 %v4469
      %v4519 = vunpack.c.l.b16 %v4470
      %v4520 = vunpack.c.h.b16 %v4470
      %v4521 = vunpack.c.l.b16 %v4471
      %v4522 = vunpack.c.h.b16 %v4471
      %v4523 = vunpack.c.l.b16 %v4472
      %v4524 = vunpack.c.h.b16 %v4472
      %v4525 = vunpack.c.l.b16 %v4473
      %v4526 = vunpack.c.h.b16 %v4473
      %v4527 = vunpack.c.l.b16 %v4474
      %v4528 = vunpack.c.h.b16 %v4474
      %v4529 = vunpack.c.l.b16 %v4475
      %v4530 = vunpack.c.h.b16 %v4475
      %v4531 = vpack.c.b16 %v4501, %v4499
      %v4532 = vpack.c.b16 %v4502, %v4500
      %v4533 = vpack.c.b16 %v4505, %v4503
      %v4534 = vpack.c.b16 %v4506, %v4504
      %v4535 = vpack.c.b16 %v4509, %v4507
      %v4536 = vpack.c.b16 %v4510, %v4508
      %v4537 = vpack.c.b16 %v4513, %v4511
      %v4538 = vpack.c.b16 %v4514, %v4512
      %v4539 = vpack.c.b16 %v4517, %v4515
      %v4540 = vpack.c.b16 %v4518, %v4516
      %v4541 = vpack.c.b16 %v4521, %v4519
      %v4542 = vpack.c.b16 %v4522, %v4520
      %v4543 = vpack.c.b16 %v4525, %v4523
      %v4544 = vpack.c.b16 %v4526, %v4524
      %v4545 = vpack.c.b16 %v4529, %v4527
      %v4546 = vpack.c.b16 %v4530, %v4528
      %4563 = vmatprep.subr.bf16.mxu0 %v4532
      %4564 = vmatpush1.bf16.msra.mxu0 %v4531
      %4565 = vmatprep.subr.bf16.mxu0 %v4534
      %4566 = vmatpush1.bf16.msra.mxu0 %v4533
      %4567 = vmatprep.subr.bf16.mxu0 %v4536
      %4568 = vmatpush1.bf16.msra.mxu0 %v4535
      %4569 = vmatprep.subr.bf16.mxu0 %v4538
      %4570 = vmatpush1.bf16.msra.mxu0 %v4537
      %4571 = vmatprep.subr.bf16.mxu0 %v4540
      %4572 = vmatpush1.bf16.msra.mxu0 %v4539
      %4573 = vmatprep.subr.bf16.mxu0 %v4542
      %4574 = vmatpush1.bf16.msra.mxu0 %v4541
      %4575 = vmatprep.subr.bf16.mxu0 %v4544
      %4576 = vmatpush1.bf16.msra.mxu0 %v4543
      %4577 = vmatprep.subr.bf16.mxu0 %v4546
      %4578 = vmatpush1.bf16.msra.mxu0 %v4545
      %4579 = vmatprep.subr.bf16.mxu0 0
      %4580 = vmatpush1.bf16.msra.mxu0 0
      %4581 = vmatprep.subr.bf16.mxu0 0
      %4582 = vmatpush1.bf16.msra.mxu0 0
      %4583 = vmatprep.subr.bf16.mxu0 0
      %4584 = vmatpush1.bf16.msra.mxu0 0
      %4585 = vmatprep.subr.bf16.mxu0 0
      %4586 = vmatpush1.bf16.msra.mxu0 0
      %4587 = vmatprep.subr.bf16.mxu0 0
      %4588 = vmatpush1.bf16.msra.mxu0 0
      %4589 = vmatprep.subr.bf16.mxu0 0
      %4590 = vmatpush1.bf16.msra.mxu0 0
      %4591 = vmatprep.subr.bf16.mxu0 0
      %4592 = vmatpush1.bf16.msra.mxu0 0
      %4593 = vmatprep.subr.bf16.mxu0 0
      %4594 = vmatpush1.bf16.msra.mxu0 0
      %4595 = vmatprep.mubr.bf16.mxu0 0
      %4596 = vmatmul.mubr.bf16.gmra.mrb[0].mxu0 %v4480
      %v4597 = vpop.f32.mrb[0].mxu0
      %v4598 = vadd.f32 0.0, %v4597
      %v4599 = vpop.f32.mrb[0].mxu0
      %v4600 = vadd.f32 0.0, %v4599
      %v4601 = vpop.f32.mrb[0].mxu0
      %v4602 = vadd.f32 0.0, %v4601
      %v4603 = vpop.f32.mrb[0].mxu0
      %v4604 = vadd.f32 0.0, %v4603
      %4605 = vmatprep.mubr.bf16.mxu0 0
      %4606 = vmatmul.mubr.bf16.gmra.mrb[0].mxu0 %v4479
      %v4607 = vpop.f32.mrb[0].mxu0
      %v4608 = vadd.f32 0.0, %v4607
      %v4609 = vpop.f32.mrb[0].mxu0
      %v4610 = vadd.f32 0.0, %v4609
      %v4611 = vpop.f32.mrb[0].mxu0
      %v4612 = vpop.f32.mrb[0].mxu0
      %4613 = vdwg.mxu0
      %v4614 = vadd.f32 %v4452, %v4598
      %v4615 = vadd.f32 %v4453, %v4600
      %v4616 = vadd.f32 %v4454, %v4602
      %v4617 = vadd.f32 %v4455, %v4604
      %v4618 = vadd.f32 %v4456, %v4608
      %v4619 = vadd.f32 %v4457, %v4610
      %s4620 = scalar_lea.vmem %s5, 896
      %v4621 = vld [vmem:[%s4620] sm:$0xff]
      %v4622 = vld [vmem:[%s4620 + $0x8] sm:$0xff]
      %v4623 = vld [vmem:[%s4620 + $0x10] sm:$0xff]
      %v4624 = vld [vmem:[%s4620 + $0x18] sm:$0xff]
      %v4625 = vld [vmem:[%s4620 + $0x20] sm:$0xff]
      %v4626 = vld [vmem:[%s4620 + $0x28] sm:$0xff]
      %v4627 = vld [vmem:[%s4620 + $0x30] sm:$0xff]
      %v4628 = vld [vmem:[%s4620 + $0x38] sm:$0xff]
      %v4629 = vld [vmem:[%s4620 + $0x40] sm:$0xff]
      %v4630 = vld [vmem:[%s4620 + $0x48] sm:$0xff]
      %v4631 = vld [vmem:[%s4620 + $0x50] sm:$0xff]
      %v4632 = vld [vmem:[%s4620 + $0x58] sm:$0xff]
      %v4633 = vld [vmem:[%s4620 + $0x60] sm:$0xff]
      %v4634 = vld [vmem:[%s4620 + $0x68] sm:$0xff]
      %v4635 = vld [vmem:[%s4620 + $0x70] sm:$0xff]
      %v4636 = vld [vmem:[%s4620 + $0x78] sm:$0xff]
      %v4638 = vshrl.u32 %v4302, 16
      %v4640 = vrot.slane %v4638, 2
      %v4641 = vshll.u32 %v4302, 16
      %v4643 = vrot.slane %v4641, 3
      %v4644 = vor.u32 %v4640, %v4643
      %v4646 = vshrl.u32 %v4458, 16
      %v4648 = vrot.slane %v4646, 2
      %v4649 = vshll.u32 %v4458, 16
      %v4651 = vrot.slane %v4649, 3
      %v4652 = vor.u32 %v4648, %v4651
      %v4653 = vsel %vm2809, %v4644, %v4652
      %v4672 = vunpack.c.l.b16 %v4621
      %v4673 = vunpack.c.h.b16 %v4621
      %v4674 = vunpack.c.l.b16 %v4622
      %v4675 = vunpack.c.h.b16 %v4622
      %v4676 = vunpack.c.l.b16 %v4623
      %v4677 = vunpack.c.h.b16 %v4623
      %v4678 = vunpack.c.l.b16 %v4624
      %v4679 = vunpack.c.h.b16 %v4624
      %v4680 = vunpack.c.l.b16 %v4625
      %v4681 = vunpack.c.h.b16 %v4625
      %v4682 = vunpack.c.l.b16 %v4626
      %v4683 = vunpack.c.h.b16 %v4626
      %v4684 = vunpack.c.l.b16 %v4627
      %v4685 = vunpack.c.h.b16 %v4627
      %v4686 = vunpack.c.l.b16 %v4628
      %v4687 = vunpack.c.h.b16 %v4628
      %v4688 = vunpack.c.l.b16 %v4629
      %v4689 = vunpack.c.h.b16 %v4629
      %v4690 = vunpack.c.l.b16 %v4630
      %v4691 = vunpack.c.h.b16 %v4630
      %v4692 = vunpack.c.l.b16 %v4631
      %v4693 = vunpack.c.h.b16 %v4631
      %v4694 = vunpack.c.l.b16 %v4632
      %v4695 = vunpack.c.h.b16 %v4632
      %v4696 = vunpack.c.l.b16 %v4633
      %v4697 = vunpack.c.h.b16 %v4633
      %v4698 = vunpack.c.l.b16 %v4634
      %v4699 = vunpack.c.h.b16 %v4634
      %v4700 = vunpack.c.l.b16 %v4635
      %v4701 = vunpack.c.h.b16 %v4635
      %v4702 = vunpack.c.l.b16 %v4636
      %v4703 = vunpack.c.h.b16 %v4636
      %v4704 = vpack.c.b16 %v4674, %v4672
      %v4705 = vpack.c.b16 %v4675, %v4673
      %v4706 = vpack.c.b16 %v4678, %v4676
      %v4707 = vpack.c.b16 %v4679, %v4677
      %v4708 = vpack.c.b16 %v4682, %v4680
      %v4709 = vpack.c.b16 %v4683, %v4681
      %v4710 = vpack.c.b16 %v4686, %v4684
      %v4711 = vpack.c.b16 %v4687, %v4685
      %v4712 = vpack.c.b16 %v4690, %v4688
      %v4713 = vpack.c.b16 %v4691, %v4689
      %v4714 = vpack.c.b16 %v4694, %v4692
      %v4715 = vpack.c.b16 %v4695, %v4693
      %v4716 = vpack.c.b16 %v4698, %v4696
      %v4717 = vpack.c.b16 %v4699, %v4697
      %v4718 = vpack.c.b16 %v4702, %v4700
      %v4719 = vpack.c.b16 %v4703, %v4701
      %4736 = vmatprep.subr.bf16.mxu0 %v4705
      %4737 = vmatpush1.bf16.msra.mxu0 %v4704
      %4738 = vmatprep.subr.bf16.mxu0 %v4707
      %4739 = vmatpush1.bf16.msra.mxu0 %v4706
      %4740 = vmatprep.subr.bf16.mxu0 %v4709
      %4741 = vmatpush1.bf16.msra.mxu0 %v4708
      %4742 = vmatprep.subr.bf16.mxu0 %v4711
      %4743 = vmatpush1.bf16.msra.mxu0 %v4710
      %4744 = vmatprep.subr.bf16.mxu0 %v4713
      %4745 = vmatpush1.bf16.msra.mxu0 %v4712
      %4746 = vmatprep.subr.bf16.mxu0 %v4715
      %4747 = vmatpush1.bf16.msra.mxu0 %v4714
      %4748 = vmatprep.subr.bf16.mxu0 %v4717
      %4749 = vmatpush1.bf16.msra.mxu0 %v4716
      %4750 = vmatprep.subr.bf16.mxu0 %v4719
      %4751 = vmatpush1.bf16.msra.mxu0 %v4718
      %4752 = vmatprep.subr.bf16.mxu0 0
      %4753 = vmatpush1.bf16.msra.mxu0 0
      %4754 = vmatprep.subr.bf16.mxu0 0
      %4755 = vmatpush1.bf16.msra.mxu0 0
      %4756 = vmatprep.subr.bf16.mxu0 0
      %4757 = vmatpush1.bf16.msra.mxu0 0
      %4758 = vmatprep.subr.bf16.mxu0 0
      %4759 = vmatpush1.bf16.msra.mxu0 0
      %4760 = vmatprep.subr.bf16.mxu0 0
      %4761 = vmatpush1.bf16.msra.mxu0 0
      %4762 = vmatprep.subr.bf16.mxu0 0
      %4763 = vmatpush1.bf16.msra.mxu0 0
      %4764 = vmatprep.subr.bf16.mxu0 0
      %4765 = vmatpush1.bf16.msra.mxu0 0
      %4766 = vmatprep.subr.bf16.mxu0 0
      %4767 = vmatpush1.bf16.msra.mxu0 0
      %4768 = vmatprep.mubr.bf16.mxu0 0
      %4769 = vmatmul.mubr.bf16.gmra.mrb[0].mxu0 %v4653
      %v4770 = vpop.f32.mrb[0].mxu0
      %v4771 = vadd.f32 0.0, %v4770
      %v4772 = vpop.f32.mrb[0].mxu0
      %v4773 = vadd.f32 0.0, %v4772
      %v4774 = vpop.f32.mrb[0].mxu0
      %v4775 = vadd.f32 0.0, %v4774
      %v4776 = vpop.f32.mrb[0].mxu0
      %v4777 = vadd.f32 0.0, %v4776
      %4778 = vmatprep.mubr.bf16.mxu0 0
      %4779 = vmatmul.mubr.bf16.gmra.mrb[0].mxu0 %v4652
      %v4780 = vpop.f32.mrb[0].mxu0
      %v4781 = vadd.f32 0.0, %v4780
      %v4782 = vpop.f32.mrb[0].mxu0
      %v4783 = vadd.f32 0.0, %v4782
      %v4784 = vpop.f32.mrb[0].mxu0
      %v4785 = vpop.f32.mrb[0].mxu0
      %4786 = vdwg.mxu0
      %v4787 = vadd.f32 %v4614, %v4771
      %v4788 = vadd.f32 %v4615, %v4773
      %v4789 = vadd.f32 %v4616, %v4775
      %v4790 = vadd.f32 %v4617, %v4777
      %v4791 = vadd.f32 %v4618, %v4781
      %v4792 = vadd.f32 %v4619, %v4783
      %s4793 = scalar_lea.vmem %s5, 1024
      %v4794 = vld [vmem:[%s4793] sm:$0xff]
      %v4795 = vld [vmem:[%s4793 + $0x8] sm:$0xff]
      %v4796 = vld [vmem:[%s4793 + $0x10] sm:$0xff]
      %v4797 = vld [vmem:[%s4793 + $0x18] sm:$0xff]
      %v4798 = vld [vmem:[%s4793 + $0x20] sm:$0xff]
      %v4799 = vld [vmem:[%s4793 + $0x28] sm:$0xff]
      %v4800 = vld [vmem:[%s4793 + $0x30] sm:$0xff]
      %v4801 = vld [vmem:[%s4793 + $0x38] sm:$0xff]
      %v4802 = vld [vmem:[%s4793 + $0x40] sm:$0xff]
      %v4803 = vld [vmem:[%s4793 + $0x48] sm:$0xff]
      %v4804 = vld [vmem:[%s4793 + $0x50] sm:$0xff]
      %v4805 = vld [vmem:[%s4793 + $0x58] sm:$0xff]
      %v4806 = vld [vmem:[%s4793 + $0x60] sm:$0xff]
      %v4807 = vld [vmem:[%s4793 + $0x68] sm:$0xff]
      %v4808 = vld [vmem:[%s4793 + $0x70] sm:$0xff]
      %v4809 = vld [vmem:[%s4793 + $0x78] sm:$0xff]
      %v4810 = vrot.slane %v4302, 3
      %v4811 = vrot.slane %v4458, 3
      %v4812 = vsel %vm2974, %v4810, %v4811
      %v4831 = vunpack.c.l.b16 %v4794
      %v4832 = vunpack.c.h.b16 %v4794
      %v4833 = vunpack.c.l.b16 %v4795
      %v4834 = vunpack.c.h.b16 %v4795
      %v4835 = vunpack.c.l.b16 %v4796
      %v4836 = vunpack.c.h.b16 %v4796
      %v4837 = vunpack.c.l.b16 %v4797
      %v4838 = vunpack.c.h.b16 %v4797
      %v4839 = vunpack.c.l.b16 %v4798
      %v4840 = vunpack.c.h.b16 %v4798
      %v4841 = vunpack.c.l.b16 %v4799
      %v4842 = vunpack.c.h.b16 %v4799
      %v4843 = vunpack.c.l.b16 %v4800
      %v4844 = vunpack.c.h.b16 %v4800
      %v4845 = vunpack.c.l.b16 %v4801
      %v4846 = vunpack.c.h.b16 %v4801
      %v4847 = vunpack.c.l.b16 %v4802
      %v4848 = vunpack.c.h.b16 %v4802
      %v4849 = vunpack.c.l.b16 %v4803
      %v4850 = vunpack.c.h.b16 %v4803
      %v4851 = vunpack.c.l.b16 %v4804
      %v4852 = vunpack.c.h.b16 %v4804
      %v4853 = vunpack.c.l.b16 %v4805
      %v4854 = vunpack.c.h.b16 %v4805
      %v4855 = vunpack.c.l.b16 %v4806
      %v4856 = vunpack.c.h.b16 %v4806
      %v4857 = vunpack.c.l.b16 %v4807
      %v4858 = vunpack.c.h.b16 %v4807
      %v4859 = vunpack.c.l.b16 %v4808
      %v4860 = vunpack.c.h.b16 %v4808
      %v4861 = vunpack.c.l.b16 %v4809
      %v4862 = vunpack.c.h.b16 %v4809
      %v4863 = vpack.c.b16 %v4833, %v4831
      %v4864 = vpack.c.b16 %v4834, %v4832
      %v4865 = vpack.c.b16 %v4837, %v4835
      %v4866 = vpack.c.b16 %v4838, %v4836
      %v4867 = vpack.c.b16 %v4841, %v4839
      %v4868 = vpack.c.b16 %v4842, %v4840
      %v4869 = vpack.c.b16 %v4845, %v4843
      %v4870 = vpack.c.b16 %v4846, %v4844
      %v4871 = vpack.c.b16 %v4849, %v4847
      %v4872 = vpack.c.b16 %v4850, %v4848
      %v4873 = vpack.c.b16 %v4853, %v4851
      %v4874 = vpack.c.b16 %v4854, %v4852
      %v4875 = vpack.c.b16 %v4857, %v4855
      %v4876 = vpack.c.b16 %v4858, %v4856
      %v4877 = vpack.c.b16 %v4861, %v4859
      %v4878 = vpack.c.b16 %v4862, %v4860
      %4895 = vmatprep.subr.bf16.mxu0 %v4864
      %4896 = vmatpush1.bf16.msra.mxu0 %v4863
      %4897 = vmatprep.subr.bf16.mxu0 %v4866
      %4898 = vmatpush1.bf16.msra.mxu0 %v4865
      %4899 = vmatprep.subr.bf16.mxu0 %v4868
      %4900 = vmatpush1.bf16.msra.mxu0 %v4867
      %4901 = vmatprep.subr.bf16.mxu0 %v4870
      %4902 = vmatpush1.bf16.msra.mxu0 %v4869
      %4903 = vmatprep.subr.bf16.mxu0 %v4872
      %4904 = vmatpush1.bf16.msra.mxu0 %v4871
      %4905 = vmatprep.subr.bf16.mxu0 %v4874
      %4906 = vmatpush1.bf16.msra.mxu0 %v4873
      %4907 = vmatprep.subr.bf16.mxu0 %v4876
      %4908 = vmatpush1.bf16.msra.mxu0 %v4875
      %4909 = vmatprep.subr.bf16.mxu0 %v4878
      %4910 = vmatpush1.bf16.msra.mxu0 %v4877
      %4911 = vmatprep.subr.bf16.mxu0 0
      %4912 = vmatpush1.bf16.msra.mxu0 0
      %4913 = vmatprep.subr.bf16.mxu0 0
      %4914 = vmatpush1.bf16.msra.mxu0 0
      %4915 = vmatprep.subr.bf16.mxu0 0
      %4916 = vmatpush1.bf16.msra.mxu0 0
      %4917 = vmatprep.subr.bf16.mxu0 0
      %4918 = vmatpush1.bf16.msra.mxu0 0
      %4919 = vmatprep.subr.bf16.mxu0 0
      %4920 = vmatpush1.bf16.msra.mxu0 0
      %4921 = vmatprep.subr.bf16.mxu0 0
      %4922 = vmatpush1.bf16.msra.mxu0 0
      %4923 = vmatprep.subr.bf16.mxu0 0
      %4924 = vmatpush1.bf16.msra.mxu0 0
      %4925 = vmatprep.subr.bf16.mxu0 0
      %4926 = vmatpush1.bf16.msra.mxu0 0
      %4927 = vmatprep.mubr.bf16.mxu0 0
      %4928 = vmatmul.mubr.bf16.gmra.mrb[0].mxu0 %v4812
      %v4929 = vpop.f32.mrb[0].mxu0
      %v4930 = vadd.f32 0.0, %v4929
      %v4931 = vpop.f32.mrb[0].mxu0
      %v4932 = vadd.f32 0.0, %v4931
      %v4933 = vpop.f32.mrb[0].mxu0
      %v4934 = vadd.f32 0.0, %v4933
      %v4935 = vpop.f32.mrb[0].mxu0
      %v4936 = vadd.f32 0.0, %v4935
      %4937 = vmatprep.mubr.bf16.mxu0 0
      %4938 = vmatmul.mubr.bf16.gmra.mrb[0].mxu0 %v4811
      %v4939 = vpop.f32.mrb[0].mxu0
      %v4940 = vadd.f32 0.0, %v4939
      %v4941 = vpop.f32.mrb[0].mxu0
      %v4942 = vadd.f32 0.0, %v4941
      %v4943 = vpop.f32.mrb[0].mxu0
      %v4944 = vpop.f32.mrb[0].mxu0
      %4945 = vdwg.mxu0
      %v4946 = vadd.f32 %v4787, %v4930
      %v4947 = vadd.f32 %v4788, %v4932
      %v4948 = vadd.f32 %v4789, %v4934
      %v4949 = vadd.f32 %v4790, %v4936
      %v4950 = vadd.f32 %v4791, %v4940
      %v4951 = vadd.f32 %v4792, %v4942
      %v4952 = vld [vmem:[%s6] sm:$0x3]
      %v4954 = vlaneseq
      %v4955 = vshrl.u32 %v4954, 7
      %v4956 = vsub.s32 0, %v4955
      %v4957 = vrot.slane %v4952, %v4956
      %v4958 = vlaneseq
      %v4959 = vshrl.u32 %v4958, 7
      %v4960 = vsub.s32 1, %v4959
      %v4961 = vrot.slane %v4952, %v4960
      %v4964 = vadd.f32 %v4946, %v4957
      %v4965 = vadd.f32 %v4947, %v4961
      %v4966 = vadd.f32 %v4948, %v4957
      %v4967 = vadd.f32 %v4949, %v4961
      %v4968 = vadd.f32 %v4950, %v4957
      %v4969 = vadd.f32 %v4951, %v4961
      %v4970 = vmax.f32 %v4964, 0.0
      %v4971 = vmax.f32 %v4965, 0.0
      %v4972 = vmax.f32 %v4966, 0.0
      %v4973 = vmax.f32 %v4967, 0.0
      %v4974 = vmax.f32 %v4968, 0.0
      %v4975 = vmax.f32 %v4969, 0.0
      %v4976 = vpack.c.bf16 %v4972, %v4970
      %v4977 = vpack.c.bf16 %v4973, %v4971
      %v4978 = vpack.c.bf16 %v4974, %v4974
      %v4979 = vpack.c.bf16 %v4975, %v4975
      %v4980 = vld [vmem:[%s15] sm:$0xf]
      %v4981 = vld [vmem:[%s15 + $0x4] sm:$0x3]
      %v4984 = vunpack.c.l.b16 %v4980
      %v4985 = vunpack.c.l.b16 %v4981
      %v4986 = vpack.c.b16 %v4985, %v4984
      %vm4987 = vcmask 195584
      %v4989 = vsel %vm4987, %v4986, 0
      %vm4991 = vcmask 1043456
      %v4993 = vsel %vm4991, %v4978, 0
      %v4996 = vsel %vm4991, %v4979, 0
      %4998 = vmatprep.subr.bf16.mxu0 %v4977
      %4999 = vmatpush1.bf16.msra.mxu0 %v4976
      %5000 = vmatprep.subr.bf16.mxu0 %v4996
      %5001 = vmatpush1.bf16.msra.mxu0 %v4993
      %5002 = vmatprep.subr.bf16.mxu0 0
      %5003 = vmatpush1.bf16.msra.mxu0 0
      %5004 = vmatprep.subr.bf16.mxu0 0
      %5005 = vmatpush1.bf16.msra.mxu0 0
      %5006 = vmatprep.subr.bf16.mxu0 0
      %5007 = vmatpush1.bf16.msra.mxu0 0
      %5008 = vmatprep.subr.bf16.mxu0 0
      %5009 = vmatpush1.bf16.msra.mxu0 0
      %5010 = vmatprep.subr.bf16.mxu0 0
      %5011 = vmatpush1.bf16.msra.mxu0 0
      %5012 = vmatprep.subr.bf16.mxu0 0
      %5013 = vmatpush1.bf16.msra.mxu0 0
      %5014 = vmatprep.subr.bf16.mxu0 0
      %5015 = vmatpush1.bf16.msra.mxu0 0
      %5016 = vmatprep.subr.bf16.mxu0 0
      %5017 = vmatpush1.bf16.msra.mxu0 0
      %5018 = vmatprep.subr.bf16.mxu0 0
      %5019 = vmatpush1.bf16.msra.mxu0 0
      %5020 = vmatprep.subr.bf16.mxu0 0
      %5021 = vmatpush1.bf16.msra.mxu0 0
      %5022 = vmatprep.subr.bf16.mxu0 0
      %5023 = vmatpush1.bf16.msra.mxu0 0
      %5024 = vmatprep.subr.bf16.mxu0 0
      %5025 = vmatpush1.bf16.msra.mxu0 0
      %5026 = vmatprep.subr.bf16.mxu0 0
      %5027 = vmatpush1.bf16.msra.mxu0 0
      %5028 = vmatprep.subr.bf16.mxu0 0
      %5029 = vmatpush1.bf16.msra.mxu0 0
      %5030 = vmatprep.mubr.bf16.mxu0 0
      %5031 = vmatmul.mubr.bf16.gmra.mrb[0].mxu0 %v4989
      %v5032 = vpop.f32.mrb[0].mxu0
      %v5033 = vadd.f32 0.0, %v5032
      %v5034 = vpop.f32.mrb[0].mxu0
      %v5035 = vadd.f32 0.0, %v5034
      %v5036 = vpop.f32.mrb[0].mxu0
      %v5037 = vadd.f32 0.0, %v5036
      %v5038 = vpop.f32.mrb[0].mxu0
      %v5039 = vadd.f32 0.0, %v5038
      %5040 = vdwg.mxu0
      %s5041 = scalar_lea.vmem %s15, 8
      %v5042 = vld [vmem:[%s5041] sm:$0xf]
      %v5043 = vld [vmem:[%s5041 + $0x4] sm:$0x3]
      %v5046 = vunpack.c.l.b16 %v5042
      %v5047 = vunpack.c.l.b16 %v5043
      %v5048 = vpack.c.b16 %v5047, %v5046
      %v5050 = vsel %vm4987, %v5048, 0
      %5052 = vmatprep.subr.bf16.mxu0 %v4977
      %5053 = vmatpush1.bf16.msra.mxu0 %v4976
      %5054 = vmatprep.subr.bf16.mxu0 %v4996
      %5055 = vmatpush1.bf16.msra.mxu0 %v4993
      %5056 = vmatprep.subr.bf16.mxu0 0
      %5057 = vmatpush1.bf16.msra.mxu0 0
      %5058 = vmatprep.subr.bf16.mxu0 0
      %5059 = vmatpush1.bf16.msra.mxu0 0
      %5060 = vmatprep.subr.bf16.mxu0 0
      %5061 = vmatpush1.bf16.msra.mxu0 0
      %5062 = vmatprep.subr.bf16.mxu0 0
      %5063 = vmatpush1.bf16.msra.mxu0 0
      %5064 = vmatprep.subr.bf16.mxu0 0
      %5065 = vmatpush1.bf16.msra.mxu0 0
      %5066 = vmatprep.subr.bf16.mxu0 0
      %5067 = vmatpush1.bf16.msra.mxu0 0
      %5068 = vmatprep.subr.bf16.mxu0 0
      %5069 = vmatpush1.bf16.msra.mxu0 0
      %5070 = vmatprep.subr.bf16.mxu0 0
      %5071 = vmatpush1.bf16.msra.mxu0 0
      %5072 = vmatprep.subr.bf16.mxu0 0
      %5073 = vmatpush1.bf16.msra.mxu0 0
      %5074 = vmatprep.subr.bf16.mxu0 0
      %5075 = vmatpush1.bf16.msra.mxu0 0
      %5076 = vmatprep.subr.bf16.mxu0 0
      %5077 = vmatpush1.bf16.msra.mxu0 0
      %5078 = vmatprep.subr.bf16.mxu0 0
      %5079 = vmatpush1.bf16.msra.mxu0 0
      %5080 = vmatprep.subr.bf16.mxu0 0
      %5081 = vmatpush1.bf16.msra.mxu0 0
      %5082 = vmatprep.subr.bf16.mxu0 0
      %5083 = vmatpush1.bf16.msra.mxu0 0
      %5084 = vmatprep.mubr.bf16.mxu0 0
      %5085 = vmatmul.mubr.bf16.gmra.mrb[0].mxu0 %v5050
      %v5086 = vpop.f32.mrb[0].mxu0
      %v5087 = vadd.f32 0.0, %v5086
      %v5088 = vpop.f32.mrb[0].mxu0
      %v5089 = vadd.f32 0.0, %v5088
      %v5090 = vpop.f32.mrb[0].mxu0
      %v5091 = vadd.f32 0.0, %v5090
      %v5092 = vpop.f32.mrb[0].mxu0
      %v5093 = vadd.f32 0.0, %v5092
      %5094 = vdwg.mxu0
      %v5095 = vmax.f32 %v5033, %v5087
      %v5096 = vmax.f32 %v5035, %v5089
      %v5097 = vmax.f32 %v5037, %v5091
      %v5098 = vmax.f32 %v5039, %v5093
      %s5099 = scalar_lea.vmem %s15, 16
      %v5100 = vld [vmem:[%s5099] sm:$0xf]
      %v5101 = vld [vmem:[%s5099 + $0x4] sm:$0x3]
      %v5104 = vunpack.c.l.b16 %v5100
      %v5105 = vunpack.c.l.b16 %v5101
      %v5106 = vpack.c.b16 %v5105, %v5104
      %v5108 = vsel %vm4987, %v5106, 0
      %5110 = vmatprep.subr.bf16.mxu0 %v4977
      %5111 = vmatpush1.bf16.msra.mxu0 %v4976
      %5112 = vmatprep.subr.bf16.mxu0 %v4996
      %5113 = vmatpush1.bf16.msra.mxu0 %v4993
      %5114 = vmatprep.subr.bf16.mxu0 0
      %5115 = vmatpush1.bf16.msra.mxu0 0
      %5116 = vmatprep.subr.bf16.mxu0 0
      %5117 = vmatpush1.bf16.msra.mxu0 0
      %5118 = vmatprep.subr.bf16.mxu0 0
      %5119 = vmatpush1.bf16.msra.mxu0 0
      %5120 = vmatprep.subr.bf16.mxu0 0
      %5121 = vmatpush1.bf16.msra.mxu0 0
      %5122 = vmatprep.subr.bf16.mxu0 0
      %5123 = vmatpush1.bf16.msra.mxu0 0
      %5124 = vmatprep.subr.bf16.mxu0 0
      %5125 = vmatpush1.bf16.msra.mxu0 0
      %5126 = vmatprep.subr.bf16.mxu0 0
      %5127 = vmatpush1.bf16.msra.mxu0 0
      %5128 = vmatprep.subr.bf16.mxu0 0
      %5129 = vmatpush1.bf16.msra.mxu0 0
      %5130 = vmatprep.subr.bf16.mxu0 0
      %5131 = vmatpush1.bf16.msra.mxu0 0
      %5132 = vmatprep.subr.bf16.mxu0 0
      %5133 = vmatpush1.bf16.msra.mxu0 0
      %5134 = vmatprep.subr.bf16.mxu0 0
      %5135 = vmatpush1.bf16.msra.mxu0 0
      %5136 = vmatprep.subr.bf16.mxu0 0
      %5137 = vmatpush1.bf16.msra.mxu0 0
      %5138 = vmatprep.subr.bf16.mxu0 0
      %5139 = vmatpush1.bf16.msra.mxu0 0
      %5140 = vmatprep.subr.bf16.mxu0 0
      %5141 = vmatpush1.bf16.msra.mxu0 0
      %5142 = vmatprep.mubr.bf16.mxu0 0
      %5143 = vmatmul.mubr.bf16.gmra.mrb[0].mxu0 %v5108
      %v5144 = vpop.f32.mrb[0].mxu0
      %v5145 = vadd.f32 0.0, %v5144
      %v5146 = vpop.f32.mrb[0].mxu0
      %v5147 = vadd.f32 0.0, %v5146
      %v5148 = vpop.f32.mrb[0].mxu0
      %v5149 = vadd.f32 0.0, %v5148
      %v5150 = vpop.f32.mrb[0].mxu0
      %v5151 = vadd.f32 0.0, %v5150
      %5152 = vdwg.mxu0
      %v5153 = vmax.f32 %v5095, %v5145
      %v5154 = vmax.f32 %v5096, %v5147
      %v5155 = vmax.f32 %v5097, %v5149
      %v5156 = vmax.f32 %v5098, %v5151
      %s5157 = scalar_lea.vmem %s15, 24
      %v5158 = vld [vmem:[%s5157] sm:$0xf]
      %v5159 = vld [vmem:[%s5157 + $0x4] sm:$0x3]
      %v5162 = vunpack.c.l.b16 %v5158
      %v5163 = vunpack.c.l.b16 %v5159
      %v5164 = vpack.c.b16 %v5163, %v5162
      %v5166 = vsel %vm4987, %v5164, 0
      %5168 = vmatprep.subr.bf16.mxu0 %v4977
      %5169 = vmatpush1.bf16.msra.mxu0 %v4976
      %5170 = vmatprep.subr.bf16.mxu0 %v4996
      %5171 = vmatpush1.bf16.msra.mxu0 %v4993
      %5172 = vmatprep.subr.bf16.mxu0 0
      %5173 = vmatpush1.bf16.msra.mxu0 0
      %5174 = vmatprep.subr.bf16.mxu0 0
      %5175 = vmatpush1.bf16.msra.mxu0 0
      %5176 = vmatprep.subr.bf16.mxu0 0
      %5177 = vmatpush1.bf16.msra.mxu0 0
      %5178 = vmatprep.subr.bf16.mxu0 0
      %5179 = vmatpush1.bf16.msra.mxu0 0
      %5180 = vmatprep.subr.bf16.mxu0 0
      %5181 = vmatpush1.bf16.msra.mxu0 0
      %5182 = vmatprep.subr.bf16.mxu0 0
      %5183 = vmatpush1.bf16.msra.mxu0 0
      %5184 = vmatprep.subr.bf16.mxu0 0
      %5185 = vmatpush1.bf16.msra.mxu0 0
      %5186 = vmatprep.subr.bf16.mxu0 0
      %5187 = vmatpush1.bf16.msra.mxu0 0
      %5188 = vmatprep.subr.bf16.mxu0 0
      %5189 = vmatpush1.bf16.msra.mxu0 0
      %5190 = vmatprep.subr.bf16.mxu0 0
      %5191 = vmatpush1.bf16.msra.mxu0 0
      %5192 = vmatprep.subr.bf16.mxu0 0
      %5193 = vmatpush1.bf16.msra.mxu0 0
      %5194 = vmatprep.subr.bf16.mxu0 0
      %5195 = vmatpush1.bf16.msra.mxu0 0
      %5196 = vmatprep.subr.bf16.mxu0 0
      %5197 = vmatpush1.bf16.msra.mxu0 0
      %5198 = vmatprep.subr.bf16.mxu0 0
      %5199 = vmatpush1.bf16.msra.mxu0 0
      %5200 = vmatprep.mubr.bf16.mxu0 0
      %5201 = vmatmul.mubr.bf16.gmra.mrb[0].mxu0 %v5166
      %v5202 = vpop.f32.mrb[0].mxu0
      %v5203 = vadd.f32 0.0, %v5202
      %v5204 = vpop.f32.mrb[0].mxu0
      %v5205 = vadd.f32 0.0, %v5204
      %v5206 = vpop.f32.mrb[0].mxu0
      %v5207 = vadd.f32 0.0, %v5206
      %v5208 = vpop.f32.mrb[0].mxu0
      %v5209 = vadd.f32 0.0, %v5208
      %5210 = vdwg.mxu0
      %v5211 = vmax.f32 %v5153, %v5203
      %v5212 = vmax.f32 %v5154, %v5205
      %v5213 = vmax.f32 %v5155, %v5207
      %v5214 = vmax.f32 %v5156, %v5209
      %v5215 = vpack.c.bf16 %v5211, %v5211
      %v5216 = vpack.c.bf16 %v5212, %v5212
      %v5217 = vpack.c.bf16 %v5213, %v5211
      %v5218 = vpack.c.bf16 %v5214, %v5212
      %s5219 = scalar_lea.vmem %s7, 512
      %v5220 = vld [vmem:[%s5219] sm:$0xf]
      %v5221 = vld [vmem:[%s5219 + $0x4] sm:$0xf]
      %v5222 = vld [vmem:[%s5219 + $0x8] sm:$0xf]
      %v5223 = vld [vmem:[%s5219 + $0xc] sm:$0xf]
      %v5224 = vld [vmem:[%s5219 + $0x10] sm:$0xf]
      %v5225 = vld [vmem:[%s5219 + $0x14] sm:$0xf]
      %v5226 = vld [vmem:[%s5219 + $0x18] sm:$0xf]
      %v5227 = vld [vmem:[%s5219 + $0x1c] sm:$0xf]
      %v5228 = vld [vmem:[%s5219 + $0x20] sm:$0xf]
      %v5229 = vld [vmem:[%s5219 + $0x24] sm:$0xf]
      %v5230 = vld [vmem:[%s5219 + $0x28] sm:$0xf]
      %v5231 = vld [vmem:[%s5219 + $0x2c] sm:$0xf]
      %v5232 = vld [vmem:[%s5219 + $0x30] sm:$0xf]
      %v5233 = vld [vmem:[%s5219 + $0x34] sm:$0xf]
      %v5234 = vld [vmem:[%s5219 + $0x38] sm:$0xf]
      %v5235 = vld [vmem:[%s5219 + $0x3c] sm:$0xf]
      %v5236 = vld [vmem:[%s5219 + $0x40] sm:$0xf]
      %v5237 = vld [vmem:[%s5219 + $0x44] sm:$0xf]
      %v5238 = vld [vmem:[%s5219 + $0x48] sm:$0xf]
      %v5239 = vld [vmem:[%s5219 + $0x4c] sm:$0xf]
      %v5240 = vld [vmem:[%s5219 + $0x50] sm:$0xf]
      %v5241 = vld [vmem:[%s5219 + $0x54] sm:$0xf]
      %v5242 = vld [vmem:[%s5219 + $0x58] sm:$0xf]
      %v5243 = vld [vmem:[%s5219 + $0x5c] sm:$0xf]
      %v5244 = vld [vmem:[%s5219 + $0x60] sm:$0xf]
      %v5245 = vld [vmem:[%s5219 + $0x64] sm:$0xf]
      %v5246 = vld [vmem:[%s5219 + $0x68] sm:$0xf]
      %v5247 = vld [vmem:[%s5219 + $0x6c] sm:$0xf]
      %v5248 = vld [vmem:[%s5219 + $0x70] sm:$0xf]
      %v5249 = vld [vmem:[%s5219 + $0x74] sm:$0xf]
      %v5250 = vld [vmem:[%s5219 + $0x78] sm:$0xf]
      %v5251 = vld [vmem:[%s5219 + $0x7c] sm:$0xf]
      %v5252 = vld [vmem:[%s8] sm:$0x1]
      %v5254 = vlaneseq
      %v5255 = vshrl.u32 %v5254, 7
      %v5256 = vsub.s32 0, %v5255
      %v5257 = vrot.slane %v5252, %v5256
      %v5291 = vunpack.c.l.b16 %v5220
      %v5292 = vunpack.c.l.b16 %v5221
      %v5293 = vunpack.c.l.b16 %v5222
      %v5294 = vunpack.c.l.b16 %v5223
      %v5295 = vunpack.c.l.b16 %v5224
      %v5296 = vunpack.c.l.b16 %v5225
      %v5297 = vunpack.c.l.b16 %v5226
      %v5298 = vunpack.c.l.b16 %v5227
      %v5299 = vunpack.c.l.b16 %v5228
      %v5300 = vunpack.c.l.b16 %v5229
      %v5301 = vunpack.c.l.b16 %v5230
      %v5302 = vunpack.c.l.b16 %v5231
      %v5303 = vunpack.c.l.b16 %v5232
      %v5304 = vunpack.c.l.b16 %v5233
      %v5305 = vunpack.c.l.b16 %v5234
      %v5306 = vunpack.c.l.b16 %v5235
      %v5307 = vunpack.c.l.b16 %v5236
      %v5308 = vunpack.c.l.b16 %v5237
      %v5309 = vunpack.c.l.b16 %v5238
      %v5310 = vunpack.c.l.b16 %v5239
      %v5311 = vunpack.c.l.b16 %v5240
      %v5312 = vunpack.c.l.b16 %v5241
      %v5313 = vunpack.c.l.b16 %v5242
      %v5314 = vunpack.c.l.b16 %v5243
      %v5315 = vunpack.c.l.b16 %v5244
      %v5316 = vunpack.c.l.b16 %v5245
      %v5317 = vunpack.c.l.b16 %v5246
      %v5318 = vunpack.c.l.b16 %v5247
      %v5319 = vunpack.c.l.b16 %v5248
      %v5320 = vunpack.c.l.b16 %v5249
      %v5321 = vunpack.c.l.b16 %v5250
      %v5322 = vunpack.c.l.b16 %v5251
      %v5323 = vpack.c.b16 %v5292, %v5291
      %v5324 = vpack.c.b16 %v5294, %v5293
      %v5325 = vpack.c.b16 %v5296, %v5295
      %v5326 = vpack.c.b16 %v5298, %v5297
      %v5327 = vpack.c.b16 %v5300, %v5299
      %v5328 = vpack.c.b16 %v5302, %v5301
      %v5329 = vpack.c.b16 %v5304, %v5303
      %v5330 = vpack.c.b16 %v5306, %v5305
      %v5331 = vpack.c.b16 %v5308, %v5307
      %v5332 = vpack.c.b16 %v5310, %v5309
      %v5333 = vpack.c.b16 %v5312, %v5311
      %v5334 = vpack.c.b16 %v5314, %v5313
      %v5335 = vpack.c.b16 %v5316, %v5315
      %v5336 = vpack.c.b16 %v5318, %v5317
      %v5337 = vpack.c.b16 %v5320, %v5319
      %v5338 = vpack.c.b16 %v5322, %v5321
      %5355 = vmatprep.subr.bf16.mxu0 0
      %5356 = vmatpush1.bf16.msra.mxu0 %v5323
      %5357 = vmatprep.subr.bf16.mxu0 0
      %5358 = vmatpush1.bf16.msra.mxu0 %v5324
      %5359 = vmatprep.subr.bf16.mxu0 0
      %5360 = vmatpush1.bf16.msra.mxu0 %v5325
      %5361 = vmatprep.subr.bf16.mxu0 0
      %5362 = vmatpush1.bf16.msra.mxu0 %v5326
      %5363 = vmatprep.subr.bf16.mxu0 0
      %5364 = vmatpush1.bf16.msra.mxu0 %v5327
      %5365 = vmatprep.subr.bf16.mxu0 0
      %5366 = vmatpush1.bf16.msra.mxu0 %v5328
      %5367 = vmatprep.subr.bf16.mxu0 0
      %5368 = vmatpush1.bf16.msra.mxu0 %v5329
      %5369 = vmatprep.subr.bf16.mxu0 0
      %5370 = vmatpush1.bf16.msra.mxu0 %v5330
      %5371 = vmatprep.subr.bf16.mxu0 0
      %5372 = vmatpush1.bf16.msra.mxu0 %v5331
      %5373 = vmatprep.subr.bf16.mxu0 0
      %5374 = vmatpush1.bf16.msra.mxu0 %v5332
      %5375 = vmatprep.subr.bf16.mxu0 0
      %5376 = vmatpush1.bf16.msra.mxu0 %v5333
      %5377 = vmatprep.subr.bf16.mxu0 0
      %5378 = vmatpush1.bf16.msra.mxu0 %v5334
      %5379 = vmatprep.subr.bf16.mxu0 0
      %5380 = vmatpush1.bf16.msra.mxu0 %v5335
      %5381 = vmatprep.subr.bf16.mxu0 0
      %5382 = vmatpush1.bf16.msra.mxu0 %v5336
      %5383 = vmatprep.subr.bf16.mxu0 0
      %5384 = vmatpush1.bf16.msra.mxu0 %v5337
      %5385 = vmatprep.subr.bf16.mxu0 0
      %5386 = vmatpush1.bf16.msra.mxu0 %v5338
      %5387 = vmatprep.mubr.bf16.mxu0 %v5216
      %5388 = vmatmul.mubr.bf16.gmra.mrb[0].mxu0 %v5215
      %v5389 = vpop.f32.mrb[0].mxu0
      %v5390 = vadd.f32 %v5257, %v5389
      %v5391 = vpop.f32.mrb[0].mxu0
      %v5392 = vpop.f32.mrb[0].mxu0
      %v5393 = vpop.f32.mrb[0].mxu0
      %5394 = vdwg.mxu0
      %v5395 = vmax.f32 %v5390, 0.0
      %s5396 = scalar_lea.vmem %s7, 640
      %v5397 = vld [vmem:[%s5396] sm:$0xf]
      %v5398 = vld [vmem:[%s5396 + $0x4] sm:$0xf]
      %v5399 = vld [vmem:[%s5396 + $0x8] sm:$0xf]
      %v5400 = vld [vmem:[%s5396 + $0xc] sm:$0xf]
      %v5401 = vld [vmem:[%s5396 + $0x10] sm:$0xf]
      %v5402 = vld [vmem:[%s5396 + $0x14] sm:$0xf]
      %v5403 = vld [vmem:[%s5396 + $0x18] sm:$0xf]
      %v5404 = vld [vmem:[%s5396 + $0x1c] sm:$0xf]
      %v5405 = vld [vmem:[%s5396 + $0x20] sm:$0xf]
      %v5406 = vld [vmem:[%s5396 + $0x24] sm:$0xf]
      %v5407 = vld [vmem:[%s5396 + $0x28] sm:$0xf]
      %v5408 = vld [vmem:[%s5396 + $0x2c] sm:$0xf]
      %v5409 = vld [vmem:[%s5396 + $0x30] sm:$0xf]
      %v5410 = vld [vmem:[%s5396 + $0x34] sm:$0xf]
      %v5411 = vld [vmem:[%s5396 + $0x38] sm:$0xf]
      %v5412 = vld [vmem:[%s5396 + $0x3c] sm:$0xf]
      %v5413 = vld [vmem:[%s5396 + $0x40] sm:$0xf]
      %v5414 = vld [vmem:[%s5396 + $0x44] sm:$0xf]
      %v5415 = vld [vmem:[%s5396 + $0x48] sm:$0xf]
      %v5416 = vld [vmem:[%s5396 + $0x4c] sm:$0xf]
      %v5417 = vld [vmem:[%s5396 + $0x50] sm:$0xf]
      %v5418 = vld [vmem:[%s5396 + $0x54] sm:$0xf]
      %v5419 = vld [vmem:[%s5396 + $0x58] sm:$0xf]
      %v5420 = vld [vmem:[%s5396 + $0x5c] sm:$0xf]
      %v5421 = vld [vmem:[%s5396 + $0x60] sm:$0xf]
      %v5422 = vld [vmem:[%s5396 + $0x64] sm:$0xf]
      %v5423 = vld [vmem:[%s5396 + $0x68] sm:$0xf]
      %v5424 = vld [vmem:[%s5396 + $0x6c] sm:$0xf]
      %v5425 = vld [vmem:[%s5396 + $0x70] sm:$0xf]
      %v5426 = vld [vmem:[%s5396 + $0x74] sm:$0xf]
      %v5427 = vld [vmem:[%s5396 + $0x78] sm:$0xf]
      %v5428 = vld [vmem:[%s5396 + $0x7c] sm:$0xf]
      %s5429 = scalar_lea.vmem %s7, 384
      %v5430 = vld [vmem:[%s5429] sm:$0xf]
      %v5431 = vld [vmem:[%s5429 + $0x4] sm:$0xf]
      %v5432 = vld [vmem:[%s5429 + $0x8] sm:$0xf]
      %v5433 = vld [vmem:[%s5429 + $0xc] sm:$0xf]
      %v5434 = vld [vmem:[%s5429 + $0x10] sm:$0xf]
      %v5435 = vld [vmem:[%s5429 + $0x14] sm:$0xf]
      %v5436 = vld [vmem:[%s5429 + $0x18] sm:$0xf]
      %v5437 = vld [vmem:[%s5429 + $0x1c] sm:$0xf]
      %v5438 = vld [vmem:[%s5429 + $0x20] sm:$0xf]
      %v5439 = vld [vmem:[%s5429 + $0x24] sm:$0xf]
      %v5440 = vld [vmem:[%s5429 + $0x28] sm:$0xf]
      %v5441 = vld [vmem:[%s5429 + $0x2c] sm:$0xf]
      %v5442 = vld [vmem:[%s5429 + $0x30] sm:$0xf]
      %v5443 = vld [vmem:[%s5429 + $0x34] sm:$0xf]
      %v5444 = vld [vmem:[%s5429 + $0x38] sm:$0xf]
      %v5445 = vld [vmem:[%s5429 + $0x3c] sm:$0xf]
      %v5446 = vld [vmem:[%s5429 + $0x40] sm:$0xf]
      %v5447 = vld [vmem:[%s5429 + $0x44] sm:$0xf]
      %v5448 = vld [vmem:[%s5429 + $0x48] sm:$0xf]
      %v5449 = vld [vmem:[%s5429 + $0x4c] sm:$0xf]
      %v5450 = vld [vmem:[%s5429 + $0x50] sm:$0xf]
      %v5451 = vld [vmem:[%s5429 + $0x54] sm:$0xf]
      %v5452 = vld [vmem:[%s5429 + $0x58] sm:$0xf]
      %v5453 = vld [vmem:[%s5429 + $0x5c] sm:$0xf]
      %v5454 = vld [vmem:[%s5429 + $0x60] sm:$0xf]
      %v5455 = vld [vmem:[%s5429 + $0x64] sm:$0xf]
      %v5456 = vld [vmem:[%s5429 + $0x68] sm:$0xf]
      %v5457 = vld [vmem:[%s5429 + $0x6c] sm:$0xf]
      %v5458 = vld [vmem:[%s5429 + $0x70] sm:$0xf]
      %v5459 = vld [vmem:[%s5429 + $0x74] sm:$0xf]
      %v5460 = vld [vmem:[%s5429 + $0x78] sm:$0xf]
      %v5461 = vld [vmem:[%s5429 + $0x7c] sm:$0xf]
      %v5463 = vshrl.u32 %v5215, 16
      %v5465 = vshll.u32 %v5215, 16
      %v5467 = vrot.slane %v5465, 1
      %v5468 = vor.u32 %v5463, %v5467
      %v5470 = vshrl.u32 %v5216, 16
      %v5472 = vshll.u32 %v5216, 16
      %v5474 = vrot.slane %v5472, 1
      %v5475 = vor.u32 %v5470, %v5474
      %v5510 = vunpack.c.l.b16 %v5430
      %v5511 = vunpack.c.l.b16 %v5431
      %v5512 = vunpack.c.l.b16 %v5432
      %v5513 = vunpack.c.l.b16 %v5433
      %v5514 = vunpack.c.l.b16 %v5434
      %v5515 = vunpack.c.l.b16 %v5435
      %v5516 = vunpack.c.l.b16 %v5436
      %v5517 = vunpack.c.l.b16 %v5437
      %v5518 = vunpack.c.l.b16 %v5438
      %v5519 = vunpack.c.l.b16 %v5439
      %v5520 = vunpack.c.l.b16 %v5440
      %v5521 = vunpack.c.l.b16 %v5441
      %v5522 = vunpack.c.l.b16 %v5442
      %v5523 = vunpack.c.l.b16 %v5443
      %v5524 = vunpack.c.l.b16 %v5444
      %v5525 = vunpack.c.l.b16 %v5445
      %v5526 = vunpack.c.l.b16 %v5446
      %v5527 = vunpack.c.l.b16 %v5447
      %v5528 = vunpack.c.l.b16 %v5448
      %v5529 = vunpack.c.l.b16 %v5449
      %v5530 = vunpack.c.l.b16 %v5450
      %v5531 = vunpack.c.l.b16 %v5451
      %v5532 = vunpack.c.l.b16 %v5452
      %v5533 = vunpack.c.l.b16 %v5453
      %v5534 = vunpack.c.l.b16 %v5454
      %v5535 = vunpack.c.l.b16 %v5455
      %v5536 = vunpack.c.l.b16 %v5456
      %v5537 = vunpack.c.l.b16 %v5457
      %v5538 = vunpack.c.l.b16 %v5458
      %v5539 = vunpack.c.l.b16 %v5459
      %v5540 = vunpack.c.l.b16 %v5460
      %v5541 = vunpack.c.l.b16 %v5461
      %v5542 = vpack.c.b16 %v5511, %v5510
      %v5543 = vpack.c.b16 %v5513, %v5512
      %v5544 = vpack.c.b16 %v5515, %v5514
      %v5545 = vpack.c.b16 %v5517, %v5516
      %v5546 = vpack.c.b16 %v5519, %v5518
      %v5547 = vpack.c.b16 %v5521, %v5520
      %v5548 = vpack.c.b16 %v5523, %v5522
      %v5549 = vpack.c.b16 %v5525, %v5524
      %v5550 = vpack.c.b16 %v5527, %v5526
      %v5551 = vpack.c.b16 %v5529, %v5528
      %v5552 = vpack.c.b16 %v5531, %v5530
      %v5553 = vpack.c.b16 %v5533, %v5532
      %v5554 = vpack.c.b16 %v5535, %v5534
      %v5555 = vpack.c.b16 %v5537, %v5536
      %v5556 = vpack.c.b16 %v5539, %v5538
      %v5557 = vpack.c.b16 %v5541, %v5540
      %5574 = vmatprep.subr.bf16.mxu0 0
      %5575 = vmatpush1.bf16.msra.mxu0 %v5542
      %5576 = vmatprep.subr.bf16.mxu0 0
      %5577 = vmatpush1.bf16.msra.mxu0 %v5543
      %5578 = vmatprep.subr.bf16.mxu0 0
      %5579 = vmatpush1.bf16.msra.mxu0 %v5544
      %5580 = vmatprep.subr.bf16.mxu0 0
      %5581 = vmatpush1.bf16.msra.mxu0 %v5545
      %5582 = vmatprep.subr.bf16.mxu0 0
      %5583 = vmatpush1.bf16.msra.mxu0 %v5546
      %5584 = vmatprep.subr.bf16.mxu0 0
      %5585 = vmatpush1.bf16.msra.mxu0 %v5547
      %5586 = vmatprep.subr.bf16.mxu0 0
      %5587 = vmatpush1.bf16.msra.mxu0 %v5548
      %5588 = vmatprep.subr.bf16.mxu0 0
      %5589 = vmatpush1.bf16.msra.mxu0 %v5549
      %5590 = vmatprep.subr.bf16.mxu0 0
      %5591 = vmatpush1.bf16.msra.mxu0 %v5550
      %5592 = vmatprep.subr.bf16.mxu0 0
      %5593 = vmatpush1.bf16.msra.mxu0 %v5551
      %5594 = vmatprep.subr.bf16.mxu0 0
      %5595 = vmatpush1.bf16.msra.mxu0 %v5552
      %5596 = vmatprep.subr.bf16.mxu0 0
      %5597 = vmatpush1.bf16.msra.mxu0 %v5553
      %5598 = vmatprep.subr.bf16.mxu0 0
      %5599 = vmatpush1.bf16.msra.mxu0 %v5554
      %5600 = vmatprep.subr.bf16.mxu0 0
      %5601 = vmatpush1.bf16.msra.mxu0 %v5555
      %5602 = vmatprep.subr.bf16.mxu0 0
      %5603 = vmatpush1.bf16.msra.mxu0 %v5556
      %5604 = vmatprep.subr.bf16.mxu0 0
      %5605 = vmatpush1.bf16.msra.mxu0 %v5557
      %5606 = vmatprep.mubr.bf16.mxu0 %v5475
      %5607 = vmatmul.mubr.bf16.gmra.mrb[0].mxu0 %v5468
      %v5608 = vpop.f32.mrb[0].mxu0
      %v5609 = vadd.f32 0.0, %v5608
      %v5610 = vpop.f32.mrb[0].mxu0
      %v5611 = vpop.f32.mrb[0].mxu0
      %v5612 = vpop.f32.mrb[0].mxu0
      %5613 = vdwg.mxu0
      %v5646 = vunpack.c.l.b16 %v5397
      %v5647 = vunpack.c.l.b16 %v5398
      %v5648 = vunpack.c.l.b16 %v5399
      %v5649 = vunpack.c.l.b16 %v5400
      %v5650 = vunpack.c.l.b16 %v5401
      %v5651 = vunpack.c.l.b16 %v5402
      %v5652 = vunpack.c.l.b16 %v5403
      %v5653 = vunpack.c.l.b16 %v5404
      %v5654 = vunpack.c.l.b16 %v5405
      %v5655 = vunpack.c.l.b16 %v5406
      %v5656 = vunpack.c.l.b16 %v5407
      %v5657 = vunpack.c.l.b16 %v5408
      %v5658 = vunpack.c.l.b16 %v5409
      %v5659 = vunpack.c.l.b16 %v5410
      %v5660 = vunpack.c.l.b16 %v5411
      %v5661 = vunpack.c.l.b16 %v5412
      %v5662 = vunpack.c.l.b16 %v5413
      %v5663 = vunpack.c.l.b16 %v5414
      %v5664 = vunpack.c.l.b16 %v5415
      %v5665 = vunpack.c.l.b16 %v5416
      %v5666 = vunpack.c.l.b16 %v5417
      %v5667 = vunpack.c.l.b16 %v5418
      %v5668 = vunpack.c.l.b16 %v5419
      %v5669 = vunpack.c.l.b16 %v5420
      %v5670 = vunpack.c.l.b16 %v5421
      %v5671 = vunpack.c.l.b16 %v5422
      %v5672 = vunpack.c.l.b16 %v5423
      %v5673 = vunpack.c.l.b16 %v5424
      %v5674 = vunpack.c.l.b16 %v5425
      %v5675 = vunpack.c.l.b16 %v5426
      %v5676 = vunpack.c.l.b16 %v5427
      %v5677 = vunpack.c.l.b16 %v5428
      %v5678 = vpack.c.b16 %v5647, %v5646
      %v5679 = vpack.c.b16 %v5649, %v5648
      %v5680 = vpack.c.b16 %v5651, %v5650
      %v5681 = vpack.c.b16 %v5653, %v5652
      %v5682 = vpack.c.b16 %v5655, %v5654
      %v5683 = vpack.c.b16 %v5657, %v5656
      %v5684 = vpack.c.b16 %v5659, %v5658
      %v5685 = vpack.c.b16 %v5661, %v5660
      %v5686 = vpack.c.b16 %v5663, %v5662
      %v5687 = vpack.c.b16 %v5665, %v5664
      %v5688 = vpack.c.b16 %v5667, %v5666
      %v5689 = vpack.c.b16 %v5669, %v5668
      %v5690 = vpack.c.b16 %v5671, %v5670
      %v5691 = vpack.c.b16 %v5673, %v5672
      %v5692 = vpack.c.b16 %v5675, %v5674
      %v5693 = vpack.c.b16 %v5677, %v5676
      %5710 = vmatprep.subr.bf16.mxu0 0
      %5711 = vmatpush1.bf16.msra.mxu0 %v5678
      %5712 = vmatprep.subr.bf16.mxu0 0
      %5713 = vmatpush1.bf16.msra.mxu0 %v5679
      %5714 = vmatprep.subr.bf16.mxu0 0
      %5715 = vmatpush1.bf16.msra.mxu0 %v5680
      %5716 = vmatprep.subr.bf16.mxu0 0
      %5717 = vmatpush1.bf16.msra.mxu0 %v5681
      %5718 = vmatprep.subr.bf16.mxu0 0
      %5719 = vmatpush1.bf16.msra.mxu0 %v5682
      %5720 = vmatprep.subr.bf16.mxu0 0
      %5721 = vmatpush1.bf16.msra.mxu0 %v5683
      %5722 = vmatprep.subr.bf16.mxu0 0
      %5723 = vmatpush1.bf16.msra.mxu0 %v5684
      %5724 = vmatprep.subr.bf16.mxu0 0
      %5725 = vmatpush1.bf16.msra.mxu0 %v5685
      %5726 = vmatprep.subr.bf16.mxu0 0
      %5727 = vmatpush1.bf16.msra.mxu0 %v5686
      %5728 = vmatprep.subr.bf16.mxu0 0
      %5729 = vmatpush1.bf16.msra.mxu0 %v5687
      %5730 = vmatprep.subr.bf16.mxu0 0
      %5731 = vmatpush1.bf16.msra.mxu0 %v5688
      %5732 = vmatprep.subr.bf16.mxu0 0
      %5733 = vmatpush1.bf16.msra.mxu0 %v5689
      %5734 = vmatprep.subr.bf16.mxu0 0
      %5735 = vmatpush1.bf16.msra.mxu0 %v5690
      %5736 = vmatprep.subr.bf16.mxu0 0
      %5737 = vmatpush1.bf16.msra.mxu0 %v5691
      %5738 = vmatprep.subr.bf16.mxu0 0
      %5739 = vmatpush1.bf16.msra.mxu0 %v5692
      %5740 = vmatprep.subr.bf16.mxu0 0
      %5741 = vmatpush1.bf16.msra.mxu0 %v5693
      %5742 = vmatprep.mubr.bf16.mxu0 %v5216
      %5743 = vmatmul.mubr.bf16.gmra.mrb[0].mxu0 %v5215
      %v5744 = vpop.f32.mrb[0].mxu0
      %v5745 = vadd.f32 %v5609, %v5744
      %v5746 = vpop.f32.mrb[0].mxu0
      %v5747 = vpop.f32.mrb[0].mxu0
      %v5748 = vpop.f32.mrb[0].mxu0
      %5749 = vdwg.mxu0
      %v5750 = vadd.f32 %v5745, %v5257
      %v5751 = vmax.f32 %v5750, 0.0
      %s5752 = scalar_lea.vmem %s7, 896
      %v5753 = vld [vmem:[%s5752] sm:$0xf]
      %v5754 = vld [vmem:[%s5752 + $0x4] sm:$0xf]
      %v5755 = vld [vmem:[%s5752 + $0x8] sm:$0xf]
      %v5756 = vld [vmem:[%s5752 + $0xc] sm:$0xf]
      %v5757 = vld [vmem:[%s5752 + $0x10] sm:$0xf]
      %v5758 = vld [vmem:[%s5752 + $0x14] sm:$0xf]
      %v5759 = vld [vmem:[%s5752 + $0x18] sm:$0xf]
      %v5760 = vld [vmem:[%s5752 + $0x1c] sm:$0xf]
      %v5761 = vld [vmem:[%s5752 + $0x20] sm:$0xf]
      %v5762 = vld [vmem:[%s5752 + $0x24] sm:$0xf]
      %v5763 = vld [vmem:[%s5752 + $0x28] sm:$0xf]
      %v5764 = vld [vmem:[%s5752 + $0x2c] sm:$0xf]
      %v5765 = vld [vmem:[%s5752 + $0x30] sm:$0xf]
      %v5766 = vld [vmem:[%s5752 + $0x34] sm:$0xf]
      %v5767 = vld [vmem:[%s5752 + $0x38] sm:$0xf]
      %v5768 = vld [vmem:[%s5752 + $0x3c] sm:$0xf]
      %v5769 = vld [vmem:[%s5752 + $0x40] sm:$0xf]
      %v5770 = vld [vmem:[%s5752 + $0x44] sm:$0xf]
      %v5771 = vld [vmem:[%s5752 + $0x48] sm:$0xf]
      %v5772 = vld [vmem:[%s5752 + $0x4c] sm:$0xf]
      %v5773 = vld [vmem:[%s5752 + $0x50] sm:$0xf]
      %v5774 = vld [vmem:[%s5752 + $0x54] sm:$0xf]
      %v5775 = vld [vmem:[%s5752 + $0x58] sm:$0xf]
      %v5776 = vld [vmem:[%s5752 + $0x5c] sm:$0xf]
      %v5777 = vld [vmem:[%s5752 + $0x60] sm:$0xf]
      %v5778 = vld [vmem:[%s5752 + $0x64] sm:$0xf]
      %v5779 = vld [vmem:[%s5752 + $0x68] sm:$0xf]
      %v5780 = vld [vmem:[%s5752 + $0x6c] sm:$0xf]
      %v5781 = vld [vmem:[%s5752 + $0x70] sm:$0xf]
      %v5782 = vld [vmem:[%s5752 + $0x74] sm:$0xf]
      %v5783 = vld [vmem:[%s5752 + $0x78] sm:$0xf]
      %v5784 = vld [vmem:[%s5752 + $0x7c] sm:$0xf]
      %s5785 = scalar_lea.vmem %s7, 128
      %v5786 = vld [vmem:[%s5785] sm:$0xf]
      %v5787 = vld [vmem:[%s5785 + $0x4] sm:$0xf]
      %v5788 = vld [vmem:[%s5785 + $0x8] sm:$0xf]
      %v5789 = vld [vmem:[%s5785 + $0xc] sm:$0xf]
      %v5790 = vld [vmem:[%s5785 + $0x10] sm:$0xf]
      %v5791 = vld [vmem:[%s5785 + $0x14] sm:$0xf]
      %v5792 = vld [vmem:[%s5785 + $0x18] sm:$0xf]
      %v5793 = vld [vmem:[%s5785 + $0x1c] sm:$0xf]
      %v5794 = vld [vmem:[%s5785 + $0x20] sm:$0xf]
      %v5795 = vld [vmem:[%s5785 + $0x24] sm:$0xf]
      %v5796 = vld [vmem:[%s5785 + $0x28] sm:$0xf]
      %v5797 = vld [vmem:[%s5785 + $0x2c] sm:$0xf]
      %v5798 = vld [vmem:[%s5785 + $0x30] sm:$0xf]
      %v5799 = vld [vmem:[%s5785 + $0x34] sm:$0xf]
      %v5800 = vld [vmem:[%s5785 + $0x38] sm:$0xf]
      %v5801 = vld [vmem:[%s5785 + $0x3c] sm:$0xf]
      %v5802 = vld [vmem:[%s5785 + $0x40] sm:$0xf]
      %v5803 = vld [vmem:[%s5785 + $0x44] sm:$0xf]
      %v5804 = vld [vmem:[%s5785 + $0x48] sm:$0xf]
      %v5805 = vld [vmem:[%s5785 + $0x4c] sm:$0xf]
      %v5806 = vld [vmem:[%s5785 + $0x50] sm:$0xf]
      %v5807 = vld [vmem:[%s5785 + $0x54] sm:$0xf]
      %v5808 = vld [vmem:[%s5785 + $0x58] sm:$0xf]
      %v5809 = vld [vmem:[%s5785 + $0x5c] sm:$0xf]
      %v5810 = vld [vmem:[%s5785 + $0x60] sm:$0xf]
      %v5811 = vld [vmem:[%s5785 + $0x64] sm:$0xf]
      %v5812 = vld [vmem:[%s5785 + $0x68] sm:$0xf]
      %v5813 = vld [vmem:[%s5785 + $0x6c] sm:$0xf]
      %v5814 = vld [vmem:[%s5785 + $0x70] sm:$0xf]
      %v5815 = vld [vmem:[%s5785 + $0x74] sm:$0xf]
      %v5816 = vld [vmem:[%s5785 + $0x78] sm:$0xf]
      %v5817 = vld [vmem:[%s5785 + $0x7c] sm:$0xf]
      %v5819 = vshrl.u32 %v5217, 16
      %v5821 = vrot.slane %v5819, 1
      %v5822 = vshll.u32 %v5217, 16
      %v5824 = vrot.slane %v5822, 2
      %v5825 = vor.u32 %v5821, %v5824
      %v5827 = vshrl.u32 %v5218, 16
      %v5829 = vrot.slane %v5827, 1
      %v5830 = vshll.u32 %v5218, 16
      %v5832 = vrot.slane %v5830, 2
      %v5833 = vor.u32 %v5829, %v5832
      %v5868 = vunpack.c.l.b16 %v5786
      %v5869 = vunpack.c.l.b16 %v5787
      %v5870 = vunpack.c.l.b16 %v5788
      %v5871 = vunpack.c.l.b16 %v5789
      %v5872 = vunpack.c.l.b16 %v5790
      %v5873 = vunpack.c.l.b16 %v5791
      %v5874 = vunpack.c.l.b16 %v5792
      %v5875 = vunpack.c.l.b16 %v5793
      %v5876 = vunpack.c.l.b16 %v5794
      %v5877 = vunpack.c.l.b16 %v5795
      %v5878 = vunpack.c.l.b16 %v5796
      %v5879 = vunpack.c.l.b16 %v5797
      %v5880 = vunpack.c.l.b16 %v5798
      %v5881 = vunpack.c.l.b16 %v5799
      %v5882 = vunpack.c.l.b16 %v5800
      %v5883 = vunpack.c.l.b16 %v5801
      %v5884 = vunpack.c.l.b16 %v5802
      %v5885 = vunpack.c.l.b16 %v5803
      %v5886 = vunpack.c.l.b16 %v5804
      %v5887 = vunpack.c.l.b16 %v5805
      %v5888 = vunpack.c.l.b16 %v5806
      %v5889 = vunpack.c.l.b16 %v5807
      %v5890 = vunpack.c.l.b16 %v5808
      %v5891 = vunpack.c.l.b16 %v5809
      %v5892 = vunpack.c.l.b16 %v5810
      %v5893 = vunpack.c.l.b16 %v5811
      %v5894 = vunpack.c.l.b16 %v5812
      %v5895 = vunpack.c.l.b16 %v5813
      %v5896 = vunpack.c.l.b16 %v5814
      %v5897 = vunpack.c.l.b16 %v5815
      %v5898 = vunpack.c.l.b16 %v5816
      %v5899 = vunpack.c.l.b16 %v5817
      %v5900 = vpack.c.b16 %v5869, %v5868
      %v5901 = vpack.c.b16 %v5871, %v5870
      %v5902 = vpack.c.b16 %v5873, %v5872
      %v5903 = vpack.c.b16 %v5875, %v5874
      %v5904 = vpack.c.b16 %v5877, %v5876
      %v5905 = vpack.c.b16 %v5879, %v5878
      %v5906 = vpack.c.b16 %v5881, %v5880
      %v5907 = vpack.c.b16 %v5883, %v5882
      %v5908 = vpack.c.b16 %v5885, %v5884
      %v5909 = vpack.c.b16 %v5887, %v5886
      %v5910 = vpack.c.b16 %v5889, %v5888
      %v5911 = vpack.c.b16 %v5891, %v5890
      %v5912 = vpack.c.b16 %v5893, %v5892
      %v5913 = vpack.c.b16 %v5895, %v5894
      %v5914 = vpack.c.b16 %v5897, %v5896
      %v5915 = vpack.c.b16 %v5899, %v5898
      %5932 = vmatprep.subr.bf16.mxu0 0
      %5933 = vmatpush1.bf16.msra.mxu0 %v5900
      %5934 = vmatprep.subr.bf16.mxu0 0
      %5935 = vmatpush1.bf16.msra.mxu0 %v5901
      %5936 = vmatprep.subr.bf16.mxu0 0
      %5937 = vmatpush1.bf16.msra.mxu0 %v5902
      %5938 = vmatprep.subr.bf16.mxu0 0
      %5939 = vmatpush1.bf16.msra.mxu0 %v5903
      %5940 = vmatprep.subr.bf16.mxu0 0
      %5941 = vmatpush1.bf16.msra.mxu0 %v5904
      %5942 = vmatprep.subr.bf16.mxu0 0
      %5943 = vmatpush1.bf16.msra.mxu0 %v5905
      %5944 = vmatprep.subr.bf16.mxu0 0
      %5945 = vmatpush1.bf16.msra.mxu0 %v5906
      %5946 = vmatprep.subr.bf16.mxu0 0
      %5947 = vmatpush1.bf16.msra.mxu0 %v5907
      %5948 = vmatprep.subr.bf16.mxu0 0
      %5949 = vmatpush1.bf16.msra.mxu0 %v5908
      %5950 = vmatprep.subr.bf16.mxu0 0
      %5951 = vmatpush1.bf16.msra.mxu0 %v5909
      %5952 = vmatprep.subr.bf16.mxu0 0
      %5953 = vmatpush1.bf16.msra.mxu0 %v5910
      %5954 = vmatprep.subr.bf16.mxu0 0
      %5955 = vmatpush1.bf16.msra.mxu0 %v5911
      %5956 = vmatprep.subr.bf16.mxu0 0
      %5957 = vmatpush1.bf16.msra.mxu0 %v5912
      %5958 = vmatprep.subr.bf16.mxu0 0
      %5959 = vmatpush1.bf16.msra.mxu0 %v5913
      %5960 = vmatprep.subr.bf16.mxu0 0
      %5961 = vmatpush1.bf16.msra.mxu0 %v5914
      %5962 = vmatprep.subr.bf16.mxu0 0
      %5963 = vmatpush1.bf16.msra.mxu0 %v5915
      %5964 = vmatprep.mubr.bf16.mxu0 %v5833
      %5965 = vmatmul.mubr.bf16.gmra.mrb[0].mxu0 %v5825
      %v5966 = vpop.f32.mrb[0].mxu0
      %v5967 = vadd.f32 0.0, %v5966
      %v5968 = vpop.f32.mrb[0].mxu0
      %v5969 = vpop.f32.mrb[0].mxu0
      %v5970 = vpop.f32.mrb[0].mxu0
      %5971 = vdwg.mxu0
      %v6004 = vunpack.c.l.b16 %v5753
      %v6005 = vunpack.c.l.b16 %v5754
      %v6006 = vunpack.c.l.b16 %v5755
      %v6007 = vunpack.c.l.b16 %v5756
      %v6008 = vunpack.c.l.b16 %v5757
      %v6009 = vunpack.c.l.b16 %v5758
      %v6010 = vunpack.c.l.b16 %v5759
      %v6011 = vunpack.c.l.b16 %v5760
      %v6012 = vunpack.c.l.b16 %v5761
      %v6013 = vunpack.c.l.b16 %v5762
      %v6014 = vunpack.c.l.b16 %v5763
      %v6015 = vunpack.c.l.b16 %v5764
      %v6016 = vunpack.c.l.b16 %v5765
      %v6017 = vunpack.c.l.b16 %v5766
      %v6018 = vunpack.c.l.b16 %v5767
      %v6019 = vunpack.c.l.b16 %v5768
      %v6020 = vunpack.c.l.b16 %v5769
      %v6021 = vunpack.c.l.b16 %v5770
      %v6022 = vunpack.c.l.b16 %v5771
      %v6023 = vunpack.c.l.b16 %v5772
      %v6024 = vunpack.c.l.b16 %v5773
      %v6025 = vunpack.c.l.b16 %v5774
      %v6026 = vunpack.c.l.b16 %v5775
      %v6027 = vunpack.c.l.b16 %v5776
      %v6028 = vunpack.c.l.b16 %v5777
      %v6029 = vunpack.c.l.b16 %v5778
      %v6030 = vunpack.c.l.b16 %v5779
      %v6031 = vunpack.c.l.b16 %v5780
      %v6032 = vunpack.c.l.b16 %v5781
      %v6033 = vunpack.c.l.b16 %v5782
      %v6034 = vunpack.c.l.b16 %v5783
      %v6035 = vunpack.c.l.b16 %v5784
      %v6036 = vpack.c.b16 %v6005, %v6004
      %v6037 = vpack.c.b16 %v6007, %v6006
      %v6038 = vpack.c.b16 %v6009, %v6008
      %v6039 = vpack.c.b16 %v6011, %v6010
      %v6040 = vpack.c.b16 %v6013, %v6012
      %v6041 = vpack.c.b16 %v6015, %v6014
      %v6042 = vpack.c.b16 %v6017, %v6016
      %v6043 = vpack.c.b16 %v6019, %v6018
      %v6044 = vpack.c.b16 %v6021, %v6020
      %v6045 = vpack.c.b16 %v6023, %v6022
      %v6046 = vpack.c.b16 %v6025, %v6024
      %v6047 = vpack.c.b16 %v6027, %v6026
      %v6048 = vpack.c.b16 %v6029, %v6028
      %v6049 = vpack.c.b16 %v6031, %v6030
      %v6050 = vpack.c.b16 %v6033, %v6032
      %v6051 = vpack.c.b16 %v6035, %v6034
      %6068 = vmatprep.subr.bf16.mxu0 0
      %6069 = vmatpush1.bf16.msra.mxu0 %v6036
      %6070 = vmatprep.subr.bf16.mxu0 0
      %6071 = vmatpush1.bf16.msra.mxu0 %v6037
      %6072 = vmatprep.subr.bf16.mxu0 0
      %6073 = vmatpush1.bf16.msra.mxu0 %v6038
      %6074 = vmatprep.subr.bf16.mxu0 0
      %6075 = vmatpush1.bf16.msra.mxu0 %v6039
      %6076 = vmatprep.subr.bf16.mxu0 0
      %6077 = vmatpush1.bf16.msra.mxu0 %v6040
      %6078 = vmatprep.subr.bf16.mxu0 0
      %6079 = vmatpush1.bf16.msra.mxu0 %v6041
      %6080 = vmatprep.subr.bf16.mxu0 0
      %6081 = vmatpush1.bf16.msra.mxu0 %v6042
      %6082 = vmatprep.subr.bf16.mxu0 0
      %6083 = vmatpush1.bf16.msra.mxu0 %v6043
      %6084 = vmatprep.subr.bf16.mxu0 0
      %6085 = vmatpush1.bf16.msra.mxu0 %v6044
      %6086 = vmatprep.subr.bf16.mxu0 0
      %6087 = vmatpush1.bf16.msra.mxu0 %v6045
      %6088 = vmatprep.subr.bf16.mxu0 0
      %6089 = vmatpush1.bf16.msra.mxu0 %v6046
      %6090 = vmatprep.subr.bf16.mxu0 0
      %6091 = vmatpush1.bf16.msra.mxu0 %v6047
      %6092 = vmatprep.subr.bf16.mxu0 0
      %6093 = vmatpush1.bf16.msra.mxu0 %v6048
      %6094 = vmatprep.subr.bf16.mxu0 0
      %6095 = vmatpush1.bf16.msra.mxu0 %v6049
      %6096 = vmatprep.subr.bf16.mxu0 0
      %6097 = vmatpush1.bf16.msra.mxu0 %v6050
      %6098 = vmatprep.subr.bf16.mxu0 0
      %6099 = vmatpush1.bf16.msra.mxu0 %v6051
      %6100 = vmatprep.mubr.bf16.mxu0 %v5216
      %6101 = vmatmul.mubr.bf16.gmra.mrb[0].mxu0 %v5215
      %v6102 = vpop.f32.mrb[0].mxu0
      %v6103 = vadd.f32 %v5967, %v6102
      %v6104 = vpop.f32.mrb[0].mxu0
      %v6105 = vpop.f32.mrb[0].mxu0
      %v6106 = vpop.f32.mrb[0].mxu0
      %6107 = vdwg.mxu0
      %v6108 = vadd.f32 %v6103, %v5257
      %v6109 = vmax.f32 %v6108, 0.0
      %s6110 = scalar_lea.vmem %s7, 1024
      %v6111 = vld [vmem:[%s6110] sm:$0xf]
      %v6112 = vld [vmem:[%s6110 + $0x4] sm:$0xf]
      %v6113 = vld [vmem:[%s6110 + $0x8] sm:$0xf]
      %v6114 = vld [vmem:[%s6110 + $0xc] sm:$0xf]
      %v6115 = vld [vmem:[%s6110 + $0x10] sm:$0xf]
      %v6116 = vld [vmem:[%s6110 + $0x14] sm:$0xf]
      %v6117 = vld [vmem:[%s6110 + $0x18] sm:$0xf]
      %v6118 = vld [vmem:[%s6110 + $0x1c] sm:$0xf]
      %v6119 = vld [vmem:[%s6110 + $0x20] sm:$0xf]
      %v6120 = vld [vmem:[%s6110 + $0x24] sm:$0xf]
      %v6121 = vld [vmem:[%s6110 + $0x28] sm:$0xf]
      %v6122 = vld [vmem:[%s6110 + $0x2c] sm:$0xf]
      %v6123 = vld [vmem:[%s6110 + $0x30] sm:$0xf]
      %v6124 = vld [vmem:[%s6110 + $0x34] sm:$0xf]
      %v6125 = vld [vmem:[%s6110 + $0x38] sm:$0xf]
      %v6126 = vld [vmem:[%s6110 + $0x3c] sm:$0xf]
      %v6127 = vld [vmem:[%s6110 + $0x40] sm:$0xf]
      %v6128 = vld [vmem:[%s6110 + $0x44] sm:$0xf]
      %v6129 = vld [vmem:[%s6110 + $0x48] sm:$0xf]
      %v6130 = vld [vmem:[%s6110 + $0x4c] sm:$0xf]
      %v6131 = vld [vmem:[%s6110 + $0x50] sm:$0xf]
      %v6132 = vld [vmem:[%s6110 + $0x54] sm:$0xf]
      %v6133 = vld [vmem:[%s6110 + $0x58] sm:$0xf]
      %v6134 = vld [vmem:[%s6110 + $0x5c] sm:$0xf]
      %v6135 = vld [vmem:[%s6110 + $0x60] sm:$0xf]
      %v6136 = vld [vmem:[%s6110 + $0x64] sm:$0xf]
      %v6137 = vld [vmem:[%s6110 + $0x68] sm:$0xf]
      %v6138 = vld [vmem:[%s6110 + $0x6c] sm:$0xf]
      %v6139 = vld [vmem:[%s6110 + $0x70] sm:$0xf]
      %v6140 = vld [vmem:[%s6110 + $0x74] sm:$0xf]
      %v6141 = vld [vmem:[%s6110 + $0x78] sm:$0xf]
      %v6142 = vld [vmem:[%s6110 + $0x7c] sm:$0xf]
      %s6143 = scalar_lea.vmem %s7, 768
      %v6144 = vld [vmem:[%s6143] sm:$0xf]
      %v6145 = vld [vmem:[%s6143 + $0x4] sm:$0xf]
      %v6146 = vld [vmem:[%s6143 + $0x8] sm:$0xf]
      %v6147 = vld [vmem:[%s6143 + $0xc] sm:$0xf]
      %v6148 = vld [vmem:[%s6143 + $0x10] sm:$0xf]
      %v6149 = vld [vmem:[%s6143 + $0x14] sm:$0xf]
      %v6150 = vld [vmem:[%s6143 + $0x18] sm:$0xf]
      %v6151 = vld [vmem:[%s6143 + $0x1c] sm:$0xf]
      %v6152 = vld [vmem:[%s6143 + $0x20] sm:$0xf]
      %v6153 = vld [vmem:[%s6143 + $0x24] sm:$0xf]
      %v6154 = vld [vmem:[%s6143 + $0x28] sm:$0xf]
      %v6155 = vld [vmem:[%s6143 + $0x2c] sm:$0xf]
      %v6156 = vld [vmem:[%s6143 + $0x30] sm:$0xf]
      %v6157 = vld [vmem:[%s6143 + $0x34] sm:$0xf]
      %v6158 = vld [vmem:[%s6143 + $0x38] sm:$0xf]
      %v6159 = vld [vmem:[%s6143 + $0x3c] sm:$0xf]
      %v6160 = vld [vmem:[%s6143 + $0x40] sm:$0xf]
      %v6161 = vld [vmem:[%s6143 + $0x44] sm:$0xf]
      %v6162 = vld [vmem:[%s6143 + $0x48] sm:$0xf]
      %v6163 = vld [vmem:[%s6143 + $0x4c] sm:$0xf]
      %v6164 = vld [vmem:[%s6143 + $0x50] sm:$0xf]
      %v6165 = vld [vmem:[%s6143 + $0x54] sm:$0xf]
      %v6166 = vld [vmem:[%s6143 + $0x58] sm:$0xf]
      %v6167 = vld [vmem:[%s6143 + $0x5c] sm:$0xf]
      %v6168 = vld [vmem:[%s6143 + $0x60] sm:$0xf]
      %v6169 = vld [vmem:[%s6143 + $0x64] sm:$0xf]
      %v6170 = vld [vmem:[%s6143 + $0x68] sm:$0xf]
      %v6171 = vld [vmem:[%s6143 + $0x6c] sm:$0xf]
      %v6172 = vld [vmem:[%s6143 + $0x70] sm:$0xf]
      %v6173 = vld [vmem:[%s6143 + $0x74] sm:$0xf]
      %v6174 = vld [vmem:[%s6143 + $0x78] sm:$0xf]
      %v6175 = vld [vmem:[%s6143 + $0x7c] sm:$0xf]
      %v6208 = vunpack.c.l.b16 %v6144
      %v6209 = vunpack.c.l.b16 %v6145
      %v6210 = vunpack.c.l.b16 %v6146
      %v6211 = vunpack.c.l.b16 %v6147
      %v6212 = vunpack.c.l.b16 %v6148
      %v6213 = vunpack.c.l.b16 %v6149
      %v6214 = vunpack.c.l.b16 %v6150
      %v6215 = vunpack.c.l.b16 %v6151
      %v6216 = vunpack.c.l.b16 %v6152
      %v6217 = vunpack.c.l.b16 %v6153
      %v6218 = vunpack.c.l.b16 %v6154
      %v6219 = vunpack.c.l.b16 %v6155
      %v6220 = vunpack.c.l.b16 %v6156
      %v6221 = vunpack.c.l.b16 %v6157
      %v6222 = vunpack.c.l.b16 %v6158
      %v6223 = vunpack.c.l.b16 %v6159
      %v6224 = vunpack.c.l.b16 %v6160
      %v6225 = vunpack.c.l.b16 %v6161
      %v6226 = vunpack.c.l.b16 %v6162
      %v6227 = vunpack.c.l.b16 %v6163
      %v6228 = vunpack.c.l.b16 %v6164
      %v6229 = vunpack.c.l.b16 %v6165
      %v6230 = vunpack.c.l.b16 %v6166
      %v6231 = vunpack.c.l.b16 %v6167
      %v6232 = vunpack.c.l.b16 %v6168
      %v6233 = vunpack.c.l.b16 %v6169
      %v6234 = vunpack.c.l.b16 %v6170
      %v6235 = vunpack.c.l.b16 %v6171
      %v6236 = vunpack.c.l.b16 %v6172
      %v6237 = vunpack.c.l.b16 %v6173
      %v6238 = vunpack.c.l.b16 %v6174
      %v6239 = vunpack.c.l.b16 %v6175
      %v6240 = vpack.c.b16 %v6209, %v6208
      %v6241 = vpack.c.b16 %v6211, %v6210
      %v6242 = vpack.c.b16 %v6213, %v6212
      %v6243 = vpack.c.b16 %v6215, %v6214
      %v6244 = vpack.c.b16 %v6217, %v6216
      %v6245 = vpack.c.b16 %v6219, %v6218
      %v6246 = vpack.c.b16 %v6221, %v6220
      %v6247 = vpack.c.b16 %v6223, %v6222
      %v6248 = vpack.c.b16 %v6225, %v6224
      %v6249 = vpack.c.b16 %v6227, %v6226
      %v6250 = vpack.c.b16 %v6229, %v6228
      %v6251 = vpack.c.b16 %v6231, %v6230
      %v6252 = vpack.c.b16 %v6233, %v6232
      %v6253 = vpack.c.b16 %v6235, %v6234
      %v6254 = vpack.c.b16 %v6237, %v6236
      %v6255 = vpack.c.b16 %v6239, %v6238
      %6272 = vmatprep.subr.bf16.mxu0 0
      %6273 = vmatpush1.bf16.msra.mxu0 %v6240
      %6274 = vmatprep.subr.bf16.mxu0 0
      %6275 = vmatpush1.bf16.msra.mxu0 %v6241
      %6276 = vmatprep.subr.bf16.mxu0 0
      %6277 = vmatpush1.bf16.msra.mxu0 %v6242
      %6278 = vmatprep.subr.bf16.mxu0 0
      %6279 = vmatpush1.bf16.msra.mxu0 %v6243
      %6280 = vmatprep.subr.bf16.mxu0 0
      %6281 = vmatpush1.bf16.msra.mxu0 %v6244
      %6282 = vmatprep.subr.bf16.mxu0 0
      %6283 = vmatpush1.bf16.msra.mxu0 %v6245
      %6284 = vmatprep.subr.bf16.mxu0 0
      %6285 = vmatpush1.bf16.msra.mxu0 %v6246
      %6286 = vmatprep.subr.bf16.mxu0 0
      %6287 = vmatpush1.bf16.msra.mxu0 %v6247
      %6288 = vmatprep.subr.bf16.mxu0 0
      %6289 = vmatpush1.bf16.msra.mxu0 %v6248
      %6290 = vmatprep.subr.bf16.mxu0 0
      %6291 = vmatpush1.bf16.msra.mxu0 %v6249
      %6292 = vmatprep.subr.bf16.mxu0 0
      %6293 = vmatpush1.bf16.msra.mxu0 %v6250
      %6294 = vmatprep.subr.bf16.mxu0 0
      %6295 = vmatpush1.bf16.msra.mxu0 %v6251
      %6296 = vmatprep.subr.bf16.mxu0 0
      %6297 = vmatpush1.bf16.msra.mxu0 %v6252
      %6298 = vmatprep.subr.bf16.mxu0 0
      %6299 = vmatpush1.bf16.msra.mxu0 %v6253
      %6300 = vmatprep.subr.bf16.mxu0 0
      %6301 = vmatpush1.bf16.msra.mxu0 %v6254
      %6302 = vmatprep.subr.bf16.mxu0 0
      %6303 = vmatpush1.bf16.msra.mxu0 %v6255
      %6304 = vmatprep.mubr.bf16.mxu0 %v5475
      %6305 = vmatmul.mubr.bf16.gmra.mrb[0].mxu0 %v5468
      %v6306 = vpop.f32.mrb[0].mxu0
      %v6307 = vadd.f32 0.0, %v6306
      %v6308 = vpop.f32.mrb[0].mxu0
      %v6309 = vpop.f32.mrb[0].mxu0
      %v6310 = vpop.f32.mrb[0].mxu0
      %6311 = vdwg.mxu0
      %v6344 = vunpack.c.l.b16 %v6111
      %v6345 = vunpack.c.l.b16 %v6112
      %v6346 = vunpack.c.l.b16 %v6113
      %v6347 = vunpack.c.l.b16 %v6114
      %v6348 = vunpack.c.l.b16 %v6115
      %v6349 = vunpack.c.l.b16 %v6116
      %v6350 = vunpack.c.l.b16 %v6117
      %v6351 = vunpack.c.l.b16 %v6118
      %v6352 = vunpack.c.l.b16 %v6119
      %v6353 = vunpack.c.l.b16 %v6120
      %v6354 = vunpack.c.l.b16 %v6121
      %v6355 = vunpack.c.l.b16 %v6122
      %v6356 = vunpack.c.l.b16 %v6123
      %v6357 = vunpack.c.l.b16 %v6124
      %v6358 = vunpack.c.l.b16 %v6125
      %v6359 = vunpack.c.l.b16 %v6126
      %v6360 = vunpack.c.l.b16 %v6127
      %v6361 = vunpack.c.l.b16 %v6128
      %v6362 = vunpack.c.l.b16 %v6129
      %v6363 = vunpack.c.l.b16 %v6130
      %v6364 = vunpack.c.l.b16 %v6131
      %v6365 = vunpack.c.l.b16 %v6132
      %v6366 = vunpack.c.l.b16 %v6133
      %v6367 = vunpack.c.l.b16 %v6134
      %v6368 = vunpack.c.l.b16 %v6135
      %v6369 = vunpack.c.l.b16 %v6136
      %v6370 = vunpack.c.l.b16 %v6137
      %v6371 = vunpack.c.l.b16 %v6138
      %v6372 = vunpack.c.l.b16 %v6139
      %v6373 = vunpack.c.l.b16 %v6140
      %v6374 = vunpack.c.l.b16 %v6141
      %v6375 = vunpack.c.l.b16 %v6142
      %v6376 = vpack.c.b16 %v6345, %v6344
      %v6377 = vpack.c.b16 %v6347, %v6346
      %v6378 = vpack.c.b16 %v6349, %v6348
      %v6379 = vpack.c.b16 %v6351, %v6350
      %v6380 = vpack.c.b16 %v6353, %v6352
      %v6381 = vpack.c.b16 %v6355, %v6354
      %v6382 = vpack.c.b16 %v6357, %v6356
      %v6383 = vpack.c.b16 %v6359, %v6358
      %v6384 = vpack.c.b16 %v6361, %v6360
      %v6385 = vpack.c.b16 %v6363, %v6362
      %v6386 = vpack.c.b16 %v6365, %v6364
      %v6387 = vpack.c.b16 %v6367, %v6366
      %v6388 = vpack.c.b16 %v6369, %v6368
      %v6389 = vpack.c.b16 %v6371, %v6370
      %v6390 = vpack.c.b16 %v6373, %v6372
      %v6391 = vpack.c.b16 %v6375, %v6374
      %6408 = vmatprep.subr.bf16.mxu0 0
      %6409 = vmatpush1.bf16.msra.mxu0 %v6376
      %6410 = vmatprep.subr.bf16.mxu0 0
      %6411 = vmatpush1.bf16.msra.mxu0 %v6377
      %6412 = vmatprep.subr.bf16.mxu0 0
      %6413 = vmatpush1.bf16.msra.mxu0 %v6378
      %6414 = vmatprep.subr.bf16.mxu0 0
      %6415 = vmatpush1.bf16.msra.mxu0 %v6379
      %6416 = vmatprep.subr.bf16.mxu0 0
      %6417 = vmatpush1.bf16.msra.mxu0 %v6380
      %6418 = vmatprep.subr.bf16.mxu0 0
      %6419 = vmatpush1.bf16.msra.mxu0 %v6381
      %6420 = vmatprep.subr.bf16.mxu0 0
      %6421 = vmatpush1.bf16.msra.mxu0 %v6382
      %6422 = vmatprep.subr.bf16.mxu0 0
      %6423 = vmatpush1.bf16.msra.mxu0 %v6383
      %6424 = vmatprep.subr.bf16.mxu0 0
      %6425 = vmatpush1.bf16.msra.mxu0 %v6384
      %6426 = vmatprep.subr.bf16.mxu0 0
      %6427 = vmatpush1.bf16.msra.mxu0 %v6385
      %6428 = vmatprep.subr.bf16.mxu0 0
      %6429 = vmatpush1.bf16.msra.mxu0 %v6386
      %6430 = vmatprep.subr.bf16.mxu0 0
      %6431 = vmatpush1.bf16.msra.mxu0 %v6387
      %6432 = vmatprep.subr.bf16.mxu0 0
      %6433 = vmatpush1.bf16.msra.mxu0 %v6388
      %6434 = vmatprep.subr.bf16.mxu0 0
      %6435 = vmatpush1.bf16.msra.mxu0 %v6389
      %6436 = vmatprep.subr.bf16.mxu0 0
      %6437 = vmatpush1.bf16.msra.mxu0 %v6390
      %6438 = vmatprep.subr.bf16.mxu0 0
      %6439 = vmatpush1.bf16.msra.mxu0 %v6391
      %6440 = vmatprep.mubr.bf16.mxu0 %v5216
      %6441 = vmatmul.mubr.bf16.gmra.mrb[0].mxu0 %v5215
      %v6442 = vpop.f32.mrb[0].mxu0
      %v6443 = vadd.f32 %v6307, %v6442
      %v6444 = vpop.f32.mrb[0].mxu0
      %v6445 = vpop.f32.mrb[0].mxu0
      %v6446 = vpop.f32.mrb[0].mxu0
      %6447 = vdwg.mxu0
      %s6448 = scalar_lea.vmem %s7, 256
      %v6449 = vld [vmem:[%s6448] sm:$0xf]
      %v6450 = vld [vmem:[%s6448 + $0x4] sm:$0xf]
      %v6451 = vld [vmem:[%s6448 + $0x8] sm:$0xf]
      %v6452 = vld [vmem:[%s6448 + $0xc] sm:$0xf]
      %v6453 = vld [vmem:[%s6448 + $0x10] sm:$0xf]
      %v6454 = vld [vmem:[%s6448 + $0x14] sm:$0xf]
      %v6455 = vld [vmem:[%s6448 + $0x18] sm:$0xf]
      %v6456 = vld [vmem:[%s6448 + $0x1c] sm:$0xf]
      %v6457 = vld [vmem:[%s6448 + $0x20] sm:$0xf]
      %v6458 = vld [vmem:[%s6448 + $0x24] sm:$0xf]
      %v6459 = vld [vmem:[%s6448 + $0x28] sm:$0xf]
      %v6460 = vld [vmem:[%s6448 + $0x2c] sm:$0xf]
      %v6461 = vld [vmem:[%s6448 + $0x30] sm:$0xf]
      %v6462 = vld [vmem:[%s6448 + $0x34] sm:$0xf]
      %v6463 = vld [vmem:[%s6448 + $0x38] sm:$0xf]
      %v6464 = vld [vmem:[%s6448 + $0x3c] sm:$0xf]
      %v6465 = vld [vmem:[%s6448 + $0x40] sm:$0xf]
      %v6466 = vld [vmem:[%s6448 + $0x44] sm:$0xf]
      %v6467 = vld [vmem:[%s6448 + $0x48] sm:$0xf]
      %v6468 = vld [vmem:[%s6448 + $0x4c] sm:$0xf]
      %v6469 = vld [vmem:[%s6448 + $0x50] sm:$0xf]
      %v6470 = vld [vmem:[%s6448 + $0x54] sm:$0xf]
      %v6471 = vld [vmem:[%s6448 + $0x58] sm:$0xf]
      %v6472 = vld [vmem:[%s6448 + $0x5c] sm:$0xf]
      %v6473 = vld [vmem:[%s6448 + $0x60] sm:$0xf]
      %v6474 = vld [vmem:[%s6448 + $0x64] sm:$0xf]
      %v6475 = vld [vmem:[%s6448 + $0x68] sm:$0xf]
      %v6476 = vld [vmem:[%s6448 + $0x6c] sm:$0xf]
      %v6477 = vld [vmem:[%s6448 + $0x70] sm:$0xf]
      %v6478 = vld [vmem:[%s6448 + $0x74] sm:$0xf]
      %v6479 = vld [vmem:[%s6448 + $0x78] sm:$0xf]
      %v6480 = vld [vmem:[%s6448 + $0x7c] sm:$0xf]
      %v6513 = vunpack.c.l.b16 %v6449
      %v6514 = vunpack.c.l.b16 %v6450
      %v6515 = vunpack.c.l.b16 %v6451
      %v6516 = vunpack.c.l.b16 %v6452
      %v6517 = vunpack.c.l.b16 %v6453
      %v6518 = vunpack.c.l.b16 %v6454
      %v6519 = vunpack.c.l.b16 %v6455
      %v6520 = vunpack.c.l.b16 %v6456
      %v6521 = vunpack.c.l.b16 %v6457
      %v6522 = vunpack.c.l.b16 %v6458
      %v6523 = vunpack.c.l.b16 %v6459
      %v6524 = vunpack.c.l.b16 %v6460
      %v6525 = vunpack.c.l.b16 %v6461
      %v6526 = vunpack.c.l.b16 %v6462
      %v6527 = vunpack.c.l.b16 %v6463
      %v6528 = vunpack.c.l.b16 %v6464
      %v6529 = vunpack.c.l.b16 %v6465
      %v6530 = vunpack.c.l.b16 %v6466
      %v6531 = vunpack.c.l.b16 %v6467
      %v6532 = vunpack.c.l.b16 %v6468
      %v6533 = vunpack.c.l.b16 %v6469
      %v6534 = vunpack.c.l.b16 %v6470
      %v6535 = vunpack.c.l.b16 %v6471
      %v6536 = vunpack.c.l.b16 %v6472
      %v6537 = vunpack.c.l.b16 %v6473
      %v6538 = vunpack.c.l.b16 %v6474
      %v6539 = vunpack.c.l.b16 %v6475
      %v6540 = vunpack.c.l.b16 %v6476
      %v6541 = vunpack.c.l.b16 %v6477
      %v6542 = vunpack.c.l.b16 %v6478
      %v6543 = vunpack.c.l.b16 %v6479
      %v6544 = vunpack.c.l.b16 %v6480
      %v6545 = vpack.c.b16 %v6514, %v6513
      %v6546 = vpack.c.b16 %v6516, %v6515
      %v6547 = vpack.c.b16 %v6518, %v6517
      %v6548 = vpack.c.b16 %v6520, %v6519
      %v6549 = vpack.c.b16 %v6522, %v6521
      %v6550 = vpack.c.b16 %v6524, %v6523
      %v6551 = vpack.c.b16 %v6526, %v6525
      %v6552 = vpack.c.b16 %v6528, %v6527
      %v6553 = vpack.c.b16 %v6530, %v6529
      %v6554 = vpack.c.b16 %v6532, %v6531
      %v6555 = vpack.c.b16 %v6534, %v6533
      %v6556 = vpack.c.b16 %v6536, %v6535
      %v6557 = vpack.c.b16 %v6538, %v6537
      %v6558 = vpack.c.b16 %v6540, %v6539
      %v6559 = vpack.c.b16 %v6542, %v6541
      %v6560 = vpack.c.b16 %v6544, %v6543
      %6577 = vmatprep.subr.bf16.mxu0 0
      %6578 = vmatpush1.bf16.msra.mxu0 %v6545
      %6579 = vmatprep.subr.bf16.mxu0 0
      %6580 = vmatpush1.bf16.msra.mxu0 %v6546
      %6581 = vmatprep.subr.bf16.mxu0 0
      %6582 = vmatpush1.bf16.msra.mxu0 %v6547
      %6583 = vmatprep.subr.bf16.mxu0 0
      %6584 = vmatpush1.bf16.msra.mxu0 %v6548
      %6585 = vmatprep.subr.bf16.mxu0 0
      %6586 = vmatpush1.bf16.msra.mxu0 %v6549
      %6587 = vmatprep.subr.bf16.mxu0 0
      %6588 = vmatpush1.bf16.msra.mxu0 %v6550
      %6589 = vmatprep.subr.bf16.mxu0 0
      %6590 = vmatpush1.bf16.msra.mxu0 %v6551
      %6591 = vmatprep.subr.bf16.mxu0 0
      %6592 = vmatpush1.bf16.msra.mxu0 %v6552
      %6593 = vmatprep.subr.bf16.mxu0 0
      %6594 = vmatpush1.bf16.msra.mxu0 %v6553
      %6595 = vmatprep.subr.bf16.mxu0 0
      %6596 = vmatpush1.bf16.msra.mxu0 %v6554
      %6597 = vmatprep.subr.bf16.mxu0 0
      %6598 = vmatpush1.bf16.msra.mxu0 %v6555
      %6599 = vmatprep.subr.bf16.mxu0 0
      %6600 = vmatpush1.bf16.msra.mxu0 %v6556
      %6601 = vmatprep.subr.bf16.mxu0 0
      %6602 = vmatpush1.bf16.msra.mxu0 %v6557
      %6603 = vmatprep.subr.bf16.mxu0 0
      %6604 = vmatpush1.bf16.msra.mxu0 %v6558
      %6605 = vmatprep.subr.bf16.mxu0 0
      %6606 = vmatpush1.bf16.msra.mxu0 %v6559
      %6607 = vmatprep.subr.bf16.mxu0 0
      %6608 = vmatpush1.bf16.msra.mxu0 %v6560
      %6609 = vmatprep.mubr.bf16.mxu0 %v5833
      %6610 = vmatmul.mubr.bf16.gmra.mrb[0].mxu0 %v5825
      %v6611 = vpop.f32.mrb[0].mxu0
      %v6612 = vadd.f32 0.0, %v6611
      %v6613 = vpop.f32.mrb[0].mxu0
      %v6614 = vpop.f32.mrb[0].mxu0
      %v6615 = vpop.f32.mrb[0].mxu0
      %6616 = vdwg.mxu0
      %v6617 = vadd.f32 %v6443, %v6612
      %v6618 = vld [vmem:[%s7] sm:$0xf]
      %v6619 = vld [vmem:[%s7 + $0x4] sm:$0xf]
      %v6620 = vld [vmem:[%s7 + $0x8] sm:$0xf]
      %v6621 = vld [vmem:[%s7 + $0xc] sm:$0xf]
      %v6622 = vld [vmem:[%s7 + $0x10] sm:$0xf]
      %v6623 = vld [vmem:[%s7 + $0x14] sm:$0xf]
      %v6624 = vld [vmem:[%s7 + $0x18] sm:$0xf]
      %v6625 = vld [vmem:[%s7 + $0x1c] sm:$0xf]
      %v6626 = vld [vmem:[%s7 + $0x20] sm:$0xf]
      %v6627 = vld [vmem:[%s7 + $0x24] sm:$0xf]
      %v6628 = vld [vmem:[%s7 + $0x28] sm:$0xf]
      %v6629 = vld [vmem:[%s7 + $0x2c] sm:$0xf]
      %v6630 = vld [vmem:[%s7 + $0x30] sm:$0xf]
      %v6631 = vld [vmem:[%s7 + $0x34] sm:$0xf]
      %v6632 = vld [vmem:[%s7 + $0x38] sm:$0xf]
      %v6633 = vld [vmem:[%s7 + $0x3c] sm:$0xf]
      %v6634 = vld [vmem:[%s7 + $0x40] sm:$0xf]
      %v6635 = vld [vmem:[%s7 + $0x44] sm:$0xf]
      %v6636 = vld [vmem:[%s7 + $0x48] sm:$0xf]
      %v6637 = vld [vmem:[%s7 + $0x4c] sm:$0xf]
      %v6638 = vld [vmem:[%s7 + $0x50] sm:$0xf]
      %v6639 = vld [vmem:[%s7 + $0x54] sm:$0xf]
      %v6640 = vld [vmem:[%s7 + $0x58] sm:$0xf]
      %v6641 = vld [vmem:[%s7 + $0x5c] sm:$0xf]
      %v6642 = vld [vmem:[%s7 + $0x60] sm:$0xf]
      %v6643 = vld [vmem:[%s7 + $0x64] sm:$0xf]
      %v6644 = vld [vmem:[%s7 + $0x68] sm:$0xf]
      %v6645 = vld [vmem:[%s7 + $0x6c] sm:$0xf]
      %v6646 = vld [vmem:[%s7 + $0x70] sm:$0xf]
      %v6647 = vld [vmem:[%s7 + $0x74] sm:$0xf]
      %v6648 = vld [vmem:[%s7 + $0x78] sm:$0xf]
      %v6649 = vld [vmem:[%s7 + $0x7c] sm:$0xf]
      %v6652 = vrot.slane %v5217, 2
      %v6653 = vrot.slane %v5218, 2
      %v6688 = vunpack.c.l.b16 %v6618
      %v6689 = vunpack.c.l.b16 %v6619
      %v6690 = vunpack.c.l.b16 %v6620
      %v6691 = vunpack.c.l.b16 %v6621
      %v6692 = vunpack.c.l.b16 %v6622
      %v6693 = vunpack.c.l.b16 %v6623
      %v6694 = vunpack.c.l.b16 %v6624
      %v6695 = vunpack.c.l.b16 %v6625
      %v6696 = vunpack.c.l.b16 %v6626
      %v6697 = vunpack.c.l.b16 %v6627
      %v6698 = vunpack.c.l.b16 %v6628
      %v6699 = vunpack.c.l.b16 %v6629
      %v6700 = vunpack.c.l.b16 %v6630
      %v6701 = vunpack.c.l.b16 %v6631
      %v6702 = vunpack.c.l.b16 %v6632
      %v6703 = vunpack.c.l.b16 %v6633
      %v6704 = vunpack.c.l.b16 %v6634
      %v6705 = vunpack.c.l.b16 %v6635
      %v6706 = vunpack.c.l.b16 %v6636
      %v6707 = vunpack.c.l.b16 %v6637
      %v6708 = vunpack.c.l.b16 %v6638
      %v6709 = vunpack.c.l.b16 %v6639
      %v6710 = vunpack.c.l.b16 %v6640
      %v6711 = vunpack.c.l.b16 %v6641
      %v6712 = vunpack.c.l.b16 %v6642
      %v6713 = vunpack.c.l.b16 %v6643
      %v6714 = vunpack.c.l.b16 %v6644
      %v6715 = vunpack.c.l.b16 %v6645
      %v6716 = vunpack.c.l.b16 %v6646
      %v6717 = vunpack.c.l.b16 %v6647
      %v6718 = vunpack.c.l.b16 %v6648
      %v6719 = vunpack.c.l.b16 %v6649
      %v6720 = vpack.c.b16 %v6689, %v6688
      %v6721 = vpack.c.b16 %v6691, %v6690
      %v6722 = vpack.c.b16 %v6693, %v6692
      %v6723 = vpack.c.b16 %v6695, %v6694
      %v6724 = vpack.c.b16 %v6697, %v6696
      %v6725 = vpack.c.b16 %v6699, %v6698
      %v6726 = vpack.c.b16 %v6701, %v6700
      %v6727 = vpack.c.b16 %v6703, %v6702
      %v6728 = vpack.c.b16 %v6705, %v6704
      %v6729 = vpack.c.b16 %v6707, %v6706
      %v6730 = vpack.c.b16 %v6709, %v6708
      %v6731 = vpack.c.b16 %v6711, %v6710
      %v6732 = vpack.c.b16 %v6713, %v6712
      %v6733 = vpack.c.b16 %v6715, %v6714
      %v6734 = vpack.c.b16 %v6717, %v6716
      %v6735 = vpack.c.b16 %v6719, %v6718
      %6752 = vmatprep.subr.bf16.mxu0 0
      %6753 = vmatpush1.bf16.msra.mxu0 %v6720
      %6754 = vmatprep.subr.bf16.mxu0 0
      %6755 = vmatpush1.bf16.msra.mxu0 %v6721
      %6756 = vmatprep.subr.bf16.mxu0 0
      %6757 = vmatpush1.bf16.msra.mxu0 %v6722
      %6758 = vmatprep.subr.bf16.mxu0 0
      %6759 = vmatpush1.bf16.msra.mxu0 %v6723
      %6760 = vmatprep.subr.bf16.mxu0 0
      %6761 = vmatpush1.bf16.msra.mxu0 %v6724
      %6762 = vmatprep.subr.bf16.mxu0 0
      %6763 = vmatpush1.bf16.msra.mxu0 %v6725
      %6764 = vmatprep.subr.bf16.mxu0 0
      %6765 = vmatpush1.bf16.msra.mxu0 %v6726
      %6766 = vmatprep.subr.bf16.mxu0 0
      %6767 = vmatpush1.bf16.msra.mxu0 %v6727
      %6768 = vmatprep.subr.bf16.mxu0 0
      %6769 = vmatpush1.bf16.msra.mxu0 %v6728
      %6770 = vmatprep.subr.bf16.mxu0 0
      %6771 = vmatpush1.bf16.msra.mxu0 %v6729
      %6772 = vmatprep.subr.bf16.mxu0 0
      %6773 = vmatpush1.bf16.msra.mxu0 %v6730
      %6774 = vmatprep.subr.bf16.mxu0 0
      %6775 = vmatpush1.bf16.msra.mxu0 %v6731
      %6776 = vmatprep.subr.bf16.mxu0 0
      %6777 = vmatpush1.bf16.msra.mxu0 %v6732
      %6778 = vmatprep.subr.bf16.mxu0 0
      %6779 = vmatpush1.bf16.msra.mxu0 %v6733
      %6780 = vmatprep.subr.bf16.mxu0 0
      %6781 = vmatpush1.bf16.msra.mxu0 %v6734
      %6782 = vmatprep.subr.bf16.mxu0 0
      %6783 = vmatpush1.bf16.msra.mxu0 %v6735
      %6784 = vmatprep.mubr.bf16.mxu0 %v6653
      %6785 = vmatmul.mubr.bf16.gmra.mrb[0].mxu0 %v6652
      %v6786 = vpop.f32.mrb[0].mxu0
      %v6787 = vadd.f32 0.0, %v6786
      %v6788 = vpop.f32.mrb[0].mxu0
      %v6789 = vpop.f32.mrb[0].mxu0
      %v6790 = vpop.f32.mrb[0].mxu0
      %6791 = vdwg.mxu0
      %v6792 = vadd.f32 %v6617, %v6787
      %v6793 = vadd.f32 %v6792, %v5257
      %v6794 = vmax.f32 %v6793, 0.0
      %v6795 = vld [vmem:[%s16] sm:$0xf]
      %v6796 = vld [vmem:[%s16 + $0x4] sm:$0xf]
      %v6797 = vld [vmem:[%s16 + $0x8] sm:$0xf]
      %v6798 = vld [vmem:[%s16 + $0xc] sm:$0x7]
      %v6799 = vpack.c.bf16 %v5395, %v5395
      %s6800 = scalar_lea.vmem %s16, 16
      %v6801 = vld [vmem:[%s6800] sm:$0xf]
      %v6802 = vld [vmem:[%s6800 + $0x4] sm:$0xf]
      %v6803 = vld [vmem:[%s6800 + $0x8] sm:$0xf]
      %v6804 = vld [vmem:[%s6800 + $0xc] sm:$0x7]
      %v6805 = vpack.c.bf16 %v5751, %v5751
      %v6810 = vunpack.c.l.b16 %v6801
      %v6811 = vunpack.c.l.b16 %v6802
      %v6812 = vunpack.c.l.b16 %v6803
      %v6813 = vunpack.c.l.b16 %v6804
      %v6814 = vpack.c.b16 %v6811, %v6810
      %v6815 = vpack.c.b16 %v6813, %v6812
      %vm6816 = vcmask 48128
      %v6818 = vsel %vm6816, %v6814, 0
      %v6821 = vsel %vm6816, %v6815, 0
      %vm6823 = vcmask 1042432
      %v6825 = vsel %vm6823, %v6805, 0
      %6827 = vmatprep.subr.bf16.mxu0 0
      %6828 = vmatpush1.bf16.msra.mxu0 %v6825
      %6829 = vmatprep.subr.bf16.mxu0 0
      %6830 = vmatpush1.bf16.msra.mxu0 0
      %6831 = vmatprep.subr.bf16.mxu0 0
      %6832 = vmatpush1.bf16.msra.mxu0 0
      %6833 = vmatprep.subr.bf16.mxu0 0
      %6834 = vmatpush1.bf16.msra.mxu0 0
      %6835 = vmatprep.subr.bf16.mxu0 0
      %6836 = vmatpush1.bf16.msra.mxu0 0
      %6837 = vmatprep.subr.bf16.mxu0 0
      %6838 = vmatpush1.bf16.msra.mxu0 0
      %6839 = vmatprep.subr.bf16.mxu0 0
      %6840 = vmatpush1.bf16.msra.mxu0 0
      %6841 = vmatprep.subr.bf16.mxu0 0
      %6842 = vmatpush1.bf16.msra.mxu0 0
      %6843 = vmatprep.subr.bf16.mxu0 0
      %6844 = vmatpush1.bf16.msra.mxu0 0
      %6845 = vmatprep.subr.bf16.mxu0 0
      %6846 = vmatpush1.bf16.msra.mxu0 0
      %6847 = vmatprep.subr.bf16.mxu0 0
      %6848 = vmatpush1.bf16.msra.mxu0 0
      %6849 = vmatprep.subr.bf16.mxu0 0
      %6850 = vmatpush1.bf16.msra.mxu0 0
      %6851 = vmatprep.subr.bf16.mxu0 0
      %6852 = vmatpush1.bf16.msra.mxu0 0
      %6853 = vmatprep.subr.bf16.mxu0 0
      %6854 = vmatpush1.bf16.msra.mxu0 0
      %6855 = vmatprep.subr.bf16.mxu0 0
      %6856 = vmatpush1.bf16.msra.mxu0 0
      %6857 = vmatprep.subr.bf16.mxu0 0
      %6858 = vmatpush1.bf16.msra.mxu0 0
      %6859 = vmatprep.mubr.bf16.mxu0 0
      %6860 = vmatmul.mubr.bf16.gmra.mrb[0].mxu0 %v6818
      %v6861 = vpop.f32.mrb[0].mxu0
      %v6862 = vadd.f32 0.0, %v6861
      %v6863 = vpop.f32.mrb[0].mxu0
      %v6864 = vpop.f32.mrb[0].mxu0
      %v6865 = vadd.f32 0.0, %v6864
      %v6866 = vpop.f32.mrb[0].mxu0
      %6867 = vmatprep.mubr.bf16.mxu0 0
      %6868 = vmatmul.mubr.bf16.gmra.mrb[0].mxu0 %v6821
      %v6869 = vpop.f32.mrb[0].mxu0
      %v6870 = vadd.f32 0.0, %v6869
      %v6871 = vpop.f32.mrb[0].mxu0
      %v6872 = vpop.f32.mrb[0].mxu0
      %v6873 = vadd.f32 0.0, %v6872
      %v6874 = vpop.f32.mrb[0].mxu0
      %6875 = vdwg.mxu0
      %v6880 = vunpack.c.l.b16 %v6795
      %v6881 = vunpack.c.l.b16 %v6796
      %v6882 = vunpack.c.l.b16 %v6797
      %v6883 = vunpack.c.l.b16 %v6798
      %v6884 = vpack.c.b16 %v6881, %v6880
      %v6885 = vpack.c.b16 %v6883, %v6882
      %v6887 = vsel %vm6816, %v6884, 0
      %v6890 = vsel %vm6816, %v6885, 0
      %v6893 = vsel %vm6823, %v6799, 0
      %6895 = vmatprep.subr.bf16.mxu0 0
      %6896 = vmatpush1.bf16.msra.mxu0 %v6893
      %6897 = vmatprep.subr.bf16.mxu0 0
      %6898 = vmatpush1.bf16.msra.mxu0 0
      %6899 = vmatprep.subr.bf16.mxu0 0
      %6900 = vmatpush1.bf16.msra.mxu0 0
      %6901 = vmatprep.subr.bf16.mxu0 0
      %6902 = vmatpush1.bf16.msra.mxu0 0
      %6903 = vmatprep.subr.bf16.mxu0 0
      %6904 = vmatpush1.bf16.msra.mxu0 0
      %6905 = vmatprep.subr.bf16.mxu0 0
      %6906 = vmatpush1.bf16.msra.mxu0 0
      %6907 = vmatprep.subr.bf16.mxu0 0
      %6908 = vmatpush1.bf16.msra.mxu0 0
      %6909 = vmatprep.subr.bf16.mxu0 0
      %6910 = vmatpush1.bf16.msra.mxu0 0
      %6911 = vmatprep.subr.bf16.mxu0 0
      %6912 = vmatpush1.bf16.msra.mxu0 0
      %6913 = vmatprep.subr.bf16.mxu0 0
      %6914 = vmatpush1.bf16.msra.mxu0 0
      %6915 = vmatprep.subr.bf16.mxu0 0
      %6916 = vmatpush1.bf16.msra.mxu0 0
      %6917 = vmatprep.subr.bf16.mxu0 0
      %6918 = vmatpush1.bf16.msra.mxu0 0
      %6919 = vmatprep.subr.bf16.mxu0 0
      %6920 = vmatpush1.bf16.msra.mxu0 0
      %6921 = vmatprep.subr.bf16.mxu0 0
      %6922 = vmatpush1.bf16.msra.mxu0 0
      %6923 = vmatprep.subr.bf16.mxu0 0
      %6924 = vmatpush1.bf16.msra.mxu0 0
      %6925 = vmatprep.subr.bf16.mxu0 0
      %6926 = vmatpush1.bf16.msra.mxu0 0
      %6927 = vmatprep.mubr.bf16.mxu0 0
      %6928 = vmatmul.mubr.bf16.gmra.mrb[0].mxu0 %v6887
      %v6929 = vpop.f32.mrb[0].mxu0
      %v6930 = vadd.f32 %v6862, %v6929
      %v6931 = vpop.f32.mrb[0].mxu0
      %v6932 = vpop.f32.mrb[0].mxu0
      %v6933 = vadd.f32 %v6865, %v6932
      %v6934 = vpop.f32.mrb[0].mxu0
      %6935 = vmatprep.mubr.bf16.mxu0 0
      %6936 = vmatmul.mubr.bf16.gmra.mrb[0].mxu0 %v6890
      %v6937 = vpop.f32.mrb[0].mxu0
      %v6938 = vadd.f32 %v6870, %v6937
      %v6939 = vpop.f32.mrb[0].mxu0
      %v6940 = vpop.f32.mrb[0].mxu0
      %v6941 = vadd.f32 %v6873, %v6940
      %v6942 = vpop.f32.mrb[0].mxu0
      %6943 = vdwg.mxu0
      %s6944 = scalar_lea.vmem %s16, 32
      %v6945 = vld [vmem:[%s6944] sm:$0xf]
      %v6946 = vld [vmem:[%s6944 + $0x4] sm:$0xf]
      %v6947 = vld [vmem:[%s6944 + $0x8] sm:$0xf]
      %v6948 = vld [vmem:[%s6944 + $0xc] sm:$0x7]
      %v6949 = vpack.c.bf16 %v6109, %v6109
      %v6954 = vunpack.c.l.b16 %v6945
      %v6955 = vunpack.c.l.b16 %v6946
      %v6956 = vunpack.c.l.b16 %v6947
      %v6957 = vunpack.c.l.b16 %v6948
      %v6958 = vpack.c.b16 %v6955, %v6954
      %v6959 = vpack.c.b16 %v6957, %v6956
      %v6961 = vsel %vm6816, %v6958, 0
      %v6964 = vsel %vm6816, %v6959, 0
      %v6967 = vsel %vm6823, %v6949, 0
      %6969 = vmatprep.subr.bf16.mxu0 0
      %6970 = vmatpush1.bf16.msra.mxu0 %v6967
      %6971 = vmatprep.subr.bf16.mxu0 0
      %6972 = vmatpush1.bf16.msra.mxu0 0
      %6973 = vmatprep.subr.bf16.mxu0 0
      %6974 = vmatpush1.bf16.msra.mxu0 0
      %6975 = vmatprep.subr.bf16.mxu0 0
      %6976 = vmatpush1.bf16.msra.mxu0 0
      %6977 = vmatprep.subr.bf16.mxu0 0
      %6978 = vmatpush1.bf16.msra.mxu0 0
      %6979 = vmatprep.subr.bf16.mxu0 0
      %6980 = vmatpush1.bf16.msra.mxu0 0
      %6981 = vmatprep.subr.bf16.mxu0 0
      %6982 = vmatpush1.bf16.msra.mxu0 0
      %6983 = vmatprep.subr.bf16.mxu0 0
      %6984 = vmatpush1.bf16.msra.mxu0 0
      %6985 = vmatprep.subr.bf16.mxu0 0
      %6986 = vmatpush1.bf16.msra.mxu0 0
      %6987 = vmatprep.subr.bf16.mxu0 0
      %6988 = vmatpush1.bf16.msra.mxu0 0
      %6989 = vmatprep.subr.bf16.mxu0 0
      %6990 = vmatpush1.bf16.msra.mxu0 0
      %6991 = vmatprep.subr.bf16.mxu0 0
      %6992 = vmatpush1.bf16.msra.mxu0 0
      %6993 = vmatprep.subr.bf16.mxu0 0
      %6994 = vmatpush1.bf16.msra.mxu0 0
      %6995 = vmatprep.subr.bf16.mxu0 0
      %6996 = vmatpush1.bf16.msra.mxu0 0
      %6997 = vmatprep.subr.bf16.mxu0 0
      %6998 = vmatpush1.bf16.msra.mxu0 0
      %6999 = vmatprep.subr.bf16.mxu0 0
      %7000 = vmatpush1.bf16.msra.mxu0 0
      %7001 = vmatprep.mubr.bf16.mxu0 0
      %7002 = vmatmul.mubr.bf16.gmra.mrb[0].mxu0 %v6961
      %v7003 = vpop.f32.mrb[0].mxu0
      %v7004 = vadd.f32 0.0, %v7003
      %v7005 = vpop.f32.mrb[0].mxu0
      %v7006 = vpop.f32.mrb[0].mxu0
      %v7007 = vadd.f32 0.0, %v7006
      %v7008 = vpop.f32.mrb[0].mxu0
      %7009 = vmatprep.mubr.bf16.mxu0 0
      %7010 = vmatmul.mubr.bf16.gmra.mrb[0].mxu0 %v6964
      %v7011 = vpop.f32.mrb[0].mxu0
      %v7012 = vadd.f32 0.0, %v7011
      %v7013 = vpop.f32.mrb[0].mxu0
      %v7014 = vpop.f32.mrb[0].mxu0
      %v7015 = vadd.f32 0.0, %v7014
      %v7016 = vpop.f32.mrb[0].mxu0
      %7017 = vdwg.mxu0
      %v7018 = vadd.f32 %v6930, %v7004
      %v7019 = vadd.f32 %v6933, %v7007
      %v7020 = vadd.f32 %v6938, %v7012
      %v7021 = vadd.f32 %v6941, %v7015
      %s7022 = scalar_lea.vmem %s16, 48
      %v7023 = vld [vmem:[%s7022] sm:$0xf]
      %v7024 = vld [vmem:[%s7022 + $0x4] sm:$0xf]
      %v7025 = vld [vmem:[%s7022 + $0x8] sm:$0xf]
      %v7026 = vld [vmem:[%s7022 + $0xc] sm:$0x7]
      %v7027 = vpack.c.bf16 %v6794, %v6794
      %v7032 = vunpack.c.l.b16 %v7023
      %v7033 = vunpack.c.l.b16 %v7024
      %v7034 = vunpack.c.l.b16 %v7025
      %v7035 = vunpack.c.l.b16 %v7026
      %v7036 = vpack.c.b16 %v7033, %v7032
      %v7037 = vpack.c.b16 %v7035, %v7034
      %v7039 = vsel %vm6816, %v7036, 0
      %v7042 = vsel %vm6816, %v7037, 0
      %v7045 = vsel %vm6823, %v7027, 0
      %7047 = vmatprep.subr.bf16.mxu0 0
      %7048 = vmatpush1.bf16.msra.mxu0 %v7045
      %7049 = vmatprep.subr.bf16.mxu0 0
      %7050 = vmatpush1.bf16.msra.mxu0 0
      %7051 = vmatprep.subr.bf16.mxu0 0
      %7052 = vmatpush1.bf16.msra.mxu0 0
      %7053 = vmatprep.subr.bf16.mxu0 0
      %7054 = vmatpush1.bf16.msra.mxu0 0
      %7055 = vmatprep.subr.bf16.mxu0 0
      %7056 = vmatpush1.bf16.msra.mxu0 0
      %7057 = vmatprep.subr.bf16.mxu0 0
      %7058 = vmatpush1.bf16.msra.mxu0 0
      %7059 = vmatprep.subr.bf16.mxu0 0
      %7060 = vmatpush1.bf16.msra.mxu0 0
      %7061 = vmatprep.subr.bf16.mxu0 0
      %7062 = vmatpush1.bf16.msra.mxu0 0
      %7063 = vmatprep.subr.bf16.mxu0 0
      %7064 = vmatpush1.bf16.msra.mxu0 0
      %7065 = vmatprep.subr.bf16.mxu0 0
      %7066 = vmatpush1.bf16.msra.mxu0 0
      %7067 = vmatprep.subr.bf16.mxu0 0
      %7068 = vmatpush1.bf16.msra.mxu0 0
      %7069 = vmatprep.subr.bf16.mxu0 0
      %7070 = vmatpush1.bf16.msra.mxu0 0
      %7071 = vmatprep.subr.bf16.mxu0 0
      %7072 = vmatpush1.bf16.msra.mxu0 0
      %7073 = vmatprep.subr.bf16.mxu0 0
      %7074 = vmatpush1.bf16.msra.mxu0 0
      %7075 = vmatprep.subr.bf16.mxu0 0
      %7076 = vmatpush1.bf16.msra.mxu0 0
      %7077 = vmatprep.subr.bf16.mxu0 0
      %7078 = vmatpush1.bf16.msra.mxu0 0
      %7079 = vmatprep.mubr.bf16.mxu0 0
      %7080 = vmatmul.mubr.bf16.gmra.mrb[0].mxu0 %v7039
      %v7081 = vpop.f32.mrb[0].mxu0
      %v7082 = vadd.f32 0.0, %v7081
      %v7083 = vpop.f32.mrb[0].mxu0
      %v7084 = vpop.f32.mrb[0].mxu0
      %v7085 = vadd.f32 0.0, %v7084
      %v7086 = vpop.f32.mrb[0].mxu0
      %7087 = vmatprep.mubr.bf16.mxu0 0
      %7088 = vmatmul.mubr.bf16.gmra.mrb[0].mxu0 %v7042
      %v7089 = vpop.f32.mrb[0].mxu0
      %v7090 = vadd.f32 0.0, %v7089
      %v7091 = vpop.f32.mrb[0].mxu0
      %v7092 = vpop.f32.mrb[0].mxu0
      %v7093 = vadd.f32 0.0, %v7092
      %v7094 = vpop.f32.mrb[0].mxu0
      %7095 = vdwg.mxu0
      %v7096 = vadd.f32 %v7018, %v7082
      %v7097 = vadd.f32 %v7019, %v7085
      %v7098 = vadd.f32 %v7020, %v7090
      %v7099 = vadd.f32 %v7021, %v7093
      %v7100 = vpack.c.bf16 %v7097, %v7096
      %v7101 = vpack.c.bf16 %v7098, %v7098
      %v7102 = vpack.c.bf16 %v7099, %v7098
      %s7103 = scalar_lea.vmem %s9, 256
      %v7104 = vld [vmem:[%s7103] sm:$0xf]
      %v7105 = vld [vmem:[%s7103 + $0x4] sm:$0xf]
      %v7106 = vld [vmem:[%s7103 + $0x8] sm:$0xf]
      %v7107 = vld [vmem:[%s7103 + $0xc] sm:$0xf]
      %v7108 = vld [vmem:[%s7103 + $0x10] sm:$0xf]
      %v7109 = vld [vmem:[%s7103 + $0x14] sm:$0xf]
      %v7110 = vld [vmem:[%s7103 + $0x18] sm:$0xf]
      %v7111 = vld [vmem:[%s7103 + $0x1c] sm:$0xf]
      %v7112 = vld [vmem:[%s7103 + $0x20] sm:$0xf]
      %v7113 = vld [vmem:[%s7103 + $0x24] sm:$0xf]
      %v7114 = vld [vmem:[%s7103 + $0x28] sm:$0xf]
      %v7115 = vld [vmem:[%s7103 + $0x2c] sm:$0xf]
      %v7116 = vld [vmem:[%s7103 + $0x30] sm:$0xf]
      %v7117 = vld [vmem:[%s7103 + $0x34] sm:$0xf]
      %v7118 = vld [vmem:[%s7103 + $0x38] sm:$0xf]
      %v7119 = vld [vmem:[%s7103 + $0x3c] sm:$0xf]
      %v7120 = vld [vmem:[%s10] sm:$0x1]
      %v7122 = vlaneseq
      %v7123 = vshrl.u32 %v7122, 7
      %v7124 = vsub.s32 0, %v7123
      %v7125 = vrot.slane %v7120, %v7124
      %v7143 = vunpack.c.l.b16 %v7104
      %v7144 = vunpack.c.l.b16 %v7105
      %v7145 = vunpack.c.l.b16 %v7106
      %v7146 = vunpack.c.l.b16 %v7107
      %v7147 = vunpack.c.l.b16 %v7108
      %v7148 = vunpack.c.l.b16 %v7109
      %v7149 = vunpack.c.l.b16 %v7110
      %v7150 = vunpack.c.l.b16 %v7111
      %v7151 = vunpack.c.l.b16 %v7112
      %v7152 = vunpack.c.l.b16 %v7113
      %v7153 = vunpack.c.l.b16 %v7114
      %v7154 = vunpack.c.l.b16 %v7115
      %v7155 = vunpack.c.l.b16 %v7116
      %v7156 = vunpack.c.l.b16 %v7117
      %v7157 = vunpack.c.l.b16 %v7118
      %v7158 = vunpack.c.l.b16 %v7119
      %v7159 = vpack.c.b16 %v7144, %v7143
      %v7160 = vpack.c.b16 %v7146, %v7145
      %v7161 = vpack.c.b16 %v7148, %v7147
      %v7162 = vpack.c.b16 %v7150, %v7149
      %v7163 = vpack.c.b16 %v7152, %v7151
      %v7164 = vpack.c.b16 %v7154, %v7153
      %v7165 = vpack.c.b16 %v7156, %v7155
      %v7166 = vpack.c.b16 %v7158, %v7157
      %7175 = vmatprep.subr.bf16.mxu0 0
      %7176 = vmatpush1.bf16.msra.mxu0 %v7159
      %7177 = vmatprep.subr.bf16.mxu0 0
      %7178 = vmatpush1.bf16.msra.mxu0 %v7160
      %7179 = vmatprep.subr.bf16.mxu0 0
      %7180 = vmatpush1.bf16.msra.mxu0 %v7161
      %7181 = vmatprep.subr.bf16.mxu0 0
      %7182 = vmatpush1.bf16.msra.mxu0 %v7162
      %7183 = vmatprep.subr.bf16.mxu0 0
      %7184 = vmatpush1.bf16.msra.mxu0 %v7163
      %7185 = vmatprep.subr.bf16.mxu0 0
      %7186 = vmatpush1.bf16.msra.mxu0 %v7164
      %7187 = vmatprep.subr.bf16.mxu0 0
      %7188 = vmatpush1.bf16.msra.mxu0 %v7165
      %7189 = vmatprep.subr.bf16.mxu0 0
      %7190 = vmatpush1.bf16.msra.mxu0 %v7166
      %7191 = vmatprep.subr.bf16.mxu0 0
      %7192 = vmatpush1.bf16.msra.mxu0 0
      %7193 = vmatprep.subr.bf16.mxu0 0
      %7194 = vmatpush1.bf16.msra.mxu0 0
      %7195 = vmatprep.subr.bf16.mxu0 0
      %7196 = vmatpush1.bf16.msra.mxu0 0
      %7197 = vmatprep.subr.bf16.mxu0 0
      %7198 = vmatpush1.bf16.msra.mxu0 0
      %7199 = vmatprep.subr.bf16.mxu0 0
      %7200 = vmatpush1.bf16.msra.mxu0 0
      %7201 = vmatprep.subr.bf16.mxu0 0
      %7202 = vmatpush1.bf16.msra.mxu0 0
      %7203 = vmatprep.subr.bf16.mxu0 0
      %7204 = vmatpush1.bf16.msra.mxu0 0
      %7205 = vmatprep.subr.bf16.mxu0 0
      %7206 = vmatpush1.bf16.msra.mxu0 0
      %7207 = vmatprep.mubr.bf16.mxu0 0
      %7208 = vmatmul.mubr.bf16.gmra.mrb[0].mxu0 %v7100
      %v7209 = vpop.f32.mrb[0].mxu0
      %v7210 = vadd.f32 %v7125, %v7209
      %v7211 = vpop.f32.mrb[0].mxu0
      %v7212 = vpop.f32.mrb[0].mxu0
      %v7213 = vadd.f32 %v7125, %v7212
      %v7214 = vpop.f32.mrb[0].mxu0
      %7215 = vmatprep.mubr.bf16.mxu0 0
      %7216 = vmatmul.mubr.bf16.gmra.mrb[0].mxu0 %v7101
      %v7217 = vpop.f32.mrb[0].mxu0
      %v7218 = vadd.f32 %v7125, %v7217
      %v7219 = vpop.f32.mrb[0].mxu0
      %v7220 = vpop.f32.mrb[0].mxu0
      %v7221 = vpop.f32.mrb[0].mxu0
      %7222 = vdwg.mxu0
      %v7223 = vmax.f32 %v7210, 0.0
      %v7224 = vmax.f32 %v7213, 0.0
      %v7225 = vmax.f32 %v7218, 0.0
      %s7226 = scalar_lea.vmem %s9, 320
      %v7227 = vld [vmem:[%s7226] sm:$0xf]
      %v7228 = vld [vmem:[%s7226 + $0x4] sm:$0xf]
      %v7229 = vld [vmem:[%s7226 + $0x8] sm:$0xf]
      %v7230 = vld [vmem:[%s7226 + $0xc] sm:$0xf]
      %v7231 = vld [vmem:[%s7226 + $0x10] sm:$0xf]
      %v7232 = vld [vmem:[%s7226 + $0x14] sm:$0xf]
      %v7233 = vld [vmem:[%s7226 + $0x18] sm:$0xf]
      %v7234 = vld [vmem:[%s7226 + $0x1c] sm:$0xf]
      %v7235 = vld [vmem:[%s7226 + $0x20] sm:$0xf]
      %v7236 = vld [vmem:[%s7226 + $0x24] sm:$0xf]
      %v7237 = vld [vmem:[%s7226 + $0x28] sm:$0xf]
      %v7238 = vld [vmem:[%s7226 + $0x2c] sm:$0xf]
      %v7239 = vld [vmem:[%s7226 + $0x30] sm:$0xf]
      %v7240 = vld [vmem:[%s7226 + $0x34] sm:$0xf]
      %v7241 = vld [vmem:[%s7226 + $0x38] sm:$0xf]
      %v7242 = vld [vmem:[%s7226 + $0x3c] sm:$0xf]
      %s7243 = scalar_lea.vmem %s9, 192
      %v7244 = vld [vmem:[%s7243] sm:$0xf]
      %v7245 = vld [vmem:[%s7243 + $0x4] sm:$0xf]
      %v7246 = vld [vmem:[%s7243 + $0x8] sm:$0xf]
      %v7247 = vld [vmem:[%s7243 + $0xc] sm:$0xf]
      %v7248 = vld [vmem:[%s7243 + $0x10] sm:$0xf]
      %v7249 = vld [vmem:[%s7243 + $0x14] sm:$0xf]
      %v7250 = vld [vmem:[%s7243 + $0x18] sm:$0xf]
      %v7251 = vld [vmem:[%s7243 + $0x1c] sm:$0xf]
      %v7252 = vld [vmem:[%s7243 + $0x20] sm:$0xf]
      %v7253 = vld [vmem:[%s7243 + $0x24] sm:$0xf]
      %v7254 = vld [vmem:[%s7243 + $0x28] sm:$0xf]
      %v7255 = vld [vmem:[%s7243 + $0x2c] sm:$0xf]
      %v7256 = vld [vmem:[%s7243 + $0x30] sm:$0xf]
      %v7257 = vld [vmem:[%s7243 + $0x34] sm:$0xf]
      %v7258 = vld [vmem:[%s7243 + $0x38] sm:$0xf]
      %v7259 = vld [vmem:[%s7243 + $0x3c] sm:$0xf]
      %v7261 = vshrl.u32 %v7100, 16
      %v7263 = vshll.u32 %v7100, 16
      %v7265 = vrot.slane %v7263, 1
      %v7266 = vor.u32 %v7261, %v7265
      %v7268 = vshll.u32 %v7101, 16
      %v7270 = vrot.slane %v7268, 1
      %v7271 = vsel %vm1758, %v7266, %v7270
      %v7272 = vshrl.u32 %v7101, 16
      %v7274 = vor.u32 %v7272, %v7270
      %v7293 = vunpack.c.l.b16 %v7244
      %v7294 = vunpack.c.l.b16 %v7245
      %v7295 = vunpack.c.l.b16 %v7246
      %v7296 = vunpack.c.l.b16 %v7247
      %v7297 = vunpack.c.l.b16 %v7248
      %v7298 = vunpack.c.l.b16 %v7249
      %v7299 = vunpack.c.l.b16 %v7250
      %v7300 = vunpack.c.l.b16 %v7251
      %v7301 = vunpack.c.l.b16 %v7252
      %v7302 = vunpack.c.l.b16 %v7253
      %v7303 = vunpack.c.l.b16 %v7254
      %v7304 = vunpack.c.l.b16 %v7255
      %v7305 = vunpack.c.l.b16 %v7256
      %v7306 = vunpack.c.l.b16 %v7257
      %v7307 = vunpack.c.l.b16 %v7258
      %v7308 = vunpack.c.l.b16 %v7259
      %v7309 = vpack.c.b16 %v7294, %v7293
      %v7310 = vpack.c.b16 %v7296, %v7295
      %v7311 = vpack.c.b16 %v7298, %v7297
      %v7312 = vpack.c.b16 %v7300, %v7299
      %v7313 = vpack.c.b16 %v7302, %v7301
      %v7314 = vpack.c.b16 %v7304, %v7303
      %v7315 = vpack.c.b16 %v7306, %v7305
      %v7316 = vpack.c.b16 %v7308, %v7307
      %7325 = vmatprep.subr.bf16.mxu0 0
      %7326 = vmatpush1.bf16.msra.mxu0 %v7309
      %7327 = vmatprep.subr.bf16.mxu0 0
      %7328 = vmatpush1.bf16.msra.mxu0 %v7310
      %7329 = vmatprep.subr.bf16.mxu0 0
      %7330 = vmatpush1.bf16.msra.mxu0 %v7311
      %7331 = vmatprep.subr.bf16.mxu0 0
      %7332 = vmatpush1.bf16.msra.mxu0 %v7312
      %7333 = vmatprep.subr.bf16.mxu0 0
      %7334 = vmatpush1.bf16.msra.mxu0 %v7313
      %7335 = vmatprep.subr.bf16.mxu0 0
      %7336 = vmatpush1.bf16.msra.mxu0 %v7314
      %7337 = vmatprep.subr.bf16.mxu0 0
      %7338 = vmatpush1.bf16.msra.mxu0 %v7315
      %7339 = vmatprep.subr.bf16.mxu0 0
      %7340 = vmatpush1.bf16.msra.mxu0 %v7316
      %7341 = vmatprep.subr.bf16.mxu0 0
      %7342 = vmatpush1.bf16.msra.mxu0 0
      %7343 = vmatprep.subr.bf16.mxu0 0
      %7344 = vmatpush1.bf16.msra.mxu0 0
      %7345 = vmatprep.subr.bf16.mxu0 0
      %7346 = vmatpush1.bf16.msra.mxu0 0
      %7347 = vmatprep.subr.bf16.mxu0 0
      %7348 = vmatpush1.bf16.msra.mxu0 0
      %7349 = vmatprep.subr.bf16.mxu0 0
      %7350 = vmatpush1.bf16.msra.mxu0 0
      %7351 = vmatprep.subr.bf16.mxu0 0
      %7352 = vmatpush1.bf16.msra.mxu0 0
      %7353 = vmatprep.subr.bf16.mxu0 0
      %7354 = vmatpush1.bf16.msra.mxu0 0
      %7355 = vmatprep.subr.bf16.mxu0 0
      %7356 = vmatpush1.bf16.msra.mxu0 0
      %7357 = vmatprep.mubr.bf16.mxu0 0
      %7358 = vmatmul.mubr.bf16.gmra.mrb[0].mxu0 %v7271
      %v7359 = vpop.f32.mrb[0].mxu0
      %v7360 = vadd.f32 0.0, %v7359
      %v7361 = vpop.f32.mrb[0].mxu0
      %v7362 = vpop.f32.mrb[0].mxu0
      %v7363 = vadd.f32 0.0, %v7362
      %v7364 = vpop.f32.mrb[0].mxu0
      %7365 = vmatprep.mubr.bf16.mxu0 0
      %7366 = vmatmul.mubr.bf16.gmra.mrb[0].mxu0 %v7274
      %v7367 = vpop.f32.mrb[0].mxu0
      %v7368 = vadd.f32 0.0, %v7367
      %v7369 = vpop.f32.mrb[0].mxu0
      %v7370 = vpop.f32.mrb[0].mxu0
      %v7371 = vpop.f32.mrb[0].mxu0
      %7372 = vdwg.mxu0
      %v7389 = vunpack.c.l.b16 %v7227
      %v7390 = vunpack.c.l.b16 %v7228
      %v7391 = vunpack.c.l.b16 %v7229
      %v7392 = vunpack.c.l.b16 %v7230
      %v7393 = vunpack.c.l.b16 %v7231
      %v7394 = vunpack.c.l.b16 %v7232
      %v7395 = vunpack.c.l.b16 %v7233
      %v7396 = vunpack.c.l.b16 %v7234
      %v7397 = vunpack.c.l.b16 %v7235
      %v7398 = vunpack.c.l.b16 %v7236
      %v7399 = vunpack.c.l.b16 %v7237
      %v7400 = vunpack.c.l.b16 %v7238
      %v7401 = vunpack.c.l.b16 %v7239
      %v7402 = vunpack.c.l.b16 %v7240
      %v7403 = vunpack.c.l.b16 %v7241
      %v7404 = vunpack.c.l.b16 %v7242
      %v7405 = vpack.c.b16 %v7390, %v7389
      %v7406 = vpack.c.b16 %v7392, %v7391
      %v7407 = vpack.c.b16 %v7394, %v7393
      %v7408 = vpack.c.b16 %v7396, %v7395
      %v7409 = vpack.c.b16 %v7398, %v7397
      %v7410 = vpack.c.b16 %v7400, %v7399
      %v7411 = vpack.c.b16 %v7402, %v7401
      %v7412 = vpack.c.b16 %v7404, %v7403
      %7421 = vmatprep.subr.bf16.mxu0 0
      %7422 = vmatpush1.bf16.msra.mxu0 %v7405
      %7423 = vmatprep.subr.bf16.mxu0 0
      %7424 = vmatpush1.bf16.msra.mxu0 %v7406
      %7425 = vmatprep.subr.bf16.mxu0 0
      %7426 = vmatpush1.bf16.msra.mxu0 %v7407
      %7427 = vmatprep.subr.bf16.mxu0 0
      %7428 = vmatpush1.bf16.msra.mxu0 %v7408
      %7429 = vmatprep.subr.bf16.mxu0 0
      %7430 = vmatpush1.bf16.msra.mxu0 %v7409
      %7431 = vmatprep.subr.bf16.mxu0 0
      %7432 = vmatpush1.bf16.msra.mxu0 %v7410
      %7433 = vmatprep.subr.bf16.mxu0 0
      %7434 = vmatpush1.bf16.msra.mxu0 %v7411
      %7435 = vmatprep.subr.bf16.mxu0 0
      %7436 = vmatpush1.bf16.msra.mxu0 %v7412
      %7437 = vmatprep.subr.bf16.mxu0 0
      %7438 = vmatpush1.bf16.msra.mxu0 0
      %7439 = vmatprep.subr.bf16.mxu0 0
      %7440 = vmatpush1.bf16.msra.mxu0 0
      %7441 = vmatprep.subr.bf16.mxu0 0
      %7442 = vmatpush1.bf16.msra.mxu0 0
      %7443 = vmatprep.subr.bf16.mxu0 0
      %7444 = vmatpush1.bf16.msra.mxu0 0
      %7445 = vmatprep.subr.bf16.mxu0 0
      %7446 = vmatpush1.bf16.msra.mxu0 0
      %7447 = vmatprep.subr.bf16.mxu0 0
      %7448 = vmatpush1.bf16.msra.mxu0 0
      %7449 = vmatprep.subr.bf16.mxu0 0
      %7450 = vmatpush1.bf16.msra.mxu0 0
      %7451 = vmatprep.subr.bf16.mxu0 0
      %7452 = vmatpush1.bf16.msra.mxu0 0
      %7453 = vmatprep.mubr.bf16.mxu0 0
      %7454 = vmatmul.mubr.bf16.gmra.mrb[0].mxu0 %v7100
      %v7455 = vpop.f32.mrb[0].mxu0
      %v7456 = vadd.f32 %v7360, %v7455
      %v7457 = vpop.f32.mrb[0].mxu0
      %v7458 = vpop.f32.mrb[0].mxu0
      %v7459 = vadd.f32 %v7363, %v7458
      %v7460 = vpop.f32.mrb[0].mxu0
      %7461 = vmatprep.mubr.bf16.mxu0 0
      %7462 = vmatmul.mubr.bf16.gmra.mrb[0].mxu0 %v7101
      %v7463 = vpop.f32.mrb[0].mxu0
      %v7464 = vadd.f32 %v7368, %v7463
      %v7465 = vpop.f32.mrb[0].mxu0
      %v7466 = vpop.f32.mrb[0].mxu0
      %v7467 = vpop.f32.mrb[0].mxu0
      %7468 = vdwg.mxu0
      %v7469 = vadd.f32 %v7456, %v7125
      %v7470 = vadd.f32 %v7459, %v7125
      %v7471 = vadd.f32 %v7464, %v7125
      %v7472 = vmax.f32 %v7469, 0.0
      %v7473 = vmax.f32 %v7470, 0.0
      %v7474 = vmax.f32 %v7471, 0.0
      %s7475 = scalar_lea.vmem %s9, 448
      %v7476 = vld [vmem:[%s7475] sm:$0xf]
      %v7477 = vld [vmem:[%s7475 + $0x4] sm:$0xf]
      %v7478 = vld [vmem:[%s7475 + $0x8] sm:$0xf]
      %v7479 = vld [vmem:[%s7475 + $0xc] sm:$0xf]
      %v7480 = vld [vmem:[%s7475 + $0x10] sm:$0xf]
      %v7481 = vld [vmem:[%s7475 + $0x14] sm:$0xf]
      %v7482 = vld [vmem:[%s7475 + $0x18] sm:$0xf]
      %v7483 = vld [vmem:[%s7475 + $0x1c] sm:$0xf]
      %v7484 = vld [vmem:[%s7475 + $0x20] sm:$0xf]
      %v7485 = vld [vmem:[%s7475 + $0x24] sm:$0xf]
      %v7486 = vld [vmem:[%s7475 + $0x28] sm:$0xf]
      %v7487 = vld [vmem:[%s7475 + $0x2c] sm:$0xf]
      %v7488 = vld [vmem:[%s7475 + $0x30] sm:$0xf]
      %v7489 = vld [vmem:[%s7475 + $0x34] sm:$0xf]
      %v7490 = vld [vmem:[%s7475 + $0x38] sm:$0xf]
      %v7491 = vld [vmem:[%s7475 + $0x3c] sm:$0xf]
      %s7492 = scalar_lea.vmem %s9, 64
      %v7493 = vld [vmem:[%s7492] sm:$0xf]
      %v7494 = vld [vmem:[%s7492 + $0x4] sm:$0xf]
      %v7495 = vld [vmem:[%s7492 + $0x8] sm:$0xf]
      %v7496 = vld [vmem:[%s7492 + $0xc] sm:$0xf]
      %v7497 = vld [vmem:[%s7492 + $0x10] sm:$0xf]
      %v7498 = vld [vmem:[%s7492 + $0x14] sm:$0xf]
      %v7499 = vld [vmem:[%s7492 + $0x18] sm:$0xf]
      %v7500 = vld [vmem:[%s7492 + $0x1c] sm:$0xf]
      %v7501 = vld [vmem:[%s7492 + $0x20] sm:$0xf]
      %v7502 = vld [vmem:[%s7492 + $0x24] sm:$0xf]
      %v7503 = vld [vmem:[%s7492 + $0x28] sm:$0xf]
      %v7504 = vld [vmem:[%s7492 + $0x2c] sm:$0xf]
      %v7505 = vld [vmem:[%s7492 + $0x30] sm:$0xf]
      %v7506 = vld [vmem:[%s7492 + $0x34] sm:$0xf]
      %v7507 = vld [vmem:[%s7492 + $0x38] sm:$0xf]
      %v7508 = vld [vmem:[%s7492 + $0x3c] sm:$0xf]
      %v7509 = vrot.slane %v7261, 2
      %v7510 = vrot.slane %v7263, 3
      %v7511 = vor.u32 %v7509, %v7510
      %v7513 = vshrl.u32 %v7102, 16
      %v7515 = vrot.slane %v7513, 2
      %v7516 = vshll.u32 %v7102, 16
      %v7518 = vrot.slane %v7516, 3
      %v7519 = vor.u32 %v7515, %v7518
      %v7520 = vsel %vm2809, %v7511, %v7519
      %v7539 = vunpack.c.l.b16 %v7493
      %v7540 = vunpack.c.l.b16 %v7494
      %v7541 = vunpack.c.l.b16 %v7495
      %v7542 = vunpack.c.l.b16 %v7496
      %v7543 = vunpack.c.l.b16 %v7497
      %v7544 = vunpack.c.l.b16 %v7498
      %v7545 = vunpack.c.l.b16 %v7499
      %v7546 = vunpack.c.l.b16 %v7500
      %v7547 = vunpack.c.l.b16 %v7501
      %v7548 = vunpack.c.l.b16 %v7502
      %v7549 = vunpack.c.l.b16 %v7503
      %v7550 = vunpack.c.l.b16 %v7504
      %v7551 = vunpack.c.l.b16 %v7505
      %v7552 = vunpack.c.l.b16 %v7506
      %v7553 = vunpack.c.l.b16 %v7507
      %v7554 = vunpack.c.l.b16 %v7508
      %v7555 = vpack.c.b16 %v7540, %v7539
      %v7556 = vpack.c.b16 %v7542, %v7541
      %v7557 = vpack.c.b16 %v7544, %v7543
      %v7558 = vpack.c.b16 %v7546, %v7545
      %v7559 = vpack.c.b16 %v7548, %v7547
      %v7560 = vpack.c.b16 %v7550, %v7549
      %v7561 = vpack.c.b16 %v7552, %v7551
      %v7562 = vpack.c.b16 %v7554, %v7553
      %7571 = vmatprep.subr.bf16.mxu0 0
      %7572 = vmatpush1.bf16.msra.mxu0 %v7555
      %7573 = vmatprep.subr.bf16.mxu0 0
      %7574 = vmatpush1.bf16.msra.mxu0 %v7556
      %7575 = vmatprep.subr.bf16.mxu0 0
      %7576 = vmatpush1.bf16.msra.mxu0 %v7557
      %7577 = vmatprep.subr.bf16.mxu0 0
      %7578 = vmatpush1.bf16.msra.mxu0 %v7558
      %7579 = vmatprep.subr.bf16.mxu0 0
      %7580 = vmatpush1.bf16.msra.mxu0 %v7559
      %7581 = vmatprep.subr.bf16.mxu0 0
      %7582 = vmatpush1.bf16.msra.mxu0 %v7560
      %7583 = vmatprep.subr.bf16.mxu0 0
      %7584 = vmatpush1.bf16.msra.mxu0 %v7561
      %7585 = vmatprep.subr.bf16.mxu0 0
      %7586 = vmatpush1.bf16.msra.mxu0 %v7562
      %7587 = vmatprep.subr.bf16.mxu0 0
      %7588 = vmatpush1.bf16.msra.mxu0 0
      %7589 = vmatprep.subr.bf16.mxu0 0
      %7590 = vmatpush1.bf16.msra.mxu0 0
      %7591 = vmatprep.subr.bf16.mxu0 0
      %7592 = vmatpush1.bf16.msra.mxu0 0
      %7593 = vmatprep.subr.bf16.mxu0 0
      %7594 = vmatpush1.bf16.msra.mxu0 0
      %7595 = vmatprep.subr.bf16.mxu0 0
      %7596 = vmatpush1.bf16.msra.mxu0 0
      %7597 = vmatprep.subr.bf16.mxu0 0
      %7598 = vmatpush1.bf16.msra.mxu0 0
      %7599 = vmatprep.subr.bf16.mxu0 0
      %7600 = vmatpush1.bf16.msra.mxu0 0
      %7601 = vmatprep.subr.bf16.mxu0 0
      %7602 = vmatpush1.bf16.msra.mxu0 0
      %7603 = vmatprep.mubr.bf16.mxu0 0
      %7604 = vmatmul.mubr.bf16.gmra.mrb[0].mxu0 %v7520
      %v7605 = vpop.f32.mrb[0].mxu0
      %v7606 = vadd.f32 0.0, %v7605
      %v7607 = vpop.f32.mrb[0].mxu0
      %v7608 = vpop.f32.mrb[0].mxu0
      %v7609 = vadd.f32 0.0, %v7608
      %v7610 = vpop.f32.mrb[0].mxu0
      %7611 = vmatprep.mubr.bf16.mxu0 0
      %7612 = vmatmul.mubr.bf16.gmra.mrb[0].mxu0 %v7519
      %v7613 = vpop.f32.mrb[0].mxu0
      %v7614 = vadd.f32 0.0, %v7613
      %v7615 = vpop.f32.mrb[0].mxu0
      %v7616 = vpop.f32.mrb[0].mxu0
      %v7617 = vpop.f32.mrb[0].mxu0
      %7618 = vdwg.mxu0
      %v7635 = vunpack.c.l.b16 %v7476
      %v7636 = vunpack.c.l.b16 %v7477
      %v7637 = vunpack.c.l.b16 %v7478
      %v7638 = vunpack.c.l.b16 %v7479
      %v7639 = vunpack.c.l.b16 %v7480
      %v7640 = vunpack.c.l.b16 %v7481
      %v7641 = vunpack.c.l.b16 %v7482
      %v7642 = vunpack.c.l.b16 %v7483
      %v7643 = vunpack.c.l.b16 %v7484
      %v7644 = vunpack.c.l.b16 %v7485
      %v7645 = vunpack.c.l.b16 %v7486
      %v7646 = vunpack.c.l.b16 %v7487
      %v7647 = vunpack.c.l.b16 %v7488
      %v7648 = vunpack.c.l.b16 %v7489
      %v7649 = vunpack.c.l.b16 %v7490
      %v7650 = vunpack.c.l.b16 %v7491
      %v7651 = vpack.c.b16 %v7636, %v7635
      %v7652 = vpack.c.b16 %v7638, %v7637
      %v7653 = vpack.c.b16 %v7640, %v7639
      %v7654 = vpack.c.b16 %v7642, %v7641
      %v7655 = vpack.c.b16 %v7644, %v7643
      %v7656 = vpack.c.b16 %v7646, %v7645
      %v7657 = vpack.c.b16 %v7648, %v7647
      %v7658 = vpack.c.b16 %v7650, %v7649
      %7667 = vmatprep.subr.bf16.mxu0 0
      %7668 = vmatpush1.bf16.msra.mxu0 %v7651
      %7669 = vmatprep.subr.bf16.mxu0 0
      %7670 = vmatpush1.bf16.msra.mxu0 %v7652
      %7671 = vmatprep.subr.bf16.mxu0 0
      %7672 = vmatpush1.bf16.msra.mxu0 %v7653
      %7673 = vmatprep.subr.bf16.mxu0 0
      %7674 = vmatpush1.bf16.msra.mxu0 %v7654
      %7675 = vmatprep.subr.bf16.mxu0 0
      %7676 = vmatpush1.bf16.msra.mxu0 %v7655
      %7677 = vmatprep.subr.bf16.mxu0 0
      %7678 = vmatpush1.bf16.msra.mxu0 %v7656
      %7679 = vmatprep.subr.bf16.mxu0 0
      %7680 = vmatpush1.bf16.msra.mxu0 %v7657
      %7681 = vmatprep.subr.bf16.mxu0 0
      %7682 = vmatpush1.bf16.msra.mxu0 %v7658
      %7683 = vmatprep.subr.bf16.mxu0 0
      %7684 = vmatpush1.bf16.msra.mxu0 0
      %7685 = vmatprep.subr.bf16.mxu0 0
      %7686 = vmatpush1.bf16.msra.mxu0 0
      %7687 = vmatprep.subr.bf16.mxu0 0
      %7688 = vmatpush1.bf16.msra.mxu0 0
      %7689 = vmatprep.subr.bf16.mxu0 0
      %7690 = vmatpush1.bf16.msra.mxu0 0
      %7691 = vmatprep.subr.bf16.mxu0 0
      %7692 = vmatpush1.bf16.msra.mxu0 0
      %7693 = vmatprep.subr.bf16.mxu0 0
      %7694 = vmatpush1.bf16.msra.mxu0 0
      %7695 = vmatprep.subr.bf16.mxu0 0
      %7696 = vmatpush1.bf16.msra.mxu0 0
      %7697 = vmatprep.subr.bf16.mxu0 0
      %7698 = vmatpush1.bf16.msra.mxu0 0
      %7699 = vmatprep.mubr.bf16.mxu0 0
      %7700 = vmatmul.mubr.bf16.gmra.mrb[0].mxu0 %v7100
      %v7701 = vpop.f32.mrb[0].mxu0
      %v7702 = vadd.f32 %v7606, %v7701
      %v7703 = vpop.f32.mrb[0].mxu0
      %v7704 = vpop.f32.mrb[0].mxu0
      %v7705 = vadd.f32 %v7609, %v7704
      %v7706 = vpop.f32.mrb[0].mxu0
      %7707 = vmatprep.mubr.bf16.mxu0 0
      %7708 = vmatmul.mubr.bf16.gmra.mrb[0].mxu0 %v7101
      %v7709 = vpop.f32.mrb[0].mxu0
      %v7710 = vadd.f32 %v7614, %v7709
      %v7711 = vpop.f32.mrb[0].mxu0
      %v7712 = vpop.f32.mrb[0].mxu0
      %v7713 = vpop.f32.mrb[0].mxu0
      %7714 = vdwg.mxu0
      %v7715 = vadd.f32 %v7702, %v7125
      %v7716 = vadd.f32 %v7705, %v7125
      %v7717 = vadd.f32 %v7710, %v7125
      %v7718 = vmax.f32 %v7715, 0.0
      %v7719 = vmax.f32 %v7716, 0.0
      %v7720 = vmax.f32 %v7717, 0.0
      %s7721 = scalar_lea.vmem %s9, 512
      %v7722 = vld [vmem:[%s7721] sm:$0xf]
      %v7723 = vld [vmem:[%s7721 + $0x4] sm:$0xf]
      %v7724 = vld [vmem:[%s7721 + $0x8] sm:$0xf]
      %v7725 = vld [vmem:[%s7721 + $0xc] sm:$0xf]
      %v7726 = vld [vmem:[%s7721 + $0x10] sm:$0xf]
      %v7727 = vld [vmem:[%s7721 + $0x14] sm:$0xf]
      %v7728 = vld [vmem:[%s7721 + $0x18] sm:$0xf]
      %v7729 = vld [vmem:[%s7721 + $0x1c] sm:$0xf]
      %v7730 = vld [vmem:[%s7721 + $0x20] sm:$0xf]
      %v7731 = vld [vmem:[%s7721 + $0x24] sm:$0xf]
      %v7732 = vld [vmem:[%s7721 + $0x28] sm:$0xf]
      %v7733 = vld [vmem:[%s7721 + $0x2c] sm:$0xf]
      %v7734 = vld [vmem:[%s7721 + $0x30] sm:$0xf]
      %v7735 = vld [vmem:[%s7721 + $0x34] sm:$0xf]
      %v7736 = vld [vmem:[%s7721 + $0x38] sm:$0xf]
      %v7737 = vld [vmem:[%s7721 + $0x3c] sm:$0xf]
      %s7738 = scalar_lea.vmem %s9, 384
      %v7739 = vld [vmem:[%s7738] sm:$0xf]
      %v7740 = vld [vmem:[%s7738 + $0x4] sm:$0xf]
      %v7741 = vld [vmem:[%s7738 + $0x8] sm:$0xf]
      %v7742 = vld [vmem:[%s7738 + $0xc] sm:$0xf]
      %v7743 = vld [vmem:[%s7738 + $0x10] sm:$0xf]
      %v7744 = vld [vmem:[%s7738 + $0x14] sm:$0xf]
      %v7745 = vld [vmem:[%s7738 + $0x18] sm:$0xf]
      %v7746 = vld [vmem:[%s7738 + $0x1c] sm:$0xf]
      %v7747 = vld [vmem:[%s7738 + $0x20] sm:$0xf]
      %v7748 = vld [vmem:[%s7738 + $0x24] sm:$0xf]
      %v7749 = vld [vmem:[%s7738 + $0x28] sm:$0xf]
      %v7750 = vld [vmem:[%s7738 + $0x2c] sm:$0xf]
      %v7751 = vld [vmem:[%s7738 + $0x30] sm:$0xf]
      %v7752 = vld [vmem:[%s7738 + $0x34] sm:$0xf]
      %v7753 = vld [vmem:[%s7738 + $0x38] sm:$0xf]
      %v7754 = vld [vmem:[%s7738 + $0x3c] sm:$0xf]
      %v7771 = vunpack.c.l.b16 %v7739
      %v7772 = vunpack.c.l.b16 %v7740
      %v7773 = vunpack.c.l.b16 %v7741
      %v7774 = vunpack.c.l.b16 %v7742
      %v7775 = vunpack.c.l.b16 %v7743
      %v7776 = vunpack.c.l.b16 %v7744
      %v7777 = vunpack.c.l.b16 %v7745
      %v7778 = vunpack.c.l.b16 %v7746
      %v7779 = vunpack.c.l.b16 %v7747
      %v7780 = vunpack.c.l.b16 %v7748
      %v7781 = vunpack.c.l.b16 %v7749
      %v7782 = vunpack.c.l.b16 %v7750
      %v7783 = vunpack.c.l.b16 %v7751
      %v7784 = vunpack.c.l.b16 %v7752
      %v7785 = vunpack.c.l.b16 %v7753
      %v7786 = vunpack.c.l.b16 %v7754
      %v7787 = vpack.c.b16 %v7772, %v7771
      %v7788 = vpack.c.b16 %v7774, %v7773
      %v7789 = vpack.c.b16 %v7776, %v7775
      %v7790 = vpack.c.b16 %v7778, %v7777
      %v7791 = vpack.c.b16 %v7780, %v7779
      %v7792 = vpack.c.b16 %v7782, %v7781
      %v7793 = vpack.c.b16 %v7784, %v7783
      %v7794 = vpack.c.b16 %v7786, %v7785
      %7803 = vmatprep.subr.bf16.mxu0 0
      %7804 = vmatpush1.bf16.msra.mxu0 %v7787
      %7805 = vmatprep.subr.bf16.mxu0 0
      %7806 = vmatpush1.bf16.msra.mxu0 %v7788
      %7807 = vmatprep.subr.bf16.mxu0 0
      %7808 = vmatpush1.bf16.msra.mxu0 %v7789
      %7809 = vmatprep.subr.bf16.mxu0 0
      %7810 = vmatpush1.bf16.msra.mxu0 %v7790
      %7811 = vmatprep.subr.bf16.mxu0 0
      %7812 = vmatpush1.bf16.msra.mxu0 %v7791
      %7813 = vmatprep.subr.bf16.mxu0 0
      %7814 = vmatpush1.bf16.msra.mxu0 %v7792
      %7815 = vmatprep.subr.bf16.mxu0 0
      %7816 = vmatpush1.bf16.msra.mxu0 %v7793
      %7817 = vmatprep.subr.bf16.mxu0 0
      %7818 = vmatpush1.bf16.msra.mxu0 %v7794
      %7819 = vmatprep.subr.bf16.mxu0 0
      %7820 = vmatpush1.bf16.msra.mxu0 0
      %7821 = vmatprep.subr.bf16.mxu0 0
      %7822 = vmatpush1.bf16.msra.mxu0 0
      %7823 = vmatprep.subr.bf16.mxu0 0
      %7824 = vmatpush1.bf16.msra.mxu0 0
      %7825 = vmatprep.subr.bf16.mxu0 0
      %7826 = vmatpush1.bf16.msra.mxu0 0
      %7827 = vmatprep.subr.bf16.mxu0 0
      %7828 = vmatpush1.bf16.msra.mxu0 0
      %7829 = vmatprep.subr.bf16.mxu0 0
      %7830 = vmatpush1.bf16.msra.mxu0 0
      %7831 = vmatprep.subr.bf16.mxu0 0
      %7832 = vmatpush1.bf16.msra.mxu0 0
      %7833 = vmatprep.subr.bf16.mxu0 0
      %7834 = vmatpush1.bf16.msra.mxu0 0
      %7835 = vmatprep.mubr.bf16.mxu0 0
      %7836 = vmatmul.mubr.bf16.gmra.mrb[0].mxu0 %v7271
      %v7837 = vpop.f32.mrb[0].mxu0
      %v7838 = vadd.f32 0.0, %v7837
      %v7839 = vpop.f32.mrb[0].mxu0
      %v7840 = vpop.f32.mrb[0].mxu0
      %v7841 = vadd.f32 0.0, %v7840
      %v7842 = vpop.f32.mrb[0].mxu0
      %7843 = vmatprep.mubr.bf16.mxu0 0
      %7844 = vmatmul.mubr.bf16.gmra.mrb[0].mxu0 %v7274
      %v7845 = vpop.f32.mrb[0].mxu0
      %v7846 = vadd.f32 0.0, %v7845
      %v7847 = vpop.f32.mrb[0].mxu0
      %v7848 = vpop.f32.mrb[0].mxu0
      %v7849 = vpop.f32.mrb[0].mxu0
      %7850 = vdwg.mxu0
      %v7867 = vunpack.c.l.b16 %v7722
      %v7868 = vunpack.c.l.b16 %v7723
      %v7869 = vunpack.c.l.b16 %v7724
      %v7870 = vunpack.c.l.b16 %v7725
      %v7871 = vunpack.c.l.b16 %v7726
      %v7872 = vunpack.c.l.b16 %v7727
      %v7873 = vunpack.c.l.b16 %v7728
      %v7874 = vunpack.c.l.b16 %v7729
      %v7875 = vunpack.c.l.b16 %v7730
      %v7876 = vunpack.c.l.b16 %v7731
      %v7877 = vunpack.c.l.b16 %v7732
      %v7878 = vunpack.c.l.b16 %v7733
      %v7879 = vunpack.c.l.b16 %v7734
      %v7880 = vunpack.c.l.b16 %v7735
      %v7881 = vunpack.c.l.b16 %v7736
      %v7882 = vunpack.c.l.b16 %v7737
      %v7883 = vpack.c.b16 %v7868, %v7867
      %v7884 = vpack.c.b16 %v7870, %v7869
      %v7885 = vpack.c.b16 %v7872, %v7871
      %v7886 = vpack.c.b16 %v7874, %v7873
      %v7887 = vpack.c.b16 %v7876, %v7875
      %v7888 = vpack.c.b16 %v7878, %v7877
      %v7889 = vpack.c.b16 %v7880, %v7879
      %v7890 = vpack.c.b16 %v7882, %v7881
      %7899 = vmatprep.subr.bf16.mxu0 0
      %7900 = vmatpush1.bf16.msra.mxu0 %v7883
      %7901 = vmatprep.subr.bf16.mxu0 0
      %7902 = vmatpush1.bf16.msra.mxu0 %v7884
      %7903 = vmatprep.subr.bf16.mxu0 0
      %7904 = vmatpush1.bf16.msra.mxu0 %v7885
      %7905 = vmatprep.subr.bf16.mxu0 0
      %7906 = vmatpush1.bf16.msra.mxu0 %v7886
      %7907 = vmatprep.subr.bf16.mxu0 0
      %7908 = vmatpush1.bf16.msra.mxu0 %v7887
      %7909 = vmatprep.subr.bf16.mxu0 0
      %7910 = vmatpush1.bf16.msra.mxu0 %v7888
      %7911 = vmatprep.subr.bf16.mxu0 0
      %7912 = vmatpush1.bf16.msra.mxu0 %v7889
      %7913 = vmatprep.subr.bf16.mxu0 0
      %7914 = vmatpush1.bf16.msra.mxu0 %v7890
      %7915 = vmatprep.subr.bf16.mxu0 0
      %7916 = vmatpush1.bf16.msra.mxu0 0
      %7917 = vmatprep.subr.bf16.mxu0 0
      %7918 = vmatpush1.bf16.msra.mxu0 0
      %7919 = vmatprep.subr.bf16.mxu0 0
      %7920 = vmatpush1.bf16.msra.mxu0 0
      %7921 = vmatprep.subr.bf16.mxu0 0
      %7922 = vmatpush1.bf16.msra.mxu0 0
      %7923 = vmatprep.subr.bf16.mxu0 0
      %7924 = vmatpush1.bf16.msra.mxu0 0
      %7925 = vmatprep.subr.bf16.mxu0 0
      %7926 = vmatpush1.bf16.msra.mxu0 0
      %7927 = vmatprep.subr.bf16.mxu0 0
      %7928 = vmatpush1.bf16.msra.mxu0 0
      %7929 = vmatprep.subr.bf16.mxu0 0
      %7930 = vmatpush1.bf16.msra.mxu0 0
      %7931 = vmatprep.mubr.bf16.mxu0 0
      %7932 = vmatmul.mubr.bf16.gmra.mrb[0].mxu0 %v7100
      %v7933 = vpop.f32.mrb[0].mxu0
      %v7934 = vadd.f32 %v7838, %v7933
      %v7935 = vpop.f32.mrb[0].mxu0
      %v7936 = vpop.f32.mrb[0].mxu0
      %v7937 = vadd.f32 %v7841, %v7936
      %v7938 = vpop.f32.mrb[0].mxu0
      %7939 = vmatprep.mubr.bf16.mxu0 0
      %7940 = vmatmul.mubr.bf16.gmra.mrb[0].mxu0 %v7101
      %v7941 = vpop.f32.mrb[0].mxu0
      %v7942 = vadd.f32 %v7846, %v7941
      %v7943 = vpop.f32.mrb[0].mxu0
      %v7944 = vpop.f32.mrb[0].mxu0
      %v7945 = vpop.f32.mrb[0].mxu0
      %7946 = vdwg.mxu0
      %s7947 = scalar_lea.vmem %s9, 128
      %v7948 = vld [vmem:[%s7947] sm:$0xf]
      %v7949 = vld [vmem:[%s7947 + $0x4] sm:$0xf]
      %v7950 = vld [vmem:[%s7947 + $0x8] sm:$0xf]
      %v7951 = vld [vmem:[%s7947 + $0xc] sm:$0xf]
      %v7952 = vld [vmem:[%s7947 + $0x10] sm:$0xf]
      %v7953 = vld [vmem:[%s7947 + $0x14] sm:$0xf]
      %v7954 = vld [vmem:[%s7947 + $0x18] sm:$0xf]
      %v7955 = vld [vmem:[%s7947 + $0x1c] sm:$0xf]
      %v7956 = vld [vmem:[%s7947 + $0x20] sm:$0xf]
      %v7957 = vld [vmem:[%s7947 + $0x24] sm:$0xf]
      %v7958 = vld [vmem:[%s7947 + $0x28] sm:$0xf]
      %v7959 = vld [vmem:[%s7947 + $0x2c] sm:$0xf]
      %v7960 = vld [vmem:[%s7947 + $0x30] sm:$0xf]
      %v7961 = vld [vmem:[%s7947 + $0x34] sm:$0xf]
      %v7962 = vld [vmem:[%s7947 + $0x38] sm:$0xf]
      %v7963 = vld [vmem:[%s7947 + $0x3c] sm:$0xf]
      %v7980 = vunpack.c.l.b16 %v7948
      %v7981 = vunpack.c.l.b16 %v7949
      %v7982 = vunpack.c.l.b16 %v7950
      %v7983 = vunpack.c.l.b16 %v7951
      %v7984 = vunpack.c.l.b16 %v7952
      %v7985 = vunpack.c.l.b16 %v7953
      %v7986 = vunpack.c.l.b16 %v7954
      %v7987 = vunpack.c.l.b16 %v7955
      %v7988 = vunpack.c.l.b16 %v7956
      %v7989 = vunpack.c.l.b16 %v7957
      %v7990 = vunpack.c.l.b16 %v7958
      %v7991 = vunpack.c.l.b16 %v7959
      %v7992 = vunpack.c.l.b16 %v7960
      %v7993 = vunpack.c.l.b16 %v7961
      %v7994 = vunpack.c.l.b16 %v7962
      %v7995 = vunpack.c.l.b16 %v7963
      %v7996 = vpack.c.b16 %v7981, %v7980
      %v7997 = vpack.c.b16 %v7983, %v7982
      %v7998 = vpack.c.b16 %v7985, %v7984
      %v7999 = vpack.c.b16 %v7987, %v7986
      %v8000 = vpack.c.b16 %v7989, %v7988
      %v8001 = vpack.c.b16 %v7991, %v7990
      %v8002 = vpack.c.b16 %v7993, %v7992
      %v8003 = vpack.c.b16 %v7995, %v7994
      %8012 = vmatprep.subr.bf16.mxu0 0
      %8013 = vmatpush1.bf16.msra.mxu0 %v7996
      %8014 = vmatprep.subr.bf16.mxu0 0
      %8015 = vmatpush1.bf16.msra.mxu0 %v7997
      %8016 = vmatprep.subr.bf16.mxu0 0
      %8017 = vmatpush1.bf16.msra.mxu0 %v7998
      %8018 = vmatprep.subr.bf16.mxu0 0
      %8019 = vmatpush1.bf16.msra.mxu0 %v7999
      %8020 = vmatprep.subr.bf16.mxu0 0
      %8021 = vmatpush1.bf16.msra.mxu0 %v8000
      %8022 = vmatprep.subr.bf16.mxu0 0
      %8023 = vmatpush1.bf16.msra.mxu0 %v8001
      %8024 = vmatprep.subr.bf16.mxu0 0
      %8025 = vmatpush1.bf16.msra.mxu0 %v8002
      %8026 = vmatprep.subr.bf16.mxu0 0
      %8027 = vmatpush1.bf16.msra.mxu0 %v8003
      %8028 = vmatprep.subr.bf16.mxu0 0
      %8029 = vmatpush1.bf16.msra.mxu0 0
      %8030 = vmatprep.subr.bf16.mxu0 0
      %8031 = vmatpush1.bf16.msra.mxu0 0
      %8032 = vmatprep.subr.bf16.mxu0 0
      %8033 = vmatpush1.bf16.msra.mxu0 0
      %8034 = vmatprep.subr.bf16.mxu0 0
      %8035 = vmatpush1.bf16.msra.mxu0 0
      %8036 = vmatprep.subr.bf16.mxu0 0
      %8037 = vmatpush1.bf16.msra.mxu0 0
      %8038 = vmatprep.subr.bf16.mxu0 0
      %8039 = vmatpush1.bf16.msra.mxu0 0
      %8040 = vmatprep.subr.bf16.mxu0 0
      %8041 = vmatpush1.bf16.msra.mxu0 0
      %8042 = vmatprep.subr.bf16.mxu0 0
      %8043 = vmatpush1.bf16.msra.mxu0 0
      %8044 = vmatprep.mubr.bf16.mxu0 0
      %8045 = vmatmul.mubr.bf16.gmra.mrb[0].mxu0 %v7520
      %v8046 = vpop.f32.mrb[0].mxu0
      %v8047 = vadd.f32 0.0, %v8046
      %v8048 = vpop.f32.mrb[0].mxu0
      %v8049 = vpop.f32.mrb[0].mxu0
      %v8050 = vadd.f32 0.0, %v8049
      %v8051 = vpop.f32.mrb[0].mxu0
      %8052 = vmatprep.mubr.bf16.mxu0 0
      %8053 = vmatmul.mubr.bf16.gmra.mrb[0].mxu0 %v7519
      %v8054 = vpop.f32.mrb[0].mxu0
      %v8055 = vadd.f32 0.0, %v8054
      %v8056 = vpop.f32.mrb[0].mxu0
      %v8057 = vpop.f32.mrb[0].mxu0
      %v8058 = vpop.f32.mrb[0].mxu0
      %8059 = vdwg.mxu0
      %v8060 = vadd.f32 %v7934, %v8047
      %v8061 = vadd.f32 %v7937, %v8050
      %v8062 = vadd.f32 %v7942, %v8055
      %v8063 = vld [vmem:[%s9] sm:$0xf]
      %v8064 = vld [vmem:[%s9 + $0x4] sm:$0xf]
      %v8065 = vld [vmem:[%s9 + $0x8] sm:$0xf]
      %v8066 = vld [vmem:[%s9 + $0xc] sm:$0xf]
      %v8067 = vld [vmem:[%s9 + $0x10] sm:$0xf]
      %v8068 = vld [vmem:[%s9 + $0x14] sm:$0xf]
      %v8069 = vld [vmem:[%s9 + $0x18] sm:$0xf]
      %v8070 = vld [vmem:[%s9 + $0x1c] sm:$0xf]
      %v8071 = vld [vmem:[%s9 + $0x20] sm:$0xf]
      %v8072 = vld [vmem:[%s9 + $0x24] sm:$0xf]
      %v8073 = vld [vmem:[%s9 + $0x28] sm:$0xf]
      %v8074 = vld [vmem:[%s9 + $0x2c] sm:$0xf]
      %v8075 = vld [vmem:[%s9 + $0x30] sm:$0xf]
      %v8076 = vld [vmem:[%s9 + $0x34] sm:$0xf]
      %v8077 = vld [vmem:[%s9 + $0x38] sm:$0xf]
      %v8078 = vld [vmem:[%s9 + $0x3c] sm:$0xf]
      %v8081 = vrot.slane %v7100, 3
      %v8082 = vrot.slane %v7102, 3
      %v8083 = vsel %vm2974, %v8081, %v8082
      %v8102 = vunpack.c.l.b16 %v8063
      %v8103 = vunpack.c.l.b16 %v8064
      %v8104 = vunpack.c.l.b16 %v8065
      %v8105 = vunpack.c.l.b16 %v8066
      %v8106 = vunpack.c.l.b16 %v8067
      %v8107 = vunpack.c.l.b16 %v8068
      %v8108 = vunpack.c.l.b16 %v8069
      %v8109 = vunpack.c.l.b16 %v8070
      %v8110 = vunpack.c.l.b16 %v8071
      %v8111 = vunpack.c.l.b16 %v8072
      %v8112 = vunpack.c.l.b16 %v8073
      %v8113 = vunpack.c.l.b16 %v8074
      %v8114 = vunpack.c.l.b16 %v8075
      %v8115 = vunpack.c.l.b16 %v8076
      %v8116 = vunpack.c.l.b16 %v8077
      %v8117 = vunpack.c.l.b16 %v8078
      %v8118 = vpack.c.b16 %v8103, %v8102
      %v8119 = vpack.c.b16 %v8105, %v8104
      %v8120 = vpack.c.b16 %v8107, %v8106
      %v8121 = vpack.c.b16 %v8109, %v8108
      %v8122 = vpack.c.b16 %v8111, %v8110
      %v8123 = vpack.c.b16 %v8113, %v8112
      %v8124 = vpack.c.b16 %v8115, %v8114
      %v8125 = vpack.c.b16 %v8117, %v8116
      %8134 = vmatprep.subr.bf16.mxu0 0
      %8135 = vmatpush1.bf16.msra.mxu0 %v8118
      %8136 = vmatprep.subr.bf16.mxu0 0
      %8137 = vmatpush1.bf16.msra.mxu0 %v8119
      %8138 = vmatprep.subr.bf16.mxu0 0
      %8139 = vmatpush1.bf16.msra.mxu0 %v8120
      %8140 = vmatprep.subr.bf16.mxu0 0
      %8141 = vmatpush1.bf16.msra.mxu0 %v8121
      %8142 = vmatprep.subr.bf16.mxu0 0
      %8143 = vmatpush1.bf16.msra.mxu0 %v8122
      %8144 = vmatprep.subr.bf16.mxu0 0
      %8145 = vmatpush1.bf16.msra.mxu0 %v8123
      %8146 = vmatprep.subr.bf16.mxu0 0
      %8147 = vmatpush1.bf16.msra.mxu0 %v8124
      %8148 = vmatprep.subr.bf16.mxu0 0
      %8149 = vmatpush1.bf16.msra.mxu0 %v8125
      %8150 = vmatprep.subr.bf16.mxu0 0
      %8151 = vmatpush1.bf16.msra.mxu0 0
      %8152 = vmatprep.subr.bf16.mxu0 0
      %8153 = vmatpush1.bf16.msra.mxu0 0
      %8154 = vmatprep.subr.bf16.mxu0 0
      %8155 = vmatpush1.bf16.msra.mxu0 0
      %8156 = vmatprep.subr.bf16.mxu0 0
      %8157 = vmatpush1.bf16.msra.mxu0 0
      %8158 = vmatprep.subr.bf16.mxu0 0
      %8159 = vmatpush1.bf16.msra.mxu0 0
      %8160 = vmatprep.subr.bf16.mxu0 0
      %8161 = vmatpush1.bf16.msra.mxu0 0
      %8162 = vmatprep.subr.bf16.mxu0 0
      %8163 = vmatpush1.bf16.msra.mxu0 0
      %8164 = vmatprep.subr.bf16.mxu0 0
      %8165 = vmatpush1.bf16.msra.mxu0 0
      %8166 = vmatprep.mubr.bf16.mxu0 0
      %8167 = vmatmul.mubr.bf16.gmra.mrb[0].mxu0 %v8083
      %v8168 = vpop.f32.mrb[0].mxu0
      %v8169 = vadd.f32 0.0, %v8168
      %v8170 = vpop.f32.mrb[0].mxu0
      %v8171 = vpop.f32.mrb[0].mxu0
      %v8172 = vadd.f32 0.0, %v8171
      %v8173 = vpop.f32.mrb[0].mxu0
      %8174 = vmatprep.mubr.bf16.mxu0 0
      %8175 = vmatmul.mubr.bf16.gmra.mrb[0].mxu0 %v8082
      %v8176 = vpop.f32.mrb[0].mxu0
      %v8177 = vadd.f32 0.0, %v8176
      %v8178 = vpop.f32.mrb[0].mxu0
      %v8179 = vpop.f32.mrb[0].mxu0
      %v8180 = vpop.f32.mrb[0].mxu0
      %8181 = vdwg.mxu0
      %v8182 = vadd.f32 %v8060, %v8169
      %v8183 = vadd.f32 %v8061, %v8172
      %v8184 = vadd.f32 %v8062, %v8177
      %v8185 = vadd.f32 %v8182, %v7125
      %v8186 = vadd.f32 %v8183, %v7125
      %v8187 = vadd.f32 %v8184, %v7125
      %v8188 = vmax.f32 %v8185, 0.0
      %v8189 = vmax.f32 %v8186, 0.0
      %v8190 = vmax.f32 %v8187, 0.0
      %v8191 = vld [vmem:[%s17] sm:$0xf]
      %v8192 = vld [vmem:[%s17 + $0x4] sm:$0xf]
      %v8193 = vld [vmem:[%s17 + $0x8] sm:$0xf]
      %v8194 = vld [vmem:[%s17 + $0xc] sm:$0xf]
      %v8195 = vld [vmem:[%s17 + $0x10] sm:$0xf]
      %v8196 = vld [vmem:[%s17 + $0x14] sm:$0xf]
      %v8197 = vld [vmem:[%s17 + $0x18] sm:$0xf]
      %v8198 = vld [vmem:[%s17 + $0x1c] sm:$0xf]
      %v8199 = vld [vmem:[%s17 + $0x20] sm:$0xf]
      %v8200 = vld [vmem:[%s17 + $0x24] sm:$0xf]
      %v8201 = vld [vmem:[%s17 + $0x28] sm:$0xf]
      %v8202 = vld [vmem:[%s17 + $0x2c] sm:$0x1]
      %v8203 = vpack.c.bf16 %v7224, %v7223
      %v8204 = vpack.c.bf16 %v7225, %v7225
      %s8205 = scalar_lea.vmem %s17, 48
      %v8206 = vld [vmem:[%s8205] sm:$0xf]
      %v8207 = vld [vmem:[%s8205 + $0x4] sm:$0xf]
      %v8208 = vld [vmem:[%s8205 + $0x8] sm:$0xf]
      %v8209 = vld [vmem:[%s8205 + $0xc] sm:$0xf]
      %v8210 = vld [vmem:[%s8205 + $0x10] sm:$0xf]
      %v8211 = vld [vmem:[%s8205 + $0x14] sm:$0xf]
      %v8212 = vld [vmem:[%s8205 + $0x18] sm:$0xf]
      %v8213 = vld [vmem:[%s8205 + $0x1c] sm:$0xf]
      %v8214 = vld [vmem:[%s8205 + $0x20] sm:$0xf]
      %v8215 = vld [vmem:[%s8205 + $0x24] sm:$0xf]
      %v8216 = vld [vmem:[%s8205 + $0x28] sm:$0xf]
      %v8217 = vld [vmem:[%s8205 + $0x2c] sm:$0x1]
      %v8218 = vpack.c.bf16 %v7473, %v7472
      %v8219 = vpack.c.bf16 %v7474, %v7474
      %v8232 = vunpack.c.l.b16 %v8206
      %v8233 = vunpack.c.l.b16 %v8207
      %v8234 = vunpack.c.l.b16 %v8208
      %v8235 = vunpack.c.l.b16 %v8209
      %v8236 = vunpack.c.l.b16 %v8210
      %v8237 = vunpack.c.l.b16 %v8211
      %v8238 = vunpack.c.l.b16 %v8212
      %v8239 = vunpack.c.l.b16 %v8213
      %v8240 = vunpack.c.l.b16 %v8214
      %v8241 = vunpack.c.l.b16 %v8215
      %v8242 = vunpack.c.l.b16 %v8216
      %v8243 = vunpack.c.l.b16 %v8217
      %v8244 = vpack.c.b16 %v8233, %v8232
      %v8245 = vpack.c.b16 %v8235, %v8234
      %v8246 = vpack.c.b16 %v8237, %v8236
      %v8247 = vpack.c.b16 %v8239, %v8238
      %v8248 = vpack.c.b16 %v8241, %v8240
      %v8249 = vpack.c.b16 %v8243, %v8242
      %vm8250 = vcmask 162816
      %v8252 = vsel %vm8250, %v8244, 0
      %v8255 = vsel %vm8250, %v8245, 0
      %v8258 = vsel %vm8250, %v8246, 0
      %v8261 = vsel %vm8250, %v8247, 0
      %v8264 = vsel %vm8250, %v8248, 0
      %v8267 = vsel %vm8250, %v8249, 0
      %v8270 = vsel %vm792, %v8219, 0
      %8272 = vmatprep.subr.bf16.mxu0 0
      %8273 = vmatpush1.bf16.msra.mxu0 %v8218
      %8274 = vmatprep.subr.bf16.mxu0 0
      %8275 = vmatpush1.bf16.msra.mxu0 %v8270
      %8276 = vmatprep.subr.bf16.mxu0 0
      %8277 = vmatpush1.bf16.msra.mxu0 0
      %8278 = vmatprep.subr.bf16.mxu0 0
      %8279 = vmatpush1.bf16.msra.mxu0 0
      %8280 = vmatprep.subr.bf16.mxu0 0
      %8281 = vmatpush1.bf16.msra.mxu0 0
      %8282 = vmatprep.subr.bf16.mxu0 0
      %8283 = vmatpush1.bf16.msra.mxu0 0
      %8284 = vmatprep.subr.bf16.mxu0 0
      %8285 = vmatpush1.bf16.msra.mxu0 0
      %8286 = vmatprep.subr.bf16.mxu0 0
      %8287 = vmatpush1.bf16.msra.mxu0 0
      %8288 = vmatprep.subr.bf16.mxu0 0
      %8289 = vmatpush1.bf16.msra.mxu0 0
      %8290 = vmatprep.subr.bf16.mxu0 0
      %8291 = vmatpush1.bf16.msra.mxu0 0
      %8292 = vmatprep.subr.bf16.mxu0 0
      %8293 = vmatpush1.bf16.msra.mxu0 0
      %8294 = vmatprep.subr.bf16.mxu0 0
      %8295 = vmatpush1.bf16.msra.mxu0 0
      %8296 = vmatprep.subr.bf16.mxu0 0
      %8297 = vmatpush1.bf16.msra.mxu0 0
      %8298 = vmatprep.subr.bf16.mxu0 0
      %8299 = vmatpush1.bf16.msra.mxu0 0
      %8300 = vmatprep.subr.bf16.mxu0 0
      %8301 = vmatpush1.bf16.msra.mxu0 0
      %8302 = vmatprep.subr.bf16.mxu0 0
      %8303 = vmatpush1.bf16.msra.mxu0 0
      %8304 = vmatprep.mubr.bf16.mxu0 0
      %8305 = vmatmul.mubr.bf16.gmra.mrb[0].mxu0 %v8252
      %v8306 = vpop.f32.mrb[0].mxu0
      %v8307 = vadd.f32 0.0, %v8306
      %v8308 = vpop.f32.mrb[0].mxu0
      %v8309 = vpop.f32.mrb[0].mxu0
      %v8310 = vadd.f32 0.0, %v8309
      %v8311 = vpop.f32.mrb[0].mxu0
      %8312 = vmatprep.mubr.bf16.mxu0 0
      %8313 = vmatmul.mubr.bf16.gmra.mrb[0].mxu0 %v8255
      %v8314 = vpop.f32.mrb[0].mxu0
      %v8315 = vadd.f32 0.0, %v8314
      %v8316 = vpop.f32.mrb[0].mxu0
      %v8317 = vpop.f32.mrb[0].mxu0
      %v8318 = vadd.f32 0.0, %v8317
      %v8319 = vpop.f32.mrb[0].mxu0
      %8320 = vmatprep.mubr.bf16.mxu0 0
      %8321 = vmatmul.mubr.bf16.gmra.mrb[0].mxu0 %v8258
      %v8322 = vpop.f32.mrb[0].mxu0
      %v8323 = vadd.f32 0.0, %v8322
      %v8324 = vpop.f32.mrb[0].mxu0
      %v8325 = vpop.f32.mrb[0].mxu0
      %v8326 = vadd.f32 0.0, %v8325
      %v8327 = vpop.f32.mrb[0].mxu0
      %8328 = vmatprep.mubr.bf16.mxu0 0
      %8329 = vmatmul.mubr.bf16.gmra.mrb[0].mxu0 %v8261
      %v8330 = vpop.f32.mrb[0].mxu0
      %v8331 = vadd.f32 0.0, %v8330
      %v8332 = vpop.f32.mrb[0].mxu0
      %v8333 = vpop.f32.mrb[0].mxu0
      %v8334 = vadd.f32 0.0, %v8333
      %v8335 = vpop.f32.mrb[0].mxu0
      %8336 = vmatprep.mubr.bf16.mxu0 0
      %8337 = vmatmul.mubr.bf16.gmra.mrb[0].mxu0 %v8264
      %v8338 = vpop.f32.mrb[0].mxu0
      %v8339 = vadd.f32 0.0, %v8338
      %v8340 = vpop.f32.mrb[0].mxu0
      %v8341 = vpop.f32.mrb[0].mxu0
      %v8342 = vadd.f32 0.0, %v8341
      %v8343 = vpop.f32.mrb[0].mxu0
      %8344 = vmatprep.mubr.bf16.mxu0 0
      %8345 = vmatmul.mubr.bf16.gmra.mrb[0].mxu0 %v8267
      %v8346 = vpop.f32.mrb[0].mxu0
      %v8347 = vadd.f32 0.0, %v8346
      %v8348 = vpop.f32.mrb[0].mxu0
      %v8349 = vpop.f32.mrb[0].mxu0
      %v8350 = vpop.f32.mrb[0].mxu0
      %8351 = vdwg.mxu0
      %v8364 = vunpack.c.l.b16 %v8191
      %v8365 = vunpack.c.l.b16 %v8192
      %v8366 = vunpack.c.l.b16 %v8193
      %v8367 = vunpack.c.l.b16 %v8194
      %v8368 = vunpack.c.l.b16 %v8195
      %v8369 = vunpack.c.l.b16 %v8196
      %v8370 = vunpack.c.l.b16 %v8197
      %v8371 = vunpack.c.l.b16 %v8198
      %v8372 = vunpack.c.l.b16 %v8199
      %v8373 = vunpack.c.l.b16 %v8200
      %v8374 = vunpack.c.l.b16 %v8201
      %v8375 = vunpack.c.l.b16 %v8202
      %v8376 = vpack.c.b16 %v8365, %v8364
      %v8377 = vpack.c.b16 %v8367, %v8366
      %v8378 = vpack.c.b16 %v8369, %v8368
      %v8379 = vpack.c.b16 %v8371, %v8370
      %v8380 = vpack.c.b16 %v8373, %v8372
      %v8381 = vpack.c.b16 %v8375, %v8374
      %v8383 = vsel %vm8250, %v8376, 0
      %v8386 = vsel %vm8250, %v8377, 0
      %v8389 = vsel %vm8250, %v8378, 0
      %v8392 = vsel %vm8250, %v8379, 0
      %v8395 = vsel %vm8250, %v8380, 0
      %v8398 = vsel %vm8250, %v8381, 0
      %v8401 = vsel %vm792, %v8204, 0
      %8403 = vmatprep.subr.bf16.mxu0 0
      %8404 = vmatpush1.bf16.msra.mxu0 %v8203
      %8405 = vmatprep.subr.bf16.mxu0 0
      %8406 = vmatpush1.bf16.msra.mxu0 %v8401
      %8407 = vmatprep.subr.bf16.mxu0 0
      %8408 = vmatpush1.bf16.msra.mxu0 0
      %8409 = vmatprep.subr.bf16.mxu0 0
      %8410 = vmatpush1.bf16.msra.mxu0 0
      %8411 = vmatprep.subr.bf16.mxu0 0
      %8412 = vmatpush1.bf16.msra.mxu0 0
      %8413 = vmatprep.subr.bf16.mxu0 0
      %8414 = vmatpush1.bf16.msra.mxu0 0
      %8415 = vmatprep.subr.bf16.mxu0 0
      %8416 = vmatpush1.bf16.msra.mxu0 0
      %8417 = vmatprep.subr.bf16.mxu0 0
      %8418 = vmatpush1.bf16.msra.mxu0 0
      %8419 = vmatprep.subr.bf16.mxu0 0
      %8420 = vmatpush1.bf16.msra.mxu0 0
      %8421 = vmatprep.subr.bf16.mxu0 0
      %8422 = vmatpush1.bf16.msra.mxu0 0
      %8423 = vmatprep.subr.bf16.mxu0 0
      %8424 = vmatpush1.bf16.msra.mxu0 0
      %8425 = vmatprep.subr.bf16.mxu0 0
      %8426 = vmatpush1.bf16.msra.mxu0 0
      %8427 = vmatprep.subr.bf16.mxu0 0
      %8428 = vmatpush1.bf16.msra.mxu0 0
      %8429 = vmatprep.subr.bf16.mxu0 0
      %8430 = vmatpush1.bf16.msra.mxu0 0
      %8431 = vmatprep.subr.bf16.mxu0 0
      %8432 = vmatpush1.bf16.msra.mxu0 0
      %8433 = vmatprep.subr.bf16.mxu0 0
      %8434 = vmatpush1.bf16.msra.mxu0 0
      %8435 = vmatprep.mubr.bf16.mxu0 0
      %8436 = vmatmul.mubr.bf16.gmra.mrb[0].mxu0 %v8383
      %v8437 = vpop.f32.mrb[0].mxu0
      %v8438 = vadd.f32 %v8307, %v8437
      %v8439 = vpop.f32.mrb[0].mxu0
      %v8440 = vpop.f32.mrb[0].mxu0
      %v8441 = vadd.f32 %v8310, %v8440
      %v8442 = vpop.f32.mrb[0].mxu0
      %8443 = vmatprep.mubr.bf16.mxu0 0
      %8444 = vmatmul.mubr.bf16.gmra.mrb[0].mxu0 %v8386
      %v8445 = vpop.f32.mrb[0].mxu0
      %v8446 = vadd.f32 %v8315, %v8445
      %v8447 = vpop.f32.mrb[0].mxu0
      %v8448 = vpop.f32.mrb[0].mxu0
      %v8449 = vadd.f32 %v8318, %v8448
      %v8450 = vpop.f32.mrb[0].mxu0
      %8451 = vmatprep.mubr.bf16.mxu0 0
      %8452 = vmatmul.mubr.bf16.gmra.mrb[0].mxu0 %v8389
      %v8453 = vpop.f32.mrb[0].mxu0
      %v8454 = vadd.f32 %v8323, %v8453
      %v8455 = vpop.f32.mrb[0].mxu0
      %v8456 = vpop.f32.mrb[0].mxu0
      %v8457 = vadd.f32 %v8326, %v8456
      %v8458 = vpop.f32.mrb[0].mxu0
      %8459 = vmatprep.mubr.bf16.mxu0 0
      %8460 = vmatmul.mubr.bf16.gmra.mrb[0].mxu0 %v8392
      %v8461 = vpop.f32.mrb[0].mxu0
      %v8462 = vadd.f32 %v8331, %v8461
      %v8463 = vpop.f32.mrb[0].mxu0
      %v8464 = vpop.f32.mrb[0].mxu0
      %v8465 = vadd.f32 %v8334, %v8464
      %v8466 = vpop.f32.mrb[0].mxu0
      %8467 = vmatprep.mubr.bf16.mxu0 0
      %8468 = vmatmul.mubr.bf16.gmra.mrb[0].mxu0 %v8395
      %v8469 = vpop.f32.mrb[0].mxu0
      %v8470 = vadd.f32 %v8339, %v8469
      %v8471 = vpop.f32.mrb[0].mxu0
      %v8472 = vpop.f32.mrb[0].mxu0
      %v8473 = vadd.f32 %v8342, %v8472
      %v8474 = vpop.f32.mrb[0].mxu0
      %8475 = vmatprep.mubr.bf16.mxu0 0
      %8476 = vmatmul.mubr.bf16.gmra.mrb[0].mxu0 %v8398
      %v8477 = vpop.f32.mrb[0].mxu0
      %v8478 = vadd.f32 %v8347, %v8477
      %v8479 = vpop.f32.mrb[0].mxu0
      %v8480 = vpop.f32.mrb[0].mxu0
      %v8481 = vpop.f32.mrb[0].mxu0
      %8482 = vdwg.mxu0
      %s8483 = scalar_lea.vmem %s17, 96
      %v8484 = vld [vmem:[%s8483] sm:$0xf]
      %v8485 = vld [vmem:[%s8483 + $0x4] sm:$0xf]
      %v8486 = vld [vmem:[%s8483 + $0x8] sm:$0xf]
      %v8487 = vld [vmem:[%s8483 + $0xc] sm:$0xf]
      %v8488 = vld [vmem:[%s8483 + $0x10] sm:$0xf]
      %v8489 = vld [vmem:[%s8483 + $0x14] sm:$0xf]
      %v8490 = vld [vmem:[%s8483 + $0x18] sm:$0xf]
      %v8491 = vld [vmem:[%s8483 + $0x1c] sm:$0xf]
      %v8492 = vld [vmem:[%s8483 + $0x20] sm:$0xf]
      %v8493 = vld [vmem:[%s8483 + $0x24] sm:$0xf]
      %v8494 = vld [vmem:[%s8483 + $0x28] sm:$0xf]
      %v8495 = vld [vmem:[%s8483 + $0x2c] sm:$0x1]
      %v8496 = vpack.c.bf16 %v7719, %v7718
      %v8497 = vpack.c.bf16 %v7720, %v7720
      %v8510 = vunpack.c.l.b16 %v8484
      %v8511 = vunpack.c.l.b16 %v8485
      %v8512 = vunpack.c.l.b16 %v8486
      %v8513 = vunpack.c.l.b16 %v8487
      %v8514 = vunpack.c.l.b16 %v8488
      %v8515 = vunpack.c.l.b16 %v8489
      %v8516 = vunpack.c.l.b16 %v8490
      %v8517 = vunpack.c.l.b16 %v8491
      %v8518 = vunpack.c.l.b16 %v8492
      %v8519 = vunpack.c.l.b16 %v8493
      %v8520 = vunpack.c.l.b16 %v8494
      %v8521 = vunpack.c.l.b16 %v8495
      %v8522 = vpack.c.b16 %v8511, %v8510
      %v8523 = vpack.c.b16 %v8513, %v8512
      %v8524 = vpack.c.b16 %v8515, %v8514
      %v8525 = vpack.c.b16 %v8517, %v8516
      %v8526 = vpack.c.b16 %v8519, %v8518
      %v8527 = vpack.c.b16 %v8521, %v8520
      %v8529 = vsel %vm8250, %v8522, 0
      %v8532 = vsel %vm8250, %v8523, 0
      %v8535 = vsel %vm8250, %v8524, 0
      %v8538 = vsel %vm8250, %v8525, 0
      %v8541 = vsel %vm8250, %v8526, 0
      %v8544 = vsel %vm8250, %v8527, 0
      %v8547 = vsel %vm792, %v8497, 0
      %8549 = vmatprep.subr.bf16.mxu0 0
      %8550 = vmatpush1.bf16.msra.mxu0 %v8496
      %8551 = vmatprep.subr.bf16.mxu0 0
      %8552 = vmatpush1.bf16.msra.mxu0 %v8547
      %8553 = vmatprep.subr.bf16.mxu0 0
      %8554 = vmatpush1.bf16.msra.mxu0 0
      %8555 = vmatprep.subr.bf16.mxu0 0
      %8556 = vmatpush1.bf16.msra.mxu0 0
      %8557 = vmatprep.subr.bf16.mxu0 0
      %8558 = vmatpush1.bf16.msra.mxu0 0
      %8559 = vmatprep.subr.bf16.mxu0 0
      %8560 = vmatpush1.bf16.msra.mxu0 0
      %8561 = vmatprep.subr.bf16.mxu0 0
      %8562 = vmatpush1.bf16.msra.mxu0 0
      %8563 = vmatprep.subr.bf16.mxu0 0
      %8564 = vmatpush1.bf16.msra.mxu0 0
      %8565 = vmatprep.subr.bf16.mxu0 0
      %8566 = vmatpush1.bf16.msra.mxu0 0
      %8567 = vmatprep.subr.bf16.mxu0 0
      %8568 = vmatpush1.bf16.msra.mxu0 0
      %8569 = vmatprep.subr.bf16.mxu0 0
      %8570 = vmatpush1.bf16.msra.mxu0 0
      %8571 = vmatprep.subr.bf16.mxu0 0
      %8572 = vmatpush1.bf16.msra.mxu0 0
      %8573 = vmatprep.subr.bf16.mxu0 0
      %8574 = vmatpush1.bf16.msra.mxu0 0
      %8575 = vmatprep.subr.bf16.mxu0 0
      %8576 = vmatpush1.bf16.msra.mxu0 0
      %8577 = vmatprep.subr.bf16.mxu0 0
      %8578 = vmatpush1.bf16.msra.mxu0 0
      %8579 = vmatprep.subr.bf16.mxu0 0
      %8580 = vmatpush1.bf16.msra.mxu0 0
      %8581 = vmatprep.mubr.bf16.mxu0 0
      %8582 = vmatmul.mubr.bf16.gmra.mrb[0].mxu0 %v8529
      %v8583 = vpop.f32.mrb[0].mxu0
      %v8584 = vadd.f32 0.0, %v8583
      %v8585 = vpop.f32.mrb[0].mxu0
      %v8586 = vpop.f32.mrb[0].mxu0
      %v8587 = vadd.f32 0.0, %v8586
      %v8588 = vpop.f32.mrb[0].mxu0
      %8589 = vmatprep.mubr.bf16.mxu0 0
      %8590 = vmatmul.mubr.bf16.gmra.mrb[0].mxu0 %v8532
      %v8591 = vpop.f32.mrb[0].mxu0
      %v8592 = vadd.f32 0.0, %v8591
      %v8593 = vpop.f32.mrb[0].mxu0
      %v8594 = vpop.f32.mrb[0].mxu0
      %v8595 = vadd.f32 0.0, %v8594
      %v8596 = vpop.f32.mrb[0].mxu0
      %8597 = vmatprep.mubr.bf16.mxu0 0
      %8598 = vmatmul.mubr.bf16.gmra.mrb[0].mxu0 %v8535
      %v8599 = vpop.f32.mrb[0].mxu0
      %v8600 = vadd.f32 0.0, %v8599
      %v8601 = vpop.f32.mrb[0].mxu0
      %v8602 = vpop.f32.mrb[0].mxu0
      %v8603 = vadd.f32 0.0, %v8602
      %v8604 = vpop.f32.mrb[0].mxu0
      %8605 = vmatprep.mubr.bf16.mxu0 0
      %8606 = vmatmul.mubr.bf16.gmra.mrb[0].mxu0 %v8538
      %v8607 = vpop.f32.mrb[0].mxu0
      %v8608 = vadd.f32 0.0, %v8607
      %v8609 = vpop.f32.mrb[0].mxu0
      %v8610 = vpop.f32.mrb[0].mxu0
      %v8611 = vadd.f32 0.0, %v8610
      %v8612 = vpop.f32.mrb[0].mxu0
      %8613 = vmatprep.mubr.bf16.mxu0 0
      %8614 = vmatmul.mubr.bf16.gmra.mrb[0].mxu0 %v8541
      %v8615 = vpop.f32.mrb[0].mxu0
      %v8616 = vadd.f32 0.0, %v8615
      %v8617 = vpop.f32.mrb[0].mxu0
      %v8618 = vpop.f32.mrb[0].mxu0
      %v8619 = vadd.f32 0.0, %v8618
      %v8620 = vpop.f32.mrb[0].mxu0
      %8621 = vmatprep.mubr.bf16.mxu0 0
      %8622 = vmatmul.mubr.bf16.gmra.mrb[0].mxu0 %v8544
      %v8623 = vpop.f32.mrb[0].mxu0
      %v8624 = vadd.f32 0.0, %v8623
      %v8625 = vpop.f32.mrb[0].mxu0
      %v8626 = vpop.f32.mrb[0].mxu0
      %v8627 = vpop.f32.mrb[0].mxu0
      %8628 = vdwg.mxu0
      %v8629 = vadd.f32 %v8438, %v8584
      %v8630 = vadd.f32 %v8441, %v8587
      %v8631 = vadd.f32 %v8446, %v8592
      %v8632 = vadd.f32 %v8449, %v8595
      %v8633 = vadd.f32 %v8454, %v8600
      %v8634 = vadd.f32 %v8457, %v8603
      %v8635 = vadd.f32 %v8462, %v8608
      %v8636 = vadd.f32 %v8465, %v8611
      %v8637 = vadd.f32 %v8470, %v8616
      %v8638 = vadd.f32 %v8473, %v8619
      %v8639 = vadd.f32 %v8478, %v8624
      %s8640 = scalar_lea.vmem %s17, 144
      %v8641 = vld [vmem:[%s8640] sm:$0xf]
      %v8642 = vld [vmem:[%s8640 + $0x4] sm:$0xf]
      %v8643 = vld [vmem:[%s8640 + $0x8] sm:$0xf]
      %v8644 = vld [vmem:[%s8640 + $0xc] sm:$0xf]
      %v8645 = vld [vmem:[%s8640 + $0x10] sm:$0xf]
      %v8646 = vld [vmem:[%s8640 + $0x14] sm:$0xf]
      %v8647 = vld [vmem:[%s8640 + $0x18] sm:$0xf]
      %v8648 = vld [vmem:[%s8640 + $0x1c] sm:$0xf]
      %v8649 = vld [vmem:[%s8640 + $0x20] sm:$0xf]
      %v8650 = vld [vmem:[%s8640 + $0x24] sm:$0xf]
      %v8651 = vld [vmem:[%s8640 + $0x28] sm:$0xf]
      %v8652 = vld [vmem:[%s8640 + $0x2c] sm:$0x1]
      %v8653 = vpack.c.bf16 %v8189, %v8188
      %v8654 = vpack.c.bf16 %v8190, %v8190
      %v8667 = vunpack.c.l.b16 %v8641
      %v8668 = vunpack.c.l.b16 %v8642
      %v8669 = vunpack.c.l.b16 %v8643
      %v8670 = vunpack.c.l.b16 %v8644
      %v8671 = vunpack.c.l.b16 %v8645
      %v8672 = vunpack.c.l.b16 %v8646
      %v8673 = vunpack.c.l.b16 %v8647
      %v8674 = vunpack.c.l.b16 %v8648
      %v8675 = vunpack.c.l.b16 %v8649
      %v8676 = vunpack.c.l.b16 %v8650
      %v8677 = vunpack.c.l.b16 %v8651
      %v8678 = vunpack.c.l.b16 %v8652
      %v8679 = vpack.c.b16 %v8668, %v8667
      %v8680 = vpack.c.b16 %v8670, %v8669
      %v8681 = vpack.c.b16 %v8672, %v8671
      %v8682 = vpack.c.b16 %v8674, %v8673
      %v8683 = vpack.c.b16 %v8676, %v8675
      %v8684 = vpack.c.b16 %v8678, %v8677
      %v8686 = vsel %vm8250, %v8679, 0
      %v8689 = vsel %vm8250, %v8680, 0
      %v8692 = vsel %vm8250, %v8681, 0
      %v8695 = vsel %vm8250, %v8682, 0
      %v8698 = vsel %vm8250, %v8683, 0
      %v8701 = vsel %vm8250, %v8684, 0
      %v8704 = vsel %vm792, %v8654, 0
      %8706 = vmatprep.subr.bf16.mxu0 0
      %8707 = vmatpush1.bf16.msra.mxu0 %v8653
      %8708 = vmatprep.subr.bf16.mxu0 0
      %8709 = vmatpush1.bf16.msra.mxu0 %v8704
      %8710 = vmatprep.subr.bf16.mxu0 0
      %8711 = vmatpush1.bf16.msra.mxu0 0
      %8712 = vmatprep.subr.bf16.mxu0 0
      %8713 = vmatpush1.bf16.msra.mxu0 0
      %8714 = vmatprep.subr.bf16.mxu0 0
      %8715 = vmatpush1.bf16.msra.mxu0 0
      %8716 = vmatprep.subr.bf16.mxu0 0
      %8717 = vmatpush1.bf16.msra.mxu0 0
      %8718 = vmatprep.subr.bf16.mxu0 0
      %8719 = vmatpush1.bf16.msra.mxu0 0
      %8720 = vmatprep.subr.bf16.mxu0 0
      %8721 = vmatpush1.bf16.msra.mxu0 0
      %8722 = vmatprep.subr.bf16.mxu0 0
      %8723 = vmatpush1.bf16.msra.mxu0 0
      %8724 = vmatprep.subr.bf16.mxu0 0
      %8725 = vmatpush1.bf16.msra.mxu0 0
      %8726 = vmatprep.subr.bf16.mxu0 0
      %8727 = vmatpush1.bf16.msra.mxu0 0
      %8728 = vmatprep.subr.bf16.mxu0 0
      %8729 = vmatpush1.bf16.msra.mxu0 0
      %8730 = vmatprep.subr.bf16.mxu0 0
      %8731 = vmatpush1.bf16.msra.mxu0 0
      %8732 = vmatprep.subr.bf16.mxu0 0
      %8733 = vmatpush1.bf16.msra.mxu0 0
      %8734 = vmatprep.subr.bf16.mxu0 0
      %8735 = vmatpush1.bf16.msra.mxu0 0
      %8736 = vmatprep.subr.bf16.mxu0 0
      %8737 = vmatpush1.bf16.msra.mxu0 0
      %8738 = vmatprep.mubr.bf16.mxu0 0
      %8739 = vmatmul.mubr.bf16.gmra.mrb[0].mxu0 %v8686
      %v8740 = vpop.f32.mrb[0].mxu0
      %v8741 = vadd.f32 0.0, %v8740
      %v8742 = vpop.f32.mrb[0].mxu0
      %v8743 = vpop.f32.mrb[0].mxu0
      %v8744 = vadd.f32 0.0, %v8743
      %v8745 = vpop.f32.mrb[0].mxu0
      %8746 = vmatprep.mubr.bf16.mxu0 0
      %8747 = vmatmul.mubr.bf16.gmra.mrb[0].mxu0 %v8689
      %v8748 = vpop.f32.mrb[0].mxu0
      %v8749 = vadd.f32 0.0, %v8748
      %v8750 = vpop.f32.mrb[0].mxu0
      %v8751 = vpop.f32.mrb[0].mxu0
      %v8752 = vadd.f32 0.0, %v8751
      %v8753 = vpop.f32.mrb[0].mxu0
      %8754 = vmatprep.mubr.bf16.mxu0 0
      %8755 = vmatmul.mubr.bf16.gmra.mrb[0].mxu0 %v8692
      %v8756 = vpop.f32.mrb[0].mxu0
      %v8757 = vadd.f32 0.0, %v8756
      %v8758 = vpop.f32.mrb[0].mxu0
      %v8759 = vpop.f32.mrb[0].mxu0
      %v8760 = vadd.f32 0.0, %v8759
      %v8761 = vpop.f32.mrb[0].mxu0
      %8762 = vmatprep.mubr.bf16.mxu0 0
      %8763 = vmatmul.mubr.bf16.gmra.mrb[0].mxu0 %v8695
      %v8764 = vpop.f32.mrb[0].mxu0
      %v8765 = vadd.f32 0.0, %v8764
      %v8766 = vpop.f32.mrb[0].mxu0
      %v8767 = vpop.f32.mrb[0].mxu0
      %v8768 = vadd.f32 0.0, %v8767
      %v8769 = vpop.f32.mrb[0].mxu0
      %8770 = vmatprep.mubr.bf16.mxu0 0
      %8771 = vmatmul.mubr.bf16.gmra.mrb[0].mxu0 %v8698
      %v8772 = vpop.f32.mrb[0].mxu0
      %v8773 = vadd.f32 0.0, %v8772
      %v8774 = vpop.f32.mrb[0].mxu0
      %v8775 = vpop.f32.mrb[0].mxu0
      %v8776 = vadd.f32 0.0, %v8775
      %v8777 = vpop.f32.mrb[0].mxu0
      %8778 = vmatprep.mubr.bf16.mxu0 0
      %8779 = vmatmul.mubr.bf16.gmra.mrb[0].mxu0 %v8701
      %v8780 = vpop.f32.mrb[0].mxu0
      %v8781 = vadd.f32 0.0, %v8780
      %v8782 = vpop.f32.mrb[0].mxu0
      %v8783 = vpop.f32.mrb[0].mxu0
      %v8784 = vpop.f32.mrb[0].mxu0
      %8785 = vdwg.mxu0
      %v8786 = vadd.f32 %v8629, %v8741
      %v8787 = vadd.f32 %v8630, %v8744
      %v8788 = vadd.f32 %v8631, %v8749
      %v8789 = vadd.f32 %v8632, %v8752
      %v8790 = vadd.f32 %v8633, %v8757
      %v8791 = vadd.f32 %v8634, %v8760
      %v8792 = vadd.f32 %v8635, %v8765
      %v8793 = vadd.f32 %v8636, %v8768
      %v8794 = vadd.f32 %v8637, %v8773
      %v8795 = vadd.f32 %v8638, %v8776
      %v8796 = vadd.f32 %v8639, %v8781
      %v8797 = vpack.c.bf16 %v8787, %v8786
      %v8798 = vpack.c.bf16 %v8789, %v8788
      %v8799 = vpack.c.bf16 %v8791, %v8790
      %v8800 = vpack.c.bf16 %v8793, %v8792
      %v8801 = vpack.c.bf16 %v8794, %v8794
      %v8802 = vpack.c.bf16 %v8795, %v8794
      %v8803 = vpack.c.bf16 %v8788, %v8787
      %v8804 = vpack.c.bf16 %v8790, %v8789
      %v8805 = vpack.c.bf16 %v8792, %v8791
      %v8806 = vpack.c.bf16 %v8794, %v8793
      %v8807 = vpack.c.bf16 %v8796, %v8795
      %s8808 = scalar_lea.vmem %s11, 128
      %v8809 = vld [vmem:[%s8808] sm:$0xf]
      %v8810 = vld [vmem:[%s8808 + $0x4] sm:$0xf]
      %v8811 = vld [vmem:[%s8808 + $0x8] sm:$0xf]
      %v8812 = vld [vmem:[%s8808 + $0xc] sm:$0xf]
      %v8813 = vld [vmem:[%s8808 + $0x10] sm:$0xf]
      %v8814 = vld [vmem:[%s8808 + $0x14] sm:$0xf]
      %v8815 = vld [vmem:[%s8808 + $0x18] sm:$0xf]
      %v8816 = vld [vmem:[%s8808 + $0x1c] sm:$0xf]
      %v8817 = vld [vmem:[%s12] sm:$0x1]
      %v8819 = vlaneseq
      %v8820 = vshrl.u32 %v8819, 7
      %v8821 = vsub.s32 0, %v8820
      %v8822 = vrot.slane %v8817, %v8821
      %v8832 = vunpack.c.l.b16 %v8809
      %v8833 = vunpack.c.l.b16 %v8810
      %v8834 = vunpack.c.l.b16 %v8811
      %v8835 = vunpack.c.l.b16 %v8812
      %v8836 = vunpack.c.l.b16 %v8813
      %v8837 = vunpack.c.l.b16 %v8814
      %v8838 = vunpack.c.l.b16 %v8815
      %v8839 = vunpack.c.l.b16 %v8816
      %v8840 = vpack.c.b16 %v8833, %v8832
      %v8841 = vpack.c.b16 %v8835, %v8834
      %v8842 = vpack.c.b16 %v8837, %v8836
      %v8843 = vpack.c.b16 %v8839, %v8838
      %v8849 = vsel %vm1827, %v8797, 0
      %v8852 = vsel %vm1827, %v8798, 0
      %v8855 = vsel %vm1827, %v8799, 0
      %v8858 = vsel %vm1827, %v8800, 0
      %v8861 = vsel %vm1827, %v8801, 0
      %8863 = vmatprep.subr.bf16.mxu0 0
      %8864 = vmatpush1.bf16.msra.mxu0 %v8840
      %8865 = vmatprep.subr.bf16.mxu0 0
      %8866 = vmatpush1.bf16.msra.mxu0 %v8841
      %8867 = vmatprep.subr.bf16.mxu0 0
      %8868 = vmatpush1.bf16.msra.mxu0 %v8842
      %8869 = vmatprep.subr.bf16.mxu0 0
      %8870 = vmatpush1.bf16.msra.mxu0 %v8843
      %8871 = vmatprep.subr.bf16.mxu0 0
      %8872 = vmatpush1.bf16.msra.mxu0 0
      %8873 = vmatprep.subr.bf16.mxu0 0
      %8874 = vmatpush1.bf16.msra.mxu0 0
      %8875 = vmatprep.subr.bf16.mxu0 0
      %8876 = vmatpush1.bf16.msra.mxu0 0
      %8877 = vmatprep.subr.bf16.mxu0 0
      %8878 = vmatpush1.bf16.msra.mxu0 0
      %8879 = vmatprep.subr.bf16.mxu0 0
      %8880 = vmatpush1.bf16.msra.mxu0 0
      %8881 = vmatprep.subr.bf16.mxu0 0
      %8882 = vmatpush1.bf16.msra.mxu0 0
      %8883 = vmatprep.subr.bf16.mxu0 0
      %8884 = vmatpush1.bf16.msra.mxu0 0
      %8885 = vmatprep.subr.bf16.mxu0 0
      %8886 = vmatpush1.bf16.msra.mxu0 0
      %8887 = vmatprep.subr.bf16.mxu0 0
      %8888 = vmatpush1.bf16.msra.mxu0 0
      %8889 = vmatprep.subr.bf16.mxu0 0
      %8890 = vmatpush1.bf16.msra.mxu0 0
      %8891 = vmatprep.subr.bf16.mxu0 0
      %8892 = vmatpush1.bf16.msra.mxu0 0
      %8893 = vmatprep.subr.bf16.mxu0 0
      %8894 = vmatpush1.bf16.msra.mxu0 0
      %8895 = vmatprep.mubr.bf16.mxu0 0
      %8896 = vmatmul.mubr.bf16.gmra.mrb[0].mxu0 %v8849
      %v8897 = vpop.f32.mrb[0].mxu0
      %v8898 = vadd.f32 %v8822, %v8897
      %v8899 = vpop.f32.mrb[0].mxu0
      %v8900 = vpop.f32.mrb[0].mxu0
      %v8901 = vadd.f32 %v8822, %v8900
      %v8902 = vpop.f32.mrb[0].mxu0
      %8903 = vmatprep.mubr.bf16.mxu0 0
      %8904 = vmatmul.mubr.bf16.gmra.mrb[0].mxu0 %v8852
      %v8905 = vpop.f32.mrb[0].mxu0
      %v8906 = vadd.f32 %v8822, %v8905
      %v8907 = vpop.f32.mrb[0].mxu0
      %v8908 = vpop.f32.mrb[0].mxu0
      %v8909 = vadd.f32 %v8822, %v8908
      %v8910 = vpop.f32.mrb[0].mxu0
      %8911 = vmatprep.mubr.bf16.mxu0 0
      %8912 = vmatmul.mubr.bf16.gmra.mrb[0].mxu0 %v8855
      %v8913 = vpop.f32.mrb[0].mxu0
      %v8914 = vadd.f32 %v8822, %v8913
      %v8915 = vpop.f32.mrb[0].mxu0
      %v8916 = vpop.f32.mrb[0].mxu0
      %v8917 = vadd.f32 %v8822, %v8916
      %v8918 = vpop.f32.mrb[0].mxu0
      %8919 = vmatprep.mubr.bf16.mxu0 0
      %8920 = vmatmul.mubr.bf16.gmra.mrb[0].mxu0 %v8858
      %v8921 = vpop.f32.mrb[0].mxu0
      %v8922 = vadd.f32 %v8822, %v8921
      %v8923 = vpop.f32.mrb[0].mxu0
      %v8924 = vpop.f32.mrb[0].mxu0
      %v8925 = vadd.f32 %v8822, %v8924
      %v8926 = vpop.f32.mrb[0].mxu0
      %8927 = vmatprep.mubr.bf16.mxu0 0
      %8928 = vmatmul.mubr.bf16.gmra.mrb[0].mxu0 %v8861
      %v8929 = vpop.f32.mrb[0].mxu0
      %v8930 = vadd.f32 %v8822, %v8929
      %v8931 = vpop.f32.mrb[0].mxu0
      %v8932 = vpop.f32.mrb[0].mxu0
      %v8933 = vpop.f32.mrb[0].mxu0
      %8934 = vdwg.mxu0
      %s8935 = scalar_lea.vmem %s11, 160
      %v8936 = vld [vmem:[%s8935] sm:$0xf]
      %v8937 = vld [vmem:[%s8935 + $0x4] sm:$0xf]
      %v8938 = vld [vmem:[%s8935 + $0x8] sm:$0xf]
      %v8939 = vld [vmem:[%s8935 + $0xc] sm:$0xf]
      %v8940 = vld [vmem:[%s8935 + $0x10] sm:$0xf]
      %v8941 = vld [vmem:[%s8935 + $0x14] sm:$0xf]
      %v8942 = vld [vmem:[%s8935 + $0x18] sm:$0xf]
      %v8943 = vld [vmem:[%s8935 + $0x1c] sm:$0xf]
      %s8944 = scalar_lea.vmem %s11, 96
      %v8945 = vld [vmem:[%s8944] sm:$0xf]
      %v8946 = vld [vmem:[%s8944 + $0x4] sm:$0xf]
      %v8947 = vld [vmem:[%s8944 + $0x8] sm:$0xf]
      %v8948 = vld [vmem:[%s8944 + $0xc] sm:$0xf]
      %v8949 = vld [vmem:[%s8944 + $0x10] sm:$0xf]
      %v8950 = vld [vmem:[%s8944 + $0x14] sm:$0xf]
      %v8951 = vld [vmem:[%s8944 + $0x18] sm:$0xf]
      %v8952 = vld [vmem:[%s8944 + $0x1c] sm:$0xf]
      %v8953 = vshrl.u32 %v8797, 16
      %v8955 = vshll.u32 %v8797, 16
      %v8957 = vrot.slane %v8955, 1
      %v8958 = vor.u32 %v8953, %v8957
      %v8959 = vshll.u32 %v8798, 16
      %v8961 = vrot.slane %v8959, 1
      %v8962 = vsel %vm1758, %v8958, %v8961
      %v8963 = vshrl.u32 %v8798, 16
      %v8965 = vor.u32 %v8963, %v8961
      %v8966 = vshll.u32 %v8799, 16
      %v8968 = vrot.slane %v8966, 1
      %v8969 = vsel %vm1758, %v8965, %v8968
      %v8970 = vshrl.u32 %v8799, 16
      %v8972 = vor.u32 %v8970, %v8968
      %v8973 = vshll.u32 %v8800, 16
      %v8975 = vrot.slane %v8973, 1
      %v8976 = vsel %vm1758, %v8972, %v8975
      %v8977 = vshrl.u32 %v8800, 16
      %v8979 = vor.u32 %v8977, %v8975
      %v8981 = vshll.u32 %v8802, 16
      %v8983 = vrot.slane %v8981, 1
      %v8984 = vsel %vm1758, %v8979, %v8983
      %v8985 = vshrl.u32 %v8802, 16
      %v8987 = vor.u32 %v8985, %v8983
      %v8996 = vunpack.c.l.b16 %v8945
      %v8997 = vunpack.c.l.b16 %v8946
      %v8998 = vunpack.c.l.b16 %v8947
      %v8999 = vunpack.c.l.b16 %v8948
      %v9000 = vunpack.c.l.b16 %v8949
      %v9001 = vunpack.c.l.b16 %v8950
      %v9002 = vunpack.c.l.b16 %v8951
      %v9003 = vunpack.c.l.b16 %v8952
      %v9004 = vpack.c.b16 %v8997, %v8996
      %v9005 = vpack.c.b16 %v8999, %v8998
      %v9006 = vpack.c.b16 %v9001, %v9000
      %v9007 = vpack.c.b16 %v9003, %v9002
      %v9013 = vsel %vm1827, %v8962, 0
      %v9016 = vsel %vm1827, %v8969, 0
      %v9019 = vsel %vm1827, %v8976, 0
      %v9022 = vsel %vm1827, %v8984, 0
      %v9025 = vsel %vm1827, %v8987, 0
      %9027 = vmatprep.subr.bf16.mxu0 0
      %9028 = vmatpush1.bf16.msra.mxu0 %v9004
      %9029 = vmatprep.subr.bf16.mxu0 0
      %9030 = vmatpush1.bf16.msra.mxu0 %v9005
      %9031 = vmatprep.subr.bf16.mxu0 0
      %9032 = vmatpush1.bf16.msra.mxu0 %v9006
      %9033 = vmatprep.subr.bf16.mxu0 0
      %9034 = vmatpush1.bf16.msra.mxu0 %v9007
      %9035 = vmatprep.subr.bf16.mxu0 0
      %9036 = vmatpush1.bf16.msra.mxu0 0
      %9037 = vmatprep.subr.bf16.mxu0 0
      %9038 = vmatpush1.bf16.msra.mxu0 0
      %9039 = vmatprep.subr.bf16.mxu0 0
      %9040 = vmatpush1.bf16.msra.mxu0 0
      %9041 = vmatprep.subr.bf16.mxu0 0
      %9042 = vmatpush1.bf16.msra.mxu0 0
      %9043 = vmatprep.subr.bf16.mxu0 0
      %9044 = vmatpush1.bf16.msra.mxu0 0
      %9045 = vmatprep.subr.bf16.mxu0 0
      %9046 = vmatpush1.bf16.msra.mxu0 0
      %9047 = vmatprep.subr.bf16.mxu0 0
      %9048 = vmatpush1.bf16.msra.mxu0 0
      %9049 = vmatprep.subr.bf16.mxu0 0
      %9050 = vmatpush1.bf16.msra.mxu0 0
      %9051 = vmatprep.subr.bf16.mxu0 0
      %9052 = vmatpush1.bf16.msra.mxu0 0
      %9053 = vmatprep.subr.bf16.mxu0 0
      %9054 = vmatpush1.bf16.msra.mxu0 0
      %9055 = vmatprep.subr.bf16.mxu0 0
      %9056 = vmatpush1.bf16.msra.mxu0 0
      %9057 = vmatprep.subr.bf16.mxu0 0
      %9058 = vmatpush1.bf16.msra.mxu0 0
      %9059 = vmatprep.mubr.bf16.mxu0 0
      %9060 = vmatmul.mubr.bf16.gmra.mrb[0].mxu0 %v9013
      %v9061 = vpop.f32.mrb[0].mxu0
      %v9062 = vadd.f32 0.0, %v9061
      %v9063 = vpop.f32.mrb[0].mxu0
      %v9064 = vpop.f32.mrb[0].mxu0
      %v9065 = vadd.f32 0.0, %v9064
      %v9066 = vpop.f32.mrb[0].mxu0
      %9067 = vmatprep.mubr.bf16.mxu0 0
      %9068 = vmatmul.mubr.bf16.gmra.mrb[0].mxu0 %v9016
      %v9069 = vpop.f32.mrb[0].mxu0
      %v9070 = vadd.f32 0.0, %v9069
      %v9071 = vpop.f32.mrb[0].mxu0
      %v9072 = vpop.f32.mrb[0].mxu0
      %v9073 = vadd.f32 0.0, %v9072
      %v9074 = vpop.f32.mrb[0].mxu0
      %9075 = vmatprep.mubr.bf16.mxu0 0
      %9076 = vmatmul.mubr.bf16.gmra.mrb[0].mxu0 %v9019
      %v9077 = vpop.f32.mrb[0].mxu0
      %v9078 = vadd.f32 0.0, %v9077
      %v9079 = vpop.f32.mrb[0].mxu0
      %v9080 = vpop.f32.mrb[0].mxu0
      %v9081 = vadd.f32 0.0, %v9080
      %v9082 = vpop.f32.mrb[0].mxu0
      %9083 = vmatprep.mubr.bf16.mxu0 0
      %9084 = vmatmul.mubr.bf16.gmra.mrb[0].mxu0 %v9022
      %v9085 = vpop.f32.mrb[0].mxu0
      %v9086 = vadd.f32 0.0, %v9085
      %v9087 = vpop.f32.mrb[0].mxu0
      %v9088 = vpop.f32.mrb[0].mxu0
      %v9089 = vadd.f32 0.0, %v9088
      %v9090 = vpop.f32.mrb[0].mxu0
      %9091 = vmatprep.mubr.bf16.mxu0 0
      %9092 = vmatmul.mubr.bf16.gmra.mrb[0].mxu0 %v9025
      %v9093 = vpop.f32.mrb[0].mxu0
      %v9094 = vadd.f32 0.0, %v9093
      %v9095 = vpop.f32.mrb[0].mxu0
      %v9096 = vpop.f32.mrb[0].mxu0
      %v9097 = vpop.f32.mrb[0].mxu0
      %9098 = vdwg.mxu0
      %v9107 = vunpack.c.l.b16 %v8936
      %v9108 = vunpack.c.l.b16 %v8937
      %v9109 = vunpack.c.l.b16 %v8938
      %v9110 = vunpack.c.l.b16 %v8939
      %v9111 = vunpack.c.l.b16 %v8940
      %v9112 = vunpack.c.l.b16 %v8941
      %v9113 = vunpack.c.l.b16 %v8942
      %v9114 = vunpack.c.l.b16 %v8943
      %v9115 = vpack.c.b16 %v9108, %v9107
      %v9116 = vpack.c.b16 %v9110, %v9109
      %v9117 = vpack.c.b16 %v9112, %v9111
      %v9118 = vpack.c.b16 %v9114, %v9113
      %9123 = vmatprep.subr.bf16.mxu0 0
      %9124 = vmatpush1.bf16.msra.mxu0 %v9115
      %9125 = vmatprep.subr.bf16.mxu0 0
      %9126 = vmatpush1.bf16.msra.mxu0 %v9116
      %9127 = vmatprep.subr.bf16.mxu0 0
      %9128 = vmatpush1.bf16.msra.mxu0 %v9117
      %9129 = vmatprep.subr.bf16.mxu0 0
      %9130 = vmatpush1.bf16.msra.mxu0 %v9118
      %9131 = vmatprep.subr.bf16.mxu0 0
      %9132 = vmatpush1.bf16.msra.mxu0 0
      %9133 = vmatprep.subr.bf16.mxu0 0
      %9134 = vmatpush1.bf16.msra.mxu0 0
      %9135 = vmatprep.subr.bf16.mxu0 0
      %9136 = vmatpush1.bf16.msra.mxu0 0
      %9137 = vmatprep.subr.bf16.mxu0 0
      %9138 = vmatpush1.bf16.msra.mxu0 0
      %9139 = vmatprep.subr.bf16.mxu0 0
      %9140 = vmatpush1.bf16.msra.mxu0 0
      %9141 = vmatprep.subr.bf16.mxu0 0
      %9142 = vmatpush1.bf16.msra.mxu0 0
      %9143 = vmatprep.subr.bf16.mxu0 0
      %9144 = vmatpush1.bf16.msra.mxu0 0
      %9145 = vmatprep.subr.bf16.mxu0 0
      %9146 = vmatpush1.bf16.msra.mxu0 0
      %9147 = vmatprep.subr.bf16.mxu0 0
      %9148 = vmatpush1.bf16.msra.mxu0 0
      %9149 = vmatprep.subr.bf16.mxu0 0
      %9150 = vmatpush1.bf16.msra.mxu0 0
      %9151 = vmatprep.subr.bf16.mxu0 0
      %9152 = vmatpush1.bf16.msra.mxu0 0
      %9153 = vmatprep.subr.bf16.mxu0 0
      %9154 = vmatpush1.bf16.msra.mxu0 0
      %9155 = vmatprep.mubr.bf16.mxu0 0
      %9156 = vmatmul.mubr.bf16.gmra.mrb[0].mxu0 %v8849
      %v9157 = vpop.f32.mrb[0].mxu0
      %v9158 = vadd.f32 %v9062, %v9157
      %v9159 = vpop.f32.mrb[0].mxu0
      %v9160 = vpop.f32.mrb[0].mxu0
      %v9161 = vadd.f32 %v9065, %v9160
      %v9162 = vpop.f32.mrb[0].mxu0
      %9163 = vmatprep.mubr.bf16.mxu0 0
      %9164 = vmatmul.mubr.bf16.gmra.mrb[0].mxu0 %v8852
      %v9165 = vpop.f32.mrb[0].mxu0
      %v9166 = vadd.f32 %v9070, %v9165
      %v9167 = vpop.f32.mrb[0].mxu0
      %v9168 = vpop.f32.mrb[0].mxu0
      %v9169 = vadd.f32 %v9073, %v9168
      %v9170 = vpop.f32.mrb[0].mxu0
      %9171 = vmatprep.mubr.bf16.mxu0 0
      %9172 = vmatmul.mubr.bf16.gmra.mrb[0].mxu0 %v8855
      %v9173 = vpop.f32.mrb[0].mxu0
      %v9174 = vadd.f32 %v9078, %v9173
      %v9175 = vpop.f32.mrb[0].mxu0
      %v9176 = vpop.f32.mrb[0].mxu0
      %v9177 = vadd.f32 %v9081, %v9176
      %v9178 = vpop.f32.mrb[0].mxu0
      %9179 = vmatprep.mubr.bf16.mxu0 0
      %9180 = vmatmul.mubr.bf16.gmra.mrb[0].mxu0 %v8858
      %v9181 = vpop.f32.mrb[0].mxu0
      %v9182 = vadd.f32 %v9086, %v9181
      %v9183 = vpop.f32.mrb[0].mxu0
      %v9184 = vpop.f32.mrb[0].mxu0
      %v9185 = vadd.f32 %v9089, %v9184
      %v9186 = vpop.f32.mrb[0].mxu0
      %9187 = vmatprep.mubr.bf16.mxu0 0
      %9188 = vmatmul.mubr.bf16.gmra.mrb[0].mxu0 %v8861
      %v9189 = vpop.f32.mrb[0].mxu0
      %v9190 = vadd.f32 %v9094, %v9189
      %v9191 = vpop.f32.mrb[0].mxu0
      %v9192 = vpop.f32.mrb[0].mxu0
      %v9193 = vpop.f32.mrb[0].mxu0
      %9194 = vdwg.mxu0
      %v9195 = vadd.f32 %v9158, %v8822
      %v9196 = vadd.f32 %v9161, %v8822
      %v9197 = vadd.f32 %v9166, %v8822
      %v9198 = vadd.f32 %v9169, %v8822
      %v9199 = vadd.f32 %v9174, %v8822
      %v9200 = vadd.f32 %v9177, %v8822
      %v9201 = vadd.f32 %v9182, %v8822
      %v9202 = vadd.f32 %v9185, %v8822
      %v9203 = vadd.f32 %v9190, %v8822
      %s9204 = scalar_lea.vmem %s11, 224
      %v9205 = vld [vmem:[%s9204] sm:$0xf]
      %v9206 = vld [vmem:[%s9204 + $0x4] sm:$0xf]
      %v9207 = vld [vmem:[%s9204 + $0x8] sm:$0xf]
      %v9208 = vld [vmem:[%s9204 + $0xc] sm:$0xf]
      %v9209 = vld [vmem:[%s9204 + $0x10] sm:$0xf]
      %v9210 = vld [vmem:[%s9204 + $0x14] sm:$0xf]
      %v9211 = vld [vmem:[%s9204 + $0x18] sm:$0xf]
      %v9212 = vld [vmem:[%s9204 + $0x1c] sm:$0xf]
      %s9213 = scalar_lea.vmem %s11, 32
      %v9214 = vld [vmem:[%s9213] sm:$0xf]
      %v9215 = vld [vmem:[%s9213 + $0x4] sm:$0xf]
      %v9216 = vld [vmem:[%s9213 + $0x8] sm:$0xf]
      %v9217 = vld [vmem:[%s9213 + $0xc] sm:$0xf]
      %v9218 = vld [vmem:[%s9213 + $0x10] sm:$0xf]
      %v9219 = vld [vmem:[%s9213 + $0x14] sm:$0xf]
      %v9220 = vld [vmem:[%s9213 + $0x18] sm:$0xf]
      %v9221 = vld [vmem:[%s9213 + $0x1c] sm:$0xf]
      %v9223 = vshrl.u32 %v8803, 16
      %v9225 = vshll.u32 %v8803, 16
      %v9227 = vrot.slane %v9225, 1
      %v9228 = vor.u32 %v9223, %v9227
      %v9230 = vshll.u32 %v8804, 16
      %v9232 = vrot.slane %v9230, 1
      %v9233 = vsel %vm1758, %v9228, %v9232
      %v9234 = vshrl.u32 %v8804, 16
      %v9236 = vor.u32 %v9234, %v9232
      %v9238 = vshll.u32 %v8805, 16
      %v9240 = vrot.slane %v9238, 1
      %v9241 = vsel %vm1758, %v9236, %v9240
      %v9242 = vshrl.u32 %v8805, 16
      %v9244 = vor.u32 %v9242, %v9240
      %v9246 = vshll.u32 %v8806, 16
      %v9248 = vrot.slane %v9246, 1
      %v9249 = vsel %vm1758, %v9244, %v9248
      %v9250 = vshrl.u32 %v8806, 16
      %v9252 = vor.u32 %v9250, %v9248
      %v9254 = vshll.u32 %v8807, 16
      %v9256 = vrot.slane %v9254, 1
      %v9257 = vsel %vm1758, %v9252, %v9256
      %v9258 = vshrl.u32 %v8807, 16
      %v9260 = vor.u32 %v9258, %v9256
      %v9269 = vunpack.c.l.b16 %v9214
      %v9270 = vunpack.c.l.b16 %v9215
      %v9271 = vunpack.c.l.b16 %v9216
      %v9272 = vunpack.c.l.b16 %v9217
      %v9273 = vunpack.c.l.b16 %v9218
      %v9274 = vunpack.c.l.b16 %v9219
      %v9275 = vunpack.c.l.b16 %v9220
      %v9276 = vunpack.c.l.b16 %v9221
      %v9277 = vpack.c.b16 %v9270, %v9269
      %v9278 = vpack.c.b16 %v9272, %v9271
      %v9279 = vpack.c.b16 %v9274, %v9273
      %v9280 = vpack.c.b16 %v9276, %v9275
      %v9286 = vsel %vm1827, %v9233, 0
      %v9289 = vsel %vm1827, %v9241, 0
      %v9292 = vsel %vm1827, %v9249, 0
      %v9295 = vsel %vm1827, %v9257, 0
      %v9298 = vsel %vm1827, %v9260, 0
      %9300 = vmatprep.subr.bf16.mxu0 0
      %9301 = vmatpush1.bf16.msra.mxu0 %v9277
      %9302 = vmatprep.subr.bf16.mxu0 0
      %9303 = vmatpush1.bf16.msra.mxu0 %v9278
      %9304 = vmatprep.subr.bf16.mxu0 0
      %9305 = vmatpush1.bf16.msra.mxu0 %v9279
      %9306 = vmatprep.subr.bf16.mxu0 0
      %9307 = vmatpush1.bf16.msra.mxu0 %v9280
      %9308 = vmatprep.subr.bf16.mxu0 0
      %9309 = vmatpush1.bf16.msra.mxu0 0
      %9310 = vmatprep.subr.bf16.mxu0 0
      %9311 = vmatpush1.bf16.msra.mxu0 0
      %9312 = vmatprep.subr.bf16.mxu0 0
      %9313 = vmatpush1.bf16.msra.mxu0 0
      %9314 = vmatprep.subr.bf16.mxu0 0
      %9315 = vmatpush1.bf16.msra.mxu0 0
      %9316 = vmatprep.subr.bf16.mxu0 0
      %9317 = vmatpush1.bf16.msra.mxu0 0
      %9318 = vmatprep.subr.bf16.mxu0 0
      %9319 = vmatpush1.bf16.msra.mxu0 0
      %9320 = vmatprep.subr.bf16.mxu0 0
      %9321 = vmatpush1.bf16.msra.mxu0 0
      %9322 = vmatprep.subr.bf16.mxu0 0
      %9323 = vmatpush1.bf16.msra.mxu0 0
      %9324 = vmatprep.subr.bf16.mxu0 0
      %9325 = vmatpush1.bf16.msra.mxu0 0
      %9326 = vmatprep.subr.bf16.mxu0 0
      %9327 = vmatpush1.bf16.msra.mxu0 0
      %9328 = vmatprep.subr.bf16.mxu0 0
      %9329 = vmatpush1.bf16.msra.mxu0 0
      %9330 = vmatprep.subr.bf16.mxu0 0
      %9331 = vmatpush1.bf16.msra.mxu0 0
      %9332 = vmatprep.mubr.bf16.mxu0 0
      %9333 = vmatmul.mubr.bf16.gmra.mrb[0].mxu0 %v9286
      %v9334 = vpop.f32.mrb[0].mxu0
      %v9335 = vadd.f32 0.0, %v9334
      %v9336 = vpop.f32.mrb[0].mxu0
      %v9337 = vpop.f32.mrb[0].mxu0
      %v9338 = vadd.f32 0.0, %v9337
      %v9339 = vpop.f32.mrb[0].mxu0
      %9340 = vmatprep.mubr.bf16.mxu0 0
      %9341 = vmatmul.mubr.bf16.gmra.mrb[0].mxu0 %v9289
      %v9342 = vpop.f32.mrb[0].mxu0
      %v9343 = vadd.f32 0.0, %v9342
      %v9344 = vpop.f32.mrb[0].mxu0
      %v9345 = vpop.f32.mrb[0].mxu0
      %v9346 = vadd.f32 0.0, %v9345
      %v9347 = vpop.f32.mrb[0].mxu0
      %9348 = vmatprep.mubr.bf16.mxu0 0
      %9349 = vmatmul.mubr.bf16.gmra.mrb[0].mxu0 %v9292
      %v9350 = vpop.f32.mrb[0].mxu0
      %v9351 = vadd.f32 0.0, %v9350
      %v9352 = vpop.f32.mrb[0].mxu0
      %v9353 = vpop.f32.mrb[0].mxu0
      %v9354 = vadd.f32 0.0, %v9353
      %v9355 = vpop.f32.mrb[0].mxu0
      %9356 = vmatprep.mubr.bf16.mxu0 0
      %9357 = vmatmul.mubr.bf16.gmra.mrb[0].mxu0 %v9295
      %v9358 = vpop.f32.mrb[0].mxu0
      %v9359 = vadd.f32 0.0, %v9358
      %v9360 = vpop.f32.mrb[0].mxu0
      %v9361 = vpop.f32.mrb[0].mxu0
      %v9362 = vadd.f32 0.0, %v9361
      %v9363 = vpop.f32.mrb[0].mxu0
      %9364 = vmatprep.mubr.bf16.mxu0 0
      %9365 = vmatmul.mubr.bf16.gmra.mrb[0].mxu0 %v9298
      %v9366 = vpop.f32.mrb[0].mxu0
      %v9367 = vadd.f32 0.0, %v9366
      %v9368 = vpop.f32.mrb[0].mxu0
      %v9369 = vpop.f32.mrb[0].mxu0
      %v9370 = vpop.f32.mrb[0].mxu0
      %9371 = vdwg.mxu0
      %v9380 = vunpack.c.l.b16 %v9205
      %v9381 = vunpack.c.l.b16 %v9206
      %v9382 = vunpack.c.l.b16 %v9207
      %v9383 = vunpack.c.l.b16 %v9208
      %v9384 = vunpack.c.l.b16 %v9209
      %v9385 = vunpack.c.l.b16 %v9210
      %v9386 = vunpack.c.l.b16 %v9211
      %v9387 = vunpack.c.l.b16 %v9212
      %v9388 = vpack.c.b16 %v9381, %v9380
      %v9389 = vpack.c.b16 %v9383, %v9382
      %v9390 = vpack.c.b16 %v9385, %v9384
      %v9391 = vpack.c.b16 %v9387, %v9386
      %9396 = vmatprep.subr.bf16.mxu0 0
      %9397 = vmatpush1.bf16.msra.mxu0 %v9388
      %9398 = vmatprep.subr.bf16.mxu0 0
      %9399 = vmatpush1.bf16.msra.mxu0 %v9389
      %9400 = vmatprep.subr.bf16.mxu0 0
      %9401 = vmatpush1.bf16.msra.mxu0 %v9390
      %9402 = vmatprep.subr.bf16.mxu0 0
      %9403 = vmatpush1.bf16.msra.mxu0 %v9391
      %9404 = vmatprep.subr.bf16.mxu0 0
      %9405 = vmatpush1.bf16.msra.mxu0 0
      %9406 = vmatprep.subr.bf16.mxu0 0
      %9407 = vmatpush1.bf16.msra.mxu0 0
      %9408 = vmatprep.subr.bf16.mxu0 0
      %9409 = vmatpush1.bf16.msra.mxu0 0
      %9410 = vmatprep.subr.bf16.mxu0 0
      %9411 = vmatpush1.bf16.msra.mxu0 0
      %9412 = vmatprep.subr.bf16.mxu0 0
      %9413 = vmatpush1.bf16.msra.mxu0 0
      %9414 = vmatprep.subr.bf16.mxu0 0
      %9415 = vmatpush1.bf16.msra.mxu0 0
      %9416 = vmatprep.subr.bf16.mxu0 0
      %9417 = vmatpush1.bf16.msra.mxu0 0
      %9418 = vmatprep.subr.bf16.mxu0 0
      %9419 = vmatpush1.bf16.msra.mxu0 0
      %9420 = vmatprep.subr.bf16.mxu0 0
      %9421 = vmatpush1.bf16.msra.mxu0 0
      %9422 = vmatprep.subr.bf16.mxu0 0
      %9423 = vmatpush1.bf16.msra.mxu0 0
      %9424 = vmatprep.subr.bf16.mxu0 0
      %9425 = vmatpush1.bf16.msra.mxu0 0
      %9426 = vmatprep.subr.bf16.mxu0 0
      %9427 = vmatpush1.bf16.msra.mxu0 0
      %9428 = vmatprep.mubr.bf16.mxu0 0
      %9429 = vmatmul.mubr.bf16.gmra.mrb[0].mxu0 %v8849
      %v9430 = vpop.f32.mrb[0].mxu0
      %v9431 = vadd.f32 %v9335, %v9430
      %v9432 = vpop.f32.mrb[0].mxu0
      %v9433 = vpop.f32.mrb[0].mxu0
      %v9434 = vadd.f32 %v9338, %v9433
      %v9435 = vpop.f32.mrb[0].mxu0
      %9436 = vmatprep.mubr.bf16.mxu0 0
      %9437 = vmatmul.mubr.bf16.gmra.mrb[0].mxu0 %v8852
      %v9438 = vpop.f32.mrb[0].mxu0
      %v9439 = vadd.f32 %v9343, %v9438
      %v9440 = vpop.f32.mrb[0].mxu0
      %v9441 = vpop.f32.mrb[0].mxu0
      %v9442 = vadd.f32 %v9346, %v9441
      %v9443 = vpop.f32.mrb[0].mxu0
      %9444 = vmatprep.mubr.bf16.mxu0 0
      %9445 = vmatmul.mubr.bf16.gmra.mrb[0].mxu0 %v8855
      %v9446 = vpop.f32.mrb[0].mxu0
      %v9447 = vadd.f32 %v9351, %v9446
      %v9448 = vpop.f32.mrb[0].mxu0
      %v9449 = vpop.f32.mrb[0].mxu0
      %v9450 = vadd.f32 %v9354, %v9449
      %v9451 = vpop.f32.mrb[0].mxu0
      %9452 = vmatprep.mubr.bf16.mxu0 0
      %9453 = vmatmul.mubr.bf16.gmra.mrb[0].mxu0 %v8858
      %v9454 = vpop.f32.mrb[0].mxu0
      %v9455 = vadd.f32 %v9359, %v9454
      %v9456 = vpop.f32.mrb[0].mxu0
      %v9457 = vpop.f32.mrb[0].mxu0
      %v9458 = vadd.f32 %v9362, %v9457
      %v9459 = vpop.f32.mrb[0].mxu0
      %9460 = vmatprep.mubr.bf16.mxu0 0
      %9461 = vmatmul.mubr.bf16.gmra.mrb[0].mxu0 %v8861
      %v9462 = vpop.f32.mrb[0].mxu0
      %v9463 = vadd.f32 %v9367, %v9462
      %v9464 = vpop.f32.mrb[0].mxu0
      %v9465 = vpop.f32.mrb[0].mxu0
      %v9466 = vpop.f32.mrb[0].mxu0
      %9467 = vdwg.mxu0
      %v9468 = vadd.f32 %v9431, %v8822
      %v9469 = vadd.f32 %v9434, %v8822
      %v9470 = vadd.f32 %v9439, %v8822
      %v9471 = vadd.f32 %v9442, %v8822
      %v9472 = vadd.f32 %v9447, %v8822
      %v9473 = vadd.f32 %v9450, %v8822
      %v9474 = vadd.f32 %v9455, %v8822
      %v9475 = vadd.f32 %v9458, %v8822
      %v9476 = vadd.f32 %v9463, %v8822
      %s9477 = scalar_lea.vmem %s11, 256
      %v9478 = vld [vmem:[%s9477] sm:$0xf]
      %v9479 = vld [vmem:[%s9477 + $0x4] sm:$0xf]
      %v9480 = vld [vmem:[%s9477 + $0x8] sm:$0xf]
      %v9481 = vld [vmem:[%s9477 + $0xc] sm:$0xf]
      %v9482 = vld [vmem:[%s9477 + $0x10] sm:$0xf]
      %v9483 = vld [vmem:[%s9477 + $0x14] sm:$0xf]
      %v9484 = vld [vmem:[%s9477 + $0x18] sm:$0xf]
      %v9485 = vld [vmem:[%s9477 + $0x1c] sm:$0xf]
      %s9486 = scalar_lea.vmem %s11, 192
      %v9487 = vld [vmem:[%s9486] sm:$0xf]
      %v9488 = vld [vmem:[%s9486 + $0x4] sm:$0xf]
      %v9489 = vld [vmem:[%s9486 + $0x8] sm:$0xf]
      %v9490 = vld [vmem:[%s9486 + $0xc] sm:$0xf]
      %v9491 = vld [vmem:[%s9486 + $0x10] sm:$0xf]
      %v9492 = vld [vmem:[%s9486 + $0x14] sm:$0xf]
      %v9493 = vld [vmem:[%s9486 + $0x18] sm:$0xf]
      %v9494 = vld [vmem:[%s9486 + $0x1c] sm:$0xf]
      %v9503 = vunpack.c.l.b16 %v9487
      %v9504 = vunpack.c.l.b16 %v9488
      %v9505 = vunpack.c.l.b16 %v9489
      %v9506 = vunpack.c.l.b16 %v9490
      %v9507 = vunpack.c.l.b16 %v9491
      %v9508 = vunpack.c.l.b16 %v9492
      %v9509 = vunpack.c.l.b16 %v9493
      %v9510 = vunpack.c.l.b16 %v9494
      %v9511 = vpack.c.b16 %v9504, %v9503
      %v9512 = vpack.c.b16 %v9506, %v9505
      %v9513 = vpack.c.b16 %v9508, %v9507
      %v9514 = vpack.c.b16 %v9510, %v9509
      %9519 = vmatprep.subr.bf16.mxu0 0
      %9520 = vmatpush1.bf16.msra.mxu0 %v9511
      %9521 = vmatprep.subr.bf16.mxu0 0
      %9522 = vmatpush1.bf16.msra.mxu0 %v9512
      %9523 = vmatprep.subr.bf16.mxu0 0
      %9524 = vmatpush1.bf16.msra.mxu0 %v9513
      %9525 = vmatprep.subr.bf16.mxu0 0
      %9526 = vmatpush1.bf16.msra.mxu0 %v9514
      %9527 = vmatprep.subr.bf16.mxu0 0
      %9528 = vmatpush1.bf16.msra.mxu0 0
      %9529 = vmatprep.subr.bf16.mxu0 0
      %9530 = vmatpush1.bf16.msra.mxu0 0
      %9531 = vmatprep.subr.bf16.mxu0 0
      %9532 = vmatpush1.bf16.msra.mxu0 0
      %9533 = vmatprep.subr.bf16.mxu0 0
      %9534 = vmatpush1.bf16.msra.mxu0 0
      %9535 = vmatprep.subr.bf16.mxu0 0
      %9536 = vmatpush1.bf16.msra.mxu0 0
      %9537 = vmatprep.subr.bf16.mxu0 0
      %9538 = vmatpush1.bf16.msra.mxu0 0
      %9539 = vmatprep.subr.bf16.mxu0 0
      %9540 = vmatpush1.bf16.msra.mxu0 0
      %9541 = vmatprep.subr.bf16.mxu0 0
      %9542 = vmatpush1.bf16.msra.mxu0 0
      %9543 = vmatprep.subr.bf16.mxu0 0
      %9544 = vmatpush1.bf16.msra.mxu0 0
      %9545 = vmatprep.subr.bf16.mxu0 0
      %9546 = vmatpush1.bf16.msra.mxu0 0
      %9547 = vmatprep.subr.bf16.mxu0 0
      %9548 = vmatpush1.bf16.msra.mxu0 0
      %9549 = vmatprep.subr.bf16.mxu0 0
      %9550 = vmatpush1.bf16.msra.mxu0 0
      %9551 = vmatprep.mubr.bf16.mxu0 0
      %9552 = vmatmul.mubr.bf16.gmra.mrb[0].mxu0 %v9013
      %v9553 = vpop.f32.mrb[0].mxu0
      %v9554 = vadd.f32 0.0, %v9553
      %v9555 = vpop.f32.mrb[0].mxu0
      %v9556 = vpop.f32.mrb[0].mxu0
      %v9557 = vadd.f32 0.0, %v9556
      %v9558 = vpop.f32.mrb[0].mxu0
      %9559 = vmatprep.mubr.bf16.mxu0 0
      %9560 = vmatmul.mubr.bf16.gmra.mrb[0].mxu0 %v9016
      %v9561 = vpop.f32.mrb[0].mxu0
      %v9562 = vadd.f32 0.0, %v9561
      %v9563 = vpop.f32.mrb[0].mxu0
      %v9564 = vpop.f32.mrb[0].mxu0
      %v9565 = vadd.f32 0.0, %v9564
      %v9566 = vpop.f32.mrb[0].mxu0
      %9567 = vmatprep.mubr.bf16.mxu0 0
      %9568 = vmatmul.mubr.bf16.gmra.mrb[0].mxu0 %v9019
      %v9569 = vpop.f32.mrb[0].mxu0
      %v9570 = vadd.f32 0.0, %v9569
      %v9571 = vpop.f32.mrb[0].mxu0
      %v9572 = vpop.f32.mrb[0].mxu0
      %v9573 = vadd.f32 0.0, %v9572
      %v9574 = vpop.f32.mrb[0].mxu0
      %9575 = vmatprep.mubr.bf16.mxu0 0
      %9576 = vmatmul.mubr.bf16.gmra.mrb[0].mxu0 %v9022
      %v9577 = vpop.f32.mrb[0].mxu0
      %v9578 = vadd.f32 0.0, %v9577
      %v9579 = vpop.f32.mrb[0].mxu0
      %v9580 = vpop.f32.mrb[0].mxu0
      %v9581 = vadd.f32 0.0, %v9580
      %v9582 = vpop.f32.mrb[0].mxu0
      %9583 = vmatprep.mubr.bf16.mxu0 0
      %9584 = vmatmul.mubr.bf16.gmra.mrb[0].mxu0 %v9025
      %v9585 = vpop.f32.mrb[0].mxu0
      %v9586 = vadd.f32 0.0, %v9585
      %v9587 = vpop.f32.mrb[0].mxu0
      %v9588 = vpop.f32.mrb[0].mxu0
      %v9589 = vpop.f32.mrb[0].mxu0
      %9590 = vdwg.mxu0
      %v9599 = vunpack.c.l.b16 %v9478
      %v9600 = vunpack.c.l.b16 %v9479
      %v9601 = vunpack.c.l.b16 %v9480
      %v9602 = vunpack.c.l.b16 %v9481
      %v9603 = vunpack.c.l.b16 %v9482
      %v9604 = vunpack.c.l.b16 %v9483
      %v9605 = vunpack.c.l.b16 %v9484
      %v9606 = vunpack.c.l.b16 %v9485
      %v9607 = vpack.c.b16 %v9600, %v9599
      %v9608 = vpack.c.b16 %v9602, %v9601
      %v9609 = vpack.c.b16 %v9604, %v9603
      %v9610 = vpack.c.b16 %v9606, %v9605
      %9615 = vmatprep.subr.bf16.mxu0 0
      %9616 = vmatpush1.bf16.msra.mxu0 %v9607
      %9617 = vmatprep.subr.bf16.mxu0 0
      %9618 = vmatpush1.bf16.msra.mxu0 %v9608
      %9619 = vmatprep.subr.bf16.mxu0 0
      %9620 = vmatpush1.bf16.msra.mxu0 %v9609
      %9621 = vmatprep.subr.bf16.mxu0 0
      %9622 = vmatpush1.bf16.msra.mxu0 %v9610
      %9623 = vmatprep.subr.bf16.mxu0 0
      %9624 = vmatpush1.bf16.msra.mxu0 0
      %9625 = vmatprep.subr.bf16.mxu0 0
      %9626 = vmatpush1.bf16.msra.mxu0 0
      %9627 = vmatprep.subr.bf16.mxu0 0
      %9628 = vmatpush1.bf16.msra.mxu0 0
      %9629 = vmatprep.subr.bf16.mxu0 0
      %9630 = vmatpush1.bf16.msra.mxu0 0
      %9631 = vmatprep.subr.bf16.mxu0 0
      %9632 = vmatpush1.bf16.msra.mxu0 0
      %9633 = vmatprep.subr.bf16.mxu0 0
      %9634 = vmatpush1.bf16.msra.mxu0 0
      %9635 = vmatprep.subr.bf16.mxu0 0
      %9636 = vmatpush1.bf16.msra.mxu0 0
      %9637 = vmatprep.subr.bf16.mxu0 0
      %9638 = vmatpush1.bf16.msra.mxu0 0
      %9639 = vmatprep.subr.bf16.mxu0 0
      %9640 = vmatpush1.bf16.msra.mxu0 0
      %9641 = vmatprep.subr.bf16.mxu0 0
      %9642 = vmatpush1.bf16.msra.mxu0 0
      %9643 = vmatprep.subr.bf16.mxu0 0
      %9644 = vmatpush1.bf16.msra.mxu0 0
      %9645 = vmatprep.subr.bf16.mxu0 0
      %9646 = vmatpush1.bf16.msra.mxu0 0
      %9647 = vmatprep.mubr.bf16.mxu0 0
      %9648 = vmatmul.mubr.bf16.gmra.mrb[0].mxu0 %v8849
      %v9649 = vpop.f32.mrb[0].mxu0
      %v9650 = vadd.f32 %v9554, %v9649
      %v9651 = vpop.f32.mrb[0].mxu0
      %v9652 = vpop.f32.mrb[0].mxu0
      %v9653 = vadd.f32 %v9557, %v9652
      %v9654 = vpop.f32.mrb[0].mxu0
      %9655 = vmatprep.mubr.bf16.mxu0 0
      %9656 = vmatmul.mubr.bf16.gmra.mrb[0].mxu0 %v8852
      %v9657 = vpop.f32.mrb[0].mxu0
      %v9658 = vadd.f32 %v9562, %v9657
      %v9659 = vpop.f32.mrb[0].mxu0
      %v9660 = vpop.f32.mrb[0].mxu0
      %v9661 = vadd.f32 %v9565, %v9660
      %v9662 = vpop.f32.mrb[0].mxu0
      %9663 = vmatprep.mubr.bf16.mxu0 0
      %9664 = vmatmul.mubr.bf16.gmra.mrb[0].mxu0 %v8855
      %v9665 = vpop.f32.mrb[0].mxu0
      %v9666 = vadd.f32 %v9570, %v9665
      %v9667 = vpop.f32.mrb[0].mxu0
      %v9668 = vpop.f32.mrb[0].mxu0
      %v9669 = vadd.f32 %v9573, %v9668
      %v9670 = vpop.f32.mrb[0].mxu0
      %9671 = vmatprep.mubr.bf16.mxu0 0
      %9672 = vmatmul.mubr.bf16.gmra.mrb[0].mxu0 %v8858
      %v9673 = vpop.f32.mrb[0].mxu0
      %v9674 = vadd.f32 %v9578, %v9673
      %v9675 = vpop.f32.mrb[0].mxu0
      %v9676 = vpop.f32.mrb[0].mxu0
      %v9677 = vadd.f32 %v9581, %v9676
      %v9678 = vpop.f32.mrb[0].mxu0
      %9679 = vmatprep.mubr.bf16.mxu0 0
      %9680 = vmatmul.mubr.bf16.gmra.mrb[0].mxu0 %v8861
      %v9681 = vpop.f32.mrb[0].mxu0
      %v9682 = vadd.f32 %v9586, %v9681
      %v9683 = vpop.f32.mrb[0].mxu0
      %v9684 = vpop.f32.mrb[0].mxu0
      %v9685 = vpop.f32.mrb[0].mxu0
      %9686 = vdwg.mxu0
      %s9687 = scalar_lea.vmem %s11, 64
      %v9688 = vld [vmem:[%s9687] sm:$0xf]
      %v9689 = vld [vmem:[%s9687 + $0x4] sm:$0xf]
      %v9690 = vld [vmem:[%s9687 + $0x8] sm:$0xf]
      %v9691 = vld [vmem:[%s9687 + $0xc] sm:$0xf]
      %v9692 = vld [vmem:[%s9687 + $0x10] sm:$0xf]
      %v9693 = vld [vmem:[%s9687 + $0x14] sm:$0xf]
      %v9694 = vld [vmem:[%s9687 + $0x18] sm:$0xf]
      %v9695 = vld [vmem:[%s9687 + $0x1c] sm:$0xf]
      %v9704 = vunpack.c.l.b16 %v9688
      %v9705 = vunpack.c.l.b16 %v9689
      %v9706 = vunpack.c.l.b16 %v9690
      %v9707 = vunpack.c.l.b16 %v9691
      %v9708 = vunpack.c.l.b16 %v9692
      %v9709 = vunpack.c.l.b16 %v9693
      %v9710 = vunpack.c.l.b16 %v9694
      %v9711 = vunpack.c.l.b16 %v9695
      %v9712 = vpack.c.b16 %v9705, %v9704
      %v9713 = vpack.c.b16 %v9707, %v9706
      %v9714 = vpack.c.b16 %v9709, %v9708
      %v9715 = vpack.c.b16 %v9711, %v9710
      %9720 = vmatprep.subr.bf16.mxu0 0
      %9721 = vmatpush1.bf16.msra.mxu0 %v9712
      %9722 = vmatprep.subr.bf16.mxu0 0
      %9723 = vmatpush1.bf16.msra.mxu0 %v9713
      %9724 = vmatprep.subr.bf16.mxu0 0
      %9725 = vmatpush1.bf16.msra.mxu0 %v9714
      %9726 = vmatprep.subr.bf16.mxu0 0
      %9727 = vmatpush1.bf16.msra.mxu0 %v9715
      %9728 = vmatprep.subr.bf16.mxu0 0
      %9729 = vmatpush1.bf16.msra.mxu0 0
      %9730 = vmatprep.subr.bf16.mxu0 0
      %9731 = vmatpush1.bf16.msra.mxu0 0
      %9732 = vmatprep.subr.bf16.mxu0 0
      %9733 = vmatpush1.bf16.msra.mxu0 0
      %9734 = vmatprep.subr.bf16.mxu0 0
      %9735 = vmatpush1.bf16.msra.mxu0 0
      %9736 = vmatprep.subr.bf16.mxu0 0
      %9737 = vmatpush1.bf16.msra.mxu0 0
      %9738 = vmatprep.subr.bf16.mxu0 0
      %9739 = vmatpush1.bf16.msra.mxu0 0
      %9740 = vmatprep.subr.bf16.mxu0 0
      %9741 = vmatpush1.bf16.msra.mxu0 0
      %9742 = vmatprep.subr.bf16.mxu0 0
      %9743 = vmatpush1.bf16.msra.mxu0 0
      %9744 = vmatprep.subr.bf16.mxu0 0
      %9745 = vmatpush1.bf16.msra.mxu0 0
      %9746 = vmatprep.subr.bf16.mxu0 0
      %9747 = vmatpush1.bf16.msra.mxu0 0
      %9748 = vmatprep.subr.bf16.mxu0 0
      %9749 = vmatpush1.bf16.msra.mxu0 0
      %9750 = vmatprep.subr.bf16.mxu0 0
      %9751 = vmatpush1.bf16.msra.mxu0 0
      %9752 = vmatprep.mubr.bf16.mxu0 0
      %9753 = vmatmul.mubr.bf16.gmra.mrb[0].mxu0 %v9286
      %v9754 = vpop.f32.mrb[0].mxu0
      %v9755 = vadd.f32 0.0, %v9754
      %v9756 = vpop.f32.mrb[0].mxu0
      %v9757 = vpop.f32.mrb[0].mxu0
      %v9758 = vadd.f32 0.0, %v9757
      %v9759 = vpop.f32.mrb[0].mxu0
      %9760 = vmatprep.mubr.bf16.mxu0 0
      %9761 = vmatmul.mubr.bf16.gmra.mrb[0].mxu0 %v9289
      %v9762 = vpop.f32.mrb[0].mxu0
      %v9763 = vadd.f32 0.0, %v9762
      %v9764 = vpop.f32.mrb[0].mxu0
      %v9765 = vpop.f32.mrb[0].mxu0
      %v9766 = vadd.f32 0.0, %v9765
      %v9767 = vpop.f32.mrb[0].mxu0
      %9768 = vmatprep.mubr.bf16.mxu0 0
      %9769 = vmatmul.mubr.bf16.gmra.mrb[0].mxu0 %v9292
      %v9770 = vpop.f32.mrb[0].mxu0
      %v9771 = vadd.f32 0.0, %v9770
      %v9772 = vpop.f32.mrb[0].mxu0
      %v9773 = vpop.f32.mrb[0].mxu0
      %v9774 = vadd.f32 0.0, %v9773
      %v9775 = vpop.f32.mrb[0].mxu0
      %9776 = vmatprep.mubr.bf16.mxu0 0
      %9777 = vmatmul.mubr.bf16.gmra.mrb[0].mxu0 %v9295
      %v9778 = vpop.f32.mrb[0].mxu0
      %v9779 = vadd.f32 0.0, %v9778
      %v9780 = vpop.f32.mrb[0].mxu0
      %v9781 = vpop.f32.mrb[0].mxu0
      %v9782 = vadd.f32 0.0, %v9781
      %v9783 = vpop.f32.mrb[0].mxu0
      %9784 = vmatprep.mubr.bf16.mxu0 0
      %9785 = vmatmul.mubr.bf16.gmra.mrb[0].mxu0 %v9298
      %v9786 = vpop.f32.mrb[0].mxu0
      %v9787 = vadd.f32 0.0, %v9786
      %v9788 = vpop.f32.mrb[0].mxu0
      %v9789 = vpop.f32.mrb[0].mxu0
      %v9790 = vpop.f32.mrb[0].mxu0
      %9791 = vdwg.mxu0
      %v9792 = vadd.f32 %v9650, %v9755
      %v9793 = vadd.f32 %v9653, %v9758
      %v9794 = vadd.f32 %v9658, %v9763
      %v9795 = vadd.f32 %v9661, %v9766
      %v9796 = vadd.f32 %v9666, %v9771
      %v9797 = vadd.f32 %v9669, %v9774
      %v9798 = vadd.f32 %v9674, %v9779
      %v9799 = vadd.f32 %v9677, %v9782
      %v9800 = vadd.f32 %v9682, %v9787
      %v9801 = vld [vmem:[%s11] sm:$0xf]
      %v9802 = vld [vmem:[%s11 + $0x4] sm:$0xf]
      %v9803 = vld [vmem:[%s11 + $0x8] sm:$0xf]
      %v9804 = vld [vmem:[%s11 + $0xc] sm:$0xf]
      %v9805 = vld [vmem:[%s11 + $0x10] sm:$0xf]
      %v9806 = vld [vmem:[%s11 + $0x14] sm:$0xf]
      %v9807 = vld [vmem:[%s11 + $0x18] sm:$0xf]
      %v9808 = vld [vmem:[%s11 + $0x1c] sm:$0xf]
      %v9814 = vrot.slane %v8803, 1
      %v9815 = vrot.slane %v8804, 1
      %v9816 = vsel %vm2038, %v9814, %v9815
      %v9817 = vrot.slane %v8805, 1
      %v9818 = vsel %vm2038, %v9815, %v9817
      %v9819 = vrot.slane %v8806, 1
      %v9820 = vsel %vm2038, %v9817, %v9819
      %v9821 = vrot.slane %v8807, 1
      %v9822 = vsel %vm2038, %v9819, %v9821
      %v9831 = vunpack.c.l.b16 %v9801
      %v9832 = vunpack.c.l.b16 %v9802
      %v9833 = vunpack.c.l.b16 %v9803
      %v9834 = vunpack.c.l.b16 %v9804
      %v9835 = vunpack.c.l.b16 %v9805
      %v9836 = vunpack.c.l.b16 %v9806
      %v9837 = vunpack.c.l.b16 %v9807
      %v9838 = vunpack.c.l.b16 %v9808
      %v9839 = vpack.c.b16 %v9832, %v9831
      %v9840 = vpack.c.b16 %v9834, %v9833
      %v9841 = vpack.c.b16 %v9836, %v9835
      %v9842 = vpack.c.b16 %v9838, %v9837
      %v9848 = vsel %vm1827, %v9816, 0
      %v9851 = vsel %vm1827, %v9818, 0
      %v9854 = vsel %vm1827, %v9820, 0
      %v9857 = vsel %vm1827, %v9822, 0
      %v9860 = vsel %vm1827, %v9821, 0
      %9862 = vmatprep.subr.bf16.mxu0 0
      %9863 = vmatpush1.bf16.msra.mxu0 %v9839
      %9864 = vmatprep.subr.bf16.mxu0 0
      %9865 = vmatpush1.bf16.msra.mxu0 %v9840
      %9866 = vmatprep.subr.bf16.mxu0 0
      %9867 = vmatpush1.bf16.msra.mxu0 %v9841
      %9868 = vmatprep.subr.bf16.mxu0 0
      %9869 = vmatpush1.bf16.msra.mxu0 %v9842
      %9870 = vmatprep.subr.bf16.mxu0 0
      %9871 = vmatpush1.bf16.msra.mxu0 0
      %9872 = vmatprep.subr.bf16.mxu0 0
      %9873 = vmatpush1.bf16.msra.mxu0 0
      %9874 = vmatprep.subr.bf16.mxu0 0
      %9875 = vmatpush1.bf16.msra.mxu0 0
      %9876 = vmatprep.subr.bf16.mxu0 0
      %9877 = vmatpush1.bf16.msra.mxu0 0
      %9878 = vmatprep.subr.bf16.mxu0 0
      %9879 = vmatpush1.bf16.msra.mxu0 0
      %9880 = vmatprep.subr.bf16.mxu0 0
      %9881 = vmatpush1.bf16.msra.mxu0 0
      %9882 = vmatprep.subr.bf16.mxu0 0
      %9883 = vmatpush1.bf16.msra.mxu0 0
      %9884 = vmatprep.subr.bf16.mxu0 0
      %9885 = vmatpush1.bf16.msra.mxu0 0
      %9886 = vmatprep.subr.bf16.mxu0 0
      %9887 = vmatpush1.bf16.msra.mxu0 0
      %9888 = vmatprep.subr.bf16.mxu0 0
      %9889 = vmatpush1.bf16.msra.mxu0 0
      %9890 = vmatprep.subr.bf16.mxu0 0
      %9891 = vmatpush1.bf16.msra.mxu0 0
      %9892 = vmatprep.subr.bf16.mxu0 0
      %9893 = vmatpush1.bf16.msra.mxu0 0
      %9894 = vmatprep.mubr.bf16.mxu0 0
      %9895 = vmatmul.mubr.bf16.gmra.mrb[0].mxu0 %v9848
      %v9896 = vpop.f32.mrb[0].mxu0
      %v9897 = vadd.f32 0.0, %v9896
      %v9898 = vpop.f32.mrb[0].mxu0
      %v9899 = vpop.f32.mrb[0].mxu0
      %v9900 = vadd.f32 0.0, %v9899
      %v9901 = vpop.f32.mrb[0].mxu0
      %9902 = vmatprep.mubr.bf16.mxu0 0
      %9903 = vmatmul.mubr.bf16.gmra.mrb[0].mxu0 %v9851
      %v9904 = vpop.f32.mrb[0].mxu0
      %v9905 = vadd.f32 0.0, %v9904
      %v9906 = vpop.f32.mrb[0].mxu0
      %v9907 = vpop.f32.mrb[0].mxu0
      %v9908 = vadd.f32 0.0, %v9907
      %v9909 = vpop.f32.mrb[0].mxu0
      %9910 = vmatprep.mubr.bf16.mxu0 0
      %9911 = vmatmul.mubr.bf16.gmra.mrb[0].mxu0 %v9854
      %v9912 = vpop.f32.mrb[0].mxu0
      %v9913 = vadd.f32 0.0, %v9912
      %v9914 = vpop.f32.mrb[0].mxu0
      %v9915 = vpop.f32.mrb[0].mxu0
      %v9916 = vadd.f32 0.0, %v9915
      %v9917 = vpop.f32.mrb[0].mxu0
      %9918 = vmatprep.mubr.bf16.mxu0 0
      %9919 = vmatmul.mubr.bf16.gmra.mrb[0].mxu0 %v9857
      %v9920 = vpop.f32.mrb[0].mxu0
      %v9921 = vadd.f32 0.0, %v9920
      %v9922 = vpop.f32.mrb[0].mxu0
      %v9923 = vpop.f32.mrb[0].mxu0
      %v9924 = vadd.f32 0.0, %v9923
      %v9925 = vpop.f32.mrb[0].mxu0
      %9926 = vmatprep.mubr.bf16.mxu0 0
      %9927 = vmatmul.mubr.bf16.gmra.mrb[0].mxu0 %v9860
      %v9928 = vpop.f32.mrb[0].mxu0
      %v9929 = vadd.f32 0.0, %v9928
      %v9930 = vpop.f32.mrb[0].mxu0
      %v9931 = vpop.f32.mrb[0].mxu0
      %v9932 = vpop.f32.mrb[0].mxu0
      %9933 = vdwg.mxu0
      %v9934 = vadd.f32 %v9792, %v9897
      %v9935 = vadd.f32 %v9793, %v9900
      %v9936 = vadd.f32 %v9794, %v9905
      %v9937 = vadd.f32 %v9795, %v9908
      %v9938 = vadd.f32 %v9796, %v9913
      %v9939 = vadd.f32 %v9797, %v9916
      %v9940 = vadd.f32 %v9798, %v9921
      %v9941 = vadd.f32 %v9799, %v9924
      %v9942 = vadd.f32 %v9800, %v9929
      %v9943 = vadd.f32 %v9934, %v8822
      %v9944 = vadd.f32 %v9935, %v8822
      %v9945 = vadd.f32 %v9936, %v8822
      %v9946 = vadd.f32 %v9937, %v8822
      %v9947 = vadd.f32 %v9938, %v8822
      %v9948 = vadd.f32 %v9939, %v8822
      %v9949 = vadd.f32 %v9940, %v8822
      %v9950 = vadd.f32 %v9941, %v8822
      %v9951 = vadd.f32 %v9942, %v8822
      %v9952 = vld [vmem:[%s18] sm:$0xf]
      %v9953 = vld [vmem:[%s18 + $0x4] sm:$0xf]
      %v9954 = vld [vmem:[%s18 + $0x8] sm:$0xf]
      %v9955 = vld [vmem:[%s18 + $0xc] sm:$0xf]
      %v9956 = vld [vmem:[%s18 + $0x10] sm:$0xf]
      %v9957 = vld [vmem:[%s18 + $0x14] sm:$0xf]
      %v9958 = vld [vmem:[%s18 + $0x18] sm:$0xf]
      %v9959 = vld [vmem:[%s18 + $0x1c] sm:$0xf]
      %v9960 = vld [vmem:[%s18 + $0x20] sm:$0xf]
      %v9961 = vld [vmem:[%s18 + $0x24] sm:$0xf]
      %v9962 = vld [vmem:[%s18 + $0x28] sm:$0xf]
      %v9963 = vld [vmem:[%s18 + $0x2c] sm:$0xf]
      %v9964 = vld [vmem:[%s18 + $0x30] sm:$0xf]
      %v9965 = vld [vmem:[%s18 + $0x34] sm:$0xf]
      %v9966 = vld [vmem:[%s18 + $0x38] sm:$0xf]
      %v9967 = vld [vmem:[%s18 + $0x3c] sm:$0xf]
      %v9968 = vld [vmem:[%s18 + $0x40] sm:$0xf]
      %v9969 = vld [vmem:[%s18 + $0x44] sm:$0xf]
      %v9970 = vld [vmem:[%s18 + $0x48] sm:$0xf]
      %v9971 = vld [vmem:[%s18 + $0x4c] sm:$0xf]
      %v9972 = vld [vmem:[%s18 + $0x50] sm:$0xf]
      %v9973 = vld [vmem:[%s18 + $0x54] sm:$0xf]
      %v9974 = vld [vmem:[%s18 + $0x58] sm:$0xf]
      %v9975 = vld [vmem:[%s18 + $0x5c] sm:$0xf]
      %v9976 = vld [vmem:[%s18 + $0x60] sm:$0xf]
      %v9977 = vld [vmem:[%s18 + $0x64] sm:$0xf]
      %v9978 = vld [vmem:[%s18 + $0x68] sm:$0xf]
      %v9979 = vld [vmem:[%s18 + $0x6c] sm:$0xf]
      %v9980 = vld [vmem:[%s18 + $0x70] sm:$0xf]
      %v9981 = vld [vmem:[%s18 + $0x74] sm:$0xf]
      %v9982 = vld [vmem:[%s18 + $0x78] sm:$0xf]
      %v9983 = vld [vmem:[%s18 + $0x7c] sm:$0xf]
      %v9984 = vpack.c.bf16 %v8901, %v8898
      %v9985 = vpack.c.bf16 %v8909, %v8906
      %v9986 = vpack.c.bf16 %v8917, %v8914
      %v9987 = vpack.c.bf16 %v8925, %v8922
      %v9988 = vpack.c.bf16 %v8930, %v8930
      %s9989 = scalar_lea.vmem %s18, 128
      %v9990 = vld [vmem:[%s9989] sm:$0xf]
      %v9991 = vld [vmem:[%s9989 + $0x4] sm:$0xf]
      %v9992 = vld [vmem:[%s9989 + $0x8] sm:$0xf]
      %v9993 = vld [vmem:[%s9989 + $0xc] sm:$0xf]
      %v9994 = vld [vmem:[%s9989 + $0x10] sm:$0xf]
      %v9995 = vld [vmem:[%s9989 + $0x14] sm:$0xf]
      %v9996 = vld [vmem:[%s9989 + $0x18] sm:$0xf]
      %v9997 = vld [vmem:[%s9989 + $0x1c] sm:$0xf]
      %v9998 = vld [vmem:[%s9989 + $0x20] sm:$0xf]
      %v9999 = vld [vmem:[%s9989 + $0x24] sm:$0xf]
      %v10000 = vld [vmem:[%s9989 + $0x28] sm:$0xf]
      %v10001 = vld [vmem:[%s9989 + $0x2c] sm:$0xf]
      %v10002 = vld [vmem:[%s9989 + $0x30] sm:$0xf]
      %v10003 = vld [vmem:[%s9989 + $0x34] sm:$0xf]
      %v10004 = vld [vmem:[%s9989 + $0x38] sm:$0xf]
      %v10005 = vld [vmem:[%s9989 + $0x3c] sm:$0xf]
      %v10006 = vld [vmem:[%s9989 + $0x40] sm:$0xf]
      %v10007 = vld [vmem:[%s9989 + $0x44] sm:$0xf]
      %v10008 = vld [vmem:[%s9989 + $0x48] sm:$0xf]
      %v10009 = vld [vmem:[%s9989 + $0x4c] sm:$0xf]
      %v10010 = vld [vmem:[%s9989 + $0x50] sm:$0xf]
      %v10011 = vld [vmem:[%s9989 + $0x54] sm:$0xf]
      %v10012 = vld [vmem:[%s9989 + $0x58] sm:$0xf]
      %v10013 = vld [vmem:[%s9989 + $0x5c] sm:$0xf]
      %v10014 = vld [vmem:[%s9989 + $0x60] sm:$0xf]
      %v10015 = vld [vmem:[%s9989 + $0x64] sm:$0xf]
      %v10016 = vld [vmem:[%s9989 + $0x68] sm:$0xf]
      %v10017 = vld [vmem:[%s9989 + $0x6c] sm:$0xf]
      %v10018 = vld [vmem:[%s9989 + $0x70] sm:$0xf]
      %v10019 = vld [vmem:[%s9989 + $0x74] sm:$0xf]
      %v10020 = vld [vmem:[%s9989 + $0x78] sm:$0xf]
      %v10021 = vld [vmem:[%s9989 + $0x7c] sm:$0xf]
      %v10022 = vpack.c.bf16 %v9196, %v9195
      %v10023 = vpack.c.bf16 %v9198, %v9197
      %v10024 = vpack.c.bf16 %v9200, %v9199
      %v10025 = vpack.c.bf16 %v9202, %v9201
      %v10026 = vpack.c.bf16 %v9203, %v9203
      %v10059 = vunpack.c.l.b16 %v9990
      %v10060 = vunpack.c.l.b16 %v9991
      %v10061 = vunpack.c.l.b16 %v9992
      %v10062 = vunpack.c.l.b16 %v9993
      %v10063 = vunpack.c.l.b16 %v9994
      %v10064 = vunpack.c.l.b16 %v9995
      %v10065 = vunpack.c.l.b16 %v9996
      %v10066 = vunpack.c.l.b16 %v9997
      %v10067 = vunpack.c.l.b16 %v9998
      %v10068 = vunpack.c.l.b16 %v9999
      %v10069 = vunpack.c.l.b16 %v10000
      %v10070 = vunpack.c.l.b16 %v10001
      %v10071 = vunpack.c.l.b16 %v10002
      %v10072 = vunpack.c.l.b16 %v10003
      %v10073 = vunpack.c.l.b16 %v10004
      %v10074 = vunpack.c.l.b16 %v10005
      %v10075 = vunpack.c.l.b16 %v10006
      %v10076 = vunpack.c.l.b16 %v10007
      %v10077 = vunpack.c.l.b16 %v10008
      %v10078 = vunpack.c.l.b16 %v10009
      %v10079 = vunpack.c.l.b16 %v10010
      %v10080 = vunpack.c.l.b16 %v10011
      %v10081 = vunpack.c.l.b16 %v10012
      %v10082 = vunpack.c.l.b16 %v10013
      %v10083 = vunpack.c.l.b16 %v10014
      %v10084 = vunpack.c.l.b16 %v10015
      %v10085 = vunpack.c.l.b16 %v10016
      %v10086 = vunpack.c.l.b16 %v10017
      %v10087 = vunpack.c.l.b16 %v10018
      %v10088 = vunpack.c.l.b16 %v10019
      %v10089 = vunpack.c.l.b16 %v10020
      %v10090 = vunpack.c.l.b16 %v10021
      %v10091 = vpack.c.b16 %v10060, %v10059
      %v10092 = vpack.c.b16 %v10062, %v10061
      %v10093 = vpack.c.b16 %v10064, %v10063
      %v10094 = vpack.c.b16 %v10066, %v10065
      %v10095 = vpack.c.b16 %v10068, %v10067
      %v10096 = vpack.c.b16 %v10070, %v10069
      %v10097 = vpack.c.b16 %v10072, %v10071
      %v10098 = vpack.c.b16 %v10074, %v10073
      %v10099 = vpack.c.b16 %v10076, %v10075
      %v10100 = vpack.c.b16 %v10078, %v10077
      %v10101 = vpack.c.b16 %v10080, %v10079
      %v10102 = vpack.c.b16 %v10082, %v10081
      %v10103 = vpack.c.b16 %v10084, %v10083
      %v10104 = vpack.c.b16 %v10086, %v10085
      %v10105 = vpack.c.b16 %v10088, %v10087
      %v10106 = vpack.c.b16 %v10090, %v10089
      %vm10107 = vcmask 588800
      %v10109 = vsel %vm10107, %v10091, 0
      %v10112 = vsel %vm10107, %v10092, 0
      %v10115 = vsel %vm10107, %v10093, 0
      %v10118 = vsel %vm10107, %v10094, 0
      %v10121 = vsel %vm10107, %v10095, 0
      %v10124 = vsel %vm10107, %v10096, 0
      %v10127 = vsel %vm10107, %v10097, 0
      %v10130 = vsel %vm10107, %v10098, 0
      %v10133 = vsel %vm10107, %v10099, 0
      %v10136 = vsel %vm10107, %v10100, 0
      %v10139 = vsel %vm10107, %v10101, 0
      %v10142 = vsel %vm10107, %v10102, 0
      %v10145 = vsel %vm10107, %v10103, 0
      %v10148 = vsel %vm10107, %v10104, 0
      %v10151 = vsel %vm10107, %v10105, 0
      %v10154 = vsel %vm10107, %v10106, 0
      %v10157 = vsel %vm4991, %v10026, 0
      %10159 = vmatprep.subr.bf16.mxu0 0
      %10160 = vmatpush1.bf16.msra.mxu0 %v10022
      %10161 = vmatprep.subr.bf16.mxu0 0
      %10162 = vmatpush1.bf16.msra.mxu0 %v10023
      %10163 = vmatprep.subr.bf16.mxu0 0
      %10164 = vmatpush1.bf16.msra.mxu0 %v10024
      %10165 = vmatprep.subr.bf16.mxu0 0
      %10166 = vmatpush1.bf16.msra.mxu0 %v10025
      %10167 = vmatprep.subr.bf16.mxu0 0
      %10168 = vmatpush1.bf16.msra.mxu0 %v10157
      %10169 = vmatprep.subr.bf16.mxu0 0
      %10170 = vmatpush1.bf16.msra.mxu0 0
      %10171 = vmatprep.subr.bf16.mxu0 0
      %10172 = vmatpush1.bf16.msra.mxu0 0
      %10173 = vmatprep.subr.bf16.mxu0 0
      %10174 = vmatpush1.bf16.msra.mxu0 0
      %10175 = vmatprep.subr.bf16.mxu0 0
      %10176 = vmatpush1.bf16.msra.mxu0 0
      %10177 = vmatprep.subr.bf16.mxu0 0
      %10178 = vmatpush1.bf16.msra.mxu0 0
      %10179 = vmatprep.subr.bf16.mxu0 0
      %10180 = vmatpush1.bf16.msra.mxu0 0
      %10181 = vmatprep.subr.bf16.mxu0 0
      %10182 = vmatpush1.bf16.msra.mxu0 0
      %10183 = vmatprep.subr.bf16.mxu0 0
      %10184 = vmatpush1.bf16.msra.mxu0 0
      %10185 = vmatprep.subr.bf16.mxu0 0
      %10186 = vmatpush1.bf16.msra.mxu0 0
      %10187 = vmatprep.subr.bf16.mxu0 0
      %10188 = vmatpush1.bf16.msra.mxu0 0
      %10189 = vmatprep.subr.bf16.mxu0 0
      %10190 = vmatpush1.bf16.msra.mxu0 0
      %10191 = vmatprep.mubr.bf16.mxu0 0
      %10192 = vmatmul.mubr.bf16.gmra.mrb[0].mxu0 %v10109
      %v10193 = vpop.f32.mrb[0].mxu0
      %v10194 = vadd.f32 0.0, %v10193
      %v10195 = vpop.f32.mrb[0].mxu0
      %v10196 = vpop.f32.mrb[0].mxu0
      %v10197 = vadd.f32 0.0, %v10196
      %v10198 = vpop.f32.mrb[0].mxu0
      %10199 = vmatprep.mubr.bf16.mxu0 0
      %10200 = vmatmul.mubr.bf16.gmra.mrb[0].mxu0 %v10112
      %v10201 = vpop.f32.mrb[0].mxu0
      %v10202 = vadd.f32 0.0, %v10201
      %v10203 = vpop.f32.mrb[0].mxu0
      %v10204 = vpop.f32.mrb[0].mxu0
      %v10205 = vadd.f32 0.0, %v10204
      %v10206 = vpop.f32.mrb[0].mxu0
      %10207 = vmatprep.mubr.bf16.mxu0 0
      %10208 = vmatmul.mubr.bf16.gmra.mrb[0].mxu0 %v10115
      %v10209 = vpop.f32.mrb[0].mxu0
      %v10210 = vadd.f32 0.0, %v10209
      %v10211 = vpop.f32.mrb[0].mxu0
      %v10212 = vpop.f32.mrb[0].mxu0
      %v10213 = vadd.f32 0.0, %v10212
      %v10214 = vpop.f32.mrb[0].mxu0
      %10215 = vmatprep.mubr.bf16.mxu0 0
      %10216 = vmatmul.mubr.bf16.gmra.mrb[0].mxu0 %v10118
      %v10217 = vpop.f32.mrb[0].mxu0
      %v10218 = vadd.f32 0.0, %v10217
      %v10219 = vpop.f32.mrb[0].mxu0
      %v10220 = vpop.f32.mrb[0].mxu0
      %v10221 = vadd.f32 0.0, %v10220
      %v10222 = vpop.f32.mrb[0].mxu0
      %10223 = vmatprep.mubr.bf16.mxu0 0
      %10224 = vmatmul.mubr.bf16.gmra.mrb[0].mxu0 %v10121
      %v10225 = vpop.f32.mrb[0].mxu0
      %v10226 = vadd.f32 0.0, %v10225
      %v10227 = vpop.f32.mrb[0].mxu0
      %v10228 = vpop.f32.mrb[0].mxu0
      %v10229 = vadd.f32 0.0, %v10228
      %v10230 = vpop.f32.mrb[0].mxu0
      %10231 = vmatprep.mubr.bf16.mxu0 0
      %10232 = vmatmul.mubr.bf16.gmra.mrb[0].mxu0 %v10124
      %v10233 = vpop.f32.mrb[0].mxu0
      %v10234 = vadd.f32 0.0, %v10233
      %v10235 = vpop.f32.mrb[0].mxu0
      %v10236 = vpop.f32.mrb[0].mxu0
      %v10237 = vadd.f32 0.0, %v10236
      %v10238 = vpop.f32.mrb[0].mxu0
      %10239 = vmatprep.mubr.bf16.mxu0 0
      %10240 = vmatmul.mubr.bf16.gmra.mrb[0].mxu0 %v10127
      %v10241 = vpop.f32.mrb[0].mxu0
      %v10242 = vadd.f32 0.0, %v10241
      %v10243 = vpop.f32.mrb[0].mxu0
      %v10244 = vpop.f32.mrb[0].mxu0
      %v10245 = vadd.f32 0.0, %v10244
      %v10246 = vpop.f32.mrb[0].mxu0
      %10247 = vmatprep.mubr.bf16.mxu0 0
      %10248 = vmatmul.mubr.bf16.gmra.mrb[0].mxu0 %v10130
      %v10249 = vpop.f32.mrb[0].mxu0
      %v10250 = vadd.f32 0.0, %v10249
      %v10251 = vpop.f32.mrb[0].mxu0
      %v10252 = vpop.f32.mrb[0].mxu0
      %v10253 = vadd.f32 0.0, %v10252
      %v10254 = vpop.f32.mrb[0].mxu0
      %10255 = vmatprep.mubr.bf16.mxu0 0
      %10256 = vmatmul.mubr.bf16.gmra.mrb[0].mxu0 %v10133
      %v10257 = vpop.f32.mrb[0].mxu0
      %v10258 = vadd.f32 0.0, %v10257
      %v10259 = vpop.f32.mrb[0].mxu0
      %v10260 = vpop.f32.mrb[0].mxu0
      %v10261 = vadd.f32 0.0, %v10260
      %v10262 = vpop.f32.mrb[0].mxu0
      %10263 = vmatprep.mubr.bf16.mxu0 0
      %10264 = vmatmul.mubr.bf16.gmra.mrb[0].mxu0 %v10136
      %v10265 = vpop.f32.mrb[0].mxu0
      %v10266 = vadd.f32 0.0, %v10265
      %v10267 = vpop.f32.mrb[0].mxu0
      %v10268 = vpop.f32.mrb[0].mxu0
      %v10269 = vadd.f32 0.0, %v10268
      %v10270 = vpop.f32.mrb[0].mxu0
      %10271 = vmatprep.mubr.bf16.mxu0 0
      %10272 = vmatmul.mubr.bf16.gmra.mrb[0].mxu0 %v10139
      %v10273 = vpop.f32.mrb[0].mxu0
      %v10274 = vadd.f32 0.0, %v10273
      %v10275 = vpop.f32.mrb[0].mxu0
      %v10276 = vpop.f32.mrb[0].mxu0
      %v10277 = vadd.f32 0.0, %v10276
      %v10278 = vpop.f32.mrb[0].mxu0
      %10279 = vmatprep.mubr.bf16.mxu0 0
      %10280 = vmatmul.mubr.bf16.gmra.mrb[0].mxu0 %v10142
      %v10281 = vpop.f32.mrb[0].mxu0
      %v10282 = vadd.f32 0.0, %v10281
      %v10283 = vpop.f32.mrb[0].mxu0
      %v10284 = vpop.f32.mrb[0].mxu0
      %v10285 = vadd.f32 0.0, %v10284
      %v10286 = vpop.f32.mrb[0].mxu0
      %10287 = vmatprep.mubr.bf16.mxu0 0
      %10288 = vmatmul.mubr.bf16.gmra.mrb[0].mxu0 %v10145
      %v10289 = vpop.f32.mrb[0].mxu0
      %v10290 = vadd.f32 0.0, %v10289
      %v10291 = vpop.f32.mrb[0].mxu0
      %v10292 = vpop.f32.mrb[0].mxu0
      %v10293 = vadd.f32 0.0, %v10292
      %v10294 = vpop.f32.mrb[0].mxu0
      %10295 = vmatprep.mubr.bf16.mxu0 0
      %10296 = vmatmul.mubr.bf16.gmra.mrb[0].mxu0 %v10148
      %v10297 = vpop.f32.mrb[0].mxu0
      %v10298 = vadd.f32 0.0, %v10297
      %v10299 = vpop.f32.mrb[0].mxu0
      %v10300 = vpop.f32.mrb[0].mxu0
      %v10301 = vadd.f32 0.0, %v10300
      %v10302 = vpop.f32.mrb[0].mxu0
      %10303 = vmatprep.mubr.bf16.mxu0 0
      %10304 = vmatmul.mubr.bf16.gmra.mrb[0].mxu0 %v10151
      %v10305 = vpop.f32.mrb[0].mxu0
      %v10306 = vadd.f32 0.0, %v10305
      %v10307 = vpop.f32.mrb[0].mxu0
      %v10308 = vpop.f32.mrb[0].mxu0
      %v10309 = vadd.f32 0.0, %v10308
      %v10310 = vpop.f32.mrb[0].mxu0
      %10311 = vmatprep.mubr.bf16.mxu0 0
      %10312 = vmatmul.mubr.bf16.gmra.mrb[0].mxu0 %v10154
      %v10313 = vpop.f32.mrb[0].mxu0
      %v10314 = vadd.f32 0.0, %v10313
      %v10315 = vpop.f32.mrb[0].mxu0
      %v10316 = vpop.f32.mrb[0].mxu0
      %v10317 = vadd.f32 0.0, %v10316
      %v10318 = vpop.f32.mrb[0].mxu0
      %10319 = vdwg.mxu0
      %v10352 = vunpack.c.l.b16 %v9952
      %v10353 = vunpack.c.l.b16 %v9953
      %v10354 = vunpack.c.l.b16 %v9954
      %v10355 = vunpack.c.l.b16 %v9955
      %v10356 = vunpack.c.l.b16 %v9956
      %v10357 = vunpack.c.l.b16 %v9957
      %v10358 = vunpack.c.l.b16 %v9958
      %v10359 = vunpack.c.l.b16 %v9959
      %v10360 = vunpack.c.l.b16 %v9960
      %v10361 = vunpack.c.l.b16 %v9961
      %v10362 = vunpack.c.l.b16 %v9962
      %v10363 = vunpack.c.l.b16 %v9963
      %v10364 = vunpack.c.l.b16 %v9964
      %v10365 = vunpack.c.l.b16 %v9965
      %v10366 = vunpack.c.l.b16 %v9966
      %v10367 = vunpack.c.l.b16 %v9967
      %v10368 = vunpack.c.l.b16 %v9968
      %v10369 = vunpack.c.l.b16 %v9969
      %v10370 = vunpack.c.l.b16 %v9970
      %v10371 = vunpack.c.l.b16 %v9971
      %v10372 = vunpack.c.l.b16 %v9972
      %v10373 = vunpack.c.l.b16 %v9973
      %v10374 = vunpack.c.l.b16 %v9974
      %v10375 = vunpack.c.l.b16 %v9975
      %v10376 = vunpack.c.l.b16 %v9976
      %v10377 = vunpack.c.l.b16 %v9977
      %v10378 = vunpack.c.l.b16 %v9978
      %v10379 = vunpack.c.l.b16 %v9979
      %v10380 = vunpack.c.l.b16 %v9980
      %v10381 = vunpack.c.l.b16 %v9981
      %v10382 = vunpack.c.l.b16 %v9982
      %v10383 = vunpack.c.l.b16 %v9983
      %v10384 = vpack.c.b16 %v10353, %v10352
      %v10385 = vpack.c.b16 %v10355, %v10354
      %v10386 = vpack.c.b16 %v10357, %v10356
      %v10387 = vpack.c.b16 %v10359, %v10358
      %v10388 = vpack.c.b16 %v10361, %v10360
      %v10389 = vpack.c.b16 %v10363, %v10362
      %v10390 = vpack.c.b16 %v10365, %v10364
      %v10391 = vpack.c.b16 %v10367, %v10366
      %v10392 = vpack.c.b16 %v10369, %v10368
      %v10393 = vpack.c.b16 %v10371, %v10370
      %v10394 = vpack.c.b16 %v10373, %v10372
      %v10395 = vpack.c.b16 %v10375, %v10374
      %v10396 = vpack.c.b16 %v10377, %v10376
      %v10397 = vpack.c.b16 %v10379, %v10378
      %v10398 = vpack.c.b16 %v10381, %v10380
      %v10399 = vpack.c.b16 %v10383, %v10382
      %v10401 = vsel %vm10107, %v10384, 0
      %v10404 = vsel %vm10107, %v10385, 0
      %v10407 = vsel %vm10107, %v10386, 0
      %v10410 = vsel %vm10107, %v10387, 0
      %v10413 = vsel %vm10107, %v10388, 0
      %v10416 = vsel %vm10107, %v10389, 0
      %v10419 = vsel %vm10107, %v10390, 0
      %v10422 = vsel %vm10107, %v10391, 0
      %v10425 = vsel %vm10107, %v10392, 0
      %v10428 = vsel %vm10107, %v10393, 0
      %v10431 = vsel %vm10107, %v10394, 0
      %v10434 = vsel %vm10107, %v10395, 0
      %v10437 = vsel %vm10107, %v10396, 0
      %v10440 = vsel %vm10107, %v10397, 0
      %v10443 = vsel %vm10107, %v10398, 0
      %v10446 = vsel %vm10107, %v10399, 0
      %v10449 = vsel %vm4991, %v9988, 0
      %10451 = vmatprep.subr.bf16.mxu0 0
      %10452 = vmatpush1.bf16.msra.mxu0 %v9984
      %10453 = vmatprep.subr.bf16.mxu0 0
      %10454 = vmatpush1.bf16.msra.mxu0 %v9985
      %10455 = vmatprep.subr.bf16.mxu0 0
      %10456 = vmatpush1.bf16.msra.mxu0 %v9986
      %10457 = vmatprep.subr.bf16.mxu0 0
      %10458 = vmatpush1.bf16.msra.mxu0 %v9987
      %10459 = vmatprep.subr.bf16.mxu0 0
      %10460 = vmatpush1.bf16.msra.mxu0 %v10449
      %10461 = vmatprep.subr.bf16.mxu0 0
      %10462 = vmatpush1.bf16.msra.mxu0 0
      %10463 = vmatprep.subr.bf16.mxu0 0
      %10464 = vmatpush1.bf16.msra.mxu0 0
      %10465 = vmatprep.subr.bf16.mxu0 0
      %10466 = vmatpush1.bf16.msra.mxu0 0
      %10467 = vmatprep.subr.bf16.mxu0 0
      %10468 = vmatpush1.bf16.msra.mxu0 0
      %10469 = vmatprep.subr.bf16.mxu0 0
      %10470 = vmatpush1.bf16.msra.mxu0 0
      %10471 = vmatprep.subr.bf16.mxu0 0
      %10472 = vmatpush1.bf16.msra.mxu0 0
      %10473 = vmatprep.subr.bf16.mxu0 0
      %10474 = vmatpush1.bf16.msra.mxu0 0
      %10475 = vmatprep.subr.bf16.mxu0 0
      %10476 = vmatpush1.bf16.msra.mxu0 0
      %10477 = vmatprep.subr.bf16.mxu0 0
      %10478 = vmatpush1.bf16.msra.mxu0 0
      %10479 = vmatprep.subr.bf16.mxu0 0
      %10480 = vmatpush1.bf16.msra.mxu0 0
      %10481 = vmatprep.subr.bf16.mxu0 0
      %10482 = vmatpush1.bf16.msra.mxu0 0
      %10483 = vmatprep.mubr.bf16.mxu0 0
      %10484 = vmatmul.mubr.bf16.gmra.mrb[0].mxu0 %v10401
      %v10485 = vpop.f32.mrb[0].mxu0
      %v10486 = vadd.f32 %v10194, %v10485
      %v10487 = vpop.f32.mrb[0].mxu0
      %v10488 = vpop.f32.mrb[0].mxu0
      %v10489 = vadd.f32 %v10197, %v10488
      %v10490 = vpop.f32.mrb[0].mxu0
      %10491 = vmatprep.mubr.bf16.mxu0 0
      %10492 = vmatmul.mubr.bf16.gmra.mrb[0].mxu0 %v10404
      %v10493 = vpop.f32.mrb[0].mxu0
      %v10494 = vadd.f32 %v10202, %v10493
      %v10495 = vpop.f32.mrb[0].mxu0
      %v10496 = vpop.f32.mrb[0].mxu0
      %v10497 = vadd.f32 %v10205, %v10496
      %v10498 = vpop.f32.mrb[0].mxu0
      %10499 = vmatprep.mubr.bf16.mxu0 0
      %10500 = vmatmul.mubr.bf16.gmra.mrb[0].mxu0 %v10407
      %v10501 = vpop.f32.mrb[0].mxu0
      %v10502 = vadd.f32 %v10210, %v10501
      %v10503 = vpop.f32.mrb[0].mxu0
      %v10504 = vpop.f32.mrb[0].mxu0
      %v10505 = vadd.f32 %v10213, %v10504
      %v10506 = vpop.f32.mrb[0].mxu0
      %10507 = vmatprep.mubr.bf16.mxu0 0
      %10508 = vmatmul.mubr.bf16.gmra.mrb[0].mxu0 %v10410
      %v10509 = vpop.f32.mrb[0].mxu0
      %v10510 = vadd.f32 %v10218, %v10509
      %v10511 = vpop.f32.mrb[0].mxu0
      %v10512 = vpop.f32.mrb[0].mxu0
      %v10513 = vadd.f32 %v10221, %v10512
      %v10514 = vpop.f32.mrb[0].mxu0
      %10515 = vmatprep.mubr.bf16.mxu0 0
      %10516 = vmatmul.mubr.bf16.gmra.mrb[0].mxu0 %v10413
      %v10517 = vpop.f32.mrb[0].mxu0
      %v10518 = vadd.f32 %v10226, %v10517
      %v10519 = vpop.f32.mrb[0].mxu0
      %v10520 = vpop.f32.mrb[0].mxu0
      %v10521 = vadd.f32 %v10229, %v10520
      %v10522 = vpop.f32.mrb[0].mxu0
      %10523 = vmatprep.mubr.bf16.mxu0 0
      %10524 = vmatmul.mubr.bf16.gmra.mrb[0].mxu0 %v10416
      %v10525 = vpop.f32.mrb[0].mxu0
      %v10526 = vadd.f32 %v10234, %v10525
      %v10527 = vpop.f32.mrb[0].mxu0
      %v10528 = vpop.f32.mrb[0].mxu0
      %v10529 = vadd.f32 %v10237, %v10528
      %v10530 = vpop.f32.mrb[0].mxu0
      %10531 = vmatprep.mubr.bf16.mxu0 0
      %10532 = vmatmul.mubr.bf16.gmra.mrb[0].mxu0 %v10419
      %v10533 = vpop.f32.mrb[0].mxu0
      %v10534 = vadd.f32 %v10242, %v10533
      %v10535 = vpop.f32.mrb[0].mxu0
      %v10536 = vpop.f32.mrb[0].mxu0
      %v10537 = vadd.f32 %v10245, %v10536
      %v10538 = vpop.f32.mrb[0].mxu0
      %10539 = vmatprep.mubr.bf16.mxu0 0
      %10540 = vmatmul.mubr.bf16.gmra.mrb[0].mxu0 %v10422
      %v10541 = vpop.f32.mrb[0].mxu0
      %v10542 = vadd.f32 %v10250, %v10541
      %v10543 = vpop.f32.mrb[0].mxu0
      %v10544 = vpop.f32.mrb[0].mxu0
      %v10545 = vadd.f32 %v10253, %v10544
      %v10546 = vpop.f32.mrb[0].mxu0
      %10547 = vmatprep.mubr.bf16.mxu0 0
      %10548 = vmatmul.mubr.bf16.gmra.mrb[0].mxu0 %v10425
      %v10549 = vpop.f32.mrb[0].mxu0
      %v10550 = vadd.f32 %v10258, %v10549
      %v10551 = vpop.f32.mrb[0].mxu0
      %v10552 = vpop.f32.mrb[0].mxu0
      %v10553 = vadd.f32 %v10261, %v10552
      %v10554 = vpop.f32.mrb[0].mxu0
      %10555 = vmatprep.mubr.bf16.mxu0 0
      %10556 = vmatmul.mubr.bf16.gmra.mrb[0].mxu0 %v10428
      %v10557 = vpop.f32.mrb[0].mxu0
      %v10558 = vadd.f32 %v10266, %v10557
      %v10559 = vpop.f32.mrb[0].mxu0
      %v10560 = vpop.f32.mrb[0].mxu0
      %v10561 = vadd.f32 %v10269, %v10560
      %v10562 = vpop.f32.mrb[0].mxu0
      %10563 = vmatprep.mubr.bf16.mxu0 0
      %10564 = vmatmul.mubr.bf16.gmra.mrb[0].mxu0 %v10431
      %v10565 = vpop.f32.mrb[0].mxu0
      %v10566 = vadd.f32 %v10274, %v10565
      %v10567 = vpop.f32.mrb[0].mxu0
      %v10568 = vpop.f32.mrb[0].mxu0
      %v10569 = vadd.f32 %v10277, %v10568
      %v10570 = vpop.f32.mrb[0].mxu0
      %10571 = vmatprep.mubr.bf16.mxu0 0
      %10572 = vmatmul.mubr.bf16.gmra.mrb[0].mxu0 %v10434
      %v10573 = vpop.f32.mrb[0].mxu0
      %v10574 = vadd.f32 %v10282, %v10573
      %v10575 = vpop.f32.mrb[0].mxu0
      %v10576 = vpop.f32.mrb[0].mxu0
      %v10577 = vadd.f32 %v10285, %v10576
      %v10578 = vpop.f32.mrb[0].mxu0
      %10579 = vmatprep.mubr.bf16.mxu0 0
      %10580 = vmatmul.mubr.bf16.gmra.mrb[0].mxu0 %v10437
      %v10581 = vpop.f32.mrb[0].mxu0
      %v10582 = vadd.f32 %v10290, %v10581
      %v10583 = vpop.f32.mrb[0].mxu0
      %v10584 = vpop.f32.mrb[0].mxu0
      %v10585 = vadd.f32 %v10293, %v10584
      %v10586 = vpop.f32.mrb[0].mxu0
      %10587 = vmatprep.mubr.bf16.mxu0 0
      %10588 = vmatmul.mubr.bf16.gmra.mrb[0].mxu0 %v10440
      %v10589 = vpop.f32.mrb[0].mxu0
      %v10590 = vadd.f32 %v10298, %v10589
      %v10591 = vpop.f32.mrb[0].mxu0
      %v10592 = vpop.f32.mrb[0].mxu0
      %v10593 = vadd.f32 %v10301, %v10592
      %v10594 = vpop.f32.mrb[0].mxu0
      %10595 = vmatprep.mubr.bf16.mxu0 0
      %10596 = vmatmul.mubr.bf16.gmra.mrb[0].mxu0 %v10443
      %v10597 = vpop.f32.mrb[0].mxu0
      %v10598 = vadd.f32 %v10306, %v10597
      %v10599 = vpop.f32.mrb[0].mxu0
      %v10600 = vpop.f32.mrb[0].mxu0
      %v10601 = vadd.f32 %v10309, %v10600
      %v10602 = vpop.f32.mrb[0].mxu0
      %10603 = vmatprep.mubr.bf16.mxu0 0
      %10604 = vmatmul.mubr.bf16.gmra.mrb[0].mxu0 %v10446
      %v10605 = vpop.f32.mrb[0].mxu0
      %v10606 = vadd.f32 %v10314, %v10605
      %v10607 = vpop.f32.mrb[0].mxu0
      %v10608 = vpop.f32.mrb[0].mxu0
      %v10609 = vadd.f32 %v10317, %v10608
      %v10610 = vpop.f32.mrb[0].mxu0
      %10611 = vdwg.mxu0
      %s10612 = scalar_lea.vmem %s18, 256
      %v10613 = vld [vmem:[%s10612] sm:$0xf]
      %v10614 = vld [vmem:[%s10612 + $0x4] sm:$0xf]
      %v10615 = vld [vmem:[%s10612 + $0x8] sm:$0xf]
      %v10616 = vld [vmem:[%s10612 + $0xc] sm:$0xf]
      %v10617 = vld [vmem:[%s10612 + $0x10] sm:$0xf]
      %v10618 = vld [vmem:[%s10612 + $0x14] sm:$0xf]
      %v10619 = vld [vmem:[%s10612 + $0x18] sm:$0xf]
      %v10620 = vld [vmem:[%s10612 + $0x1c] sm:$0xf]
      %v10621 = vld [vmem:[%s10612 + $0x20] sm:$0xf]
      %v10622 = vld [vmem:[%s10612 + $0x24] sm:$0xf]
      %v10623 = vld [vmem:[%s10612 + $0x28] sm:$0xf]
      %v10624 = vld [vmem:[%s10612 + $0x2c] sm:$0xf]
      %v10625 = vld [vmem:[%s10612 + $0x30] sm:$0xf]
      %v10626 = vld [vmem:[%s10612 + $0x34] sm:$0xf]
      %v10627 = vld [vmem:[%s10612 + $0x38] sm:$0xf]
      %v10628 = vld [vmem:[%s10612 + $0x3c] sm:$0xf]
      %v10629 = vld [vmem:[%s10612 + $0x40] sm:$0xf]
      %v10630 = vld [vmem:[%s10612 + $0x44] sm:$0xf]
      %v10631 = vld [vmem:[%s10612 + $0x48] sm:$0xf]
      %v10632 = vld [vmem:[%s10612 + $0x4c] sm:$0xf]
      %v10633 = vld [vmem:[%s10612 + $0x50] sm:$0xf]
      %v10634 = vld [vmem:[%s10612 + $0x54] sm:$0xf]
      %v10635 = vld [vmem:[%s10612 + $0x58] sm:$0xf]
      %v10636 = vld [vmem:[%s10612 + $0x5c] sm:$0xf]
      %v10637 = vld [vmem:[%s10612 + $0x60] sm:$0xf]
      %v10638 = vld [vmem:[%s10612 + $0x64] sm:$0xf]
      %v10639 = vld [vmem:[%s10612 + $0x68] sm:$0xf]
      %v10640 = vld [vmem:[%s10612 + $0x6c] sm:$0xf]
      %v10641 = vld [vmem:[%s10612 + $0x70] sm:$0xf]
      %v10642 = vld [vmem:[%s10612 + $0x74] sm:$0xf]
      %v10643 = vld [vmem:[%s10612 + $0x78] sm:$0xf]
      %v10644 = vld [vmem:[%s10612 + $0x7c] sm:$0xf]
      %v10645 = vpack.c.bf16 %v9469, %v9468
      %v10646 = vpack.c.bf16 %v9471, %v9470
      %v10647 = vpack.c.bf16 %v9473, %v9472
      %v10648 = vpack.c.bf16 %v9475, %v9474
      %v10649 = vpack.c.bf16 %v9476, %v9476
      %v10682 = vunpack.c.l.b16 %v10613
      %v10683 = vunpack.c.l.b16 %v10614
      %v10684 = vunpack.c.l.b16 %v10615
      %v10685 = vunpack.c.l.b16 %v10616
      %v10686 = vunpack.c.l.b16 %v10617
      %v10687 = vunpack.c.l.b16 %v10618
      %v10688 = vunpack.c.l.b16 %v10619
      %v10689 = vunpack.c.l.b16 %v10620
      %v10690 = vunpack.c.l.b16 %v10621
      %v10691 = vunpack.c.l.b16 %v10622
      %v10692 = vunpack.c.l.b16 %v10623
      %v10693 = vunpack.c.l.b16 %v10624
      %v10694 = vunpack.c.l.b16 %v10625
      %v10695 = vunpack.c.l.b16 %v10626
      %v10696 = vunpack.c.l.b16 %v10627
      %v10697 = vunpack.c.l.b16 %v10628
      %v10698 = vunpack.c.l.b16 %v10629
      %v10699 = vunpack.c.l.b16 %v10630
      %v10700 = vunpack.c.l.b16 %v10631
      %v10701 = vunpack.c.l.b16 %v10632
      %v10702 = vunpack.c.l.b16 %v10633
      %v10703 = vunpack.c.l.b16 %v10634
      %v10704 = vunpack.c.l.b16 %v10635
      %v10705 = vunpack.c.l.b16 %v10636
      %v10706 = vunpack.c.l.b16 %v10637
      %v10707 = vunpack.c.l.b16 %v10638
      %v10708 = vunpack.c.l.b16 %v10639
      %v10709 = vunpack.c.l.b16 %v10640
      %v10710 = vunpack.c.l.b16 %v10641
      %v10711 = vunpack.c.l.b16 %v10642
      %v10712 = vunpack.c.l.b16 %v10643
      %v10713 = vunpack.c.l.b16 %v10644
      %v10714 = vpack.c.b16 %v10683, %v10682
      %v10715 = vpack.c.b16 %v10685, %v10684
      %v10716 = vpack.c.b16 %v10687, %v10686
      %v10717 = vpack.c.b16 %v10689, %v10688
      %v10718 = vpack.c.b16 %v10691, %v10690
      %v10719 = vpack.c.b16 %v10693, %v10692
      %v10720 = vpack.c.b16 %v10695, %v10694
      %v10721 = vpack.c.b16 %v10697, %v10696
      %v10722 = vpack.c.b16 %v10699, %v10698
      %v10723 = vpack.c.b16 %v10701, %v10700
      %v10724 = vpack.c.b16 %v10703, %v10702
      %v10725 = vpack.c.b16 %v10705, %v10704
      %v10726 = vpack.c.b16 %v10707, %v10706
      %v10727 = vpack.c.b16 %v10709, %v10708
      %v10728 = vpack.c.b16 %v10711, %v10710
      %v10729 = vpack.c.b16 %v10713, %v10712
      %v10731 = vsel %vm10107, %v10714, 0
      %v10734 = vsel %vm10107, %v10715, 0
      %v10737 = vsel %vm10107, %v10716, 0
      %v10740 = vsel %vm10107, %v10717, 0
      %v10743 = vsel %vm10107, %v10718, 0
      %v10746 = vsel %vm10107, %v10719, 0
      %v10749 = vsel %vm10107, %v10720, 0
      %v10752 = vsel %vm10107, %v10721, 0
      %v10755 = vsel %vm10107, %v10722, 0
      %v10758 = vsel %vm10107, %v10723, 0
      %v10761 = vsel %vm10107, %v10724, 0
      %v10764 = vsel %vm10107, %v10725, 0
      %v10767 = vsel %vm10107, %v10726, 0
      %v10770 = vsel %vm10107, %v10727, 0
      %v10773 = vsel %vm10107, %v10728, 0
      %v10776 = vsel %vm10107, %v10729, 0
      %v10779 = vsel %vm4991, %v10649, 0
      %10781 = vmatprep.subr.bf16.mxu0 0
      %10782 = vmatpush1.bf16.msra.mxu0 %v10645
      %10783 = vmatprep.subr.bf16.mxu0 0
      %10784 = vmatpush1.bf16.msra.mxu0 %v10646
      %10785 = vmatprep.subr.bf16.mxu0 0
      %10786 = vmatpush1.bf16.msra.mxu0 %v10647
      %10787 = vmatprep.subr.bf16.mxu0 0
      %10788 = vmatpush1.bf16.msra.mxu0 %v10648
      %10789 = vmatprep.subr.bf16.mxu0 0
      %10790 = vmatpush1.bf16.msra.mxu0 %v10779
      %10791 = vmatprep.subr.bf16.mxu0 0
      %10792 = vmatpush1.bf16.msra.mxu0 0
      %10793 = vmatprep.subr.bf16.mxu0 0
      %10794 = vmatpush1.bf16.msra.mxu0 0
      %10795 = vmatprep.subr.bf16.mxu0 0
      %10796 = vmatpush1.bf16.msra.mxu0 0
      %10797 = vmatprep.subr.bf16.mxu0 0
      %10798 = vmatpush1.bf16.msra.mxu0 0
      %10799 = vmatprep.subr.bf16.mxu0 0
      %10800 = vmatpush1.bf16.msra.mxu0 0
      %10801 = vmatprep.subr.bf16.mxu0 0
      %10802 = vmatpush1.bf16.msra.mxu0 0
      %10803 = vmatprep.subr.bf16.mxu0 0
      %10804 = vmatpush1.bf16.msra.mxu0 0
      %10805 = vmatprep.subr.bf16.mxu0 0
      %10806 = vmatpush1.bf16.msra.mxu0 0
      %10807 = vmatprep.subr.bf16.mxu0 0
      %10808 = vmatpush1.bf16.msra.mxu0 0
      %10809 = vmatprep.subr.bf16.mxu0 0
      %10810 = vmatpush1.bf16.msra.mxu0 0
      %10811 = vmatprep.subr.bf16.mxu0 0
      %10812 = vmatpush1.bf16.msra.mxu0 0
      %10813 = vmatprep.mubr.bf16.mxu0 0
      %10814 = vmatmul.mubr.bf16.gmra.mrb[0].mxu0 %v10731
      %v10815 = vpop.f32.mrb[0].mxu0
      %v10816 = vadd.f32 0.0, %v10815
      %v10817 = vpop.f32.mrb[0].mxu0
      %v10818 = vpop.f32.mrb[0].mxu0
      %v10819 = vadd.f32 0.0, %v10818
      %v10820 = vpop.f32.mrb[0].mxu0
      %10821 = vmatprep.mubr.bf16.mxu0 0
      %10822 = vmatmul.mubr.bf16.gmra.mrb[0].mxu0 %v10734
      %v10823 = vpop.f32.mrb[0].mxu0
      %v10824 = vadd.f32 0.0, %v10823
      %v10825 = vpop.f32.mrb[0].mxu0
      %v10826 = vpop.f32.mrb[0].mxu0
      %v10827 = vadd.f32 0.0, %v10826
      %v10828 = vpop.f32.mrb[0].mxu0
      %10829 = vmatprep.mubr.bf16.mxu0 0
      %10830 = vmatmul.mubr.bf16.gmra.mrb[0].mxu0 %v10737
      %v10831 = vpop.f32.mrb[0].mxu0
      %v10832 = vadd.f32 0.0, %v10831
      %v10833 = vpop.f32.mrb[0].mxu0
      %v10834 = vpop.f32.mrb[0].mxu0
      %v10835 = vadd.f32 0.0, %v10834
      %v10836 = vpop.f32.mrb[0].mxu0
      %10837 = vmatprep.mubr.bf16.mxu0 0
      %10838 = vmatmul.mubr.bf16.gmra.mrb[0].mxu0 %v10740
      %v10839 = vpop.f32.mrb[0].mxu0
      %v10840 = vadd.f32 0.0, %v10839
      %v10841 = vpop.f32.mrb[0].mxu0
      %v10842 = vpop.f32.mrb[0].mxu0
      %v10843 = vadd.f32 0.0, %v10842
      %v10844 = vpop.f32.mrb[0].mxu0
      %10845 = vmatprep.mubr.bf16.mxu0 0
      %10846 = vmatmul.mubr.bf16.gmra.mrb[0].mxu0 %v10743
      %v10847 = vpop.f32.mrb[0].mxu0
      %v10848 = vadd.f32 0.0, %v10847
      %v10849 = vpop.f32.mrb[0].mxu0
      %v10850 = vpop.f32.mrb[0].mxu0
      %v10851 = vadd.f32 0.0, %v10850
      %v10852 = vpop.f32.mrb[0].mxu0
      %10853 = vmatprep.mubr.bf16.mxu0 0
      %10854 = vmatmul.mubr.bf16.gmra.mrb[0].mxu0 %v10746
      %v10855 = vpop.f32.mrb[0].mxu0
      %v10856 = vadd.f32 0.0, %v10855
      %v10857 = vpop.f32.mrb[0].mxu0
      %v10858 = vpop.f32.mrb[0].mxu0
      %v10859 = vadd.f32 0.0, %v10858
      %v10860 = vpop.f32.mrb[0].mxu0
      %10861 = vmatprep.mubr.bf16.mxu0 0
      %10862 = vmatmul.mubr.bf16.gmra.mrb[0].mxu0 %v10749
      %v10863 = vpop.f32.mrb[0].mxu0
      %v10864 = vadd.f32 0.0, %v10863
      %v10865 = vpop.f32.mrb[0].mxu0
      %v10866 = vpop.f32.mrb[0].mxu0
      %v10867 = vadd.f32 0.0, %v10866
      %v10868 = vpop.f32.mrb[0].mxu0
      %10869 = vmatprep.mubr.bf16.mxu0 0
      %10870 = vmatmul.mubr.bf16.gmra.mrb[0].mxu0 %v10752
      %v10871 = vpop.f32.mrb[0].mxu0
      %v10872 = vadd.f32 0.0, %v10871
      %v10873 = vpop.f32.mrb[0].mxu0
      %v10874 = vpop.f32.mrb[0].mxu0
      %v10875 = vadd.f32 0.0, %v10874
      %v10876 = vpop.f32.mrb[0].mxu0
      %10877 = vmatprep.mubr.bf16.mxu0 0
      %10878 = vmatmul.mubr.bf16.gmra.mrb[0].mxu0 %v10755
      %v10879 = vpop.f32.mrb[0].mxu0
      %v10880 = vadd.f32 0.0, %v10879
      %v10881 = vpop.f32.mrb[0].mxu0
      %v10882 = vpop.f32.mrb[0].mxu0
      %v10883 = vadd.f32 0.0, %v10882
      %v10884 = vpop.f32.mrb[0].mxu0
      %10885 = vmatprep.mubr.bf16.mxu0 0
      %10886 = vmatmul.mubr.bf16.gmra.mrb[0].mxu0 %v10758
      %v10887 = vpop.f32.mrb[0].mxu0
      %v10888 = vadd.f32 0.0, %v10887
      %v10889 = vpop.f32.mrb[0].mxu0
      %v10890 = vpop.f32.mrb[0].mxu0
      %v10891 = vadd.f32 0.0, %v10890
      %v10892 = vpop.f32.mrb[0].mxu0
      %10893 = vmatprep.mubr.bf16.mxu0 0
      %10894 = vmatmul.mubr.bf16.gmra.mrb[0].mxu0 %v10761
      %v10895 = vpop.f32.mrb[0].mxu0
      %v10896 = vadd.f32 0.0, %v10895
      %v10897 = vpop.f32.mrb[0].mxu0
      %v10898 = vpop.f32.mrb[0].mxu0
      %v10899 = vadd.f32 0.0, %v10898
      %v10900 = vpop.f32.mrb[0].mxu0
      %10901 = vmatprep.mubr.bf16.mxu0 0
      %10902 = vmatmul.mubr.bf16.gmra.mrb[0].mxu0 %v10764
      %v10903 = vpop.f32.mrb[0].mxu0
      %v10904 = vadd.f32 0.0, %v10903
      %v10905 = vpop.f32.mrb[0].mxu0
      %v10906 = vpop.f32.mrb[0].mxu0
      %v10907 = vadd.f32 0.0, %v10906
      %v10908 = vpop.f32.mrb[0].mxu0
      %10909 = vmatprep.mubr.bf16.mxu0 0
      %10910 = vmatmul.mubr.bf16.gmra.mrb[0].mxu0 %v10767
      %v10911 = vpop.f32.mrb[0].mxu0
      %v10912 = vadd.f32 0.0, %v10911
      %v10913 = vpop.f32.mrb[0].mxu0
      %v10914 = vpop.f32.mrb[0].mxu0
      %v10915 = vadd.f32 0.0, %v10914
      %v10916 = vpop.f32.mrb[0].mxu0
      %10917 = vmatprep.mubr.bf16.mxu0 0
      %10918 = vmatmul.mubr.bf16.gmra.mrb[0].mxu0 %v10770
      %v10919 = vpop.f32.mrb[0].mxu0
      %v10920 = vadd.f32 0.0, %v10919
      %v10921 = vpop.f32.mrb[0].mxu0
      %v10922 = vpop.f32.mrb[0].mxu0
      %v10923 = vadd.f32 0.0, %v10922
      %v10924 = vpop.f32.mrb[0].mxu0
      %10925 = vmatprep.mubr.bf16.mxu0 0
      %10926 = vmatmul.mubr.bf16.gmra.mrb[0].mxu0 %v10773
      %v10927 = vpop.f32.mrb[0].mxu0
      %v10928 = vadd.f32 0.0, %v10927
      %v10929 = vpop.f32.mrb[0].mxu0
      %v10930 = vpop.f32.mrb[0].mxu0
      %v10931 = vadd.f32 0.0, %v10930
      %v10932 = vpop.f32.mrb[0].mxu0
      %10933 = vmatprep.mubr.bf16.mxu0 0
      %10934 = vmatmul.mubr.bf16.gmra.mrb[0].mxu0 %v10776
      %v10935 = vpop.f32.mrb[0].mxu0
      %v10936 = vadd.f32 0.0, %v10935
      %v10937 = vpop.f32.mrb[0].mxu0
      %v10938 = vpop.f32.mrb[0].mxu0
      %v10939 = vadd.f32 0.0, %v10938
      %v10940 = vpop.f32.mrb[0].mxu0
      %10941 = vdwg.mxu0
      %v10942 = vadd.f32 %v10486, %v10816
      %v10943 = vadd.f32 %v10489, %v10819
      %v10944 = vadd.f32 %v10494, %v10824
      %v10945 = vadd.f32 %v10497, %v10827
      %v10946 = vadd.f32 %v10502, %v10832
      %v10947 = vadd.f32 %v10505, %v10835
      %v10948 = vadd.f32 %v10510, %v10840
      %v10949 = vadd.f32 %v10513, %v10843
      %v10950 = vadd.f32 %v10518, %v10848
      %v10951 = vadd.f32 %v10521, %v10851
      %v10952 = vadd.f32 %v10526, %v10856
      %v10953 = vadd.f32 %v10529, %v10859
      %v10954 = vadd.f32 %v10534, %v10864
      %v10955 = vadd.f32 %v10537, %v10867
      %v10956 = vadd.f32 %v10542, %v10872
      %v10957 = vadd.f32 %v10545, %v10875
      %v10958 = vadd.f32 %v10550, %v10880
      %v10959 = vadd.f32 %v10553, %v10883
      %v10960 = vadd.f32 %v10558, %v10888
      %v10961 = vadd.f32 %v10561, %v10891
      %v10962 = vadd.f32 %v10566, %v10896
      %v10963 = vadd.f32 %v10569, %v10899
      %v10964 = vadd.f32 %v10574, %v10904
      %v10965 = vadd.f32 %v10577, %v10907
      %v10966 = vadd.f32 %v10582, %v10912
      %v10967 = vadd.f32 %v10585, %v10915
      %v10968 = vadd.f32 %v10590, %v10920
      %v10969 = vadd.f32 %v10593, %v10923
      %v10970 = vadd.f32 %v10598, %v10928
      %v10971 = vadd.f32 %v10601, %v10931
      %v10972 = vadd.f32 %v10606, %v10936
      %v10973 = vadd.f32 %v10609, %v10939
      %s10974 = scalar_lea.vmem %s18, 384
      %v10975 = vld [vmem:[%s10974] sm:$0xf]
      %v10976 = vld [vmem:[%s10974 + $0x4] sm:$0xf]
      %v10977 = vld [vmem:[%s10974 + $0x8] sm:$0xf]
      %v10978 = vld [vmem:[%s10974 + $0xc] sm:$0xf]
      %v10979 = vld [vmem:[%s10974 + $0x10] sm:$0xf]
      %v10980 = vld [vmem:[%s10974 + $0x14] sm:$0xf]
      %v10981 = vld [vmem:[%s10974 + $0x18] sm:$0xf]
      %v10982 = vld [vmem:[%s10974 + $0x1c] sm:$0xf]
      %v10983 = vld [vmem:[%s10974 + $0x20] sm:$0xf]
      %v10984 = vld [vmem:[%s10974 + $0x24] sm:$0xf]
      %v10985 = vld [vmem:[%s10974 + $0x28] sm:$0xf]
      %v10986 = vld [vmem:[%s10974 + $0x2c] sm:$0xf]
      %v10987 = vld [vmem:[%s10974 + $0x30] sm:$0xf]
      %v10988 = vld [vmem:[%s10974 + $0x34] sm:$0xf]
      %v10989 = vld [vmem:[%s10974 + $0x38] sm:$0xf]
      %v10990 = vld [vmem:[%s10974 + $0x3c] sm:$0xf]
      %v10991 = vld [vmem:[%s10974 + $0x40] sm:$0xf]
      %v10992 = vld [vmem:[%s10974 + $0x44] sm:$0xf]
      %v10993 = vld [vmem:[%s10974 + $0x48] sm:$0xf]
      %v10994 = vld [vmem:[%s10974 + $0x4c] sm:$0xf]
      %v10995 = vld [vmem:[%s10974 + $0x50] sm:$0xf]
      %v10996 = vld [vmem:[%s10974 + $0x54] sm:$0xf]
      %v10997 = vld [vmem:[%s10974 + $0x58] sm:$0xf]
      %v10998 = vld [vmem:[%s10974 + $0x5c] sm:$0xf]
      %v10999 = vld [vmem:[%s10974 + $0x60] sm:$0xf]
      %v11000 = vld [vmem:[%s10974 + $0x64] sm:$0xf]
      %v11001 = vld [vmem:[%s10974 + $0x68] sm:$0xf]
      %v11002 = vld [vmem:[%s10974 + $0x6c] sm:$0xf]
      %v11003 = vld [vmem:[%s10974 + $0x70] sm:$0xf]
      %v11004 = vld [vmem:[%s10974 + $0x74] sm:$0xf]
      %v11005 = vld [vmem:[%s10974 + $0x78] sm:$0xf]
      %v11006 = vld [vmem:[%s10974 + $0x7c] sm:$0xf]
      %v11007 = vpack.c.bf16 %v9944, %v9943
      %v11008 = vpack.c.bf16 %v9946, %v9945
      %v11009 = vpack.c.bf16 %v9948, %v9947
      %v11010 = vpack.c.bf16 %v9950, %v9949
      %v11011 = vpack.c.bf16 %v9951, %v9951
      %v11044 = vunpack.c.l.b16 %v10975
      %v11045 = vunpack.c.l.b16 %v10976
      %v11046 = vunpack.c.l.b16 %v10977
      %v11047 = vunpack.c.l.b16 %v10978
      %v11048 = vunpack.c.l.b16 %v10979
      %v11049 = vunpack.c.l.b16 %v10980
      %v11050 = vunpack.c.l.b16 %v10981
      %v11051 = vunpack.c.l.b16 %v10982
      %v11052 = vunpack.c.l.b16 %v10983
      %v11053 = vunpack.c.l.b16 %v10984
      %v11054 = vunpack.c.l.b16 %v10985
      %v11055 = vunpack.c.l.b16 %v10986
      %v11056 = vunpack.c.l.b16 %v10987
      %v11057 = vunpack.c.l.b16 %v10988
      %v11058 = vunpack.c.l.b16 %v10989
      %v11059 = vunpack.c.l.b16 %v10990
      %v11060 = vunpack.c.l.b16 %v10991
      %v11061 = vunpack.c.l.b16 %v10992
      %v11062 = vunpack.c.l.b16 %v10993
      %v11063 = vunpack.c.l.b16 %v10994
      %v11064 = vunpack.c.l.b16 %v10995
      %v11065 = vunpack.c.l.b16 %v10996
      %v11066 = vunpack.c.l.b16 %v10997
      %v11067 = vunpack.c.l.b16 %v10998
      %v11068 = vunpack.c.l.b16 %v10999
      %v11069 = vunpack.c.l.b16 %v11000
      %v11070 = vunpack.c.l.b16 %v11001
      %v11071 = vunpack.c.l.b16 %v11002
      %v11072 = vunpack.c.l.b16 %v11003
      %v11073 = vunpack.c.l.b16 %v11004
      %v11074 = vunpack.c.l.b16 %v11005
      %v11075 = vunpack.c.l.b16 %v11006
      %v11076 = vpack.c.b16 %v11045, %v11044
      %v11077 = vpack.c.b16 %v11047, %v11046
      %v11078 = vpack.c.b16 %v11049, %v11048
      %v11079 = vpack.c.b16 %v11051, %v11050
      %v11080 = vpack.c.b16 %v11053, %v11052
      %v11081 = vpack.c.b16 %v11055, %v11054
      %v11082 = vpack.c.b16 %v11057, %v11056
      %v11083 = vpack.c.b16 %v11059, %v11058
      %v11084 = vpack.c.b16 %v11061, %v11060
      %v11085 = vpack.c.b16 %v11063, %v11062
      %v11086 = vpack.c.b16 %v11065, %v11064
      %v11087 = vpack.c.b16 %v11067, %v11066
      %v11088 = vpack.c.b16 %v11069, %v11068
      %v11089 = vpack.c.b16 %v11071, %v11070
      %v11090 = vpack.c.b16 %v11073, %v11072
      %v11091 = vpack.c.b16 %v11075, %v11074
      %v11093 = vsel %vm10107, %v11076, 0
      %v11096 = vsel %vm10107, %v11077, 0
      %v11099 = vsel %vm10107, %v11078, 0
      %v11102 = vsel %vm10107, %v11079, 0
      %v11105 = vsel %vm10107, %v11080, 0
      %v11108 = vsel %vm10107, %v11081, 0
      %v11111 = vsel %vm10107, %v11082, 0
      %v11114 = vsel %vm10107, %v11083, 0
      %v11117 = vsel %vm10107, %v11084, 0
      %v11120 = vsel %vm10107, %v11085, 0
      %v11123 = vsel %vm10107, %v11086, 0
      %v11126 = vsel %vm10107, %v11087, 0
      %v11129 = vsel %vm10107, %v11088, 0
      %v11132 = vsel %vm10107, %v11089, 0
      %v11135 = vsel %vm10107, %v11090, 0
      %v11138 = vsel %vm10107, %v11091, 0
      %v11141 = vsel %vm4991, %v11011, 0
      %11143 = vmatprep.subr.bf16.mxu0 0
      %11144 = vmatpush1.bf16.msra.mxu0 %v11007
      %11145 = vmatprep.subr.bf16.mxu0 0
      %11146 = vmatpush1.bf16.msra.mxu0 %v11008
      %11147 = vmatprep.subr.bf16.mxu0 0
      %11148 = vmatpush1.bf16.msra.mxu0 %v11009
      %11149 = vmatprep.subr.bf16.mxu0 0
      %11150 = vmatpush1.bf16.msra.mxu0 %v11010
      %11151 = vmatprep.subr.bf16.mxu0 0
      %11152 = vmatpush1.bf16.msra.mxu0 %v11141
      %11153 = vmatprep.subr.bf16.mxu0 0
      %11154 = vmatpush1.bf16.msra.mxu0 0
      %11155 = vmatprep.subr.bf16.mxu0 0
      %11156 = vmatpush1.bf16.msra.mxu0 0
      %11157 = vmatprep.subr.bf16.mxu0 0
      %11158 = vmatpush1.bf16.msra.mxu0 0
      %11159 = vmatprep.subr.bf16.mxu0 0
      %11160 = vmatpush1.bf16.msra.mxu0 0
      %11161 = vmatprep.subr.bf16.mxu0 0
      %11162 = vmatpush1.bf16.msra.mxu0 0
      %11163 = vmatprep.subr.bf16.mxu0 0
      %11164 = vmatpush1.bf16.msra.mxu0 0
      %11165 = vmatprep.subr.bf16.mxu0 0
      %11166 = vmatpush1.bf16.msra.mxu0 0
      %11167 = vmatprep.subr.bf16.mxu0 0
      %11168 = vmatpush1.bf16.msra.mxu0 0
      %11169 = vmatprep.subr.bf16.mxu0 0
      %11170 = vmatpush1.bf16.msra.mxu0 0
      %11171 = vmatprep.subr.bf16.mxu0 0
      %11172 = vmatpush1.bf16.msra.mxu0 0
      %11173 = vmatprep.subr.bf16.mxu0 0
      %11174 = vmatpush1.bf16.msra.mxu0 0
      %11175 = vmatprep.mubr.bf16.mxu0 0
      %11176 = vmatmul.mubr.bf16.gmra.mrb[0].mxu0 %v11093
      %v11177 = vpop.f32.mrb[0].mxu0
      %v11178 = vadd.f32 0.0, %v11177
      %v11179 = vpop.f32.mrb[0].mxu0
      %v11180 = vpop.f32.mrb[0].mxu0
      %v11181 = vadd.f32 0.0, %v11180
      %v11182 = vpop.f32.mrb[0].mxu0
      %11183 = vmatprep.mubr.bf16.mxu0 0
      %11184 = vmatmul.mubr.bf16.gmra.mrb[0].mxu0 %v11096
      %v11185 = vpop.f32.mrb[0].mxu0
      %v11186 = vadd.f32 0.0, %v11185
      %v11187 = vpop.f32.mrb[0].mxu0
      %v11188 = vpop.f32.mrb[0].mxu0
      %v11189 = vadd.f32 0.0, %v11188
      %v11190 = vpop.f32.mrb[0].mxu0
      %11191 = vmatprep.mubr.bf16.mxu0 0
      %11192 = vmatmul.mubr.bf16.gmra.mrb[0].mxu0 %v11099
      %v11193 = vpop.f32.mrb[0].mxu0
      %v11194 = vadd.f32 0.0, %v11193
      %v11195 = vpop.f32.mrb[0].mxu0
      %v11196 = vpop.f32.mrb[0].mxu0
      %v11197 = vadd.f32 0.0, %v11196
      %v11198 = vpop.f32.mrb[0].mxu0
      %11199 = vmatprep.mubr.bf16.mxu0 0
      %11200 = vmatmul.mubr.bf16.gmra.mrb[0].mxu0 %v11102
      %v11201 = vpop.f32.mrb[0].mxu0
      %v11202 = vadd.f32 0.0, %v11201
      %v11203 = vpop.f32.mrb[0].mxu0
      %v11204 = vpop.f32.mrb[0].mxu0
      %v11205 = vadd.f32 0.0, %v11204
      %v11206 = vpop.f32.mrb[0].mxu0
      %11207 = vmatprep.mubr.bf16.mxu0 0
      %11208 = vmatmul.mubr.bf16.gmra.mrb[0].mxu0 %v11105
      %v11209 = vpop.f32.mrb[0].mxu0
      %v11210 = vadd.f32 0.0, %v11209
      %v11211 = vpop.f32.mrb[0].mxu0
      %v11212 = vpop.f32.mrb[0].mxu0
      %v11213 = vadd.f32 0.0, %v11212
      %v11214 = vpop.f32.mrb[0].mxu0
      %11215 = vmatprep.mubr.bf16.mxu0 0
      %11216 = vmatmul.mubr.bf16.gmra.mrb[0].mxu0 %v11108
      %v11217 = vpop.f32.mrb[0].mxu0
      %v11218 = vadd.f32 0.0, %v11217
      %v11219 = vpop.f32.mrb[0].mxu0
      %v11220 = vpop.f32.mrb[0].mxu0
      %v11221 = vadd.f32 0.0, %v11220
      %v11222 = vpop.f32.mrb[0].mxu0
      %11223 = vmatprep.mubr.bf16.mxu0 0
      %11224 = vmatmul.mubr.bf16.gmra.mrb[0].mxu0 %v11111
      %v11225 = vpop.f32.mrb[0].mxu0
      %v11226 = vadd.f32 0.0, %v11225
      %v11227 = vpop.f32.mrb[0].mxu0
      %v11228 = vpop.f32.mrb[0].mxu0
      %v11229 = vadd.f32 0.0, %v11228
      %v11230 = vpop.f32.mrb[0].mxu0
      %11231 = vmatprep.mubr.bf16.mxu0 0
      %11232 = vmatmul.mubr.bf16.gmra.mrb[0].mxu0 %v11114
      %v11233 = vpop.f32.mrb[0].mxu0
      %v11234 = vadd.f32 0.0, %v11233
      %v11235 = vpop.f32.mrb[0].mxu0
      %v11236 = vpop.f32.mrb[0].mxu0
      %v11237 = vadd.f32 0.0, %v11236
      %v11238 = vpop.f32.mrb[0].mxu0
      %11239 = vmatprep.mubr.bf16.mxu0 0
      %11240 = vmatmul.mubr.bf16.gmra.mrb[0].mxu0 %v11117
      %v11241 = vpop.f32.mrb[0].mxu0
      %v11242 = vadd.f32 0.0, %v11241
      %v11243 = vpop.f32.mrb[0].mxu0
      %v11244 = vpop.f32.mrb[0].mxu0
      %v11245 = vadd.f32 0.0, %v11244
      %v11246 = vpop.f32.mrb[0].mxu0
      %11247 = vmatprep.mubr.bf16.mxu0 0
      %11248 = vmatmul.mubr.bf16.gmra.mrb[0].mxu0 %v11120
      %v11249 = vpop.f32.mrb[0].mxu0
      %v11250 = vadd.f32 0.0, %v11249
      %v11251 = vpop.f32.mrb[0].mxu0
      %v11252 = vpop.f32.mrb[0].mxu0
      %v11253 = vadd.f32 0.0, %v11252
      %v11254 = vpop.f32.mrb[0].mxu0
      %11255 = vmatprep.mubr.bf16.mxu0 0
      %11256 = vmatmul.mubr.bf16.gmra.mrb[0].mxu0 %v11123
      %v11257 = vpop.f32.mrb[0].mxu0
      %v11258 = vadd.f32 0.0, %v11257
      %v11259 = vpop.f32.mrb[0].mxu0
      %v11260 = vpop.f32.mrb[0].mxu0
      %v11261 = vadd.f32 0.0, %v11260
      %v11262 = vpop.f32.mrb[0].mxu0
      %11263 = vmatprep.mubr.bf16.mxu0 0
      %11264 = vmatmul.mubr.bf16.gmra.mrb[0].mxu0 %v11126
      %v11265 = vpop.f32.mrb[0].mxu0
      %v11266 = vadd.f32 0.0, %v11265
      %v11267 = vpop.f32.mrb[0].mxu0
      %v11268 = vpop.f32.mrb[0].mxu0
      %v11269 = vadd.f32 0.0, %v11268
      %v11270 = vpop.f32.mrb[0].mxu0
      %11271 = vmatprep.mubr.bf16.mxu0 0
      %11272 = vmatmul.mubr.bf16.gmra.mrb[0].mxu0 %v11129
      %v11273 = vpop.f32.mrb[0].mxu0
      %v11274 = vadd.f32 0.0, %v11273
      %v11275 = vpop.f32.mrb[0].mxu0
      %v11276 = vpop.f32.mrb[0].mxu0
      %v11277 = vadd.f32 0.0, %v11276
      %v11278 = vpop.f32.mrb[0].mxu0
      %11279 = vmatprep.mubr.bf16.mxu0 0
      %11280 = vmatmul.mubr.bf16.gmra.mrb[0].mxu0 %v11132
      %v11281 = vpop.f32.mrb[0].mxu0
      %v11282 = vadd.f32 0.0, %v11281
      %v11283 = vpop.f32.mrb[0].mxu0
      %v11284 = vpop.f32.mrb[0].mxu0
      %v11285 = vadd.f32 0.0, %v11284
      %v11286 = vpop.f32.mrb[0].mxu0
      %11287 = vmatprep.mubr.bf16.mxu0 0
      %11288 = vmatmul.mubr.bf16.gmra.mrb[0].mxu0 %v11135
      %v11289 = vpop.f32.mrb[0].mxu0
      %v11290 = vadd.f32 0.0, %v11289
      %v11291 = vpop.f32.mrb[0].mxu0
      %v11292 = vpop.f32.mrb[0].mxu0
      %v11293 = vadd.f32 0.0, %v11292
      %v11294 = vpop.f32.mrb[0].mxu0
      %11295 = vmatprep.mubr.bf16.mxu0 0
      %11296 = vmatmul.mubr.bf16.gmra.mrb[0].mxu0 %v11138
      %v11297 = vpop.f32.mrb[0].mxu0
      %v11298 = vadd.f32 0.0, %v11297
      %v11299 = vpop.f32.mrb[0].mxu0
      %v11300 = vpop.f32.mrb[0].mxu0
      %v11301 = vadd.f32 0.0, %v11300
      %v11302 = vpop.f32.mrb[0].mxu0
      %11303 = vdwg.mxu0
      %v11304 = vadd.f32 %v10942, %v11178
      %v11305 = vadd.f32 %v10943, %v11181
      %v11306 = vadd.f32 %v10944, %v11186
      %v11307 = vadd.f32 %v10945, %v11189
      %v11308 = vadd.f32 %v10946, %v11194
      %v11309 = vadd.f32 %v10947, %v11197
      %v11310 = vadd.f32 %v10948, %v11202
      %v11311 = vadd.f32 %v10949, %v11205
      %v11312 = vadd.f32 %v10950, %v11210
      %v11313 = vadd.f32 %v10951, %v11213
      %v11314 = vadd.f32 %v10952, %v11218
      %v11315 = vadd.f32 %v10953, %v11221
      %v11316 = vadd.f32 %v10954, %v11226
      %v11317 = vadd.f32 %v10955, %v11229
      %v11318 = vadd.f32 %v10956, %v11234
      %v11319 = vadd.f32 %v10957, %v11237
      %v11320 = vadd.f32 %v10958, %v11242
      %v11321 = vadd.f32 %v10959, %v11245
      %v11322 = vadd.f32 %v10960, %v11250
      %v11323 = vadd.f32 %v10961, %v11253
      %v11324 = vadd.f32 %v10962, %v11258
      %v11325 = vadd.f32 %v10963, %v11261
      %v11326 = vadd.f32 %v10964, %v11266
      %v11327 = vadd.f32 %v10965, %v11269
      %v11328 = vadd.f32 %v10966, %v11274
      %v11329 = vadd.f32 %v10967, %v11277
      %v11330 = vadd.f32 %v10968, %v11282
      %v11331 = vadd.f32 %v10969, %v11285
      %v11332 = vadd.f32 %v10970, %v11290
      %v11333 = vadd.f32 %v10971, %v11293
      %v11334 = vadd.f32 %v10972, %v11298
      %v11335 = vadd.f32 %v10973, %v11301
      %v11336 = vsub.f32 0.0, %v11304
      %v11337 = vsub.f32 0.0, %v11305
      %v11338 = vsub.f32 0.0, %v11306
      %v11339 = vsub.f32 0.0, %v11307
      %v11340 = vsub.f32 0.0, %v11308
      %v11341 = vsub.f32 0.0, %v11309
      %v11342 = vsub.f32 0.0, %v11310
      %v11343 = vsub.f32 0.0, %v11311
      %v11344 = vsub.f32 0.0, %v11312
      %v11345 = vsub.f32 0.0, %v11313
      %v11346 = vsub.f32 0.0, %v11314
      %v11347 = vsub.f32 0.0, %v11315
      %v11348 = vsub.f32 0.0, %v11316
      %v11349 = vsub.f32 0.0, %v11317
      %v11350 = vsub.f32 0.0, %v11318
      %v11351 = vsub.f32 0.0, %v11319
      %v11352 = vsub.f32 0.0, %v11320
      %v11353 = vsub.f32 0.0, %v11321
      %v11354 = vsub.f32 0.0, %v11322
      %v11355 = vsub.f32 0.0, %v11323
      %v11356 = vsub.f32 0.0, %v11324
      %v11357 = vsub.f32 0.0, %v11325
      %v11358 = vsub.f32 0.0, %v11326
      %v11359 = vsub.f32 0.0, %v11327
      %v11360 = vsub.f32 0.0, %v11328
      %v11361 = vsub.f32 0.0, %v11329
      %v11362 = vsub.f32 0.0, %v11330
      %v11363 = vsub.f32 0.0, %v11331
      %v11364 = vsub.f32 0.0, %v11332
      %v11365 = vsub.f32 0.0, %v11333
      %v11366 = vsub.f32 0.0, %v11334
      %v11367 = vsub.f32 0.0, %v11335
      %v11368 = vmul.f32 %v11336, 1.442695
      %v11369 = vpow.pop %v11368
      %v11370 = vmul.f32 %v11337, 1.442695
      %v11371 = vpow.pop %v11370
      %v11372 = vmul.f32 %v11338, 1.442695
      %v11373 = vpow.pop %v11372
      %v11374 = vmul.f32 %v11339, 1.442695
      %v11375 = vpow.pop %v11374
      %v11376 = vmul.f32 %v11340, 1.442695
      %v11377 = vpow.pop %v11376
      %v11378 = vmul.f32 %v11341, 1.442695
      %v11379 = vpow.pop %v11378
      %v11380 = vmul.f32 %v11342, 1.442695
      %v11381 = vpow.pop %v11380
      %v11382 = vmul.f32 %v11343, 1.442695
      %v11383 = vpow.pop %v11382
      %v11384 = vmul.f32 %v11344, 1.442695
      %v11385 = vpow.pop %v11384
      %v11386 = vmul.f32 %v11345, 1.442695
      %v11387 = vpow.pop %v11386
      %v11388 = vmul.f32 %v11346, 1.442695
      %v11389 = vpow.pop %v11388
      %v11390 = vmul.f32 %v11347, 1.442695
      %v11391 = vpow.pop %v11390
      %v11392 = vmul.f32 %v11348, 1.442695
      %v11393 = vpow.pop %v11392
      %v11394 = vmul.f32 %v11349, 1.442695
      %v11395 = vpow.pop %v11394
      %v11396 = vmul.f32 %v11350, 1.442695
      %v11397 = vpow.pop %v11396
      %v11398 = vmul.f32 %v11351, 1.442695
      %v11399 = vpow.pop %v11398
      %v11400 = vmul.f32 %v11352, 1.442695
      %v11401 = vpow.pop %v11400
      %v11402 = vmul.f32 %v11353, 1.442695
      %v11403 = vpow.pop %v11402
      %v11404 = vmul.f32 %v11354, 1.442695
      %v11405 = vpow.pop %v11404
      %v11406 = vmul.f32 %v11355, 1.442695
      %v11407 = vpow.pop %v11406
      %v11408 = vmul.f32 %v11356, 1.442695
      %v11409 = vpow.pop %v11408
      %v11410 = vmul.f32 %v11357, 1.442695
      %v11411 = vpow.pop %v11410
      %v11412 = vmul.f32 %v11358, 1.442695
      %v11413 = vpow.pop %v11412
      %v11414 = vmul.f32 %v11359, 1.442695
      %v11415 = vpow.pop %v11414
      %v11416 = vmul.f32 %v11360, 1.442695
      %v11417 = vpow.pop %v11416
      %v11418 = vmul.f32 %v11361, 1.442695
      %v11419 = vpow.pop %v11418
      %v11420 = vmul.f32 %v11362, 1.442695
      %v11421 = vpow.pop %v11420
      %v11422 = vmul.f32 %v11363, 1.442695
      %v11423 = vpow.pop %v11422
      %v11424 = vmul.f32 %v11364, 1.442695
      %v11425 = vpow.pop %v11424
      %v11426 = vmul.f32 %v11365, 1.442695
      %v11427 = vpow.pop %v11426
      %v11428 = vmul.f32 %v11366, 1.442695
      %v11429 = vpow.pop %v11428
      %v11430 = vmul.f32 %v11367, 1.442695
      %v11431 = vpow.pop %v11430
      %v11432 = vadd.f32 %v11369, 1.0
      %v11433 = vadd.f32 %v11371, 1.0
      %v11434 = vadd.f32 %v11373, 1.0
      %v11435 = vadd.f32 %v11375, 1.0
      %v11436 = vadd.f32 %v11377, 1.0
      %v11437 = vadd.f32 %v11379, 1.0
      %v11438 = vadd.f32 %v11381, 1.0
      %v11439 = vadd.f32 %v11383, 1.0
      %v11440 = vadd.f32 %v11385, 1.0
      %v11441 = vadd.f32 %v11387, 1.0
      %v11442 = vadd.f32 %v11389, 1.0
      %v11443 = vadd.f32 %v11391, 1.0
      %v11444 = vadd.f32 %v11393, 1.0
      %v11445 = vadd.f32 %v11395, 1.0
      %v11446 = vadd.f32 %v11397, 1.0
      %v11447 = vadd.f32 %v11399, 1.0
      %v11448 = vadd.f32 %v11401, 1.0
      %v11449 = vadd.f32 %v11403, 1.0
      %v11450 = vadd.f32 %v11405, 1.0
      %v11451 = vadd.f32 %v11407, 1.0
      %v11452 = vadd.f32 %v11409, 1.0
      %v11453 = vadd.f32 %v11411, 1.0
      %v11454 = vadd.f32 %v11413, 1.0
      %v11455 = vadd.f32 %v11415, 1.0
      %v11456 = vadd.f32 %v11417, 1.0
      %v11457 = vadd.f32 %v11419, 1.0
      %v11458 = vadd.f32 %v11421, 1.0
      %v11459 = vadd.f32 %v11423, 1.0
      %v11460 = vadd.f32 %v11425, 1.0
      %v11461 = vadd.f32 %v11427, 1.0
      %v11462 = vadd.f32 %v11429, 1.0
      %v11463 = vadd.f32 %v11431, 1.0
      %v11464 = vrcp.pop %v11432
      %v11465 = vmul.f32 1.0, %v11464
      %v11466 = vrcp.pop %v11433
      %v11467 = vmul.f32 1.0, %v11466
      %v11468 = vrcp.pop %v11434
      %v11469 = vmul.f32 1.0, %v11468
      %v11470 = vrcp.pop %v11435
      %v11471 = vmul.f32 1.0, %v11470
      %v11472 = vrcp.pop %v11436
      %v11473 = vmul.f32 1.0, %v11472
      %v11474 = vrcp.pop %v11437
      %v11475 = vmul.f32 1.0, %v11474
      %v11476 = vrcp.pop %v11438
      %v11477 = vmul.f32 1.0, %v11476
      %v11478 = vrcp.pop %v11439
      %v11479 = vmul.f32 1.0, %v11478
      %v11480 = vrcp.pop %v11440
      %v11481 = vmul.f32 1.0, %v11480
      %v11482 = vrcp.pop %v11441
      %v11483 = vmul.f32 1.0, %v11482
      %v11484 = vrcp.pop %v11442
      %v11485 = vmul.f32 1.0, %v11484
      %v11486 = vrcp.pop %v11443
      %v11487 = vmul.f32 1.0, %v11486
      %v11488 = vrcp.pop %v11444
      %v11489 = vmul.f32 1.0, %v11488
      %v11490 = vrcp.pop %v11445
      %v11491 = vmul.f32 1.0, %v11490
      %v11492 = vrcp.pop %v11446
      %v11493 = vmul.f32 1.0, %v11492
      %v11494 = vrcp.pop %v11447
      %v11495 = vmul.f32 1.0, %v11494
      %v11496 = vrcp.pop %v11448
      %v11497 = vmul.f32 1.0, %v11496
      %v11498 = vrcp.pop %v11449
      %v11499 = vmul.f32 1.0, %v11498
      %v11500 = vrcp.pop %v11450
      %v11501 = vmul.f32 1.0, %v11500
      %v11502 = vrcp.pop %v11451
      %v11503 = vmul.f32 1.0, %v11502
      %v11504 = vrcp.pop %v11452
      %v11505 = vmul.f32 1.0, %v11504
      %v11506 = vrcp.pop %v11453
      %v11507 = vmul.f32 1.0, %v11506
      %v11508 = vrcp.pop %v11454
      %v11509 = vmul.f32 1.0, %v11508
      %v11510 = vrcp.pop %v11455
      %v11511 = vmul.f32 1.0, %v11510
      %v11512 = vrcp.pop %v11456
      %v11513 = vmul.f32 1.0, %v11512
      %v11514 = vrcp.pop %v11457
      %v11515 = vmul.f32 1.0, %v11514
      %v11516 = vrcp.pop %v11458
      %v11517 = vmul.f32 1.0, %v11516
      %v11518 = vrcp.pop %v11459
      %v11519 = vmul.f32 1.0, %v11518
      %v11520 = vrcp.pop %v11460
      %v11521 = vmul.f32 1.0, %v11520
      %v11522 = vrcp.pop %v11461
      %v11523 = vmul.f32 1.0, %v11522
      %v11524 = vrcp.pop %v11462
      %v11525 = vmul.f32 1.0, %v11524
      %v11526 = vrcp.pop %v11463
      %v11527 = vmul.f32 1.0, %v11526
      %vm11528 = vcmask 23552
      %11529 = vst.msk [vmem:[%s602] sm:$0xff] %vm11528, %v11465
      %11530 = vst.msk [vmem:[%s602 + $0x8] sm:$0xff] %vm11528, %v11467
      %11531 = vst.msk [vmem:[%s602 + $0x10] sm:$0xff] %vm11528, %v11469
      %11532 = vst.msk [vmem:[%s602 + $0x18] sm:$0xff] %vm11528, %v11471
      %11533 = vst.msk [vmem:[%s602 + $0x20] sm:$0xff] %vm11528, %v11473
      %11534 = vst.msk [vmem:[%s602 + $0x28] sm:$0xff] %vm11528, %v11475
      %11535 = vst.msk [vmem:[%s602 + $0x30] sm:$0xff] %vm11528, %v11477
      %11536 = vst.msk [vmem:[%s602 + $0x38] sm:$0xff] %vm11528, %v11479
      %11537 = vst.msk [vmem:[%s602 + $0x40] sm:$0xff] %vm11528, %v11481
      %11538 = vst.msk [vmem:[%s602 + $0x48] sm:$0xff] %vm11528, %v11483
      %11539 = vst.msk [vmem:[%s602 + $0x50] sm:$0xff] %vm11528, %v11485
      %11540 = vst.msk [vmem:[%s602 + $0x58] sm:$0xff] %vm11528, %v11487
      %11541 = vst.msk [vmem:[%s602 + $0x60] sm:$0xff] %vm11528, %v11489
      %11542 = vst.msk [vmem:[%s602 + $0x68] sm:$0xff] %vm11528, %v11491
      %11543 = vst.msk [vmem:[%s602 + $0x70] sm:$0xff] %vm11528, %v11493
      %11544 = vst.msk [vmem:[%s602 + $0x78] sm:$0xff] %vm11528, %v11495
      %11545 = vst.msk [vmem:[%s602 + $0x80] sm:$0xff] %vm11528, %v11497
      %11546 = vst.msk [vmem:[%s602 + $0x88] sm:$0xff] %vm11528, %v11499
      %11547 = vst.msk [vmem:[%s602 + $0x90] sm:$0xff] %vm11528, %v11501
      %11548 = vst.msk [vmem:[%s602 + $0x98] sm:$0xff] %vm11528, %v11503
      %11549 = vst.msk [vmem:[%s602 + $0xa0] sm:$0xff] %vm11528, %v11505
      %11550 = vst.msk [vmem:[%s602 + $0xa8] sm:$0xff] %vm11528, %v11507
      %11551 = vst.msk [vmem:[%s602 + $0xb0] sm:$0xff] %vm11528, %v11509
      %11552 = vst.msk [vmem:[%s602 + $0xb8] sm:$0xff] %vm11528, %v11511
      %11553 = vst.msk [vmem:[%s602 + $0xc0] sm:$0xff] %vm11528, %v11513
      %11554 = vst.msk [vmem:[%s602 + $0xc8] sm:$0xff] %vm11528, %v11515
      %11555 = vst.msk [vmem:[%s602 + $0xd0] sm:$0xff] %vm11528, %v11517
      %11556 = vst.msk [vmem:[%s602 + $0xd8] sm:$0xff] %vm11528, %v11519
      %11557 = vst.msk [vmem:[%s602 + $0xe0] sm:$0xff] %vm11528, %v11521
      %11558 = vst.msk [vmem:[%s602 + $0xe8] sm:$0xff] %vm11528, %v11523
      %11559 = vst.msk [vmem:[%s602 + $0xf0] sm:$0xff] %vm11528, %v11525
      %11560 = vst.msk [vmem:[%s602 + $0xf8] sm:$0xff] %vm11528, %v11527
      %p11561 = scmp.lt.s32.totalorder %s30, 1
      %s11562 = scalar_select %p11561, %s30, 1
      %s11563 = smul.addr %s11562, 32
      %s11564 = smul.addr %s11563, 8
      %s11565 = scalar_lea.vmem %s19, %s11564
      // Predicated region
      $region97: #{encoder_decoder_forward.1} parent=95 // pred_check
        %p11566 = pneg %p452
      $region98: #{encoder_decoder_forward.1} parent=95 // pred_check_branch
        %11568 = sbr.rel (%p11566) target = $region100
      $region99: #{encoder_decoder_forward.1} parent=95 // pred_region
        _
      $region100: #{encoder_decoder_forward.1} parent=95 // pred_fallthru
        _
    $region96: #{encoder_decoder_forward.1} parent=5 // pred_fallthru
      _
    %p11569 = scmp.le.s32.totalorder 2, %s25
    // Predicated region
    $region101: #{encoder_decoder_forward.1} parent=5 // pred_check
      %p11570 = pneg %p11569
    $region102: #{encoder_decoder_forward.1} parent=5 // pred_check_branch
      %11572 = sbr.rel (%p11570) target = $region104
    $region103: #{encoder_decoder_forward.1} parent=5 // pred_region
      %s11573 = ssub.s32 %s25, 2
      // Predicated region
      $region105: #{encoder_decoder_forward.1} parent=103 // pred_check
        %p11574 = pneg %p458
      $region106: #{encoder_decoder_forward.1} parent=103 // pred_check_branch
        %11576 = sbr.rel (%p11574) target = $region108
      $region107: #{encoder_decoder_forward.1} parent=103 // pred_region
        %p11577 = scmp.lt.s32.totalorder %s31, 1
        %s11578 = scalar_select %p11577, %s31, 1
        %s11579 = smul.addr %s11578, 32
        %s11580 = smul.addr %s11579, 8
        %s11581 = scalar_lea.vmem %s19, %s11580
      $region108: #{encoder_decoder_forward.1} parent=103 // pred_fallthru
        _
    $region104: #{encoder_decoder_forward.1} parent=5 // pred_fallthru
      _
  $region6: #{encoder_decoder_forward.1} parent=0 // loop_footer
    %s29 = sadd.s32 1, %s25
  $region7: #{encoder_decoder_forward.1} parent=0 // loop_footer_branch
    %24 = sbr.rel target = $region3
  $region8: #{encoder_decoder_forward.1} parent=0 // loop_exit
    _

</llo_original>
